<compile_context>
chip_gen: v5e
topology: v5e:2x2
jax: 0.10.0
libtpu: 0.0.40
codegen_flags: <defaults>
</compile_context>

<pallas_src>
import functools

import jax
import jax.numpy as jnp
from jax import lax
from jax.experimental import pallas as pl
from jax.experimental.pallas import tpu as pltpu


# ----------------------------------------------------------------------------
# Trace-time (hoisted) weight preprocessing: conv / deconv as dense matrices
# acting on NCHW-flattened activations, plus 128-lane padding helpers.
# ----------------------------------------------------------------------------
def _round_up(n, m=128):
    return -(-n // m) * m


def _pad2d(mat, rows, cols):
    r, c = mat.shape
    return jnp.pad(mat, ((0, rows - r), (0, cols - c)))


def _pad1d(vec, n):
    return jnp.pad(vec, (0, n - vec.shape[0]))


def _conv2d_as_matrix(w, ih, iw):
    """PyTorch Conv2d weight (Cout, Cin, k, k), stride 1, valid padding
    -> matrix (Cin*ih*iw, Cout*oh*ow) s.t. out_flat = in_flat @ M."""
    cout, cin, k, _ = w.shape
    basis = jnp.eye(cin * ih * iw, dtype=jnp.float32).reshape(
        cin * ih * iw, cin, ih, iw)
    out = jax.lax.conv_general_dilated(
        basis, w.astype(jnp.float32), window_strides=(1, 1), padding="VALID",
        dimension_numbers=("NCHW", "OIHW", "NCHW"))
    return out.reshape(cin * ih * iw, -1)


def _deconv2d_as_matrix(w_t, ih, iw):
    """PyTorch ConvTranspose2d weight (Cin, Cout, k, k), stride 1, no padding
    == full correlation with spatially flipped, channel-swapped kernel."""
    cin, cout, k, _ = w_t.shape
    w_eq = jnp.flip(w_t, axis=(-2, -1)).transpose(1, 0, 2, 3)   # (Cout,Cin,k,k)
    basis = jnp.eye(cin * ih * iw, dtype=jnp.float32).reshape(
        cin * ih * iw, cin, ih, iw)
    out = jax.lax.conv_general_dilated(
        basis, w_eq.astype(jnp.float32), window_strides=(1, 1),
        padding=[(k - 1, k - 1), (k - 1, k - 1)],
        dimension_numbers=("NCHW", "OIHW", "NCHW"))
    return out.reshape(cin * ih * iw, -1)


# ----------------------------------------------------------------------------
# The single fused kernel: whole network + whole time recurrence, no grid.
# ----------------------------------------------------------------------------
def _sae_kernel(i1_ref,                               # (T, B, d_c1_p) f32
                w2, b2, wfi, bfi, wfo, bfo, wd2, bd2, wr, br,
                spk_rec_ref, spk_out_ref,
                *, beta, threshold):
    T = i1_ref.shape[0]
    B = i1_ref.shape[1]

    def lif(curr, mem_prev):
        # snn.Leaky, reset_mechanism="subtract":
        #   reset from PREVIOUS membrane, fire (strict >) from NEW membrane.
        reset = (mem_prev > threshold).astype(jnp.float32)
        mem_new = beta * mem_prev + curr - reset * threshold
        return mem_new > threshold, mem_new            # bool spikes, f32 mem

    def layer(spk_bf16, w_ref, b_ref, mem_prev):
        # bf16 MXU operands (spikes are exactly 0/1 -> lossless),
        # f32 accumulation + f32 LIF math (v5e-safe).
        curr = jnp.dot(spk_bf16, w_ref[...],
                       preferred_element_type=jnp.float32) + b_ref[...]
        return lif(curr, mem_prev)

    def step(t, mems):
        m_c1, m_c2, m_r, m_o, m_d2, m_rc = mems
        s_c1, m_c1 = lif(i1_ref[t], m_c1)                          # conv1 LIF
        s_c2, m_c2 = layer(s_c1.astype(jnp.bfloat16), w2, b2, m_c2)   # conv2
        s_r,  m_r  = layer(s_c2.astype(jnp.bfloat16), wfi, bfi, m_r)  # ff_in
        s_o,  m_o  = layer(s_r.astype(jnp.bfloat16), wfo, bfo, m_o)   # ff_out
        s_d2, m_d2 = layer(s_o.astype(jnp.bfloat16), wd2, bd2, m_d2)  # deconv2
        s_rc, m_rc = layer(s_d2.astype(jnp.bfloat16), wr, br, m_rc)   # recon
        spk_rec_ref[t] = s_r.astype(jnp.float32)
        spk_out_ref[t] = s_rc.astype(jnp.float32)
        return (m_c1, m_c2, m_r, m_o, m_d2, m_rc)

    mems0 = (jnp.zeros((B, i1_ref.shape[2]), jnp.float32),  # mem_conv1
             jnp.zeros(b2.shape, jnp.float32),              # mem_conv2
             jnp.zeros(bfi.shape, jnp.float32),             # mem_rec1
             jnp.zeros(bfo.shape, jnp.float32),             # mem_out
             jnp.zeros(bd2.shape, jnp.float32),             # mem_deconv2
             jnp.zeros(br.shape, jnp.float32))              # mem_recon
    lax.fori_loop(0, T, step, mems0)


# ----------------------------------------------------------------------------
# Forward wrapper.
# ----------------------------------------------------------------------------
def sae_forward(x, params, beta, threshold, cp):
    T, B, depth, H, W = x.shape
    C1, C2 = cp["channels_1"], cp["channels_2"]
    f1, f2 = cp["filter_1"], cp["filter_2"]
    h1 = H - f1 + 1
    h2 = h1 - f2 + 1
    d_in = depth * H * W
    d_c1 = C1 * h1 * h1
    n_c2 = C2 * h2 * h2
    n_rec = params["ff_in_w"].shape[0]
    d_out = depth * H * W

    # 128-lane padded feature dims (padding is zero weights / zero bias, so the
    # padded neurons never spike and contribute nothing downstream).
    d_c1_p = _round_up(d_c1)
    n_c2_p = _round_up(n_c2)
    n_rec_p = _round_up(n_rec)
    d_out_p = _round_up(d_out)

    x = x.astype(jnp.float32)

    # ---- hoisted, once-per-call weight preprocessing (outside the kernel) ----
    W1 = _pad2d(_conv2d_as_matrix(params["conv1_w"], H, W), d_in, d_c1_p)
    b1 = _pad1d(jnp.repeat(params["conv1_b"], h1 * h1), d_c1_p)
    W2 = _pad2d(_conv2d_as_matrix(params["conv2_w"], h1, h1), d_c1_p, n_c2_p)
    b2 = _pad1d(jnp.repeat(params["conv2_b"], h2 * h2), n_c2_p)
    Wfi = _pad2d(params["ff_in_w"].T.astype(jnp.float32), n_c2_p, n_rec_p)
    bfi = _pad1d(params["ff_in_b"].astype(jnp.float32), n_rec_p)
    Wfo = _pad2d(params["ff_out_w"].T.astype(jnp.float32), n_rec_p, n_c2_p)
    bfo = _pad1d(params["ff_out_b"].astype(jnp.float32), n_c2_p)
    Wd2 = _pad2d(_deconv2d_as_matrix(params["deconv2_w"], h2, h2),
                 n_c2_p, d_c1_p)
    bd2 = _pad1d(jnp.repeat(params["deconv2_b"], h1 * h1), d_c1_p)
    Wr = _pad2d(_deconv2d_as_matrix(params["recon_w"], h1, h1), d_c1_p, d_out_p)
    br = _pad1d(jnp.repeat(params["recon_b"], H * W), d_out_p)

    # ---- layer-1 currents for ALL timesteps: one big-M GEMM (M = T*B) ----
    x2d = x.reshape(T * B, d_in).astype(jnp.bfloat16)
    i1 = (jnp.dot(x2d, W1.astype(jnp.bfloat16),
                  preferred_element_type=jnp.float32)
          + b1[None, :].astype(jnp.float32)).reshape(T, B, d_c1_p)

    weights = [w.astype(jnp.bfloat16) for w in (W2, Wfi, Wfo, Wd2, Wr)]
    biases = [jnp.tile(b.astype(jnp.float32)[None, :], (B, 1))  # (B, N) f32
              for b in (b2, bfi, bfo, bd2, br)]

    args = [i1]
    for w, b in zip(weights, biases):
        args += [w, b]

    vmem = pl.BlockSpec(memory_space=pltpu.MemorySpace.VMEM)
    kernel = functools.partial(_sae_kernel, beta=float(beta),
                               threshold=float(threshold))

    # Resident VMEM at this config: ~3.4 MiB of bf16 weights + ~0.1 MiB of
    # currents/biases/outputs -- comfortably inside every generation's limit.
    # TODO(synk): for non-toy spatial sizes the dense conv matrices outgrow
    #             VMEM (first on v7x, 64 MiB): K-block the big GEMMs over a
    #             reduction grid axis (or lower conv1/recon as real convs) and
    #             set vmem_limit_bytes explicitly.
    spk_rec_p, spk_out_p = pl.pallas_call(
        kernel,
        out_shape=(jax.ShapeDtypeStruct((T, B, n_rec_p), jnp.float32),
                   jax.ShapeDtypeStruct((T, B, d_out_p), jnp.float32)),
        in_specs=[vmem] * len(args),
        out_specs=(vmem, vmem),
    )(*args)

    spk_recs = spk_rec_p[:, :, :n_rec]
    spk_outs = spk_out_p[:, :, :d_out].reshape(T, B, depth, H, W)
    return spk_recs, spk_outs


# ----------------------------------------------------------------------------
if __name__ == "__main__":
    key = jax.random.PRNGKey(0)

    # process_params(): size=16, f1=f2=3 -> conv1_size=14, conv2_size=12,
    # num_conv2 = 4*12*12 = 576
    T, B, depth, H = 8, 2, 2, 16
    C1, C2, f1, f2 = 4, 4, 3, 3
    num_rec = 32
    h1 = H - f1 + 1
    h2 = h1 - f2 + 1
    num_conv2 = C2 * h2 * h2

    dt, tau_m, v_th = 1.0, 10.0, 0.5
    beta = float(jnp.exp(-dt / tau_m))      # netp['beta'] = exp(-dt/tau_m)
    threshold = v_th

    keys = jax.random.split(key, 13)
    init = lambda k, shape, s: s * jax.random.normal(k, shape, jnp.float32)
    params = dict(
        conv1_w=init(keys[0], (C1, depth, f1, f1), 0.2),
        conv1_b=init(keys[1], (C1,), 0.2),
        conv2_w=init(keys[2], (C2, C1, f2, f2), 0.2),
        conv2_b=init(keys[3], (C2,), 0.2),
        ff_in_w=init(keys[4], (num_rec, num_conv2), 0.05),
        ff_in_b=init(keys[5], (num_rec,), 0.05),
        ff_out_w=init(keys[6], (num_conv2, num_rec), 0.2),
        ff_out_b=init(keys[7], (num_conv2,), 0.2),
        deconv2_w=init(keys[8], (C2, C1, f2, f2), 0.2),  # ConvTranspose2d: (Cin,Cout,k,k)
        deconv2_b=init(keys[9], (C1,), 0.2),
        recon_w=init(keys[10], (C1, depth, f1, f1), 0.2),
        recon_b=init(keys[11], (depth,), 0.2),
    )
    cp = dict(channels_1=C1, channels_2=C2, filter_1=f1, filter_2=f2)

    x = jax.random.uniform(keys[12], (T, B, depth, H, H), jnp.float32)

    spk_recs, spk_outs = sae_forward(x, params, beta, threshold, cp)
    jax.block_until_ready((spk_recs, spk_outs))

    assert spk_recs.shape == (T, B, num_rec)
    assert spk_outs.shape == (T, B, depth, H, H)
    # spikes are strictly binary
    assert bool(jnp.all((spk_recs == 0.0) | (spk_recs == 1.0)))
    assert bool(jnp.all((spk_outs == 0.0) | (spk_outs == 1.0)))
    print("KERNEL_OK")
</pallas_src>

<mosaic_0001>
module attributes {stable_mosaic.version = 11 : i64} {
  func.func @_sae_kernel(%arg0: memref<8x2x896xf32, #tpu.memory_space<vmem>>, %arg1: memref<896x640xbf16, #tpu.memory_space<vmem>>, %arg2: memref<2x640xf32, #tpu.memory_space<vmem>>, %arg3: memref<640x128xbf16, #tpu.memory_space<vmem>>, %arg4: memref<2x128xf32, #tpu.memory_space<vmem>>, %arg5: memref<128x640xbf16, #tpu.memory_space<vmem>>, %arg6: memref<2x640xf32, #tpu.memory_space<vmem>>, %arg7: memref<640x896xbf16, #tpu.memory_space<vmem>>, %arg8: memref<2x896xf32, #tpu.memory_space<vmem>>, %arg9: memref<896x512xbf16, #tpu.memory_space<vmem>>, %arg10: memref<2x512xf32, #tpu.memory_space<vmem>>, %arg11: memref<8x2x128xf32, #tpu.memory_space<vmem>>, %arg12: memref<8x2x512xf32, #tpu.memory_space<vmem>>) attributes {dimension_semantics = [], scalar_prefetch = 0 : i64, scratch_operands = 0 : i64, tpu.core_type = #tpu.core_type<tc>} {
    %cst = arith.constant 0.000000e+00 : f32
    %0 = vector.broadcast %cst : f32 to vector<2x896xf32>
    %cst_0 = arith.constant 0.000000e+00 : f32
    %1 = vector.broadcast %cst_0 : f32 to vector<2x640xf32>
    %cst_1 = arith.constant 0.000000e+00 : f32
    %2 = vector.broadcast %cst_1 : f32 to vector<2x128xf32>
    %cst_2 = arith.constant 0.000000e+00 : f32
    %3 = vector.broadcast %cst_2 : f32 to vector<2x640xf32>
    %cst_3 = arith.constant 0.000000e+00 : f32
    %4 = vector.broadcast %cst_3 : f32 to vector<2x896xf32>
    %cst_4 = arith.constant 0.000000e+00 : f32
    %5 = vector.broadcast %cst_4 : f32 to vector<2x512xf32>
    %c0_i32 = arith.constant 0 : i32
    %c8_i32 = arith.constant 8 : i32
    %6 = arith.addi %c0_i32, %c8_i32 : i32
    %c1_i32 = arith.constant 1 : i32
    %7:6 = scf.for %arg13 = %c0_i32 to %6 step %c1_i32 iter_args(%arg14 = %0, %arg15 = %1, %arg16 = %2, %arg17 = %3, %arg18 = %4, %arg19 = %5) -> (vector<2x896xf32>, vector<2x640xf32>, vector<2x128xf32>, vector<2x640xf32>, vector<2x896xf32>, vector<2x512xf32>)  : i32 {
      %8 = arith.index_cast %arg13 : i32 to index
      %c0 = arith.constant 0 : index
      %c0_6 = arith.constant 0 : index
      %9 = vector.load %arg0[%8, %c0, %c0_6] : memref<8x2x896xf32, #tpu.memory_space<vmem>>, vector<1x2x896xf32>
      %10 = vector.shape_cast %9 : vector<1x2x896xf32> to vector<2x896xf32>
      %cst_7 = arith.constant 5.000000e-01 : f32
      %11 = vector.broadcast %cst_7 : f32 to vector<2x896xf32>
      %12 = arith.cmpf ogt, %arg14, %11 : vector<2x896xf32>
      %13 = arith.extui %12 : vector<2x896xi1> to vector<2x896xi32>
      %14 = arith.sitofp %13 : vector<2x896xi32> to vector<2x896xf32>
      %cst_8 = arith.constant 0.904837429 : f32
      %15 = vector.broadcast %cst_8 : f32 to vector<2x896xf32>
      %16 = arith.mulf %15, %arg14 : vector<2x896xf32>
      %17 = arith.addf %16, %10 : vector<2x896xf32>
      %cst_9 = arith.constant 5.000000e-01 : f32
      %18 = vector.broadcast %cst_9 : f32 to vector<2x896xf32>
      %19 = arith.mulf %14, %18 : vector<2x896xf32>
      %20 = arith.subf %17, %19 : vector<2x896xf32>
      %cst_10 = arith.constant 5.000000e-01 : f32
      %21 = vector.broadcast %cst_10 : f32 to vector<2x896xf32>
      %22 = arith.cmpf ogt, %20, %21 : vector<2x896xf32>
      %23 = arith.extui %22 : vector<2x896xi1> to vector<2x896xi32>
      %24 = arith.sitofp %23 : vector<2x896xi32> to vector<2x896xf32>
      %25 = arith.truncf %24 : vector<2x896xf32> to vector<2x896xbf16>
      %c0_11 = arith.constant 0 : index
      %c0_12 = arith.constant 0 : index
      %26 = vector.load %arg1[%c0_11, %c0_12] : memref<896x640xbf16, #tpu.memory_space<vmem>>, vector<896x640xbf16>
      %cst_13 = arith.constant dense<0.000000e+00> : vector<2x640xf32>
      %27 = tpu.matmul %25, %26, %cst_13 {dimension_numbers = #tpu.dot_dimension_numbers<[1], [0], [0], [1], [0, 0, 1, 1], [], []>} : vector<2x896xbf16>, vector<896x640xbf16>, vector<2x640xf32> -> vector<2x640xf32>
      %c0_14 = arith.constant 0 : index
      %c0_15 = arith.constant 0 : index
      %28 = vector.load %arg2[%c0_14, %c0_15] : memref<2x640xf32, #tpu.memory_space<vmem>>, vector<2x640xf32>
      %29 = arith.addf %27, %28 : vector<2x640xf32>
      %cst_16 = arith.constant 5.000000e-01 : f32
      %30 = vector.broadcast %cst_16 : f32 to vector<2x640xf32>
      %31 = arith.cmpf ogt, %arg15, %30 : vector<2x640xf32>
      %32 = arith.extui %31 : vector<2x640xi1> to vector<2x640xi32>
      %33 = arith.sitofp %32 : vector<2x640xi32> to vector<2x640xf32>
      %cst_17 = arith.constant 0.904837429 : f32
      %34 = vector.broadcast %cst_17 : f32 to vector<2x640xf32>
      %35 = arith.mulf %34, %arg15 : vector<2x640xf32>
      %36 = arith.addf %35, %29 : vector<2x640xf32>
      %cst_18 = arith.constant 5.000000e-01 : f32
      %37 = vector.broadcast %cst_18 : f32 to vector<2x640xf32>
      %38 = arith.mulf %33, %37 : vector<2x640xf32>
      %39 = arith.subf %36, %38 : vector<2x640xf32>
      %cst_19 = arith.constant 5.000000e-01 : f32
      %40 = vector.broadcast %cst_19 : f32 to vector<2x640xf32>
      %41 = arith.cmpf ogt, %39, %40 : vector<2x640xf32>
      %42 = arith.extui %41 : vector<2x640xi1> to vector<2x640xi32>
      %43 = arith.sitofp %42 : vector<2x640xi32> to vector<2x640xf32>
      %44 = arith.truncf %43 : vector<2x640xf32> to vector<2x640xbf16>
      %c0_20 = arith.constant 0 : index
      %c0_21 = arith.constant 0 : index
      %45 = vector.load %arg3[%c0_20, %c0_21] : memref<640x128xbf16, #tpu.memory_space<vmem>>, vector<640x128xbf16>
      %cst_22 = arith.constant dense<0.000000e+00> : vector<2x128xf32>
      %46 = tpu.matmul %44, %45, %cst_22 {dimension_numbers = #tpu.dot_dimension_numbers<[1], [0], [0], [1], [0, 0, 1, 1], [], []>} : vector<2x640xbf16>, vector<640x128xbf16>, vector<2x128xf32> -> vector<2x128xf32>
      %c0_23 = arith.constant 0 : index
      %c0_24 = arith.constant 0 : index
      %47 = vector.load %arg4[%c0_23, %c0_24] : memref<2x128xf32, #tpu.memory_space<vmem>>, vector<2x128xf32>
      %48 = arith.addf %46, %47 : vector<2x128xf32>
      %cst_25 = arith.constant 5.000000e-01 : f32
      %49 = vector.broadcast %cst_25 : f32 to vector<2x128xf32>
      %50 = arith.cmpf ogt, %arg16, %49 : vector<2x128xf32>
      %51 = arith.extui %50 : vector<2x128xi1> to vector<2x128xi32>
      %52 = arith.sitofp %51 : vector<2x128xi32> to vector<2x128xf32>
      %cst_26 = arith.constant 0.904837429 : f32
      %53 = vector.broadcast %cst_26 : f32 to vector<2x128xf32>
      %54 = arith.mulf %53, %arg16 : vector<2x128xf32>
      %55 = arith.addf %54, %48 : vector<2x128xf32>
      %cst_27 = arith.constant 5.000000e-01 : f32
      %56 = vector.broadcast %cst_27 : f32 to vector<2x128xf32>
      %57 = arith.mulf %52, %56 : vector<2x128xf32>
      %58 = arith.subf %55, %57 : vector<2x128xf32>
      %cst_28 = arith.constant 5.000000e-01 : f32
      %59 = vector.broadcast %cst_28 : f32 to vector<2x128xf32>
      %60 = arith.cmpf ogt, %58, %59 : vector<2x128xf32>
      %61 = arith.extui %60 : vector<2x128xi1> to vector<2x128xi32>
      %62 = arith.sitofp %61 : vector<2x128xi32> to vector<2x128xf32>
      %63 = arith.truncf %62 : vector<2x128xf32> to vector<2x128xbf16>
      %c0_29 = arith.constant 0 : index
      %c0_30 = arith.constant 0 : index
      %64 = vector.load %arg5[%c0_29, %c0_30] : memref<128x640xbf16, #tpu.memory_space<vmem>>, vector<128x640xbf16>
      %cst_31 = arith.constant dense<0.000000e+00> : vector<2x640xf32>
      %65 = tpu.matmul %63, %64, %cst_31 {dimension_numbers = #tpu.dot_dimension_numbers<[1], [0], [0], [1], [0, 0, 1, 1], [], []>} : vector<2x128xbf16>, vector<128x640xbf16>, vector<2x640xf32> -> vector<2x640xf32>
      %c0_32 = arith.constant 0 : index
      %c0_33 = arith.constant 0 : index
      %66 = vector.load %arg6[%c0_32, %c0_33] : memref<2x640xf32, #tpu.memory_space<vmem>>, vector<2x640xf32>
      %67 = arith.addf %65, %66 : vector<2x640xf32>
      %cst_34 = arith.constant 5.000000e-01 : f32
      %68 = vector.broadcast %cst_34 : f32 to vector<2x640xf32>
      %69 = arith.cmpf ogt, %arg17, %68 : vector<2x640xf32>
      %70 = arith.extui %69 : vector<2x640xi1> to vector<2x640xi32>
      %71 = arith.sitofp %70 : vector<2x640xi32> to vector<2x640xf32>
      %cst_35 = arith.constant 0.904837429 : f32
      %72 = vector.broadcast %cst_35 : f32 to vector<2x640xf32>
      %73 = arith.mulf %72, %arg17 : vector<2x640xf32>
      %74 = arith.addf %73, %67 : vector<2x640xf32>
      %cst_36 = arith.constant 5.000000e-01 : f32
      %75 = vector.broadcast %cst_36 : f32 to vector<2x640xf32>
      %76 = arith.mulf %71, %75 : vector<2x640xf32>
      %77 = arith.subf %74, %76 : vector<2x640xf32>
      %cst_37 = arith.constant 5.000000e-01 : f32
      %78 = vector.broadcast %cst_37 : f32 to vector<2x640xf32>
      %79 = arith.cmpf ogt, %77, %78 : vector<2x640xf32>
      %80 = arith.extui %79 : vector<2x640xi1> to vector<2x640xi32>
      %81 = arith.sitofp %80 : vector<2x640xi32> to vector<2x640xf32>
      %82 = arith.truncf %81 : vector<2x640xf32> to vector<2x640xbf16>
      %c0_38 = arith.constant 0 : index
      %c0_39 = arith.constant 0 : index
      %83 = vector.load %arg7[%c0_38, %c0_39] : memref<640x896xbf16, #tpu.memory_space<vmem>>, vector<640x896xbf16>
      %cst_40 = arith.constant dense<0.000000e+00> : vector<2x896xf32>
      %84 = tpu.matmul %82, %83, %cst_40 {dimension_numbers = #tpu.dot_dimension_numbers<[1], [0], [0], [1], [0, 0, 1, 1], [], []>} : vector<2x640xbf16>, vector<640x896xbf16>, vector<2x896xf32> -> vector<2x896xf32>
      %c0_41 = arith.constant 0 : index
      %c0_42 = arith.constant 0 : index
      %85 = vector.load %arg8[%c0_41, %c0_42] : memref<2x896xf32, #tpu.memory_space<vmem>>, vector<2x896xf32>
      %86 = arith.addf %84, %85 : vector<2x896xf32>
      %cst_43 = arith.constant 5.000000e-01 : f32
      %87 = vector.broadcast %cst_43 : f32 to vector<2x896xf32>
      %88 = arith.cmpf ogt, %arg18, %87 : vector<2x896xf32>
      %89 = arith.extui %88 : vector<2x896xi1> to vector<2x896xi32>
      %90 = arith.sitofp %89 : vector<2x896xi32> to vector<2x896xf32>
      %cst_44 = arith.constant 0.904837429 : f32
      %91 = vector.broadcast %cst_44 : f32 to vector<2x896xf32>
      %92 = arith.mulf %91, %arg18 : vector<2x896xf32>
      %93 = arith.addf %92, %86 : vector<2x896xf32>
      %cst_45 = arith.constant 5.000000e-01 : f32
      %94 = vector.broadcast %cst_45 : f32 to vector<2x896xf32>
      %95 = arith.mulf %90, %94 : vector<2x896xf32>
      %96 = arith.subf %93, %95 : vector<2x896xf32>
      %cst_46 = arith.constant 5.000000e-01 : f32
      %97 = vector.broadcast %cst_46 : f32 to vector<2x896xf32>
      %98 = arith.cmpf ogt, %96, %97 : vector<2x896xf32>
      %99 = arith.extui %98 : vector<2x896xi1> to vector<2x896xi32>
      %100 = arith.sitofp %99 : vector<2x896xi32> to vector<2x896xf32>
      %101 = arith.truncf %100 : vector<2x896xf32> to vector<2x896xbf16>
      %c0_47 = arith.constant 0 : index
      %c0_48 = arith.constant 0 : index
      %102 = vector.load %arg9[%c0_47, %c0_48] : memref<896x512xbf16, #tpu.memory_space<vmem>>, vector<896x512xbf16>
      %cst_49 = arith.constant dense<0.000000e+00> : vector<2x512xf32>
      %103 = tpu.matmul %101, %102, %cst_49 {dimension_numbers = #tpu.dot_dimension_numbers<[1], [0], [0], [1], [0, 0, 1, 1], [], []>} : vector<2x896xbf16>, vector<896x512xbf16>, vector<2x512xf32> -> vector<2x512xf32>
      %c0_50 = arith.constant 0 : index
      %c0_51 = arith.constant 0 : index
      %104 = vector.load %arg10[%c0_50, %c0_51] : memref<2x512xf32, #tpu.memory_space<vmem>>, vector<2x512xf32>
      %105 = arith.addf %103, %104 : vector<2x512xf32>
      %cst_52 = arith.constant 5.000000e-01 : f32
      %106 = vector.broadcast %cst_52 : f32 to vector<2x512xf32>
      %107 = arith.cmpf ogt, %arg19, %106 : vector<2x512xf32>
      %108 = arith.extui %107 : vector<2x512xi1> to vector<2x512xi32>
      %109 = arith.sitofp %108 : vector<2x512xi32> to vector<2x512xf32>
      %cst_53 = arith.constant 0.904837429 : f32
      %110 = vector.broadcast %cst_53 : f32 to vector<2x512xf32>
      %111 = arith.mulf %110, %arg19 : vector<2x512xf32>
      %112 = arith.addf %111, %105 : vector<2x512xf32>
      %cst_54 = arith.constant 5.000000e-01 : f32
      %113 = vector.broadcast %cst_54 : f32 to vector<2x512xf32>
      %114 = arith.mulf %109, %113 : vector<2x512xf32>
      %115 = arith.subf %112, %114 : vector<2x512xf32>
      %cst_55 = arith.constant 5.000000e-01 : f32
      %116 = vector.broadcast %cst_55 : f32 to vector<2x512xf32>
      %117 = arith.cmpf ogt, %115, %116 : vector<2x512xf32>
      %118 = arith.extui %60 : vector<2x128xi1> to vector<2x128xi32>
      %119 = arith.sitofp %118 : vector<2x128xi32> to vector<2x128xf32>
      %120 = arith.index_cast %arg13 : i32 to index
      %c0_56 = arith.constant 0 : index
      %c0_57 = arith.constant 0 : index
      %121 = vector.load %arg11[%120, %c0_56, %c0_57] : memref<8x2x128xf32, #tpu.memory_space<vmem>>, vector<1x2x128xf32>
      %122 = vector.shape_cast %121 : vector<1x2x128xf32> to vector<2x128xf32>
      %123 = vector.shape_cast %119 : vector<2x128xf32> to vector<1x2x128xf32>
      tpu.vector_store %arg11[%120, %c0_56, %c0_57], %123 {strides = array<i32>} : memref<8x2x128xf32, #tpu.memory_space<vmem>>, vector<1x2x128xf32>,
      %124 = arith.extui %117 : vector<2x512xi1> to vector<2x512xi32>
      %125 = arith.sitofp %124 : vector<2x512xi32> to vector<2x512xf32>
      %126 = arith.index_cast %arg13 : i32 to index
      %c0_58 = arith.constant 0 : index
      %c0_59 = arith.constant 0 : index
      %127 = vector.load %arg12[%126, %c0_58, %c0_59] : memref<8x2x512xf32, #tpu.memory_space<vmem>>, vector<1x2x512xf32>
      %128 = vector.shape_cast %127 : vector<1x2x512xf32> to vector<2x512xf32>
      %129 = vector.shape_cast %125 : vector<2x512xf32> to vector<1x2x512xf32>
      tpu.vector_store %arg12[%126, %c0_58, %c0_59], %129 {strides = array<i32>} : memref<8x2x512xf32, #tpu.memory_space<vmem>>, vector<1x2x512xf32>,
      scf.yield %20, %39, %58, %77, %96, %115 : vector<2x896xf32>, vector<2x640xf32>, vector<2x128xf32>, vector<2x640xf32>, vector<2x896xf32>, vector<2x512xf32>
    }
    %c8_i32_5 = arith.constant 8 : i32
    return
  }
}

</mosaic_0001>

<llo_original>
// kernel: tpu_custom_call.1
$region0: #{tpu_custom_call.1}
  #allocation0 [shape = 'u32[]', space=smem, size = 0x4, offset = 0x4, fixed_abs, tag = 'smem constant byte address 0x4 - core index']
  #allocation1 [shape = 'u32[72,128]{1,0:T(1,128)}', space=vmem, size = 0x9000, scoped, tag = 'internal scratch']
  %s0 = inlined_call_operand.hbm [shape: f32[8,2,896], index: 0, kind: input, shape index: {}]
  %s1 = inlined_call_operand.hbm [shape: bf16[896,640], index: 1, kind: input, shape index: {}]
  %s2 = inlined_call_operand.hbm [shape: f32[2,640], index: 2, kind: input, shape index: {}]
  %s3 = inlined_call_operand.hbm [shape: bf16[640,128], index: 3, kind: input, shape index: {}]
  %s4 = inlined_call_operand.hbm [shape: f32[2,128], index: 4, kind: input, shape index: {}]
  %s5 = inlined_call_operand.hbm [shape: bf16[128,640], index: 5, kind: input, shape index: {}]
  %s6 = inlined_call_operand.hbm [shape: f32[2,640], index: 6, kind: input, shape index: {}]
  %s7 = inlined_call_operand.hbm [shape: bf16[640,896], index: 7, kind: input, shape index: {}]
  %s8 = inlined_call_operand.hbm [shape: f32[2,896], index: 8, kind: input, shape index: {}]
  %s9 = inlined_call_operand.hbm [shape: bf16[896,512], index: 9, kind: input, shape index: {}]
  %s10 = inlined_call_operand.hbm [shape: f32[2,512], index: 10, kind: input, shape index: {}]
  %s11 = inlined_call_operand.hbm [shape: f32[8,2,128], index: 11, kind: output, shape index: {0}]
  %s12 = inlined_call_operand.hbm [shape: f32[8,2,512], index: 12, kind: output, shape index: {1}]
  %13 = xla_tuple %s11, %s12
  %s14 = sld [smem:[#allocation0]]
  $region113: #{tpu_custom_call.1} parent=0
    _
  %s16 = ssub.s32 1, %s14
  %s17 = scalar_select 0, %s16, %s14
  $region1: #{tpu_custom_call.1} parent=0
    #allocation2 [shape = 'u8[57344]{0}', space=vmem, size = 0xe000, scoped, tag = 'input window, operand 0, single buffered']
    #allocation3 [shape = 's32[1]{0}', space=sflag, size = 0x4, scoped, tag = 'scoped memory for tpu_custom_call.1']
    #allocation4 [shape = 's32[1]{0}', space=sflag, size = 0x4, scoped, tag = 'scoped memory for tpu_custom_call.1']
    #allocation5 [shape = 'u8[1146880]{0}', space=vmem, size = 0x118000, scoped, tag = 'input window, operand 1, single buffered']
    #allocation6 [shape = 's32[1]{0}', space=sflag, size = 0x4, scoped, tag = 'scoped memory for tpu_custom_call.1']
    #allocation7 [shape = 'u8[5120]{0}', space=vmem, size = 0x1400, scoped, tag = 'input window, operand 2, single buffered']
    #allocation8 [shape = 'u8[163840]{0}', space=vmem, size = 0x28000, scoped, tag = 'input window, operand 3, single buffered']
    #allocation9 [shape = 's32[1]{0}', space=sflag, size = 0x4, scoped, tag = 'scoped memory for tpu_custom_call.1']
    #allocation10 [shape = 'u8[1024]{0}', space=vmem, size = 0x400, scoped, tag = 'input window, operand 4, single buffered']
    #allocation11 [shape = 'u8[163840]{0}', space=vmem, size = 0x28000, scoped, tag = 'input window, operand 5, single buffered']
    #allocation12 [shape = 's32[1]{0}', space=sflag, size = 0x4, scoped, tag = 'scoped memory for tpu_custom_call.1']
    #allocation13 [shape = 'u8[5120]{0}', space=vmem, size = 0x1400, scoped, tag = 'input window, operand 6, single buffered']
    #allocation14 [shape = 'u8[1146880]{0}', space=vmem, size = 0x118000, scoped, tag = 'input window, operand 7, single buffered']
    #allocation15 [shape = 's32[1]{0}', space=sflag, size = 0x4, scoped, tag = 'scoped memory for tpu_custom_call.1']
    #allocation16 [shape = 'u8[7168]{0}', space=vmem, size = 0x1c00, scoped, tag = 'input window, operand 8, single buffered']
    #allocation17 [shape = 'u8[917504]{0}', space=vmem, size = 0xe0000, scoped, tag = 'input window, operand 9, single buffered']
    #allocation18 [shape = 's32[1]{0}', space=sflag, size = 0x4, scoped, tag = 'scoped memory for tpu_custom_call.1']
    #allocation19 [shape = 'u8[4096]{0}', space=vmem, size = 0x1000, scoped, tag = 'input window, operand 10, single buffered']
    #allocation20 [shape = 'u8[8192]{0}', space=vmem, size = 0x2000, scoped, tag = 'output window, operand 0, single buffered']
    #allocation21 [shape = 'u8[32768]{0}', space=vmem, size = 0x8000, scoped, tag = 'output window, operand 1, single buffered']
    #allocation22 [shape = 's32[1]{0}', space=sflag, size = 0x4, scoped, tag = 'scoped memory for tpu_custom_call.1']
    %18 = vsyncpa [#allocation3], 0
    %19 = vsyncpa [#allocation6], 0
    %20 = vsyncpa [#allocation9], 0
    %21 = vsyncpa [#allocation12], 0
    %22 = vsyncpa [#allocation15], 0
    %23 = vsyncpa [#allocation18], 0
    %24 = vsyncpa [#allocation4], 0
    %25 = vsyncpa [#allocation22], 0
    // Predicated region
    $region2: #{tpu_custom_call.1} parent=1 // pred_check
      _
    $region3: #{tpu_custom_call.1} parent=1 // pred_check_branch
      %27 = sbr.rel (0) target = $region5
    $region4: #{tpu_custom_call.1} parent=1 // pred_region
      %29 = vsyncadd [#allocation3], 0
      %s30 = sshll.u32 %s0, 4
      %s31 = int_to_ptr.hbm [resolvable:$true] %s30
      %s32 = sshll.u32 [#allocation2], 4
      %s33 = int_to_ptr.vmem [resolvable:$true] %s32
      %38 = dma.hbm_to_vmem [thread:$0]  %s31, 1792, %s33, [#allocation3], 224, 224, 14
    $region5: #{tpu_custom_call.1} parent=1 // pred_fallthru
      _
    // Predicated region
    $region6: #{tpu_custom_call.1} parent=1 // pred_check
      _
    $region7: #{tpu_custom_call.1} parent=1 // pred_check_branch
      %40 = sbr.rel (0) target = $region9
    $region8: #{tpu_custom_call.1} parent=1 // pred_region
      %42 = vsyncadd [#allocation6], 0
      %s43 = sshll.u32 %s1, 4
      %s44 = int_to_ptr.hbm [resolvable:$true] %s43
      %s45 = sshll.u32 [#allocation5], 4
      %s46 = int_to_ptr.vmem [resolvable:$true] %s45
      %51 = dma.hbm_to_vmem [thread:$0]  %s44, 35840, %s46, [#allocation6], 320, 320, 20
    $region9: #{tpu_custom_call.1} parent=1 // pred_fallthru
      _
    // Predicated region
    $region10: #{tpu_custom_call.1} parent=1 // pred_check
      _
    $region11: #{tpu_custom_call.1} parent=1 // pred_check_branch
      %53 = sbr.rel (0) target = $region13
    $region12: #{tpu_custom_call.1} parent=1 // pred_region
      %55 = vsyncadd [#allocation6], 0
      %s57 = sshll.u32 %s2, 4
      %s58 = int_to_ptr.hbm [resolvable:$true] %s57
      %s59 = sshll.u32 [#allocation7], 4
      %s60 = int_to_ptr.vmem [resolvable:$true] %s59
      %62 = dma.hbm_to_vmem [thread:$0]  %s58, 160, %s60, [#allocation6]
    $region13: #{tpu_custom_call.1} parent=1 // pred_fallthru
      _
    // Predicated region
    $region14: #{tpu_custom_call.1} parent=1 // pred_check
      _
    $region15: #{tpu_custom_call.1} parent=1 // pred_check_branch
      %64 = sbr.rel (0) target = $region17
    $region16: #{tpu_custom_call.1} parent=1 // pred_region
      %66 = vsyncadd [#allocation9], 0
      %s67 = sshll.u32 %s3, 4
      %s68 = int_to_ptr.hbm [resolvable:$true] %s67
      %s69 = sshll.u32 [#allocation8], 4
      %s70 = int_to_ptr.vmem [resolvable:$true] %s69
      %75 = dma.hbm_to_vmem [thread:$0]  %s68, 5120, %s70, [#allocation9], 64, 64, 4
    $region17: #{tpu_custom_call.1} parent=1 // pred_fallthru
      _
    // Predicated region
    $region18: #{tpu_custom_call.1} parent=1 // pred_check
      _
    $region19: #{tpu_custom_call.1} parent=1 // pred_check_branch
      %77 = sbr.rel (0) target = $region21
    $region20: #{tpu_custom_call.1} parent=1 // pred_region
      %79 = vsyncadd [#allocation9], 0
      %s81 = sshll.u32 %s4, 4
      %s82 = int_to_ptr.hbm [resolvable:$true] %s81
      %s83 = sshll.u32 [#allocation10], 4
      %s84 = int_to_ptr.vmem [resolvable:$true] %s83
      %86 = dma.hbm_to_vmem [thread:$0]  %s82, 32, %s84, [#allocation9]
    $region21: #{tpu_custom_call.1} parent=1 // pred_fallthru
      _
    // Predicated region
    $region22: #{tpu_custom_call.1} parent=1 // pred_check
      _
    $region23: #{tpu_custom_call.1} parent=1 // pred_check_branch
      %88 = sbr.rel (0) target = $region25
    $region24: #{tpu_custom_call.1} parent=1 // pred_region
      %90 = vsyncadd [#allocation12], 0
      %s91 = sshll.u32 %s5, 4
      %s92 = int_to_ptr.hbm [resolvable:$true] %s91
      %s93 = sshll.u32 [#allocation11], 4
      %s94 = int_to_ptr.vmem [resolvable:$true] %s93
      %99 = dma.hbm_to_vmem [thread:$0]  %s92, 5120, %s94, [#allocation12], 320, 320, 20
    $region25: #{tpu_custom_call.1} parent=1 // pred_fallthru
      _
    // Predicated region
    $region26: #{tpu_custom_call.1} parent=1 // pred_check
      _
    $region27: #{tpu_custom_call.1} parent=1 // pred_check_branch
      %101 = sbr.rel (0) target = $region29
    $region28: #{tpu_custom_call.1} parent=1 // pred_region
      %103 = vsyncadd [#allocation12], 0
      %s105 = sshll.u32 %s6, 4
      %s106 = int_to_ptr.hbm [resolvable:$true] %s105
      %s107 = sshll.u32 [#allocation13], 4
      %s108 = int_to_ptr.vmem [resolvable:$true] %s107
      %110 = dma.hbm_to_vmem [thread:$0]  %s106, 160, %s108, [#allocation12]
    $region29: #{tpu_custom_call.1} parent=1 // pred_fallthru
      _
    // Predicated region
    $region30: #{tpu_custom_call.1} parent=1 // pred_check
      _
    $region31: #{tpu_custom_call.1} parent=1 // pred_check_branch
      %112 = sbr.rel (0) target = $region33
    $region32: #{tpu_custom_call.1} parent=1 // pred_region
      %114 = vsyncadd [#allocation15], 0
      %s115 = sshll.u32 %s7, 4
      %s116 = int_to_ptr.hbm [resolvable:$true] %s115
      %s117 = sshll.u32 [#allocation14], 4
      %s118 = int_to_ptr.vmem [resolvable:$true] %s117
      %123 = dma.hbm_to_vmem [thread:$0]  %s116, 35840, %s118, [#allocation15], 448, 448, 28
    $region33: #{tpu_custom_call.1} parent=1 // pred_fallthru
      _
    // Predicated region
    $region34: #{tpu_custom_call.1} parent=1 // pred_check
      _
    $region35: #{tpu_custom_call.1} parent=1 // pred_check_branch
      %125 = sbr.rel (0) target = $region37
    $region36: #{tpu_custom_call.1} parent=1 // pred_region
      %127 = vsyncadd [#allocation15], 0
      %s129 = sshll.u32 %s8, 4
      %s130 = int_to_ptr.hbm [resolvable:$true] %s129
      %s131 = sshll.u32 [#allocation16], 4
      %s132 = int_to_ptr.vmem [resolvable:$true] %s131
      %134 = dma.hbm_to_vmem [thread:$0]  %s130, 224, %s132, [#allocation15]
    $region37: #{tpu_custom_call.1} parent=1 // pred_fallthru
      _
    // Predicated region
    $region38: #{tpu_custom_call.1} parent=1 // pred_check
      _
    $region39: #{tpu_custom_call.1} parent=1 // pred_check_branch
      %136 = sbr.rel (0) target = $region41
    $region40: #{tpu_custom_call.1} parent=1 // pred_region
      %138 = vsyncadd [#allocation18], 0
      %s139 = sshll.u32 %s9, 4
      %s140 = int_to_ptr.hbm [resolvable:$true] %s139
      %s141 = sshll.u32 [#allocation17], 4
      %s142 = int_to_ptr.vmem [resolvable:$true] %s141
      %147 = dma.hbm_to_vmem [thread:$0]  %s140, 28672, %s142, [#allocation18], 256, 256, 16
    $region41: #{tpu_custom_call.1} parent=1 // pred_fallthru
      _
    // Predicated region
    $region42: #{tpu_custom_call.1} parent=1 // pred_check
      _
    $region43: #{tpu_custom_call.1} parent=1 // pred_check_branch
      %149 = sbr.rel (0) target = $region45
    $region44: #{tpu_custom_call.1} parent=1 // pred_region
      %151 = vsyncadd [#allocation18], 0
      %s153 = sshll.u32 %s10, 4
      %s154 = int_to_ptr.hbm [resolvable:$true] %s153
      %s155 = sshll.u32 [#allocation19], 4
      %s156 = int_to_ptr.vmem [resolvable:$true] %s155
      %158 = dma.hbm_to_vmem [thread:$0]  %s154, 128, %s156, [#allocation18]
    $region45: #{tpu_custom_call.1} parent=1 // pred_fallthru
      _
    // Predicated region
    $region46: #{tpu_custom_call.1} parent=1 // pred_check
      _
    $region47: #{tpu_custom_call.1} parent=1 // pred_check_branch
      %160 = sbr.rel (0) target = $region49
    $region48: #{tpu_custom_call.1} parent=1 // pred_region
      %162 = dma.done [#allocation3], 1792
    $region49: #{tpu_custom_call.1} parent=1 // pred_fallthru
      _
    // Predicated region
    $region50: #{tpu_custom_call.1} parent=1 // pred_check
      _
    $region51: #{tpu_custom_call.1} parent=1 // pred_check_branch
      %164 = sbr.rel (0) target = $region53
    $region52: #{tpu_custom_call.1} parent=1 // pred_region
      %166 = dma.done [#allocation6], 35840
    $region53: #{tpu_custom_call.1} parent=1 // pred_fallthru
      _
    // Predicated region
    $region54: #{tpu_custom_call.1} parent=1 // pred_check
      _
    $region55: #{tpu_custom_call.1} parent=1 // pred_check_branch
      %168 = sbr.rel (0) target = $region57
    $region56: #{tpu_custom_call.1} parent=1 // pred_region
      %170 = dma.done [#allocation6], 160
    $region57: #{tpu_custom_call.1} parent=1 // pred_fallthru
      _
    // Predicated region
    $region58: #{tpu_custom_call.1} parent=1 // pred_check
      _
    $region59: #{tpu_custom_call.1} parent=1 // pred_check_branch
      %172 = sbr.rel (0) target = $region61
    $region60: #{tpu_custom_call.1} parent=1 // pred_region
      %174 = dma.done [#allocation9], 5120
    $region61: #{tpu_custom_call.1} parent=1 // pred_fallthru
      _
    // Predicated region
    $region62: #{tpu_custom_call.1} parent=1 // pred_check
      _
    $region63: #{tpu_custom_call.1} parent=1 // pred_check_branch
      %176 = sbr.rel (0) target = $region65
    $region64: #{tpu_custom_call.1} parent=1 // pred_region
      %178 = dma.done [#allocation9], 32
    $region65: #{tpu_custom_call.1} parent=1 // pred_fallthru
      _
    // Predicated region
    $region66: #{tpu_custom_call.1} parent=1 // pred_check
      _
    $region67: #{tpu_custom_call.1} parent=1 // pred_check_branch
      %180 = sbr.rel (0) target = $region69
    $region68: #{tpu_custom_call.1} parent=1 // pred_region
      %182 = dma.done [#allocation12], 5120
    $region69: #{tpu_custom_call.1} parent=1 // pred_fallthru
      _
    // Predicated region
    $region70: #{tpu_custom_call.1} parent=1 // pred_check
      _
    $region71: #{tpu_custom_call.1} parent=1 // pred_check_branch
      %184 = sbr.rel (0) target = $region73
    $region72: #{tpu_custom_call.1} parent=1 // pred_region
      %186 = dma.done [#allocation12], 160
    $region73: #{tpu_custom_call.1} parent=1 // pred_fallthru
      _
    // Predicated region
    $region74: #{tpu_custom_call.1} parent=1 // pred_check
      _
    $region75: #{tpu_custom_call.1} parent=1 // pred_check_branch
      %188 = sbr.rel (0) target = $region77
    $region76: #{tpu_custom_call.1} parent=1 // pred_region
      %190 = dma.done [#allocation15], 35840
    $region77: #{tpu_custom_call.1} parent=1 // pred_fallthru
      _
    // Predicated region
    $region78: #{tpu_custom_call.1} parent=1 // pred_check
      _
    $region79: #{tpu_custom_call.1} parent=1 // pred_check_branch
      %192 = sbr.rel (0) target = $region81
    $region80: #{tpu_custom_call.1} parent=1 // pred_region
      %194 = dma.done [#allocation15], 224
    $region81: #{tpu_custom_call.1} parent=1 // pred_fallthru
      _
    // Predicated region
    $region82: #{tpu_custom_call.1} parent=1 // pred_check
      _
    $region83: #{tpu_custom_call.1} parent=1 // pred_check_branch
      %196 = sbr.rel (0) target = $region85
    $region84: #{tpu_custom_call.1} parent=1 // pred_region
      %198 = dma.done [#allocation18], 28672
    $region85: #{tpu_custom_call.1} parent=1 // pred_fallthru
      _
    // Predicated region
    $region86: #{tpu_custom_call.1} parent=1 // pred_check
      _
    $region87: #{tpu_custom_call.1} parent=1 // pred_check_branch
      %200 = sbr.rel (0) target = $region89
    $region88: #{tpu_custom_call.1} parent=1 // pred_region
      %202 = dma.done [#allocation18], 128
    $region89: #{tpu_custom_call.1} parent=1 // pred_fallthru
      _
    loop: start=0, step=1, limit=8
    $region90: #{tpu_custom_call.1} parent=1 // loop_pre_header
      _
    $region91: #{tpu_custom_call.1} parent=1 // loop_header
      %s204 = sphi 0, %s208
      %p205 = scmp.ge.s32.totalorder %s204, 8
      %v209 = vphi 0.0, %v250
      %v210 = vphi 0.0, %v251
      %v211 = vphi 0.0, %v2578
      %v212 = vphi 0.0, %v2579
      %v213 = vphi 0.0, %v2580
      %v214 = vphi 0.0, %v2581
      %v215 = vphi 0.0, %v2582
      %v216 = vphi 0.0, %v2995
      %v217 = vphi 0.0, %v3368
      %v218 = vphi 0.0, %v3369
      %v219 = vphi 0.0, %v3370
      %v220 = vphi 0.0, %v3371
      %v221 = vphi 0.0, %v3372
      %v222 = vphi 0.0, %v5671
      %v223 = vphi 0.0, %v5672
      %v224 = vphi 0.0, %v5673
      %v225 = vphi 0.0, %v5674
      %v226 = vphi 0.0, %v5675
      %v227 = vphi 0.0, %v5676
      %v228 = vphi 0.0, %v5677
      %v229 = vphi 0.0, %v7449
      %v230 = vphi 0.0, %v7450
      %v231 = vphi 0.0, %v7451
      %v232 = vphi 0.0, %v7452
    $region92: #{tpu_custom_call.1} parent=1 // loop_header_branch
      %207 = sbr.rel (%p205) target = $region96
    $region93: #{tpu_custom_call.1} parent=1 // loop_body
      %s233 = smul.u32 %s204, 7
      %s234 = smul.addr %s233, 2
      %s235 = scalar_lea.vmem [#allocation2], %s234
      %v236 = vld [vmem:[%s235] sm:$0xff]
      %v237 = vld [vmem:[%s235 + $0x8] sm:$0x3f]
      %vm238 = vcmp.gt.f32.partialorder %v209, 0.5
      %vm239 = vcmp.gt.f32.partialorder %v210, 0.5
      %v240 = vsel %vm238, 1, 0
      %v241 = vsel %vm239, 1, 0
      %v242 = vcvt.s32.f32 %v240
      %v243 = vcvt.s32.f32 %v241
      %v244 = vmul.f32 %v209, 0.9048374
      %v245 = vmul.f32 %v210, 0.9048374
      %v246 = vadd.f32 %v244, %v236
      %v247 = vadd.f32 %v245, %v237
      %v248 = vmul.f32 %v242, 0.5
      %v249 = vmul.f32 %v243, 0.5
      %v250 = vsub.f32 %v246, %v248
      %v251 = vsub.f32 %v247, %v249
      %vm252 = vcmp.gt.f32.partialorder %v250, 0.5
      %vm253 = vcmp.gt.f32.partialorder %v251, 0.5
      %v254 = vsel %vm252, 1, 0
      %v255 = vsel %vm253, 1, 0
      %v256 = vcvt.s32.f32 %v254
      %v257 = vcvt.s32.f32 %v255
      %260 = vst [vmem:[#allocation1] ss:$4 sm:$0xff] %v256
      %s261 = scalar_lea.vmem [#allocation1], 32
      %262 = vst [vmem:[%s261] ss:$4 sm:$0xff] %v257
      %v263 = vld.sshfl [vmem:[#allocation1] sm:$0xff pattern:$0x73625140]
      %v264 = vld.sshfl [vmem:[#allocation1 + $0x8] sm:$0xff pattern:$0x73625140]
      %v265 = vld.sshfl [vmem:[#allocation1 + $0x10] sm:$0xff pattern:$0x73625140]
      %v266 = vld.sshfl [vmem:[#allocation1 + $0x18] sm:$0xff pattern:$0x73625140]
      %v267 = vld.sshfl [vmem:[#allocation1 + $0x20] sm:$0xff pattern:$0x73625140]
      %v268 = vld.sshfl [vmem:[#allocation1 + $0x28] sm:$0xff pattern:$0x73625140]
      %v269 = vld.sshfl [vmem:[#allocation1 + $0x30] sm:$0xff pattern:$0x73625140]
      %v277 = vpack.c.bf16 %v263, %v263
      %v278 = vpack.c.bf16 %v264, %v264
      %v279 = vpack.c.bf16 %v265, %v265
      %v280 = vpack.c.bf16 %v266, %v266
      %v281 = vpack.c.bf16 %v267, %v267
      %v282 = vpack.c.bf16 %v268, %v268
      %v283 = vpack.c.bf16 %v269, %v269
      %v284 = vld [vmem:[#allocation5] sm:$0xff]
      %v285 = vld [vmem:[#allocation5 + $0x8] sm:$0xff]
      %v286 = vld [vmem:[#allocation5 + $0x10] sm:$0xf]
      %v287 = vld [vmem:[#allocation5 + $0x14] sm:$0xff]
      %v288 = vld [vmem:[#allocation5 + $0x1c] sm:$0xff]
      %v289 = vld [vmem:[#allocation5 + $0x24] sm:$0xf]
      %v290 = vld [vmem:[#allocation5 + $0x28] sm:$0xff]
      %v291 = vld [vmem:[#allocation5 + $0x30] sm:$0xff]
      %v292 = vld [vmem:[#allocation5 + $0x38] sm:$0xf]
      %v293 = vld [vmem:[#allocation5 + $0x3c] sm:$0xff]
      %v294 = vld [vmem:[#allocation5 + $0x44] sm:$0xff]
      %v295 = vld [vmem:[#allocation5 + $0x4c] sm:$0xf]
      %v296 = vld [vmem:[#allocation5 + $0x50] sm:$0xff]
      %v297 = vld [vmem:[#allocation5 + $0x58] sm:$0xff]
      %v298 = vld [vmem:[#allocation5 + $0x60] sm:$0xf]
      %v299 = vld [vmem:[#allocation5 + $0x64] sm:$0xff]
      %v300 = vld [vmem:[#allocation5 + $0x6c] sm:$0xff]
      %v301 = vld [vmem:[#allocation5 + $0x74] sm:$0xf]
      %v302 = vld [vmem:[#allocation5 + $0x78] sm:$0xff]
      %v303 = vld [vmem:[#allocation5 + $0x80] sm:$0xff]
      %v304 = vld [vmem:[#allocation5 + $0x88] sm:$0xf]
      %v305 = vld [vmem:[#allocation5 + $0x8c] sm:$0xff]
      %v306 = vld [vmem:[#allocation5 + $0x94] sm:$0xff]
      %v307 = vld [vmem:[#allocation5 + $0x9c] sm:$0xf]
      %v308 = vld [vmem:[#allocation5 + $0xa0] sm:$0xff]
      %v309 = vld [vmem:[#allocation5 + $0xa8] sm:$0xff]
      %v310 = vld [vmem:[#allocation5 + $0xb0] sm:$0xf]
      %v311 = vld [vmem:[#allocation5 + $0xb4] sm:$0xff]
      %v312 = vld [vmem:[#allocation5 + $0xbc] sm:$0xff]
      %v313 = vld [vmem:[#allocation5 + $0xc4] sm:$0xf]
      %v314 = vld [vmem:[#allocation5 + $0xc8] sm:$0xff]
      %v315 = vld [vmem:[#allocation5 + $0xd0] sm:$0xff]
      %v316 = vld [vmem:[#allocation5 + $0xd8] sm:$0xf]
      %v317 = vld [vmem:[#allocation5 + $0xdc] sm:$0xff]
      %v318 = vld [vmem:[#allocation5 + $0xe4] sm:$0xff]
      %v319 = vld [vmem:[#allocation5 + $0xec] sm:$0xf]
      %v320 = vld [vmem:[#allocation5 + $0xf0] sm:$0xff]
      %v321 = vld [vmem:[#allocation5 + $0xf8] sm:$0xff]
      %v322 = vld [vmem:[#allocation5 + $0x100] sm:$0xf]
      %v323 = vld [vmem:[#allocation5 + $0x104] sm:$0xff]
      %v324 = vld [vmem:[#allocation5 + $0x10c] sm:$0xff]
      %v325 = vld [vmem:[#allocation5 + $0x114] sm:$0xf]
      %v326 = vld [vmem:[#allocation5 + $0x118] sm:$0xff]
      %v327 = vld [vmem:[#allocation5 + $0x120] sm:$0xff]
      %v328 = vld [vmem:[#allocation5 + $0x128] sm:$0xf]
      %v329 = vld [vmem:[#allocation5 + $0x12c] sm:$0xff]
      %v330 = vld [vmem:[#allocation5 + $0x134] sm:$0xff]
      %v331 = vld [vmem:[#allocation5 + $0x13c] sm:$0xf]
      %v332 = vld [vmem:[#allocation5 + $0x140] sm:$0xff]
      %v333 = vld [vmem:[#allocation5 + $0x148] sm:$0xff]
      %v334 = vld [vmem:[#allocation5 + $0x150] sm:$0xf]
      %v335 = vld [vmem:[#allocation5 + $0x154] sm:$0xff]
      %v336 = vld [vmem:[#allocation5 + $0x15c] sm:$0xff]
      %v337 = vld [vmem:[#allocation5 + $0x164] sm:$0xf]
      %v338 = vld [vmem:[#allocation5 + $0x168] sm:$0xff]
      %v339 = vld [vmem:[#allocation5 + $0x170] sm:$0xff]
      %v340 = vld [vmem:[#allocation5 + $0x178] sm:$0xf]
      %v341 = vld [vmem:[#allocation5 + $0x17c] sm:$0xff]
      %v342 = vld [vmem:[#allocation5 + $0x184] sm:$0xff]
      %v343 = vld [vmem:[#allocation5 + $0x18c] sm:$0xf]
      %v344 = vld [vmem:[#allocation5 + $0x190] sm:$0xff]
      %v345 = vld [vmem:[#allocation5 + $0x198] sm:$0xff]
      %v346 = vld [vmem:[#allocation5 + $0x1a0] sm:$0xf]
      %v347 = vld [vmem:[#allocation5 + $0x1a4] sm:$0xff]
      %v348 = vld [vmem:[#allocation5 + $0x1ac] sm:$0xff]
      %v349 = vld [vmem:[#allocation5 + $0x1b4] sm:$0xf]
      %v350 = vld [vmem:[#allocation5 + $0x1b8] sm:$0xff]
      %v351 = vld [vmem:[#allocation5 + $0x1c0] sm:$0xff]
      %v352 = vld [vmem:[#allocation5 + $0x1c8] sm:$0xf]
      %v353 = vld [vmem:[#allocation5 + $0x1cc] sm:$0xff]
      %v354 = vld [vmem:[#allocation5 + $0x1d4] sm:$0xff]
      %v355 = vld [vmem:[#allocation5 + $0x1dc] sm:$0xf]
      %v356 = vld [vmem:[#allocation5 + $0x1e0] sm:$0xff]
      %v357 = vld [vmem:[#allocation5 + $0x1e8] sm:$0xff]
      %v358 = vld [vmem:[#allocation5 + $0x1f0] sm:$0xf]
      %v359 = vld [vmem:[#allocation5 + $0x1f4] sm:$0xff]
      %v360 = vld [vmem:[#allocation5 + $0x1fc] sm:$0xff]
      %v361 = vld [vmem:[#allocation5 + $0x204] sm:$0xf]
      %v362 = vld [vmem:[#allocation5 + $0x208] sm:$0xff]
      %v363 = vld [vmem:[#allocation5 + $0x210] sm:$0xff]
      %v364 = vld [vmem:[#allocation5 + $0x218] sm:$0xf]
      %v365 = vld [vmem:[#allocation5 + $0x21c] sm:$0xff]
      %v366 = vld [vmem:[#allocation5 + $0x224] sm:$0xff]
      %v367 = vld [vmem:[#allocation5 + $0x22c] sm:$0xf]
      %v368 = vld [vmem:[#allocation5 + $0x230] sm:$0xff]
      %v369 = vld [vmem:[#allocation5 + $0x238] sm:$0xff]
      %v370 = vld [vmem:[#allocation5 + $0x240] sm:$0xf]
      %v371 = vld [vmem:[#allocation5 + $0x244] sm:$0xff]
      %v372 = vld [vmem:[#allocation5 + $0x24c] sm:$0xff]
      %v373 = vld [vmem:[#allocation5 + $0x254] sm:$0xf]
      %v374 = vld [vmem:[#allocation5 + $0x258] sm:$0xff]
      %v375 = vld [vmem:[#allocation5 + $0x260] sm:$0xff]
      %v376 = vld [vmem:[#allocation5 + $0x268] sm:$0xf]
      %v377 = vld [vmem:[#allocation5 + $0x26c] sm:$0xff]
      %v378 = vld [vmem:[#allocation5 + $0x274] sm:$0xff]
      %v379 = vld [vmem:[#allocation5 + $0x27c] sm:$0xf]
      %v380 = vld [vmem:[#allocation5 + $0x280] sm:$0xff]
      %v381 = vld [vmem:[#allocation5 + $0x288] sm:$0xff]
      %v382 = vld [vmem:[#allocation5 + $0x290] sm:$0xf]
      %v383 = vld [vmem:[#allocation5 + $0x294] sm:$0xff]
      %v384 = vld [vmem:[#allocation5 + $0x29c] sm:$0xff]
      %v385 = vld [vmem:[#allocation5 + $0x2a4] sm:$0xf]
      %v386 = vld [vmem:[#allocation5 + $0x2a8] sm:$0xff]
      %v387 = vld [vmem:[#allocation5 + $0x2b0] sm:$0xff]
      %v388 = vld [vmem:[#allocation5 + $0x2b8] sm:$0xf]
      %v389 = vld [vmem:[#allocation5 + $0x2bc] sm:$0xff]
      %v390 = vld [vmem:[#allocation5 + $0x2c4] sm:$0xff]
      %v391 = vld [vmem:[#allocation5 + $0x2cc] sm:$0xf]
      %v392 = vld [vmem:[#allocation5 + $0x2d0] sm:$0xff]
      %v393 = vld [vmem:[#allocation5 + $0x2d8] sm:$0xff]
      %v394 = vld [vmem:[#allocation5 + $0x2e0] sm:$0xf]
      %v395 = vld [vmem:[#allocation5 + $0x2e4] sm:$0xff]
      %v396 = vld [vmem:[#allocation5 + $0x2ec] sm:$0xff]
      %v397 = vld [vmem:[#allocation5 + $0x2f4] sm:$0xf]
      %v398 = vld [vmem:[#allocation5 + $0x2f8] sm:$0xff]
      %v399 = vld [vmem:[#allocation5 + $0x300] sm:$0xff]
      %v400 = vld [vmem:[#allocation5 + $0x308] sm:$0xf]
      %v401 = vld [vmem:[#allocation5 + $0x30c] sm:$0xff]
      %v402 = vld [vmem:[#allocation5 + $0x314] sm:$0xff]
      %v403 = vld [vmem:[#allocation5 + $0x31c] sm:$0xf]
      %v404 = vld [vmem:[#allocation5 + $0x320] sm:$0xff]
      %v405 = vld [vmem:[#allocation5 + $0x328] sm:$0xff]
      %v406 = vld [vmem:[#allocation5 + $0x330] sm:$0xf]
      %v407 = vld [vmem:[#allocation5 + $0x334] sm:$0xff]
      %v408 = vld [vmem:[#allocation5 + $0x33c] sm:$0xff]
      %v409 = vld [vmem:[#allocation5 + $0x344] sm:$0xf]
      %v410 = vld [vmem:[#allocation5 + $0x348] sm:$0xff]
      %v411 = vld [vmem:[#allocation5 + $0x350] sm:$0xff]
      %v412 = vld [vmem:[#allocation5 + $0x358] sm:$0xf]
      %v413 = vld [vmem:[#allocation5 + $0x35c] sm:$0xff]
      %v414 = vld [vmem:[#allocation5 + $0x364] sm:$0xff]
      %v415 = vld [vmem:[#allocation5 + $0x36c] sm:$0xf]
      %v416 = vld [vmem:[#allocation5 + $0x370] sm:$0xff]
      %v417 = vld [vmem:[#allocation5 + $0x378] sm:$0xff]
      %v418 = vld [vmem:[#allocation5 + $0x380] sm:$0xf]
      %v419 = vld [vmem:[#allocation5 + $0x384] sm:$0xff]
      %v420 = vld [vmem:[#allocation5 + $0x38c] sm:$0xff]
      %v421 = vld [vmem:[#allocation5 + $0x394] sm:$0xf]
      %v422 = vld [vmem:[#allocation5 + $0x398] sm:$0xff]
      %v423 = vld [vmem:[#allocation5 + $0x3a0] sm:$0xff]
      %v424 = vld [vmem:[#allocation5 + $0x3a8] sm:$0xf]
      %v425 = vld [vmem:[#allocation5 + $0x3ac] sm:$0xff]
      %v426 = vld [vmem:[#allocation5 + $0x3b4] sm:$0xff]
      %v427 = vld [vmem:[#allocation5 + $0x3bc] sm:$0xf]
      %v428 = vld [vmem:[#allocation5 + $0x3c0] sm:$0xff]
      %v429 = vld [vmem:[#allocation5 + $0x3c8] sm:$0xff]
      %v430 = vld [vmem:[#allocation5 + $0x3d0] sm:$0xf]
      %v431 = vld [vmem:[#allocation5 + $0x3d4] sm:$0xff]
      %v432 = vld [vmem:[#allocation5 + $0x3dc] sm:$0xff]
      %v433 = vld [vmem:[#allocation5 + $0x3e4] sm:$0xf]
      %v434 = vld [vmem:[#allocation5 + $0x3e8] sm:$0xff]
      %v435 = vld [vmem:[#allocation5 + $0x3f0] sm:$0xff]
      %v436 = vld [vmem:[#allocation5 + $0x3f8] sm:$0xf]
      %v437 = vld [vmem:[#allocation5 + $0x3fc] sm:$0xff]
      %v438 = vld [vmem:[#allocation5 + $0x404] sm:$0xff]
      %v439 = vld [vmem:[#allocation5 + $0x40c] sm:$0xf]
      %v440 = vld [vmem:[#allocation5 + $0x410] sm:$0xff]
      %v441 = vld [vmem:[#allocation5 + $0x418] sm:$0xff]
      %v442 = vld [vmem:[#allocation5 + $0x420] sm:$0xf]
      %v443 = vld [vmem:[#allocation5 + $0x424] sm:$0xff]
      %v444 = vld [vmem:[#allocation5 + $0x42c] sm:$0xff]
      %v445 = vld [vmem:[#allocation5 + $0x434] sm:$0xf]
      %v446 = vld [vmem:[#allocation5 + $0x438] sm:$0xff]
      %v447 = vld [vmem:[#allocation5 + $0x440] sm:$0xff]
      %v448 = vld [vmem:[#allocation5 + $0x448] sm:$0xf]
      %v449 = vld [vmem:[#allocation5 + $0x44c] sm:$0xff]
      %v450 = vld [vmem:[#allocation5 + $0x454] sm:$0xff]
      %v451 = vld [vmem:[#allocation5 + $0x45c] sm:$0xf]
      %v452 = vld [vmem:[#allocation5 + $0x460] sm:$0xff]
      %v453 = vld [vmem:[#allocation5 + $0x468] sm:$0xff]
      %v454 = vld [vmem:[#allocation5 + $0x470] sm:$0xf]
      %v455 = vld [vmem:[#allocation5 + $0x474] sm:$0xff]
      %v456 = vld [vmem:[#allocation5 + $0x47c] sm:$0xff]
      %v457 = vld [vmem:[#allocation5 + $0x484] sm:$0xf]
      %v458 = vld [vmem:[#allocation5 + $0x488] sm:$0xff]
      %v459 = vld [vmem:[#allocation5 + $0x490] sm:$0xff]
      %v460 = vld [vmem:[#allocation5 + $0x498] sm:$0xf]
      %v461 = vld [vmem:[#allocation5 + $0x49c] sm:$0xff]
      %v462 = vld [vmem:[#allocation5 + $0x4a4] sm:$0xff]
      %v463 = vld [vmem:[#allocation5 + $0x4ac] sm:$0xf]
      %v464 = vld [vmem:[#allocation5 + $0x4b0] sm:$0xff]
      %v465 = vld [vmem:[#allocation5 + $0x4b8] sm:$0xff]
      %v466 = vld [vmem:[#allocation5 + $0x4c0] sm:$0xf]
      %v467 = vld [vmem:[#allocation5 + $0x4c4] sm:$0xff]
      %v468 = vld [vmem:[#allocation5 + $0x4cc] sm:$0xff]
      %v469 = vld [vmem:[#allocation5 + $0x4d4] sm:$0xf]
      %v470 = vld [vmem:[#allocation5 + $0x4d8] sm:$0xff]
      %v471 = vld [vmem:[#allocation5 + $0x4e0] sm:$0xff]
      %v472 = vld [vmem:[#allocation5 + $0x4e8] sm:$0xf]
      %v473 = vld [vmem:[#allocation5 + $0x4ec] sm:$0xff]
      %v474 = vld [vmem:[#allocation5 + $0x4f4] sm:$0xff]
      %v475 = vld [vmem:[#allocation5 + $0x4fc] sm:$0xf]
      %v476 = vld [vmem:[#allocation5 + $0x500] sm:$0xff]
      %v477 = vld [vmem:[#allocation5 + $0x508] sm:$0xff]
      %v478 = vld [vmem:[#allocation5 + $0x510] sm:$0xf]
      %v479 = vld [vmem:[#allocation5 + $0x514] sm:$0xff]
      %v480 = vld [vmem:[#allocation5 + $0x51c] sm:$0xff]
      %v481 = vld [vmem:[#allocation5 + $0x524] sm:$0xf]
      %v482 = vld [vmem:[#allocation5 + $0x528] sm:$0xff]
      %v483 = vld [vmem:[#allocation5 + $0x530] sm:$0xff]
      %v484 = vld [vmem:[#allocation5 + $0x538] sm:$0xf]
      %v485 = vld [vmem:[#allocation5 + $0x53c] sm:$0xff]
      %v486 = vld [vmem:[#allocation5 + $0x544] sm:$0xff]
      %v487 = vld [vmem:[#allocation5 + $0x54c] sm:$0xf]
      %v488 = vld [vmem:[#allocation5 + $0x550] sm:$0xff]
      %v489 = vld [vmem:[#allocation5 + $0x558] sm:$0xff]
      %v490 = vld [vmem:[#allocation5 + $0x560] sm:$0xf]
      %v491 = vld [vmem:[#allocation5 + $0x564] sm:$0xff]
      %v492 = vld [vmem:[#allocation5 + $0x56c] sm:$0xff]
      %v493 = vld [vmem:[#allocation5 + $0x574] sm:$0xf]
      %v494 = vld [vmem:[#allocation5 + $0x578] sm:$0xff]
      %v495 = vld [vmem:[#allocation5 + $0x580] sm:$0xff]
      %v496 = vld [vmem:[#allocation5 + $0x588] sm:$0xf]
      %v497 = vld [vmem:[#allocation5 + $0x58c] sm:$0xff]
      %v498 = vld [vmem:[#allocation5 + $0x594] sm:$0xff]
      %v499 = vld [vmem:[#allocation5 + $0x59c] sm:$0xf]
      %v500 = vld [vmem:[#allocation5 + $0x5a0] sm:$0xff]
      %v501 = vld [vmem:[#allocation5 + $0x5a8] sm:$0xff]
      %v502 = vld [vmem:[#allocation5 + $0x5b0] sm:$0xf]
      %v503 = vld [vmem:[#allocation5 + $0x5b4] sm:$0xff]
      %v504 = vld [vmem:[#allocation5 + $0x5bc] sm:$0xff]
      %v505 = vld [vmem:[#allocation5 + $0x5c4] sm:$0xf]
      %v506 = vld [vmem:[#allocation5 + $0x5c8] sm:$0xff]
      %v507 = vld [vmem:[#allocation5 + $0x5d0] sm:$0xff]
      %v508 = vld [vmem:[#allocation5 + $0x5d8] sm:$0xf]
      %v509 = vld [vmem:[#allocation5 + $0x5dc] sm:$0xff]
      %v510 = vld [vmem:[#allocation5 + $0x5e4] sm:$0xff]
      %v511 = vld [vmem:[#allocation5 + $0x5ec] sm:$0xf]
      %v512 = vld [vmem:[#allocation5 + $0x5f0] sm:$0xff]
      %v513 = vld [vmem:[#allocation5 + $0x5f8] sm:$0xff]
      %v514 = vld [vmem:[#allocation5 + $0x600] sm:$0xf]
      %v515 = vld [vmem:[#allocation5 + $0x604] sm:$0xff]
      %v516 = vld [vmem:[#allocation5 + $0x60c] sm:$0xff]
      %v517 = vld [vmem:[#allocation5 + $0x614] sm:$0xf]
      %v518 = vld [vmem:[#allocation5 + $0x618] sm:$0xff]
      %v519 = vld [vmem:[#allocation5 + $0x620] sm:$0xff]
      %v520 = vld [vmem:[#allocation5 + $0x628] sm:$0xf]
      %v521 = vld [vmem:[#allocation5 + $0x62c] sm:$0xff]
      %v522 = vld [vmem:[#allocation5 + $0x634] sm:$0xff]
      %v523 = vld [vmem:[#allocation5 + $0x63c] sm:$0xf]
      %v524 = vld [vmem:[#allocation5 + $0x640] sm:$0xff]
      %v525 = vld [vmem:[#allocation5 + $0x648] sm:$0xff]
      %v526 = vld [vmem:[#allocation5 + $0x650] sm:$0xf]
      %v527 = vld [vmem:[#allocation5 + $0x654] sm:$0xff]
      %v528 = vld [vmem:[#allocation5 + $0x65c] sm:$0xff]
      %v529 = vld [vmem:[#allocation5 + $0x664] sm:$0xf]
      %v530 = vld [vmem:[#allocation5 + $0x668] sm:$0xff]
      %v531 = vld [vmem:[#allocation5 + $0x670] sm:$0xff]
      %v532 = vld [vmem:[#allocation5 + $0x678] sm:$0xf]
      %v533 = vld [vmem:[#allocation5 + $0x67c] sm:$0xff]
      %v534 = vld [vmem:[#allocation5 + $0x684] sm:$0xff]
      %v535 = vld [vmem:[#allocation5 + $0x68c] sm:$0xf]
      %v536 = vld [vmem:[#allocation5 + $0x690] sm:$0xff]
      %v537 = vld [vmem:[#allocation5 + $0x698] sm:$0xff]
      %v538 = vld [vmem:[#allocation5 + $0x6a0] sm:$0xf]
      %v539 = vld [vmem:[#allocation5 + $0x6a4] sm:$0xff]
      %v540 = vld [vmem:[#allocation5 + $0x6ac] sm:$0xff]
      %v541 = vld [vmem:[#allocation5 + $0x6b4] sm:$0xf]
      %v542 = vld [vmem:[#allocation5 + $0x6b8] sm:$0xff]
      %v543 = vld [vmem:[#allocation5 + $0x6c0] sm:$0xff]
      %v544 = vld [vmem:[#allocation5 + $0x6c8] sm:$0xf]
      %v545 = vld [vmem:[#allocation5 + $0x6cc] sm:$0xff]
      %v546 = vld [vmem:[#allocation5 + $0x6d4] sm:$0xff]
      %v547 = vld [vmem:[#allocation5 + $0x6dc] sm:$0xf]
      %v548 = vld [vmem:[#allocation5 + $0x6e0] sm:$0xff]
      %v549 = vld [vmem:[#allocation5 + $0x6e8] sm:$0xff]
      %v550 = vld [vmem:[#allocation5 + $0x6f0] sm:$0xf]
      %v551 = vld [vmem:[#allocation5 + $0x6f4] sm:$0xff]
      %v552 = vld [vmem:[#allocation5 + $0x6fc] sm:$0xff]
      %v553 = vld [vmem:[#allocation5 + $0x704] sm:$0xf]
      %v554 = vld [vmem:[#allocation5 + $0x708] sm:$0xff]
      %v555 = vld [vmem:[#allocation5 + $0x710] sm:$0xff]
      %v556 = vld [vmem:[#allocation5 + $0x718] sm:$0xf]
      %v557 = vld [vmem:[#allocation5 + $0x71c] sm:$0xff]
      %v558 = vld [vmem:[#allocation5 + $0x724] sm:$0xff]
      %v559 = vld [vmem:[#allocation5 + $0x72c] sm:$0xf]
      %v560 = vld [vmem:[#allocation5 + $0x730] sm:$0xff]
      %v561 = vld [vmem:[#allocation5 + $0x738] sm:$0xff]
      %v562 = vld [vmem:[#allocation5 + $0x740] sm:$0xf]
      %v563 = vld [vmem:[#allocation5 + $0x744] sm:$0xff]
      %v564 = vld [vmem:[#allocation5 + $0x74c] sm:$0xff]
      %v565 = vld [vmem:[#allocation5 + $0x754] sm:$0xf]
      %v566 = vld [vmem:[#allocation5 + $0x758] sm:$0xff]
      %v567 = vld [vmem:[#allocation5 + $0x760] sm:$0xff]
      %v568 = vld [vmem:[#allocation5 + $0x768] sm:$0xf]
      %v569 = vld [vmem:[#allocation5 + $0x76c] sm:$0xff]
      %v570 = vld [vmem:[#allocation5 + $0x774] sm:$0xff]
      %v571 = vld [vmem:[#allocation5 + $0x77c] sm:$0xf]
      %v572 = vld [vmem:[#allocation5 + $0x780] sm:$0xff]
      %v573 = vld [vmem:[#allocation5 + $0x788] sm:$0xff]
      %v574 = vld [vmem:[#allocation5 + $0x790] sm:$0xf]
      %v575 = vld [vmem:[#allocation5 + $0x794] sm:$0xff]
      %v576 = vld [vmem:[#allocation5 + $0x79c] sm:$0xff]
      %v577 = vld [vmem:[#allocation5 + $0x7a4] sm:$0xf]
      %v578 = vld [vmem:[#allocation5 + $0x7a8] sm:$0xff]
      %v579 = vld [vmem:[#allocation5 + $0x7b0] sm:$0xff]
      %v580 = vld [vmem:[#allocation5 + $0x7b8] sm:$0xf]
      %v581 = vld [vmem:[#allocation5 + $0x7bc] sm:$0xff]
      %v582 = vld [vmem:[#allocation5 + $0x7c4] sm:$0xff]
      %v583 = vld [vmem:[#allocation5 + $0x7cc] sm:$0xf]
      %v584 = vld [vmem:[#allocation5 + $0x7d0] sm:$0xff]
      %v585 = vld [vmem:[#allocation5 + $0x7d8] sm:$0xff]
      %v586 = vld [vmem:[#allocation5 + $0x7e0] sm:$0xf]
      %v587 = vld [vmem:[#allocation5 + $0x7e4] sm:$0xff]
      %v588 = vld [vmem:[#allocation5 + $0x7ec] sm:$0xff]
      %v589 = vld [vmem:[#allocation5 + $0x7f4] sm:$0xf]
      %v590 = vld [vmem:[#allocation5 + $0x7f8] sm:$0xff]
      %v591 = vld [vmem:[#allocation5 + $0x800] sm:$0xff]
      %v592 = vld [vmem:[#allocation5 + $0x808] sm:$0xf]
      %v593 = vld [vmem:[#allocation5 + $0x80c] sm:$0xff]
      %v594 = vld [vmem:[#allocation5 + $0x814] sm:$0xff]
      %v595 = vld [vmem:[#allocation5 + $0x81c] sm:$0xf]
      %v596 = vld [vmem:[#allocation5 + $0x820] sm:$0xff]
      %v597 = vld [vmem:[#allocation5 + $0x828] sm:$0xff]
      %v598 = vld [vmem:[#allocation5 + $0x830] sm:$0xf]
      %v599 = vld [vmem:[#allocation5 + $0x834] sm:$0xff]
      %v600 = vld [vmem:[#allocation5 + $0x83c] sm:$0xff]
      %v601 = vld [vmem:[#allocation5 + $0x844] sm:$0xf]
      %v602 = vld [vmem:[#allocation5 + $0x848] sm:$0xff]
      %v603 = vld [vmem:[#allocation5 + $0x850] sm:$0xff]
      %v604 = vld [vmem:[#allocation5 + $0x858] sm:$0xf]
      %v605 = vld [vmem:[#allocation5 + $0x85c] sm:$0xff]
      %v606 = vld [vmem:[#allocation5 + $0x864] sm:$0xff]
      %v607 = vld [vmem:[#allocation5 + $0x86c] sm:$0xf]
      %v608 = vld [vmem:[#allocation5 + $0x870] sm:$0xff]
      %v609 = vld [vmem:[#allocation5 + $0x878] sm:$0xff]
      %v610 = vld [vmem:[#allocation5 + $0x880] sm:$0xf]
      %v611 = vld [vmem:[#allocation5 + $0x884] sm:$0xff]
      %v612 = vld [vmem:[#allocation5 + $0x88c] sm:$0xff]
      %v613 = vld [vmem:[#allocation5 + $0x894] sm:$0xf]
      %v614 = vld [vmem:[#allocation5 + $0x898] sm:$0xff]
      %v615 = vld [vmem:[#allocation5 + $0x8a0] sm:$0xff]
      %v616 = vld [vmem:[#allocation5 + $0x8a8] sm:$0xf]
      %v617 = vld [vmem:[#allocation5 + $0x8ac] sm:$0xff]
      %v618 = vld [vmem:[#allocation5 + $0x8b4] sm:$0xff]
      %v619 = vld [vmem:[#allocation5 + $0x8bc] sm:$0xf]
      %v620 = vld [vmem:[#allocation7] sm:$0xff]
      %v621 = vld [vmem:[#allocation7 + $0x8] sm:$0x3]
      %v958 = vunpack.c.l.b16 %v284
      %v959 = vunpack.c.h.b16 %v284
      %v960 = vunpack.c.l.b16 %v285
      %v961 = vunpack.c.h.b16 %v285
      %v962 = vunpack.c.l.b16 %v286
      %v963 = vunpack.c.l.b16 %v287
      %v964 = vunpack.c.h.b16 %v287
      %v965 = vunpack.c.l.b16 %v288
      %v966 = vunpack.c.h.b16 %v288
      %v967 = vunpack.c.l.b16 %v289
      %v968 = vunpack.c.l.b16 %v290
      %v969 = vunpack.c.h.b16 %v290
      %v970 = vunpack.c.l.b16 %v291
      %v971 = vunpack.c.h.b16 %v291
      %v972 = vunpack.c.l.b16 %v292
      %v973 = vunpack.c.l.b16 %v293
      %v974 = vunpack.c.h.b16 %v293
      %v975 = vunpack.c.l.b16 %v294
      %v976 = vunpack.c.h.b16 %v294
      %v977 = vunpack.c.l.b16 %v295
      %v978 = vunpack.c.l.b16 %v296
      %v979 = vunpack.c.h.b16 %v296
      %v980 = vunpack.c.l.b16 %v297
      %v981 = vunpack.c.h.b16 %v297
      %v982 = vunpack.c.l.b16 %v298
      %v983 = vunpack.c.l.b16 %v299
      %v984 = vunpack.c.h.b16 %v299
      %v985 = vunpack.c.l.b16 %v300
      %v986 = vunpack.c.h.b16 %v300
      %v987 = vunpack.c.l.b16 %v301
      %v988 = vunpack.c.l.b16 %v302
      %v989 = vunpack.c.h.b16 %v302
      %v990 = vunpack.c.l.b16 %v303
      %v991 = vunpack.c.h.b16 %v303
      %v992 = vunpack.c.l.b16 %v304
      %v993 = vunpack.c.l.b16 %v305
      %v994 = vunpack.c.h.b16 %v305
      %v995 = vunpack.c.l.b16 %v306
      %v996 = vunpack.c.h.b16 %v306
      %v997 = vunpack.c.l.b16 %v307
      %v998 = vunpack.c.l.b16 %v308
      %v999 = vunpack.c.h.b16 %v308
      %v1000 = vunpack.c.l.b16 %v309
      %v1001 = vunpack.c.h.b16 %v309
      %v1002 = vunpack.c.l.b16 %v310
      %v1003 = vunpack.c.l.b16 %v311
      %v1004 = vunpack.c.h.b16 %v311
      %v1005 = vunpack.c.l.b16 %v312
      %v1006 = vunpack.c.h.b16 %v312
      %v1007 = vunpack.c.l.b16 %v313
      %v1008 = vunpack.c.l.b16 %v314
      %v1009 = vunpack.c.h.b16 %v314
      %v1010 = vunpack.c.l.b16 %v315
      %v1011 = vunpack.c.h.b16 %v315
      %v1012 = vunpack.c.l.b16 %v316
      %v1013 = vunpack.c.l.b16 %v317
      %v1014 = vunpack.c.h.b16 %v317
      %v1015 = vunpack.c.l.b16 %v318
      %v1016 = vunpack.c.h.b16 %v318
      %v1017 = vunpack.c.l.b16 %v319
      %v1018 = vunpack.c.l.b16 %v320
      %v1019 = vunpack.c.h.b16 %v320
      %v1020 = vunpack.c.l.b16 %v321
      %v1021 = vunpack.c.h.b16 %v321
      %v1022 = vunpack.c.l.b16 %v322
      %v1023 = vunpack.c.l.b16 %v323
      %v1024 = vunpack.c.h.b16 %v323
      %v1025 = vunpack.c.l.b16 %v324
      %v1026 = vunpack.c.h.b16 %v324
      %v1027 = vunpack.c.l.b16 %v325
      %v1028 = vunpack.c.l.b16 %v326
      %v1029 = vunpack.c.h.b16 %v326
      %v1030 = vunpack.c.l.b16 %v327
      %v1031 = vunpack.c.h.b16 %v327
      %v1032 = vunpack.c.l.b16 %v328
      %v1033 = vunpack.c.l.b16 %v329
      %v1034 = vunpack.c.h.b16 %v329
      %v1035 = vunpack.c.l.b16 %v330
      %v1036 = vunpack.c.h.b16 %v330
      %v1037 = vunpack.c.l.b16 %v331
      %v1038 = vunpack.c.l.b16 %v332
      %v1039 = vunpack.c.h.b16 %v332
      %v1040 = vunpack.c.l.b16 %v333
      %v1041 = vunpack.c.h.b16 %v333
      %v1042 = vunpack.c.l.b16 %v334
      %v1043 = vunpack.c.l.b16 %v335
      %v1044 = vunpack.c.h.b16 %v335
      %v1045 = vunpack.c.l.b16 %v336
      %v1046 = vunpack.c.h.b16 %v336
      %v1047 = vunpack.c.l.b16 %v337
      %v1048 = vunpack.c.l.b16 %v338
      %v1049 = vunpack.c.h.b16 %v338
      %v1050 = vunpack.c.l.b16 %v339
      %v1051 = vunpack.c.h.b16 %v339
      %v1052 = vunpack.c.l.b16 %v340
      %v1053 = vunpack.c.l.b16 %v341
      %v1054 = vunpack.c.h.b16 %v341
      %v1055 = vunpack.c.l.b16 %v342
      %v1056 = vunpack.c.h.b16 %v342
      %v1057 = vunpack.c.l.b16 %v343
      %v1058 = vunpack.c.l.b16 %v344
      %v1059 = vunpack.c.h.b16 %v344
      %v1060 = vunpack.c.l.b16 %v345
      %v1061 = vunpack.c.h.b16 %v345
      %v1062 = vunpack.c.l.b16 %v346
      %v1063 = vunpack.c.l.b16 %v347
      %v1064 = vunpack.c.h.b16 %v347
      %v1065 = vunpack.c.l.b16 %v348
      %v1066 = vunpack.c.h.b16 %v348
      %v1067 = vunpack.c.l.b16 %v349
      %v1068 = vunpack.c.l.b16 %v350
      %v1069 = vunpack.c.h.b16 %v350
      %v1070 = vunpack.c.l.b16 %v351
      %v1071 = vunpack.c.h.b16 %v351
      %v1072 = vunpack.c.l.b16 %v352
      %v1073 = vunpack.c.l.b16 %v353
      %v1074 = vunpack.c.h.b16 %v353
      %v1075 = vunpack.c.l.b16 %v354
      %v1076 = vunpack.c.h.b16 %v354
      %v1077 = vunpack.c.l.b16 %v355
      %v1078 = vunpack.c.l.b16 %v356
      %v1079 = vunpack.c.h.b16 %v356
      %v1080 = vunpack.c.l.b16 %v357
      %v1081 = vunpack.c.h.b16 %v357
      %v1082 = vunpack.c.l.b16 %v358
      %v1083 = vunpack.c.l.b16 %v359
      %v1084 = vunpack.c.h.b16 %v359
      %v1085 = vunpack.c.l.b16 %v360
      %v1086 = vunpack.c.h.b16 %v360
      %v1087 = vunpack.c.l.b16 %v361
      %v1088 = vunpack.c.l.b16 %v362
      %v1089 = vunpack.c.h.b16 %v362
      %v1090 = vunpack.c.l.b16 %v363
      %v1091 = vunpack.c.h.b16 %v363
      %v1092 = vunpack.c.l.b16 %v364
      %v1093 = vunpack.c.l.b16 %v365
      %v1094 = vunpack.c.h.b16 %v365
      %v1095 = vunpack.c.l.b16 %v366
      %v1096 = vunpack.c.h.b16 %v366
      %v1097 = vunpack.c.l.b16 %v367
      %v1098 = vunpack.c.l.b16 %v368
      %v1099 = vunpack.c.h.b16 %v368
      %v1100 = vunpack.c.l.b16 %v369
      %v1101 = vunpack.c.h.b16 %v369
      %v1102 = vunpack.c.l.b16 %v370
      %v1103 = vunpack.c.l.b16 %v371
      %v1104 = vunpack.c.h.b16 %v371
      %v1105 = vunpack.c.l.b16 %v372
      %v1106 = vunpack.c.h.b16 %v372
      %v1107 = vunpack.c.l.b16 %v373
      %v1108 = vunpack.c.l.b16 %v374
      %v1109 = vunpack.c.h.b16 %v374
      %v1110 = vunpack.c.l.b16 %v375
      %v1111 = vunpack.c.h.b16 %v375
      %v1112 = vunpack.c.l.b16 %v376
      %v1113 = vunpack.c.l.b16 %v377
      %v1114 = vunpack.c.h.b16 %v377
      %v1115 = vunpack.c.l.b16 %v378
      %v1116 = vunpack.c.h.b16 %v378
      %v1117 = vunpack.c.l.b16 %v379
      %v1118 = vunpack.c.l.b16 %v380
      %v1119 = vunpack.c.h.b16 %v380
      %v1120 = vunpack.c.l.b16 %v381
      %v1121 = vunpack.c.h.b16 %v381
      %v1122 = vunpack.c.l.b16 %v382
      %v1123 = vunpack.c.l.b16 %v383
      %v1124 = vunpack.c.h.b16 %v383
      %v1125 = vunpack.c.l.b16 %v384
      %v1126 = vunpack.c.h.b16 %v384
      %v1127 = vunpack.c.l.b16 %v385
      %v1128 = vunpack.c.l.b16 %v386
      %v1129 = vunpack.c.h.b16 %v386
      %v1130 = vunpack.c.l.b16 %v387
      %v1131 = vunpack.c.h.b16 %v387
      %v1132 = vunpack.c.l.b16 %v388
      %v1133 = vunpack.c.l.b16 %v389
      %v1134 = vunpack.c.h.b16 %v389
      %v1135 = vunpack.c.l.b16 %v390
      %v1136 = vunpack.c.h.b16 %v390
      %v1137 = vunpack.c.l.b16 %v391
      %v1138 = vunpack.c.l.b16 %v392
      %v1139 = vunpack.c.h.b16 %v392
      %v1140 = vunpack.c.l.b16 %v393
      %v1141 = vunpack.c.h.b16 %v393
      %v1142 = vunpack.c.l.b16 %v394
      %v1143 = vunpack.c.l.b16 %v395
      %v1144 = vunpack.c.h.b16 %v395
      %v1145 = vunpack.c.l.b16 %v396
      %v1146 = vunpack.c.h.b16 %v396
      %v1147 = vunpack.c.l.b16 %v397
      %v1148 = vunpack.c.l.b16 %v398
      %v1149 = vunpack.c.h.b16 %v398
      %v1150 = vunpack.c.l.b16 %v399
      %v1151 = vunpack.c.h.b16 %v399
      %v1152 = vunpack.c.l.b16 %v400
      %v1153 = vunpack.c.l.b16 %v401
      %v1154 = vunpack.c.h.b16 %v401
      %v1155 = vunpack.c.l.b16 %v402
      %v1156 = vunpack.c.h.b16 %v402
      %v1157 = vunpack.c.l.b16 %v403
      %v1158 = vunpack.c.l.b16 %v404
      %v1159 = vunpack.c.h.b16 %v404
      %v1160 = vunpack.c.l.b16 %v405
      %v1161 = vunpack.c.h.b16 %v405
      %v1162 = vunpack.c.l.b16 %v406
      %v1163 = vunpack.c.l.b16 %v407
      %v1164 = vunpack.c.h.b16 %v407
      %v1165 = vunpack.c.l.b16 %v408
      %v1166 = vunpack.c.h.b16 %v408
      %v1167 = vunpack.c.l.b16 %v409
      %v1168 = vunpack.c.l.b16 %v410
      %v1169 = vunpack.c.h.b16 %v410
      %v1170 = vunpack.c.l.b16 %v411
      %v1171 = vunpack.c.h.b16 %v411
      %v1172 = vunpack.c.l.b16 %v412
      %v1173 = vunpack.c.l.b16 %v413
      %v1174 = vunpack.c.h.b16 %v413
      %v1175 = vunpack.c.l.b16 %v414
      %v1176 = vunpack.c.h.b16 %v414
      %v1177 = vunpack.c.l.b16 %v415
      %v1178 = vunpack.c.l.b16 %v416
      %v1179 = vunpack.c.h.b16 %v416
      %v1180 = vunpack.c.l.b16 %v417
      %v1181 = vunpack.c.h.b16 %v417
      %v1182 = vunpack.c.l.b16 %v418
      %v1183 = vunpack.c.l.b16 %v419
      %v1184 = vunpack.c.h.b16 %v419
      %v1185 = vunpack.c.l.b16 %v420
      %v1186 = vunpack.c.h.b16 %v420
      %v1187 = vunpack.c.l.b16 %v421
      %v1188 = vunpack.c.l.b16 %v422
      %v1189 = vunpack.c.h.b16 %v422
      %v1190 = vunpack.c.l.b16 %v423
      %v1191 = vunpack.c.h.b16 %v423
      %v1192 = vunpack.c.l.b16 %v424
      %v1193 = vunpack.c.l.b16 %v425
      %v1194 = vunpack.c.h.b16 %v425
      %v1195 = vunpack.c.l.b16 %v426
      %v1196 = vunpack.c.h.b16 %v426
      %v1197 = vunpack.c.l.b16 %v427
      %v1198 = vunpack.c.l.b16 %v428
      %v1199 = vunpack.c.h.b16 %v428
      %v1200 = vunpack.c.l.b16 %v429
      %v1201 = vunpack.c.h.b16 %v429
      %v1202 = vunpack.c.l.b16 %v430
      %v1203 = vunpack.c.l.b16 %v431
      %v1204 = vunpack.c.h.b16 %v431
      %v1205 = vunpack.c.l.b16 %v432
      %v1206 = vunpack.c.h.b16 %v432
      %v1207 = vunpack.c.l.b16 %v433
      %v1208 = vunpack.c.l.b16 %v434
      %v1209 = vunpack.c.h.b16 %v434
      %v1210 = vunpack.c.l.b16 %v435
      %v1211 = vunpack.c.h.b16 %v435
      %v1212 = vunpack.c.l.b16 %v436
      %v1213 = vunpack.c.l.b16 %v437
      %v1214 = vunpack.c.h.b16 %v437
      %v1215 = vunpack.c.l.b16 %v438
      %v1216 = vunpack.c.h.b16 %v438
      %v1217 = vunpack.c.l.b16 %v439
      %v1218 = vunpack.c.l.b16 %v440
      %v1219 = vunpack.c.h.b16 %v440
      %v1220 = vunpack.c.l.b16 %v441
      %v1221 = vunpack.c.h.b16 %v441
      %v1222 = vunpack.c.l.b16 %v442
      %v1223 = vunpack.c.l.b16 %v443
      %v1224 = vunpack.c.h.b16 %v443
      %v1225 = vunpack.c.l.b16 %v444
      %v1226 = vunpack.c.h.b16 %v444
      %v1227 = vunpack.c.l.b16 %v445
      %v1228 = vunpack.c.l.b16 %v446
      %v1229 = vunpack.c.h.b16 %v446
      %v1230 = vunpack.c.l.b16 %v447
      %v1231 = vunpack.c.h.b16 %v447
      %v1232 = vunpack.c.l.b16 %v448
      %v1233 = vunpack.c.l.b16 %v449
      %v1234 = vunpack.c.h.b16 %v449
      %v1235 = vunpack.c.l.b16 %v450
      %v1236 = vunpack.c.h.b16 %v450
      %v1237 = vunpack.c.l.b16 %v451
      %v1238 = vunpack.c.l.b16 %v452
      %v1239 = vunpack.c.h.b16 %v452
      %v1240 = vunpack.c.l.b16 %v453
      %v1241 = vunpack.c.h.b16 %v453
      %v1242 = vunpack.c.l.b16 %v454
      %v1243 = vunpack.c.l.b16 %v455
      %v1244 = vunpack.c.h.b16 %v455
      %v1245 = vunpack.c.l.b16 %v456
      %v1246 = vunpack.c.h.b16 %v456
      %v1247 = vunpack.c.l.b16 %v457
      %v1248 = vunpack.c.l.b16 %v458
      %v1249 = vunpack.c.h.b16 %v458
      %v1250 = vunpack.c.l.b16 %v459
      %v1251 = vunpack.c.h.b16 %v459
      %v1252 = vunpack.c.l.b16 %v460
      %v1253 = vunpack.c.l.b16 %v461
      %v1254 = vunpack.c.h.b16 %v461
      %v1255 = vunpack.c.l.b16 %v462
      %v1256 = vunpack.c.h.b16 %v462
      %v1257 = vunpack.c.l.b16 %v463
      %v1258 = vunpack.c.l.b16 %v464
      %v1259 = vunpack.c.h.b16 %v464
      %v1260 = vunpack.c.l.b16 %v465
      %v1261 = vunpack.c.h.b16 %v465
      %v1262 = vunpack.c.l.b16 %v466
      %v1263 = vunpack.c.l.b16 %v467
      %v1264 = vunpack.c.h.b16 %v467
      %v1265 = vunpack.c.l.b16 %v468
      %v1266 = vunpack.c.h.b16 %v468
      %v1267 = vunpack.c.l.b16 %v469
      %v1268 = vunpack.c.l.b16 %v470
      %v1269 = vunpack.c.h.b16 %v470
      %v1270 = vunpack.c.l.b16 %v471
      %v1271 = vunpack.c.h.b16 %v471
      %v1272 = vunpack.c.l.b16 %v472
      %v1273 = vunpack.c.l.b16 %v473
      %v1274 = vunpack.c.h.b16 %v473
      %v1275 = vunpack.c.l.b16 %v474
      %v1276 = vunpack.c.h.b16 %v474
      %v1277 = vunpack.c.l.b16 %v475
      %v1278 = vunpack.c.l.b16 %v476
      %v1279 = vunpack.c.h.b16 %v476
      %v1280 = vunpack.c.l.b16 %v477
      %v1281 = vunpack.c.h.b16 %v477
      %v1282 = vunpack.c.l.b16 %v478
      %v1283 = vunpack.c.l.b16 %v479
      %v1284 = vunpack.c.h.b16 %v479
      %v1285 = vunpack.c.l.b16 %v480
      %v1286 = vunpack.c.h.b16 %v480
      %v1287 = vunpack.c.l.b16 %v481
      %v1288 = vunpack.c.l.b16 %v482
      %v1289 = vunpack.c.h.b16 %v482
      %v1290 = vunpack.c.l.b16 %v483
      %v1291 = vunpack.c.h.b16 %v483
      %v1292 = vunpack.c.l.b16 %v484
      %v1293 = vunpack.c.l.b16 %v485
      %v1294 = vunpack.c.h.b16 %v485
      %v1295 = vunpack.c.l.b16 %v486
      %v1296 = vunpack.c.h.b16 %v486
      %v1297 = vunpack.c.l.b16 %v487
      %v1298 = vunpack.c.l.b16 %v488
      %v1299 = vunpack.c.h.b16 %v488
      %v1300 = vunpack.c.l.b16 %v489
      %v1301 = vunpack.c.h.b16 %v489
      %v1302 = vunpack.c.l.b16 %v490
      %v1303 = vunpack.c.l.b16 %v491
      %v1304 = vunpack.c.h.b16 %v491
      %v1305 = vunpack.c.l.b16 %v492
      %v1306 = vunpack.c.h.b16 %v492
      %v1307 = vunpack.c.l.b16 %v493
      %v1308 = vunpack.c.l.b16 %v494
      %v1309 = vunpack.c.h.b16 %v494
      %v1310 = vunpack.c.l.b16 %v495
      %v1311 = vunpack.c.h.b16 %v495
      %v1312 = vunpack.c.l.b16 %v496
      %v1313 = vunpack.c.l.b16 %v497
      %v1314 = vunpack.c.h.b16 %v497
      %v1315 = vunpack.c.l.b16 %v498
      %v1316 = vunpack.c.h.b16 %v498
      %v1317 = vunpack.c.l.b16 %v499
      %v1318 = vunpack.c.l.b16 %v500
      %v1319 = vunpack.c.h.b16 %v500
      %v1320 = vunpack.c.l.b16 %v501
      %v1321 = vunpack.c.h.b16 %v501
      %v1322 = vunpack.c.l.b16 %v502
      %v1323 = vunpack.c.l.b16 %v503
      %v1324 = vunpack.c.h.b16 %v503
      %v1325 = vunpack.c.l.b16 %v504
      %v1326 = vunpack.c.h.b16 %v504
      %v1327 = vunpack.c.l.b16 %v505
      %v1328 = vunpack.c.l.b16 %v506
      %v1329 = vunpack.c.h.b16 %v506
      %v1330 = vunpack.c.l.b16 %v507
      %v1331 = vunpack.c.h.b16 %v507
      %v1332 = vunpack.c.l.b16 %v508
      %v1333 = vunpack.c.l.b16 %v509
      %v1334 = vunpack.c.h.b16 %v509
      %v1335 = vunpack.c.l.b16 %v510
      %v1336 = vunpack.c.h.b16 %v510
      %v1337 = vunpack.c.l.b16 %v511
      %v1338 = vunpack.c.l.b16 %v512
      %v1339 = vunpack.c.h.b16 %v512
      %v1340 = vunpack.c.l.b16 %v513
      %v1341 = vunpack.c.h.b16 %v513
      %v1342 = vunpack.c.l.b16 %v514
      %v1343 = vunpack.c.l.b16 %v515
      %v1344 = vunpack.c.h.b16 %v515
      %v1345 = vunpack.c.l.b16 %v516
      %v1346 = vunpack.c.h.b16 %v516
      %v1347 = vunpack.c.l.b16 %v517
      %v1348 = vunpack.c.l.b16 %v518
      %v1349 = vunpack.c.h.b16 %v518
      %v1350 = vunpack.c.l.b16 %v519
      %v1351 = vunpack.c.h.b16 %v519
      %v1352 = vunpack.c.l.b16 %v520
      %v1353 = vunpack.c.l.b16 %v521
      %v1354 = vunpack.c.h.b16 %v521
      %v1355 = vunpack.c.l.b16 %v522
      %v1356 = vunpack.c.h.b16 %v522
      %v1357 = vunpack.c.l.b16 %v523
      %v1358 = vunpack.c.l.b16 %v524
      %v1359 = vunpack.c.h.b16 %v524
      %v1360 = vunpack.c.l.b16 %v525
      %v1361 = vunpack.c.h.b16 %v525
      %v1362 = vunpack.c.l.b16 %v526
      %v1363 = vunpack.c.l.b16 %v527
      %v1364 = vunpack.c.h.b16 %v527
      %v1365 = vunpack.c.l.b16 %v528
      %v1366 = vunpack.c.h.b16 %v528
      %v1367 = vunpack.c.l.b16 %v529
      %v1368 = vunpack.c.l.b16 %v530
      %v1369 = vunpack.c.h.b16 %v530
      %v1370 = vunpack.c.l.b16 %v531
      %v1371 = vunpack.c.h.b16 %v531
      %v1372 = vunpack.c.l.b16 %v532
      %v1373 = vunpack.c.l.b16 %v533
      %v1374 = vunpack.c.h.b16 %v533
      %v1375 = vunpack.c.l.b16 %v534
      %v1376 = vunpack.c.h.b16 %v534
      %v1377 = vunpack.c.l.b16 %v535
      %v1378 = vunpack.c.l.b16 %v536
      %v1379 = vunpack.c.h.b16 %v536
      %v1380 = vunpack.c.l.b16 %v537
      %v1381 = vunpack.c.h.b16 %v537
      %v1382 = vunpack.c.l.b16 %v538
      %v1383 = vunpack.c.l.b16 %v539
      %v1384 = vunpack.c.h.b16 %v539
      %v1385 = vunpack.c.l.b16 %v540
      %v1386 = vunpack.c.h.b16 %v540
      %v1387 = vunpack.c.l.b16 %v541
      %v1388 = vunpack.c.l.b16 %v542
      %v1389 = vunpack.c.h.b16 %v542
      %v1390 = vunpack.c.l.b16 %v543
      %v1391 = vunpack.c.h.b16 %v543
      %v1392 = vunpack.c.l.b16 %v544
      %v1393 = vunpack.c.l.b16 %v545
      %v1394 = vunpack.c.h.b16 %v545
      %v1395 = vunpack.c.l.b16 %v546
      %v1396 = vunpack.c.h.b16 %v546
      %v1397 = vunpack.c.l.b16 %v547
      %v1398 = vunpack.c.l.b16 %v548
      %v1399 = vunpack.c.h.b16 %v548
      %v1400 = vunpack.c.l.b16 %v549
      %v1401 = vunpack.c.h.b16 %v549
      %v1402 = vunpack.c.l.b16 %v550
      %v1403 = vunpack.c.l.b16 %v551
      %v1404 = vunpack.c.h.b16 %v551
      %v1405 = vunpack.c.l.b16 %v552
      %v1406 = vunpack.c.h.b16 %v552
      %v1407 = vunpack.c.l.b16 %v553
      %v1408 = vunpack.c.l.b16 %v554
      %v1409 = vunpack.c.h.b16 %v554
      %v1410 = vunpack.c.l.b16 %v555
      %v1411 = vunpack.c.h.b16 %v555
      %v1412 = vunpack.c.l.b16 %v556
      %v1413 = vunpack.c.l.b16 %v557
      %v1414 = vunpack.c.h.b16 %v557
      %v1415 = vunpack.c.l.b16 %v558
      %v1416 = vunpack.c.h.b16 %v558
      %v1417 = vunpack.c.l.b16 %v559
      %v1418 = vunpack.c.l.b16 %v560
      %v1419 = vunpack.c.h.b16 %v560
      %v1420 = vunpack.c.l.b16 %v561
      %v1421 = vunpack.c.h.b16 %v561
      %v1422 = vunpack.c.l.b16 %v562
      %v1423 = vunpack.c.l.b16 %v563
      %v1424 = vunpack.c.h.b16 %v563
      %v1425 = vunpack.c.l.b16 %v564
      %v1426 = vunpack.c.h.b16 %v564
      %v1427 = vunpack.c.l.b16 %v565
      %v1428 = vunpack.c.l.b16 %v566
      %v1429 = vunpack.c.h.b16 %v566
      %v1430 = vunpack.c.l.b16 %v567
      %v1431 = vunpack.c.h.b16 %v567
      %v1432 = vunpack.c.l.b16 %v568
      %v1433 = vunpack.c.l.b16 %v569
      %v1434 = vunpack.c.h.b16 %v569
      %v1435 = vunpack.c.l.b16 %v570
      %v1436 = vunpack.c.h.b16 %v570
      %v1437 = vunpack.c.l.b16 %v571
      %v1438 = vunpack.c.l.b16 %v572
      %v1439 = vunpack.c.h.b16 %v572
      %v1440 = vunpack.c.l.b16 %v573
      %v1441 = vunpack.c.h.b16 %v573
      %v1442 = vunpack.c.l.b16 %v574
      %v1443 = vunpack.c.l.b16 %v575
      %v1444 = vunpack.c.h.b16 %v575
      %v1445 = vunpack.c.l.b16 %v576
      %v1446 = vunpack.c.h.b16 %v576
      %v1447 = vunpack.c.l.b16 %v577
      %v1448 = vunpack.c.l.b16 %v578
      %v1449 = vunpack.c.h.b16 %v578
      %v1450 = vunpack.c.l.b16 %v579
      %v1451 = vunpack.c.h.b16 %v579
      %v1452 = vunpack.c.l.b16 %v580
      %v1453 = vunpack.c.l.b16 %v581
      %v1454 = vunpack.c.h.b16 %v581
      %v1455 = vunpack.c.l.b16 %v582
      %v1456 = vunpack.c.h.b16 %v582
      %v1457 = vunpack.c.l.b16 %v583
      %v1458 = vunpack.c.l.b16 %v584
      %v1459 = vunpack.c.h.b16 %v584
      %v1460 = vunpack.c.l.b16 %v585
      %v1461 = vunpack.c.h.b16 %v585
      %v1462 = vunpack.c.l.b16 %v586
      %v1463 = vunpack.c.l.b16 %v587
      %v1464 = vunpack.c.h.b16 %v587
      %v1465 = vunpack.c.l.b16 %v588
      %v1466 = vunpack.c.h.b16 %v588
      %v1467 = vunpack.c.l.b16 %v589
      %v1468 = vunpack.c.l.b16 %v590
      %v1469 = vunpack.c.h.b16 %v590
      %v1470 = vunpack.c.l.b16 %v591
      %v1471 = vunpack.c.h.b16 %v591
      %v1472 = vunpack.c.l.b16 %v592
      %v1473 = vunpack.c.l.b16 %v593
      %v1474 = vunpack.c.h.b16 %v593
      %v1475 = vunpack.c.l.b16 %v594
      %v1476 = vunpack.c.h.b16 %v594
      %v1477 = vunpack.c.l.b16 %v595
      %v1478 = vunpack.c.l.b16 %v596
      %v1479 = vunpack.c.h.b16 %v596
      %v1480 = vunpack.c.l.b16 %v597
      %v1481 = vunpack.c.h.b16 %v597
      %v1482 = vunpack.c.l.b16 %v598
      %v1483 = vunpack.c.l.b16 %v599
      %v1484 = vunpack.c.h.b16 %v599
      %v1485 = vunpack.c.l.b16 %v600
      %v1486 = vunpack.c.h.b16 %v600
      %v1487 = vunpack.c.l.b16 %v601
      %v1488 = vunpack.c.l.b16 %v602
      %v1489 = vunpack.c.h.b16 %v602
      %v1490 = vunpack.c.l.b16 %v603
      %v1491 = vunpack.c.h.b16 %v603
      %v1492 = vunpack.c.l.b16 %v604
      %v1493 = vunpack.c.l.b16 %v605
      %v1494 = vunpack.c.h.b16 %v605
      %v1495 = vunpack.c.l.b16 %v606
      %v1496 = vunpack.c.h.b16 %v606
      %v1497 = vunpack.c.l.b16 %v607
      %v1498 = vunpack.c.l.b16 %v608
      %v1499 = vunpack.c.h.b16 %v608
      %v1500 = vunpack.c.l.b16 %v609
      %v1501 = vunpack.c.h.b16 %v609
      %v1502 = vunpack.c.l.b16 %v610
      %v1503 = vunpack.c.l.b16 %v611
      %v1504 = vunpack.c.h.b16 %v611
      %v1505 = vunpack.c.l.b16 %v612
      %v1506 = vunpack.c.h.b16 %v612
      %v1507 = vunpack.c.l.b16 %v613
      %v1508 = vunpack.c.l.b16 %v614
      %v1509 = vunpack.c.h.b16 %v614
      %v1510 = vunpack.c.l.b16 %v615
      %v1511 = vunpack.c.h.b16 %v615
      %v1512 = vunpack.c.l.b16 %v616
      %v1513 = vunpack.c.l.b16 %v617
      %v1514 = vunpack.c.h.b16 %v617
      %v1515 = vunpack.c.l.b16 %v618
      %v1516 = vunpack.c.h.b16 %v618
      %v1517 = vunpack.c.l.b16 %v619
      %v1518 = vpack.c.b16 %v963, %v958
      %v1519 = vpack.c.b16 %v964, %v959
      %v1520 = vpack.c.b16 %v965, %v960
      %v1521 = vpack.c.b16 %v966, %v961
      %v1522 = vpack.c.b16 %v967, %v962
      %v1523 = vpack.c.b16 %v973, %v968
      %v1524 = vpack.c.b16 %v974, %v969
      %v1525 = vpack.c.b16 %v975, %v970
      %v1526 = vpack.c.b16 %v976, %v971
      %v1527 = vpack.c.b16 %v977, %v972
      %v1528 = vpack.c.b16 %v983, %v978
      %v1529 = vpack.c.b16 %v984, %v979
      %v1530 = vpack.c.b16 %v985, %v980
      %v1531 = vpack.c.b16 %v986, %v981
      %v1532 = vpack.c.b16 %v987, %v982
      %v1533 = vpack.c.b16 %v993, %v988
      %v1534 = vpack.c.b16 %v994, %v989
      %v1535 = vpack.c.b16 %v995, %v990
      %v1536 = vpack.c.b16 %v996, %v991
      %v1537 = vpack.c.b16 %v997, %v992
      %v1538 = vpack.c.b16 %v1003, %v998
      %v1539 = vpack.c.b16 %v1004, %v999
      %v1540 = vpack.c.b16 %v1005, %v1000
      %v1541 = vpack.c.b16 %v1006, %v1001
      %v1542 = vpack.c.b16 %v1007, %v1002
      %v1543 = vpack.c.b16 %v1013, %v1008
      %v1544 = vpack.c.b16 %v1014, %v1009
      %v1545 = vpack.c.b16 %v1015, %v1010
      %v1546 = vpack.c.b16 %v1016, %v1011
      %v1547 = vpack.c.b16 %v1017, %v1012
      %v1548 = vpack.c.b16 %v1023, %v1018
      %v1549 = vpack.c.b16 %v1024, %v1019
      %v1550 = vpack.c.b16 %v1025, %v1020
      %v1551 = vpack.c.b16 %v1026, %v1021
      %v1552 = vpack.c.b16 %v1027, %v1022
      %v1553 = vpack.c.b16 %v1033, %v1028
      %v1554 = vpack.c.b16 %v1034, %v1029
      %v1555 = vpack.c.b16 %v1035, %v1030
      %v1556 = vpack.c.b16 %v1036, %v1031
      %v1557 = vpack.c.b16 %v1037, %v1032
      %v1558 = vpack.c.b16 %v1043, %v1038
      %v1559 = vpack.c.b16 %v1044, %v1039
      %v1560 = vpack.c.b16 %v1045, %v1040
      %v1561 = vpack.c.b16 %v1046, %v1041
      %v1562 = vpack.c.b16 %v1047, %v1042
      %v1563 = vpack.c.b16 %v1053, %v1048
      %v1564 = vpack.c.b16 %v1054, %v1049
      %v1565 = vpack.c.b16 %v1055, %v1050
      %v1566 = vpack.c.b16 %v1056, %v1051
      %v1567 = vpack.c.b16 %v1057, %v1052
      %v1568 = vpack.c.b16 %v1063, %v1058
      %v1569 = vpack.c.b16 %v1064, %v1059
      %v1570 = vpack.c.b16 %v1065, %v1060
      %v1571 = vpack.c.b16 %v1066, %v1061
      %v1572 = vpack.c.b16 %v1067, %v1062
      %v1573 = vpack.c.b16 %v1073, %v1068
      %v1574 = vpack.c.b16 %v1074, %v1069
      %v1575 = vpack.c.b16 %v1075, %v1070
      %v1576 = vpack.c.b16 %v1076, %v1071
      %v1577 = vpack.c.b16 %v1077, %v1072
      %v1578 = vpack.c.b16 %v1083, %v1078
      %v1579 = vpack.c.b16 %v1084, %v1079
      %v1580 = vpack.c.b16 %v1085, %v1080
      %v1581 = vpack.c.b16 %v1086, %v1081
      %v1582 = vpack.c.b16 %v1087, %v1082
      %v1583 = vpack.c.b16 %v1093, %v1088
      %v1584 = vpack.c.b16 %v1094, %v1089
      %v1585 = vpack.c.b16 %v1095, %v1090
      %v1586 = vpack.c.b16 %v1096, %v1091
      %v1587 = vpack.c.b16 %v1097, %v1092
      %v1588 = vpack.c.b16 %v1103, %v1098
      %v1589 = vpack.c.b16 %v1104, %v1099
      %v1590 = vpack.c.b16 %v1105, %v1100
      %v1591 = vpack.c.b16 %v1106, %v1101
      %v1592 = vpack.c.b16 %v1107, %v1102
      %v1593 = vpack.c.b16 %v1113, %v1108
      %v1594 = vpack.c.b16 %v1114, %v1109
      %v1595 = vpack.c.b16 %v1115, %v1110
      %v1596 = vpack.c.b16 %v1116, %v1111
      %v1597 = vpack.c.b16 %v1117, %v1112
      %v1598 = vpack.c.b16 %v1123, %v1118
      %v1599 = vpack.c.b16 %v1124, %v1119
      %v1600 = vpack.c.b16 %v1125, %v1120
      %v1601 = vpack.c.b16 %v1126, %v1121
      %v1602 = vpack.c.b16 %v1127, %v1122
      %v1603 = vpack.c.b16 %v1133, %v1128
      %v1604 = vpack.c.b16 %v1134, %v1129
      %v1605 = vpack.c.b16 %v1135, %v1130
      %v1606 = vpack.c.b16 %v1136, %v1131
      %v1607 = vpack.c.b16 %v1137, %v1132
      %v1608 = vpack.c.b16 %v1143, %v1138
      %v1609 = vpack.c.b16 %v1144, %v1139
      %v1610 = vpack.c.b16 %v1145, %v1140
      %v1611 = vpack.c.b16 %v1146, %v1141
      %v1612 = vpack.c.b16 %v1147, %v1142
      %v1613 = vpack.c.b16 %v1153, %v1148
      %v1614 = vpack.c.b16 %v1154, %v1149
      %v1615 = vpack.c.b16 %v1155, %v1150
      %v1616 = vpack.c.b16 %v1156, %v1151
      %v1617 = vpack.c.b16 %v1157, %v1152
      %v1618 = vpack.c.b16 %v1163, %v1158
      %v1619 = vpack.c.b16 %v1164, %v1159
      %v1620 = vpack.c.b16 %v1165, %v1160
      %v1621 = vpack.c.b16 %v1166, %v1161
      %v1622 = vpack.c.b16 %v1167, %v1162
      %v1623 = vpack.c.b16 %v1173, %v1168
      %v1624 = vpack.c.b16 %v1174, %v1169
      %v1625 = vpack.c.b16 %v1175, %v1170
      %v1626 = vpack.c.b16 %v1176, %v1171
      %v1627 = vpack.c.b16 %v1177, %v1172
      %v1628 = vpack.c.b16 %v1183, %v1178
      %v1629 = vpack.c.b16 %v1184, %v1179
      %v1630 = vpack.c.b16 %v1185, %v1180
      %v1631 = vpack.c.b16 %v1186, %v1181
      %v1632 = vpack.c.b16 %v1187, %v1182
      %v1633 = vpack.c.b16 %v1193, %v1188
      %v1634 = vpack.c.b16 %v1194, %v1189
      %v1635 = vpack.c.b16 %v1195, %v1190
      %v1636 = vpack.c.b16 %v1196, %v1191
      %v1637 = vpack.c.b16 %v1197, %v1192
      %v1638 = vpack.c.b16 %v1203, %v1198
      %v1639 = vpack.c.b16 %v1204, %v1199
      %v1640 = vpack.c.b16 %v1205, %v1200
      %v1641 = vpack.c.b16 %v1206, %v1201
      %v1642 = vpack.c.b16 %v1207, %v1202
      %v1643 = vpack.c.b16 %v1213, %v1208
      %v1644 = vpack.c.b16 %v1214, %v1209
      %v1645 = vpack.c.b16 %v1215, %v1210
      %v1646 = vpack.c.b16 %v1216, %v1211
      %v1647 = vpack.c.b16 %v1217, %v1212
      %v1648 = vpack.c.b16 %v1223, %v1218
      %v1649 = vpack.c.b16 %v1224, %v1219
      %v1650 = vpack.c.b16 %v1225, %v1220
      %v1651 = vpack.c.b16 %v1226, %v1221
      %v1652 = vpack.c.b16 %v1227, %v1222
      %v1653 = vpack.c.b16 %v1233, %v1228
      %v1654 = vpack.c.b16 %v1234, %v1229
      %v1655 = vpack.c.b16 %v1235, %v1230
      %v1656 = vpack.c.b16 %v1236, %v1231
      %v1657 = vpack.c.b16 %v1237, %v1232
      %v1658 = vpack.c.b16 %v1243, %v1238
      %v1659 = vpack.c.b16 %v1244, %v1239
      %v1660 = vpack.c.b16 %v1245, %v1240
      %v1661 = vpack.c.b16 %v1246, %v1241
      %v1662 = vpack.c.b16 %v1247, %v1242
      %v1663 = vpack.c.b16 %v1253, %v1248
      %v1664 = vpack.c.b16 %v1254, %v1249
      %v1665 = vpack.c.b16 %v1255, %v1250
      %v1666 = vpack.c.b16 %v1256, %v1251
      %v1667 = vpack.c.b16 %v1257, %v1252
      %v1668 = vpack.c.b16 %v1263, %v1258
      %v1669 = vpack.c.b16 %v1264, %v1259
      %v1670 = vpack.c.b16 %v1265, %v1260
      %v1671 = vpack.c.b16 %v1266, %v1261
      %v1672 = vpack.c.b16 %v1267, %v1262
      %v1673 = vpack.c.b16 %v1273, %v1268
      %v1674 = vpack.c.b16 %v1274, %v1269
      %v1675 = vpack.c.b16 %v1275, %v1270
      %v1676 = vpack.c.b16 %v1276, %v1271
      %v1677 = vpack.c.b16 %v1277, %v1272
      %v1678 = vpack.c.b16 %v1283, %v1278
      %v1679 = vpack.c.b16 %v1284, %v1279
      %v1680 = vpack.c.b16 %v1285, %v1280
      %v1681 = vpack.c.b16 %v1286, %v1281
      %v1682 = vpack.c.b16 %v1287, %v1282
      %v1683 = vpack.c.b16 %v1293, %v1288
      %v1684 = vpack.c.b16 %v1294, %v1289
      %v1685 = vpack.c.b16 %v1295, %v1290
      %v1686 = vpack.c.b16 %v1296, %v1291
      %v1687 = vpack.c.b16 %v1297, %v1292
      %v1688 = vpack.c.b16 %v1303, %v1298
      %v1689 = vpack.c.b16 %v1304, %v1299
      %v1690 = vpack.c.b16 %v1305, %v1300
      %v1691 = vpack.c.b16 %v1306, %v1301
      %v1692 = vpack.c.b16 %v1307, %v1302
      %v1693 = vpack.c.b16 %v1313, %v1308
      %v1694 = vpack.c.b16 %v1314, %v1309
      %v1695 = vpack.c.b16 %v1315, %v1310
      %v1696 = vpack.c.b16 %v1316, %v1311
      %v1697 = vpack.c.b16 %v1317, %v1312
      %v1698 = vpack.c.b16 %v1323, %v1318
      %v1699 = vpack.c.b16 %v1324, %v1319
      %v1700 = vpack.c.b16 %v1325, %v1320
      %v1701 = vpack.c.b16 %v1326, %v1321
      %v1702 = vpack.c.b16 %v1327, %v1322
      %v1703 = vpack.c.b16 %v1333, %v1328
      %v1704 = vpack.c.b16 %v1334, %v1329
      %v1705 = vpack.c.b16 %v1335, %v1330
      %v1706 = vpack.c.b16 %v1336, %v1331
      %v1707 = vpack.c.b16 %v1337, %v1332
      %v1708 = vpack.c.b16 %v1343, %v1338
      %v1709 = vpack.c.b16 %v1344, %v1339
      %v1710 = vpack.c.b16 %v1345, %v1340
      %v1711 = vpack.c.b16 %v1346, %v1341
      %v1712 = vpack.c.b16 %v1347, %v1342
      %v1713 = vpack.c.b16 %v1353, %v1348
      %v1714 = vpack.c.b16 %v1354, %v1349
      %v1715 = vpack.c.b16 %v1355, %v1350
      %v1716 = vpack.c.b16 %v1356, %v1351
      %v1717 = vpack.c.b16 %v1357, %v1352
      %v1718 = vpack.c.b16 %v1363, %v1358
      %v1719 = vpack.c.b16 %v1364, %v1359
      %v1720 = vpack.c.b16 %v1365, %v1360
      %v1721 = vpack.c.b16 %v1366, %v1361
      %v1722 = vpack.c.b16 %v1367, %v1362
      %v1723 = vpack.c.b16 %v1373, %v1368
      %v1724 = vpack.c.b16 %v1374, %v1369
      %v1725 = vpack.c.b16 %v1375, %v1370
      %v1726 = vpack.c.b16 %v1376, %v1371
      %v1727 = vpack.c.b16 %v1377, %v1372
      %v1728 = vpack.c.b16 %v1383, %v1378
      %v1729 = vpack.c.b16 %v1384, %v1379
      %v1730 = vpack.c.b16 %v1385, %v1380
      %v1731 = vpack.c.b16 %v1386, %v1381
      %v1732 = vpack.c.b16 %v1387, %v1382
      %v1733 = vpack.c.b16 %v1393, %v1388
      %v1734 = vpack.c.b16 %v1394, %v1389
      %v1735 = vpack.c.b16 %v1395, %v1390
      %v1736 = vpack.c.b16 %v1396, %v1391
      %v1737 = vpack.c.b16 %v1397, %v1392
      %v1738 = vpack.c.b16 %v1403, %v1398
      %v1739 = vpack.c.b16 %v1404, %v1399
      %v1740 = vpack.c.b16 %v1405, %v1400
      %v1741 = vpack.c.b16 %v1406, %v1401
      %v1742 = vpack.c.b16 %v1407, %v1402
      %v1743 = vpack.c.b16 %v1413, %v1408
      %v1744 = vpack.c.b16 %v1414, %v1409
      %v1745 = vpack.c.b16 %v1415, %v1410
      %v1746 = vpack.c.b16 %v1416, %v1411
      %v1747 = vpack.c.b16 %v1417, %v1412
      %v1748 = vpack.c.b16 %v1423, %v1418
      %v1749 = vpack.c.b16 %v1424, %v1419
      %v1750 = vpack.c.b16 %v1425, %v1420
      %v1751 = vpack.c.b16 %v1426, %v1421
      %v1752 = vpack.c.b16 %v1427, %v1422
      %v1753 = vpack.c.b16 %v1433, %v1428
      %v1754 = vpack.c.b16 %v1434, %v1429
      %v1755 = vpack.c.b16 %v1435, %v1430
      %v1756 = vpack.c.b16 %v1436, %v1431
      %v1757 = vpack.c.b16 %v1437, %v1432
      %v1758 = vpack.c.b16 %v1443, %v1438
      %v1759 = vpack.c.b16 %v1444, %v1439
      %v1760 = vpack.c.b16 %v1445, %v1440
      %v1761 = vpack.c.b16 %v1446, %v1441
      %v1762 = vpack.c.b16 %v1447, %v1442
      %v1763 = vpack.c.b16 %v1453, %v1448
      %v1764 = vpack.c.b16 %v1454, %v1449
      %v1765 = vpack.c.b16 %v1455, %v1450
      %v1766 = vpack.c.b16 %v1456, %v1451
      %v1767 = vpack.c.b16 %v1457, %v1452
      %v1768 = vpack.c.b16 %v1463, %v1458
      %v1769 = vpack.c.b16 %v1464, %v1459
      %v1770 = vpack.c.b16 %v1465, %v1460
      %v1771 = vpack.c.b16 %v1466, %v1461
      %v1772 = vpack.c.b16 %v1467, %v1462
      %v1773 = vpack.c.b16 %v1473, %v1468
      %v1774 = vpack.c.b16 %v1474, %v1469
      %v1775 = vpack.c.b16 %v1475, %v1470
      %v1776 = vpack.c.b16 %v1476, %v1471
      %v1777 = vpack.c.b16 %v1477, %v1472
      %v1778 = vpack.c.b16 %v1483, %v1478
      %v1779 = vpack.c.b16 %v1484, %v1479
      %v1780 = vpack.c.b16 %v1485, %v1480
      %v1781 = vpack.c.b16 %v1486, %v1481
      %v1782 = vpack.c.b16 %v1487, %v1482
      %v1783 = vpack.c.b16 %v1493, %v1488
      %v1784 = vpack.c.b16 %v1494, %v1489
      %v1785 = vpack.c.b16 %v1495, %v1490
      %v1786 = vpack.c.b16 %v1496, %v1491
      %v1787 = vpack.c.b16 %v1497, %v1492
      %v1788 = vpack.c.b16 %v1503, %v1498
      %v1789 = vpack.c.b16 %v1504, %v1499
      %v1790 = vpack.c.b16 %v1505, %v1500
      %v1791 = vpack.c.b16 %v1506, %v1501
      %v1792 = vpack.c.b16 %v1507, %v1502
      %v1793 = vpack.c.b16 %v1513, %v1508
      %v1794 = vpack.c.b16 %v1514, %v1509
      %v1795 = vpack.c.b16 %v1515, %v1510
      %v1796 = vpack.c.b16 %v1516, %v1511
      %v1797 = vpack.c.b16 %v1517, %v1512
      %2080 = vst [vmem:[#allocation1] ss:$4 sm:$0xff] %v620
      %s2081 = scalar_lea.vmem [#allocation1], 32
      %2082 = vst [vmem:[%s2081] ss:$4 sm:$0xff] %v621
      %v2083 = vld.sshfl [vmem:[#allocation1] sm:$0xff pattern:$0x73625140]
      %v2084 = vld.sshfl [vmem:[#allocation1 + $0x8] sm:$0xff pattern:$0x73625140]
      %v2085 = vld.sshfl [vmem:[#allocation1 + $0x10] sm:$0xff pattern:$0x73625140]
      %v2086 = vld.sshfl [vmem:[#allocation1 + $0x18] sm:$0xff pattern:$0x73625140]
      %v2087 = vld.sshfl [vmem:[#allocation1 + $0x20] sm:$0xff pattern:$0x73625140]
      %2093 = vmatpush.bf16.msra.mxu0 %v1553
      %2094 = vmatpush.bf16.msra.mxu0 %v1548
      %2095 = vmatpush.bf16.msra.mxu0 %v1543
      %2096 = vmatpush.bf16.msra.mxu0 %v1538
      %2097 = vmatpush.bf16.msra.mxu0 %v1533
      %2098 = vmatpush.bf16.msra.mxu0 %v1528
      %2099 = vmatpush.bf16.msra.mxu0 %v1523
      %2100 = vmatpush.bf16.msra.mxu0 %v1518
      %2101 = vmatmul.bf16.gmra.mxu0 %v277
      %v2102 = vpop.f32.mrf.mxu0
      %v2103 = vadd.f32 %v2083, %v2102
      %v2104 = vpop.f32.mrf.mxu0
      %2105 = vdwg.mxu0
      %2106 = vmatpush.bf16.msra.mxu0 %v1593
      %2107 = vmatpush.bf16.msra.mxu0 %v1588
      %2108 = vmatpush.bf16.msra.mxu0 %v1583
      %2109 = vmatpush.bf16.msra.mxu0 %v1578
      %2110 = vmatpush.bf16.msra.mxu0 %v1573
      %2111 = vmatpush.bf16.msra.mxu0 %v1568
      %2112 = vmatpush.bf16.msra.mxu0 %v1563
      %2113 = vmatpush.bf16.msra.mxu0 %v1558
      %2114 = vmatmul.bf16.gmra.mxu0 %v278
      %v2115 = vpop.f32.mrf.mxu0
      %v2116 = vadd.f32 %v2103, %v2115
      %v2117 = vpop.f32.mrf.mxu0
      %2118 = vdwg.mxu0
      %2119 = vmatpush.bf16.msra.mxu0 %v1633
      %2120 = vmatpush.bf16.msra.mxu0 %v1628
      %2121 = vmatpush.bf16.msra.mxu0 %v1623
      %2122 = vmatpush.bf16.msra.mxu0 %v1618
      %2123 = vmatpush.bf16.msra.mxu0 %v1613
      %2124 = vmatpush.bf16.msra.mxu0 %v1608
      %2125 = vmatpush.bf16.msra.mxu0 %v1603
      %2126 = vmatpush.bf16.msra.mxu0 %v1598
      %2127 = vmatmul.bf16.gmra.mxu0 %v279
      %v2128 = vpop.f32.mrf.mxu0
      %v2129 = vadd.f32 %v2116, %v2128
      %v2130 = vpop.f32.mrf.mxu0
      %2131 = vdwg.mxu0
      %2132 = vmatpush.bf16.msra.mxu0 %v1673
      %2133 = vmatpush.bf16.msra.mxu0 %v1668
      %2134 = vmatpush.bf16.msra.mxu0 %v1663
      %2135 = vmatpush.bf16.msra.mxu0 %v1658
      %2136 = vmatpush.bf16.msra.mxu0 %v1653
      %2137 = vmatpush.bf16.msra.mxu0 %v1648
      %2138 = vmatpush.bf16.msra.mxu0 %v1643
      %2139 = vmatpush.bf16.msra.mxu0 %v1638
      %2140 = vmatmul.bf16.gmra.mxu0 %v280
      %v2141 = vpop.f32.mrf.mxu0
      %v2142 = vadd.f32 %v2129, %v2141
      %v2143 = vpop.f32.mrf.mxu0
      %2144 = vdwg.mxu0
      %2145 = vmatpush.bf16.msra.mxu0 %v1713
      %2146 = vmatpush.bf16.msra.mxu0 %v1708
      %2147 = vmatpush.bf16.msra.mxu0 %v1703
      %2148 = vmatpush.bf16.msra.mxu0 %v1698
      %2149 = vmatpush.bf16.msra.mxu0 %v1693
      %2150 = vmatpush.bf16.msra.mxu0 %v1688
      %2151 = vmatpush.bf16.msra.mxu0 %v1683
      %2152 = vmatpush.bf16.msra.mxu0 %v1678
      %2153 = vmatmul.bf16.gmra.mxu0 %v281
      %v2154 = vpop.f32.mrf.mxu0
      %v2155 = vadd.f32 %v2142, %v2154
      %v2156 = vpop.f32.mrf.mxu0
      %2157 = vdwg.mxu0
      %2158 = vmatpush.bf16.msra.mxu0 %v1753
      %2159 = vmatpush.bf16.msra.mxu0 %v1748
      %2160 = vmatpush.bf16.msra.mxu0 %v1743
      %2161 = vmatpush.bf16.msra.mxu0 %v1738
      %2162 = vmatpush.bf16.msra.mxu0 %v1733
      %2163 = vmatpush.bf16.msra.mxu0 %v1728
      %2164 = vmatpush.bf16.msra.mxu0 %v1723
      %2165 = vmatpush.bf16.msra.mxu0 %v1718
      %2166 = vmatmul.bf16.gmra.mxu0 %v282
      %v2167 = vpop.f32.mrf.mxu0
      %v2168 = vadd.f32 %v2155, %v2167
      %v2169 = vpop.f32.mrf.mxu0
      %2170 = vdwg.mxu0
      %2171 = vmatpush.bf16.msra.mxu0 %v1793
      %2172 = vmatpush.bf16.msra.mxu0 %v1788
      %2173 = vmatpush.bf16.msra.mxu0 %v1783
      %2174 = vmatpush.bf16.msra.mxu0 %v1778
      %2175 = vmatpush.bf16.msra.mxu0 %v1773
      %2176 = vmatpush.bf16.msra.mxu0 %v1768
      %2177 = vmatpush.bf16.msra.mxu0 %v1763
      %2178 = vmatpush.bf16.msra.mxu0 %v1758
      %2179 = vmatmul.bf16.gmra.mxu0 %v283
      %v2180 = vpop.f32.mrf.mxu0
      %v2181 = vadd.f32 %v2168, %v2180
      %v2182 = vpop.f32.mrf.mxu0
      %2183 = vdwg.mxu0
      %2184 = vmatpush.bf16.msra.mxu0 %v1554
      %2185 = vmatpush.bf16.msra.mxu0 %v1549
      %2186 = vmatpush.bf16.msra.mxu0 %v1544
      %2187 = vmatpush.bf16.msra.mxu0 %v1539
      %2188 = vmatpush.bf16.msra.mxu0 %v1534
      %2189 = vmatpush.bf16.msra.mxu0 %v1529
      %2190 = vmatpush.bf16.msra.mxu0 %v1524
      %2191 = vmatpush.bf16.msra.mxu0 %v1519
      %2192 = vmatmul.bf16.gmra.mxu0 %v277
      %v2193 = vpop.f32.mrf.mxu0
      %v2194 = vadd.f32 %v2084, %v2193
      %v2195 = vpop.f32.mrf.mxu0
      %2196 = vdwg.mxu0
      %2197 = vmatpush.bf16.msra.mxu0 %v1594
      %2198 = vmatpush.bf16.msra.mxu0 %v1589
      %2199 = vmatpush.bf16.msra.mxu0 %v1584
      %2200 = vmatpush.bf16.msra.mxu0 %v1579
      %2201 = vmatpush.bf16.msra.mxu0 %v1574
      %2202 = vmatpush.bf16.msra.mxu0 %v1569
      %2203 = vmatpush.bf16.msra.mxu0 %v1564
      %2204 = vmatpush.bf16.msra.mxu0 %v1559
      %2205 = vmatmul.bf16.gmra.mxu0 %v278
      %v2206 = vpop.f32.mrf.mxu0
      %v2207 = vadd.f32 %v2194, %v2206
      %v2208 = vpop.f32.mrf.mxu0
      %2209 = vdwg.mxu0
      %2210 = vmatpush.bf16.msra.mxu0 %v1634
      %2211 = vmatpush.bf16.msra.mxu0 %v1629
      %2212 = vmatpush.bf16.msra.mxu0 %v1624
      %2213 = vmatpush.bf16.msra.mxu0 %v1619
      %2214 = vmatpush.bf16.msra.mxu0 %v1614
      %2215 = vmatpush.bf16.msra.mxu0 %v1609
      %2216 = vmatpush.bf16.msra.mxu0 %v1604
      %2217 = vmatpush.bf16.msra.mxu0 %v1599
      %2218 = vmatmul.bf16.gmra.mxu0 %v279
      %v2219 = vpop.f32.mrf.mxu0
      %v2220 = vadd.f32 %v2207, %v2219
      %v2221 = vpop.f32.mrf.mxu0
      %2222 = vdwg.mxu0
      %2223 = vmatpush.bf16.msra.mxu0 %v1674
      %2224 = vmatpush.bf16.msra.mxu0 %v1669
      %2225 = vmatpush.bf16.msra.mxu0 %v1664
      %2226 = vmatpush.bf16.msra.mxu0 %v1659
      %2227 = vmatpush.bf16.msra.mxu0 %v1654
      %2228 = vmatpush.bf16.msra.mxu0 %v1649
      %2229 = vmatpush.bf16.msra.mxu0 %v1644
      %2230 = vmatpush.bf16.msra.mxu0 %v1639
      %2231 = vmatmul.bf16.gmra.mxu0 %v280
      %v2232 = vpop.f32.mrf.mxu0
      %v2233 = vadd.f32 %v2220, %v2232
      %v2234 = vpop.f32.mrf.mxu0
      %2235 = vdwg.mxu0
      %2236 = vmatpush.bf16.msra.mxu0 %v1714
      %2237 = vmatpush.bf16.msra.mxu0 %v1709
      %2238 = vmatpush.bf16.msra.mxu0 %v1704
      %2239 = vmatpush.bf16.msra.mxu0 %v1699
      %2240 = vmatpush.bf16.msra.mxu0 %v1694
      %2241 = vmatpush.bf16.msra.mxu0 %v1689
      %2242 = vmatpush.bf16.msra.mxu0 %v1684
      %2243 = vmatpush.bf16.msra.mxu0 %v1679
      %2244 = vmatmul.bf16.gmra.mxu0 %v281
      %v2245 = vpop.f32.mrf.mxu0
      %v2246 = vadd.f32 %v2233, %v2245
      %v2247 = vpop.f32.mrf.mxu0
      %2248 = vdwg.mxu0
      %2249 = vmatpush.bf16.msra.mxu0 %v1754
      %2250 = vmatpush.bf16.msra.mxu0 %v1749
      %2251 = vmatpush.bf16.msra.mxu0 %v1744
      %2252 = vmatpush.bf16.msra.mxu0 %v1739
      %2253 = vmatpush.bf16.msra.mxu0 %v1734
      %2254 = vmatpush.bf16.msra.mxu0 %v1729
      %2255 = vmatpush.bf16.msra.mxu0 %v1724
      %2256 = vmatpush.bf16.msra.mxu0 %v1719
      %2257 = vmatmul.bf16.gmra.mxu0 %v282
      %v2258 = vpop.f32.mrf.mxu0
      %v2259 = vadd.f32 %v2246, %v2258
      %v2260 = vpop.f32.mrf.mxu0
      %2261 = vdwg.mxu0
      %2262 = vmatpush.bf16.msra.mxu0 %v1794
      %2263 = vmatpush.bf16.msra.mxu0 %v1789
      %2264 = vmatpush.bf16.msra.mxu0 %v1784
      %2265 = vmatpush.bf16.msra.mxu0 %v1779
      %2266 = vmatpush.bf16.msra.mxu0 %v1774
      %2267 = vmatpush.bf16.msra.mxu0 %v1769
      %2268 = vmatpush.bf16.msra.mxu0 %v1764
      %2269 = vmatpush.bf16.msra.mxu0 %v1759
      %2270 = vmatmul.bf16.gmra.mxu0 %v283
      %v2271 = vpop.f32.mrf.mxu0
      %v2272 = vadd.f32 %v2259, %v2271
      %v2273 = vpop.f32.mrf.mxu0
      %2274 = vdwg.mxu0
      %2275 = vmatpush.bf16.msra.mxu0 %v1555
      %2276 = vmatpush.bf16.msra.mxu0 %v1550
      %2277 = vmatpush.bf16.msra.mxu0 %v1545
      %2278 = vmatpush.bf16.msra.mxu0 %v1540
      %2279 = vmatpush.bf16.msra.mxu0 %v1535
      %2280 = vmatpush.bf16.msra.mxu0 %v1530
      %2281 = vmatpush.bf16.msra.mxu0 %v1525
      %2282 = vmatpush.bf16.msra.mxu0 %v1520
      %2283 = vmatmul.bf16.gmra.mxu0 %v277
      %v2284 = vpop.f32.mrf.mxu0
      %v2285 = vadd.f32 %v2085, %v2284
      %v2286 = vpop.f32.mrf.mxu0
      %2287 = vdwg.mxu0
      %2288 = vmatpush.bf16.msra.mxu0 %v1595
      %2289 = vmatpush.bf16.msra.mxu0 %v1590
      %2290 = vmatpush.bf16.msra.mxu0 %v1585
      %2291 = vmatpush.bf16.msra.mxu0 %v1580
      %2292 = vmatpush.bf16.msra.mxu0 %v1575
      %2293 = vmatpush.bf16.msra.mxu0 %v1570
      %2294 = vmatpush.bf16.msra.mxu0 %v1565
      %2295 = vmatpush.bf16.msra.mxu0 %v1560
      %2296 = vmatmul.bf16.gmra.mxu0 %v278
      %v2297 = vpop.f32.mrf.mxu0
      %v2298 = vadd.f32 %v2285, %v2297
      %v2299 = vpop.f32.mrf.mxu0
      %2300 = vdwg.mxu0
      %2301 = vmatpush.bf16.msra.mxu0 %v1635
      %2302 = vmatpush.bf16.msra.mxu0 %v1630
      %2303 = vmatpush.bf16.msra.mxu0 %v1625
      %2304 = vmatpush.bf16.msra.mxu0 %v1620
      %2305 = vmatpush.bf16.msra.mxu0 %v1615
      %2306 = vmatpush.bf16.msra.mxu0 %v1610
      %2307 = vmatpush.bf16.msra.mxu0 %v1605
      %2308 = vmatpush.bf16.msra.mxu0 %v1600
      %2309 = vmatmul.bf16.gmra.mxu0 %v279
      %v2310 = vpop.f32.mrf.mxu0
      %v2311 = vadd.f32 %v2298, %v2310
      %v2312 = vpop.f32.mrf.mxu0
      %2313 = vdwg.mxu0
      %2314 = vmatpush.bf16.msra.mxu0 %v1675
      %2315 = vmatpush.bf16.msra.mxu0 %v1670
      %2316 = vmatpush.bf16.msra.mxu0 %v1665
      %2317 = vmatpush.bf16.msra.mxu0 %v1660
      %2318 = vmatpush.bf16.msra.mxu0 %v1655
      %2319 = vmatpush.bf16.msra.mxu0 %v1650
      %2320 = vmatpush.bf16.msra.mxu0 %v1645
      %2321 = vmatpush.bf16.msra.mxu0 %v1640
      %2322 = vmatmul.bf16.gmra.mxu0 %v280
      %v2323 = vpop.f32.mrf.mxu0
      %v2324 = vadd.f32 %v2311, %v2323
      %v2325 = vpop.f32.mrf.mxu0
      %2326 = vdwg.mxu0
      %2327 = vmatpush.bf16.msra.mxu0 %v1715
      %2328 = vmatpush.bf16.msra.mxu0 %v1710
      %2329 = vmatpush.bf16.msra.mxu0 %v1705
      %2330 = vmatpush.bf16.msra.mxu0 %v1700
      %2331 = vmatpush.bf16.msra.mxu0 %v1695
      %2332 = vmatpush.bf16.msra.mxu0 %v1690
      %2333 = vmatpush.bf16.msra.mxu0 %v1685
      %2334 = vmatpush.bf16.msra.mxu0 %v1680
      %2335 = vmatmul.bf16.gmra.mxu0 %v281
      %v2336 = vpop.f32.mrf.mxu0
      %v2337 = vadd.f32 %v2324, %v2336
      %v2338 = vpop.f32.mrf.mxu0
      %2339 = vdwg.mxu0
      %2340 = vmatpush.bf16.msra.mxu0 %v1755
      %2341 = vmatpush.bf16.msra.mxu0 %v1750
      %2342 = vmatpush.bf16.msra.mxu0 %v1745
      %2343 = vmatpush.bf16.msra.mxu0 %v1740
      %2344 = vmatpush.bf16.msra.mxu0 %v1735
      %2345 = vmatpush.bf16.msra.mxu0 %v1730
      %2346 = vmatpush.bf16.msra.mxu0 %v1725
      %2347 = vmatpush.bf16.msra.mxu0 %v1720
      %2348 = vmatmul.bf16.gmra.mxu0 %v282
      %v2349 = vpop.f32.mrf.mxu0
      %v2350 = vadd.f32 %v2337, %v2349
      %v2351 = vpop.f32.mrf.mxu0
      %2352 = vdwg.mxu0
      %2353 = vmatpush.bf16.msra.mxu0 %v1795
      %2354 = vmatpush.bf16.msra.mxu0 %v1790
      %2355 = vmatpush.bf16.msra.mxu0 %v1785
      %2356 = vmatpush.bf16.msra.mxu0 %v1780
      %2357 = vmatpush.bf16.msra.mxu0 %v1775
      %2358 = vmatpush.bf16.msra.mxu0 %v1770
      %2359 = vmatpush.bf16.msra.mxu0 %v1765
      %2360 = vmatpush.bf16.msra.mxu0 %v1760
      %2361 = vmatmul.bf16.gmra.mxu0 %v283
      %v2362 = vpop.f32.mrf.mxu0
      %v2363 = vadd.f32 %v2350, %v2362
      %v2364 = vpop.f32.mrf.mxu0
      %2365 = vdwg.mxu0
      %2366 = vmatpush.bf16.msra.mxu0 %v1556
      %2367 = vmatpush.bf16.msra.mxu0 %v1551
      %2368 = vmatpush.bf16.msra.mxu0 %v1546
      %2369 = vmatpush.bf16.msra.mxu0 %v1541
      %2370 = vmatpush.bf16.msra.mxu0 %v1536
      %2371 = vmatpush.bf16.msra.mxu0 %v1531
      %2372 = vmatpush.bf16.msra.mxu0 %v1526
      %2373 = vmatpush.bf16.msra.mxu0 %v1521
      %2374 = vmatmul.bf16.gmra.mxu0 %v277
      %v2375 = vpop.f32.mrf.mxu0
      %v2376 = vadd.f32 %v2086, %v2375
      %v2377 = vpop.f32.mrf.mxu0
      %2378 = vdwg.mxu0
      %2379 = vmatpush.bf16.msra.mxu0 %v1596
      %2380 = vmatpush.bf16.msra.mxu0 %v1591
      %2381 = vmatpush.bf16.msra.mxu0 %v1586
      %2382 = vmatpush.bf16.msra.mxu0 %v1581
      %2383 = vmatpush.bf16.msra.mxu0 %v1576
      %2384 = vmatpush.bf16.msra.mxu0 %v1571
      %2385 = vmatpush.bf16.msra.mxu0 %v1566
      %2386 = vmatpush.bf16.msra.mxu0 %v1561
      %2387 = vmatmul.bf16.gmra.mxu0 %v278
      %v2388 = vpop.f32.mrf.mxu0
      %v2389 = vadd.f32 %v2376, %v2388
      %v2390 = vpop.f32.mrf.mxu0
      %2391 = vdwg.mxu0
      %2392 = vmatpush.bf16.msra.mxu0 %v1636
      %2393 = vmatpush.bf16.msra.mxu0 %v1631
      %2394 = vmatpush.bf16.msra.mxu0 %v1626
      %2395 = vmatpush.bf16.msra.mxu0 %v1621
      %2396 = vmatpush.bf16.msra.mxu0 %v1616
      %2397 = vmatpush.bf16.msra.mxu0 %v1611
      %2398 = vmatpush.bf16.msra.mxu0 %v1606
      %2399 = vmatpush.bf16.msra.mxu0 %v1601
      %2400 = vmatmul.bf16.gmra.mxu0 %v279
      %v2401 = vpop.f32.mrf.mxu0
      %v2402 = vadd.f32 %v2389, %v2401
      %v2403 = vpop.f32.mrf.mxu0
      %2404 = vdwg.mxu0
      %2405 = vmatpush.bf16.msra.mxu0 %v1676
      %2406 = vmatpush.bf16.msra.mxu0 %v1671
      %2407 = vmatpush.bf16.msra.mxu0 %v1666
      %2408 = vmatpush.bf16.msra.mxu0 %v1661
      %2409 = vmatpush.bf16.msra.mxu0 %v1656
      %2410 = vmatpush.bf16.msra.mxu0 %v1651
      %2411 = vmatpush.bf16.msra.mxu0 %v1646
      %2412 = vmatpush.bf16.msra.mxu0 %v1641
      %2413 = vmatmul.bf16.gmra.mxu0 %v280
      %v2414 = vpop.f32.mrf.mxu0
      %v2415 = vadd.f32 %v2402, %v2414
      %v2416 = vpop.f32.mrf.mxu0
      %2417 = vdwg.mxu0
      %2418 = vmatpush.bf16.msra.mxu0 %v1716
      %2419 = vmatpush.bf16.msra.mxu0 %v1711
      %2420 = vmatpush.bf16.msra.mxu0 %v1706
      %2421 = vmatpush.bf16.msra.mxu0 %v1701
      %2422 = vmatpush.bf16.msra.mxu0 %v1696
      %2423 = vmatpush.bf16.msra.mxu0 %v1691
      %2424 = vmatpush.bf16.msra.mxu0 %v1686
      %2425 = vmatpush.bf16.msra.mxu0 %v1681
      %2426 = vmatmul.bf16.gmra.mxu0 %v281
      %v2427 = vpop.f32.mrf.mxu0
      %v2428 = vadd.f32 %v2415, %v2427
      %v2429 = vpop.f32.mrf.mxu0
      %2430 = vdwg.mxu0
      %2431 = vmatpush.bf16.msra.mxu0 %v1756
      %2432 = vmatpush.bf16.msra.mxu0 %v1751
      %2433 = vmatpush.bf16.msra.mxu0 %v1746
      %2434 = vmatpush.bf16.msra.mxu0 %v1741
      %2435 = vmatpush.bf16.msra.mxu0 %v1736
      %2436 = vmatpush.bf16.msra.mxu0 %v1731
      %2437 = vmatpush.bf16.msra.mxu0 %v1726
      %2438 = vmatpush.bf16.msra.mxu0 %v1721
      %2439 = vmatmul.bf16.gmra.mxu0 %v282
      %v2440 = vpop.f32.mrf.mxu0
      %v2441 = vadd.f32 %v2428, %v2440
      %v2442 = vpop.f32.mrf.mxu0
      %2443 = vdwg.mxu0
      %2444 = vmatpush.bf16.msra.mxu0 %v1796
      %2445 = vmatpush.bf16.msra.mxu0 %v1791
      %2446 = vmatpush.bf16.msra.mxu0 %v1786
      %2447 = vmatpush.bf16.msra.mxu0 %v1781
      %2448 = vmatpush.bf16.msra.mxu0 %v1776
      %2449 = vmatpush.bf16.msra.mxu0 %v1771
      %2450 = vmatpush.bf16.msra.mxu0 %v1766
      %2451 = vmatpush.bf16.msra.mxu0 %v1761
      %2452 = vmatmul.bf16.gmra.mxu0 %v283
      %v2453 = vpop.f32.mrf.mxu0
      %v2454 = vadd.f32 %v2441, %v2453
      %v2455 = vpop.f32.mrf.mxu0
      %2456 = vdwg.mxu0
      %2457 = vmatpush.bf16.msra.mxu0 %v1557
      %2458 = vmatpush.bf16.msra.mxu0 %v1552
      %2459 = vmatpush.bf16.msra.mxu0 %v1547
      %2460 = vmatpush.bf16.msra.mxu0 %v1542
      %2461 = vmatpush.bf16.msra.mxu0 %v1537
      %2462 = vmatpush.bf16.msra.mxu0 %v1532
      %2463 = vmatpush.bf16.msra.mxu0 %v1527
      %2464 = vmatpush.bf16.msra.mxu0 %v1522
      %2465 = vmatmul.bf16.gmra.mxu0 %v277
      %v2466 = vpop.f32.mrf.mxu0
      %v2467 = vadd.f32 %v2087, %v2466
      %v2468 = vpop.f32.mrf.mxu0
      %2469 = vdwg.mxu0
      %2470 = vmatpush.bf16.msra.mxu0 %v1597
      %2471 = vmatpush.bf16.msra.mxu0 %v1592
      %2472 = vmatpush.bf16.msra.mxu0 %v1587
      %2473 = vmatpush.bf16.msra.mxu0 %v1582
      %2474 = vmatpush.bf16.msra.mxu0 %v1577
      %2475 = vmatpush.bf16.msra.mxu0 %v1572
      %2476 = vmatpush.bf16.msra.mxu0 %v1567
      %2477 = vmatpush.bf16.msra.mxu0 %v1562
      %2478 = vmatmul.bf16.gmra.mxu0 %v278
      %v2479 = vpop.f32.mrf.mxu0
      %v2480 = vadd.f32 %v2467, %v2479
      %v2481 = vpop.f32.mrf.mxu0
      %2482 = vdwg.mxu0
      %2483 = vmatpush.bf16.msra.mxu0 %v1637
      %2484 = vmatpush.bf16.msra.mxu0 %v1632
      %2485 = vmatpush.bf16.msra.mxu0 %v1627
      %2486 = vmatpush.bf16.msra.mxu0 %v1622
      %2487 = vmatpush.bf16.msra.mxu0 %v1617
      %2488 = vmatpush.bf16.msra.mxu0 %v1612
      %2489 = vmatpush.bf16.msra.mxu0 %v1607
      %2490 = vmatpush.bf16.msra.mxu0 %v1602
      %2491 = vmatmul.bf16.gmra.mxu0 %v279
      %v2492 = vpop.f32.mrf.mxu0
      %v2493 = vadd.f32 %v2480, %v2492
      %v2494 = vpop.f32.mrf.mxu0
      %2495 = vdwg.mxu0
      %2496 = vmatpush.bf16.msra.mxu0 %v1677
      %2497 = vmatpush.bf16.msra.mxu0 %v1672
      %2498 = vmatpush.bf16.msra.mxu0 %v1667
      %2499 = vmatpush.bf16.msra.mxu0 %v1662
      %2500 = vmatpush.bf16.msra.mxu0 %v1657
      %2501 = vmatpush.bf16.msra.mxu0 %v1652
      %2502 = vmatpush.bf16.msra.mxu0 %v1647
      %2503 = vmatpush.bf16.msra.mxu0 %v1642
      %2504 = vmatmul.bf16.gmra.mxu0 %v280
      %v2505 = vpop.f32.mrf.mxu0
      %v2506 = vadd.f32 %v2493, %v2505
      %v2507 = vpop.f32.mrf.mxu0
      %2508 = vdwg.mxu0
      %2509 = vmatpush.bf16.msra.mxu0 %v1717
      %2510 = vmatpush.bf16.msra.mxu0 %v1712
      %2511 = vmatpush.bf16.msra.mxu0 %v1707
      %2512 = vmatpush.bf16.msra.mxu0 %v1702
      %2513 = vmatpush.bf16.msra.mxu0 %v1697
      %2514 = vmatpush.bf16.msra.mxu0 %v1692
      %2515 = vmatpush.bf16.msra.mxu0 %v1687
      %2516 = vmatpush.bf16.msra.mxu0 %v1682
      %2517 = vmatmul.bf16.gmra.mxu0 %v281
      %v2518 = vpop.f32.mrf.mxu0
      %v2519 = vadd.f32 %v2506, %v2518
      %v2520 = vpop.f32.mrf.mxu0
      %2521 = vdwg.mxu0
      %2522 = vmatpush.bf16.msra.mxu0 %v1757
      %2523 = vmatpush.bf16.msra.mxu0 %v1752
      %2524 = vmatpush.bf16.msra.mxu0 %v1747
      %2525 = vmatpush.bf16.msra.mxu0 %v1742
      %2526 = vmatpush.bf16.msra.mxu0 %v1737
      %2527 = vmatpush.bf16.msra.mxu0 %v1732
      %2528 = vmatpush.bf16.msra.mxu0 %v1727
      %2529 = vmatpush.bf16.msra.mxu0 %v1722
      %2530 = vmatmul.bf16.gmra.mxu0 %v282
      %v2531 = vpop.f32.mrf.mxu0
      %v2532 = vadd.f32 %v2519, %v2531
      %v2533 = vpop.f32.mrf.mxu0
      %2534 = vdwg.mxu0
      %2535 = vmatpush.bf16.msra.mxu0 %v1797
      %2536 = vmatpush.bf16.msra.mxu0 %v1792
      %2537 = vmatpush.bf16.msra.mxu0 %v1787
      %2538 = vmatpush.bf16.msra.mxu0 %v1782
      %2539 = vmatpush.bf16.msra.mxu0 %v1777
      %2540 = vmatpush.bf16.msra.mxu0 %v1772
      %2541 = vmatpush.bf16.msra.mxu0 %v1767
      %2542 = vmatpush.bf16.msra.mxu0 %v1762
      %2543 = vmatmul.bf16.gmra.mxu0 %v283
      %v2544 = vpop.f32.mrf.mxu0
      %v2545 = vadd.f32 %v2532, %v2544
      %v2546 = vpop.f32.mrf.mxu0
      %2547 = vdwg.mxu0
      %vm2548 = vcmp.gt.f32.partialorder %v211, 0.5
      %vm2549 = vcmp.gt.f32.partialorder %v212, 0.5
      %vm2550 = vcmp.gt.f32.partialorder %v213, 0.5
      %vm2551 = vcmp.gt.f32.partialorder %v214, 0.5
      %vm2552 = vcmp.gt.f32.partialorder %v215, 0.5
      %v2553 = vsel %vm2548, 1, 0
      %v2554 = vsel %vm2549, 1, 0
      %v2555 = vsel %vm2550, 1, 0
      %v2556 = vsel %vm2551, 1, 0
      %v2557 = vsel %vm2552, 1, 0
      %v2558 = vcvt.s32.f32 %v2553
      %v2559 = vcvt.s32.f32 %v2554
      %v2560 = vcvt.s32.f32 %v2555
      %v2561 = vcvt.s32.f32 %v2556
      %v2562 = vcvt.s32.f32 %v2557
      %v2563 = vmul.f32 %v211, 0.9048374
      %v2564 = vmul.f32 %v212, 0.9048374
      %v2565 = vmul.f32 %v213, 0.9048374
      %v2566 = vmul.f32 %v214, 0.9048374
      %v2567 = vmul.f32 %v215, 0.9048374
      %v2568 = vadd.f32 %v2563, %v2181
      %v2569 = vadd.f32 %v2564, %v2272
      %v2570 = vadd.f32 %v2565, %v2363
      %v2571 = vadd.f32 %v2566, %v2454
      %v2572 = vadd.f32 %v2567, %v2545
      %v2573 = vmul.f32 %v2558, 0.5
      %v2574 = vmul.f32 %v2559, 0.5
      %v2575 = vmul.f32 %v2560, 0.5
      %v2576 = vmul.f32 %v2561, 0.5
      %v2577 = vmul.f32 %v2562, 0.5
      %v2578 = vsub.f32 %v2568, %v2573
      %v2579 = vsub.f32 %v2569, %v2574
      %v2580 = vsub.f32 %v2570, %v2575
      %v2581 = vsub.f32 %v2571, %v2576
      %v2582 = vsub.f32 %v2572, %v2577
      %vm2583 = vcmp.gt.f32.partialorder %v2578, 0.5
      %vm2584 = vcmp.gt.f32.partialorder %v2579, 0.5
      %vm2585 = vcmp.gt.f32.partialorder %v2580, 0.5
      %vm2586 = vcmp.gt.f32.partialorder %v2581, 0.5
      %vm2587 = vcmp.gt.f32.partialorder %v2582, 0.5
      %v2588 = vsel %vm2583, 1, 0
      %v2589 = vsel %vm2584, 1, 0
      %v2590 = vsel %vm2585, 1, 0
      %v2591 = vsel %vm2586, 1, 0
      %v2592 = vsel %vm2587, 1, 0
      %v2593 = vcvt.s32.f32 %v2588
      %v2594 = vcvt.s32.f32 %v2589
      %v2595 = vcvt.s32.f32 %v2590
      %v2596 = vcvt.s32.f32 %v2591
      %v2597 = vcvt.s32.f32 %v2592
      %v2598 = vpack.c.bf16 %v2593, %v2593
      %v2599 = vpack.c.bf16 %v2594, %v2594
      %v2600 = vpack.c.bf16 %v2595, %v2595
      %v2601 = vpack.c.bf16 %v2596, %v2596
      %v2602 = vpack.c.bf16 %v2597, %v2597
      %v2603 = vld [vmem:[#allocation8] sm:$0xf]
      %v2604 = vld [vmem:[#allocation8 + $0x4] sm:$0xf]
      %v2605 = vld [vmem:[#allocation8 + $0x8] sm:$0xf]
      %v2606 = vld [vmem:[#allocation8 + $0xc] sm:$0xf]
      %v2607 = vld [vmem:[#allocation8 + $0x10] sm:$0xf]
      %v2608 = vld [vmem:[#allocation8 + $0x14] sm:$0xf]
      %v2609 = vld [vmem:[#allocation8 + $0x18] sm:$0xf]
      %v2610 = vld [vmem:[#allocation8 + $0x1c] sm:$0xf]
      %v2611 = vld [vmem:[#allocation8 + $0x20] sm:$0xf]
      %v2612 = vld [vmem:[#allocation8 + $0x24] sm:$0xf]
      %v2613 = vld [vmem:[#allocation8 + $0x28] sm:$0xf]
      %v2614 = vld [vmem:[#allocation8 + $0x2c] sm:$0xf]
      %v2615 = vld [vmem:[#allocation8 + $0x30] sm:$0xf]
      %v2616 = vld [vmem:[#allocation8 + $0x34] sm:$0xf]
      %v2617 = vld [vmem:[#allocation8 + $0x38] sm:$0xf]
      %v2618 = vld [vmem:[#allocation8 + $0x3c] sm:$0xf]
      %v2619 = vld [vmem:[#allocation8 + $0x40] sm:$0xf]
      %v2620 = vld [vmem:[#allocation8 + $0x44] sm:$0xf]
      %v2621 = vld [vmem:[#allocation8 + $0x48] sm:$0xf]
      %v2622 = vld [vmem:[#allocation8 + $0x4c] sm:$0xf]
      %v2623 = vld [vmem:[#allocation8 + $0x50] sm:$0xf]
      %v2624 = vld [vmem:[#allocation8 + $0x54] sm:$0xf]
      %v2625 = vld [vmem:[#allocation8 + $0x58] sm:$0xf]
      %v2626 = vld [vmem:[#allocation8 + $0x5c] sm:$0xf]
      %v2627 = vld [vmem:[#allocation8 + $0x60] sm:$0xf]
      %v2628 = vld [vmem:[#allocation8 + $0x64] sm:$0xf]
      %v2629 = vld [vmem:[#allocation8 + $0x68] sm:$0xf]
      %v2630 = vld [vmem:[#allocation8 + $0x6c] sm:$0xf]
      %v2631 = vld [vmem:[#allocation8 + $0x70] sm:$0xf]
      %v2632 = vld [vmem:[#allocation8 + $0x74] sm:$0xf]
      %v2633 = vld [vmem:[#allocation8 + $0x78] sm:$0xf]
      %v2634 = vld [vmem:[#allocation8 + $0x7c] sm:$0xf]
      %v2635 = vld [vmem:[#allocation8 + $0x80] sm:$0xf]
      %v2636 = vld [vmem:[#allocation8 + $0x84] sm:$0xf]
      %v2637 = vld [vmem:[#allocation8 + $0x88] sm:$0xf]
      %v2638 = vld [vmem:[#allocation8 + $0x8c] sm:$0xf]
      %v2639 = vld [vmem:[#allocation8 + $0x90] sm:$0xf]
      %v2640 = vld [vmem:[#allocation8 + $0x94] sm:$0xf]
      %v2641 = vld [vmem:[#allocation8 + $0x98] sm:$0xf]
      %v2642 = vld [vmem:[#allocation8 + $0x9c] sm:$0xf]
      %v2643 = vld [vmem:[#allocation8 + $0xa0] sm:$0xf]
      %v2644 = vld [vmem:[#allocation8 + $0xa4] sm:$0xf]
      %v2645 = vld [vmem:[#allocation8 + $0xa8] sm:$0xf]
      %v2646 = vld [vmem:[#allocation8 + $0xac] sm:$0xf]
      %v2647 = vld [vmem:[#allocation8 + $0xb0] sm:$0xf]
      %v2648 = vld [vmem:[#allocation8 + $0xb4] sm:$0xf]
      %v2649 = vld [vmem:[#allocation8 + $0xb8] sm:$0xf]
      %v2650 = vld [vmem:[#allocation8 + $0xbc] sm:$0xf]
      %v2651 = vld [vmem:[#allocation8 + $0xc0] sm:$0xf]
      %v2652 = vld [vmem:[#allocation8 + $0xc4] sm:$0xf]
      %v2653 = vld [vmem:[#allocation8 + $0xc8] sm:$0xf]
      %v2654 = vld [vmem:[#allocation8 + $0xcc] sm:$0xf]
      %v2655 = vld [vmem:[#allocation8 + $0xd0] sm:$0xf]
      %v2656 = vld [vmem:[#allocation8 + $0xd4] sm:$0xf]
      %v2657 = vld [vmem:[#allocation8 + $0xd8] sm:$0xf]
      %v2658 = vld [vmem:[#allocation8 + $0xdc] sm:$0xf]
      %v2659 = vld [vmem:[#allocation8 + $0xe0] sm:$0xf]
      %v2660 = vld [vmem:[#allocation8 + $0xe4] sm:$0xf]
      %v2661 = vld [vmem:[#allocation8 + $0xe8] sm:$0xf]
      %v2662 = vld [vmem:[#allocation8 + $0xec] sm:$0xf]
      %v2663 = vld [vmem:[#allocation8 + $0xf0] sm:$0xf]
      %v2664 = vld [vmem:[#allocation8 + $0xf4] sm:$0xf]
      %v2665 = vld [vmem:[#allocation8 + $0xf8] sm:$0xf]
      %v2666 = vld [vmem:[#allocation8 + $0xfc] sm:$0xf]
      %v2667 = vld [vmem:[#allocation8 + $0x100] sm:$0xf]
      %v2668 = vld [vmem:[#allocation8 + $0x104] sm:$0xf]
      %v2669 = vld [vmem:[#allocation8 + $0x108] sm:$0xf]
      %v2670 = vld [vmem:[#allocation8 + $0x10c] sm:$0xf]
      %v2671 = vld [vmem:[#allocation8 + $0x110] sm:$0xf]
      %v2672 = vld [vmem:[#allocation8 + $0x114] sm:$0xf]
      %v2673 = vld [vmem:[#allocation8 + $0x118] sm:$0xf]
      %v2674 = vld [vmem:[#allocation8 + $0x11c] sm:$0xf]
      %v2675 = vld [vmem:[#allocation8 + $0x120] sm:$0xf]
      %v2676 = vld [vmem:[#allocation8 + $0x124] sm:$0xf]
      %v2677 = vld [vmem:[#allocation8 + $0x128] sm:$0xf]
      %v2678 = vld [vmem:[#allocation8 + $0x12c] sm:$0xf]
      %v2679 = vld [vmem:[#allocation8 + $0x130] sm:$0xf]
      %v2680 = vld [vmem:[#allocation8 + $0x134] sm:$0xf]
      %v2681 = vld [vmem:[#allocation8 + $0x138] sm:$0xf]
      %v2682 = vld [vmem:[#allocation8 + $0x13c] sm:$0xf]
      %v2683 = vld [vmem:[#allocation10] sm:$0x3]
      %v2764 = vunpack.c.l.b16 %v2603
      %v2765 = vunpack.c.l.b16 %v2604
      %v2766 = vunpack.c.l.b16 %v2605
      %v2767 = vunpack.c.l.b16 %v2606
      %v2768 = vunpack.c.l.b16 %v2607
      %v2769 = vunpack.c.l.b16 %v2608
      %v2770 = vunpack.c.l.b16 %v2609
      %v2771 = vunpack.c.l.b16 %v2610
      %v2772 = vunpack.c.l.b16 %v2611
      %v2773 = vunpack.c.l.b16 %v2612
      %v2774 = vunpack.c.l.b16 %v2613
      %v2775 = vunpack.c.l.b16 %v2614
      %v2776 = vunpack.c.l.b16 %v2615
      %v2777 = vunpack.c.l.b16 %v2616
      %v2778 = vunpack.c.l.b16 %v2617
      %v2779 = vunpack.c.l.b16 %v2618
      %v2780 = vunpack.c.l.b16 %v2619
      %v2781 = vunpack.c.l.b16 %v2620
      %v2782 = vunpack.c.l.b16 %v2621
      %v2783 = vunpack.c.l.b16 %v2622
      %v2784 = vunpack.c.l.b16 %v2623
      %v2785 = vunpack.c.l.b16 %v2624
      %v2786 = vunpack.c.l.b16 %v2625
      %v2787 = vunpack.c.l.b16 %v2626
      %v2788 = vunpack.c.l.b16 %v2627
      %v2789 = vunpack.c.l.b16 %v2628
      %v2790 = vunpack.c.l.b16 %v2629
      %v2791 = vunpack.c.l.b16 %v2630
      %v2792 = vunpack.c.l.b16 %v2631
      %v2793 = vunpack.c.l.b16 %v2632
      %v2794 = vunpack.c.l.b16 %v2633
      %v2795 = vunpack.c.l.b16 %v2634
      %v2796 = vunpack.c.l.b16 %v2635
      %v2797 = vunpack.c.l.b16 %v2636
      %v2798 = vunpack.c.l.b16 %v2637
      %v2799 = vunpack.c.l.b16 %v2638
      %v2800 = vunpack.c.l.b16 %v2639
      %v2801 = vunpack.c.l.b16 %v2640
      %v2802 = vunpack.c.l.b16 %v2641
      %v2803 = vunpack.c.l.b16 %v2642
      %v2804 = vunpack.c.l.b16 %v2643
      %v2805 = vunpack.c.l.b16 %v2644
      %v2806 = vunpack.c.l.b16 %v2645
      %v2807 = vunpack.c.l.b16 %v2646
      %v2808 = vunpack.c.l.b16 %v2647
      %v2809 = vunpack.c.l.b16 %v2648
      %v2810 = vunpack.c.l.b16 %v2649
      %v2811 = vunpack.c.l.b16 %v2650
      %v2812 = vunpack.c.l.b16 %v2651
      %v2813 = vunpack.c.l.b16 %v2652
      %v2814 = vunpack.c.l.b16 %v2653
      %v2815 = vunpack.c.l.b16 %v2654
      %v2816 = vunpack.c.l.b16 %v2655
      %v2817 = vunpack.c.l.b16 %v2656
      %v2818 = vunpack.c.l.b16 %v2657
      %v2819 = vunpack.c.l.b16 %v2658
      %v2820 = vunpack.c.l.b16 %v2659
      %v2821 = vunpack.c.l.b16 %v2660
      %v2822 = vunpack.c.l.b16 %v2661
      %v2823 = vunpack.c.l.b16 %v2662
      %v2824 = vunpack.c.l.b16 %v2663
      %v2825 = vunpack.c.l.b16 %v2664
      %v2826 = vunpack.c.l.b16 %v2665
      %v2827 = vunpack.c.l.b16 %v2666
      %v2828 = vunpack.c.l.b16 %v2667
      %v2829 = vunpack.c.l.b16 %v2668
      %v2830 = vunpack.c.l.b16 %v2669
      %v2831 = vunpack.c.l.b16 %v2670
      %v2832 = vunpack.c.l.b16 %v2671
      %v2833 = vunpack.c.l.b16 %v2672
      %v2834 = vunpack.c.l.b16 %v2673
      %v2835 = vunpack.c.l.b16 %v2674
      %v2836 = vunpack.c.l.b16 %v2675
      %v2837 = vunpack.c.l.b16 %v2676
      %v2838 = vunpack.c.l.b16 %v2677
      %v2839 = vunpack.c.l.b16 %v2678
      %v2840 = vunpack.c.l.b16 %v2679
      %v2841 = vunpack.c.l.b16 %v2680
      %v2842 = vunpack.c.l.b16 %v2681
      %v2843 = vunpack.c.l.b16 %v2682
      %v2844 = vpack.c.b16 %v2765, %v2764
      %v2845 = vpack.c.b16 %v2767, %v2766
      %v2846 = vpack.c.b16 %v2769, %v2768
      %v2847 = vpack.c.b16 %v2771, %v2770
      %v2848 = vpack.c.b16 %v2773, %v2772
      %v2849 = vpack.c.b16 %v2775, %v2774
      %v2850 = vpack.c.b16 %v2777, %v2776
      %v2851 = vpack.c.b16 %v2779, %v2778
      %v2852 = vpack.c.b16 %v2781, %v2780
      %v2853 = vpack.c.b16 %v2783, %v2782
      %v2854 = vpack.c.b16 %v2785, %v2784
      %v2855 = vpack.c.b16 %v2787, %v2786
      %v2856 = vpack.c.b16 %v2789, %v2788
      %v2857 = vpack.c.b16 %v2791, %v2790
      %v2858 = vpack.c.b16 %v2793, %v2792
      %v2859 = vpack.c.b16 %v2795, %v2794
      %v2860 = vpack.c.b16 %v2797, %v2796
      %v2861 = vpack.c.b16 %v2799, %v2798
      %v2862 = vpack.c.b16 %v2801, %v2800
      %v2863 = vpack.c.b16 %v2803, %v2802
      %v2864 = vpack.c.b16 %v2805, %v2804
      %v2865 = vpack.c.b16 %v2807, %v2806
      %v2866 = vpack.c.b16 %v2809, %v2808
      %v2867 = vpack.c.b16 %v2811, %v2810
      %v2868 = vpack.c.b16 %v2813, %v2812
      %v2869 = vpack.c.b16 %v2815, %v2814
      %v2870 = vpack.c.b16 %v2817, %v2816
      %v2871 = vpack.c.b16 %v2819, %v2818
      %v2872 = vpack.c.b16 %v2821, %v2820
      %v2873 = vpack.c.b16 %v2823, %v2822
      %v2874 = vpack.c.b16 %v2825, %v2824
      %v2875 = vpack.c.b16 %v2827, %v2826
      %v2876 = vpack.c.b16 %v2829, %v2828
      %v2877 = vpack.c.b16 %v2831, %v2830
      %v2878 = vpack.c.b16 %v2833, %v2832
      %v2879 = vpack.c.b16 %v2835, %v2834
      %v2880 = vpack.c.b16 %v2837, %v2836
      %v2881 = vpack.c.b16 %v2839, %v2838
      %v2882 = vpack.c.b16 %v2841, %v2840
      %v2883 = vpack.c.b16 %v2843, %v2842
      %2924 = vmatpush.bf16.msra.mxu0 %v2851
      %2925 = vmatpush.bf16.msra.mxu0 %v2850
      %2926 = vmatpush.bf16.msra.mxu0 %v2849
      %2927 = vmatpush.bf16.msra.mxu0 %v2848
      %2928 = vmatpush.bf16.msra.mxu0 %v2847
      %2929 = vmatpush.bf16.msra.mxu0 %v2846
      %2930 = vmatpush.bf16.msra.mxu0 %v2845
      %2931 = vmatpush.bf16.msra.mxu0 %v2844
      %2932 = vmatmul.bf16.gmra.mxu0 %v2598
      %v2933 = vpop.f32.mrf.mxu0
      %v2934 = vadd.f32 %v2683, %v2933
      %v2935 = vpop.f32.mrf.mxu0
      %2936 = vdwg.mxu0
      %2937 = vmatpush.bf16.msra.mxu0 %v2859
      %2938 = vmatpush.bf16.msra.mxu0 %v2858
      %2939 = vmatpush.bf16.msra.mxu0 %v2857
      %2940 = vmatpush.bf16.msra.mxu0 %v2856
      %2941 = vmatpush.bf16.msra.mxu0 %v2855
      %2942 = vmatpush.bf16.msra.mxu0 %v2854
      %2943 = vmatpush.bf16.msra.mxu0 %v2853
      %2944 = vmatpush.bf16.msra.mxu0 %v2852
      %2945 = vmatmul.bf16.gmra.mxu0 %v2599
      %v2946 = vpop.f32.mrf.mxu0
      %v2947 = vadd.f32 %v2934, %v2946
      %v2948 = vpop.f32.mrf.mxu0
      %2949 = vdwg.mxu0
      %2950 = vmatpush.bf16.msra.mxu0 %v2867
      %2951 = vmatpush.bf16.msra.mxu0 %v2866
      %2952 = vmatpush.bf16.msra.mxu0 %v2865
      %2953 = vmatpush.bf16.msra.mxu0 %v2864
      %2954 = vmatpush.bf16.msra.mxu0 %v2863
      %2955 = vmatpush.bf16.msra.mxu0 %v2862
      %2956 = vmatpush.bf16.msra.mxu0 %v2861
      %2957 = vmatpush.bf16.msra.mxu0 %v2860
      %2958 = vmatmul.bf16.gmra.mxu0 %v2600
      %v2959 = vpop.f32.mrf.mxu0
      %v2960 = vadd.f32 %v2947, %v2959
      %v2961 = vpop.f32.mrf.mxu0
      %2962 = vdwg.mxu0
      %2963 = vmatpush.bf16.msra.mxu0 %v2875
      %2964 = vmatpush.bf16.msra.mxu0 %v2874
      %2965 = vmatpush.bf16.msra.mxu0 %v2873
      %2966 = vmatpush.bf16.msra.mxu0 %v2872
      %2967 = vmatpush.bf16.msra.mxu0 %v2871
      %2968 = vmatpush.bf16.msra.mxu0 %v2870
      %2969 = vmatpush.bf16.msra.mxu0 %v2869
      %2970 = vmatpush.bf16.msra.mxu0 %v2868
      %2971 = vmatmul.bf16.gmra.mxu0 %v2601
      %v2972 = vpop.f32.mrf.mxu0
      %v2973 = vadd.f32 %v2960, %v2972
      %v2974 = vpop.f32.mrf.mxu0
      %2975 = vdwg.mxu0
      %2976 = vmatpush.bf16.msra.mxu0 %v2883
      %2977 = vmatpush.bf16.msra.mxu0 %v2882
      %2978 = vmatpush.bf16.msra.mxu0 %v2881
      %2979 = vmatpush.bf16.msra.mxu0 %v2880
      %2980 = vmatpush.bf16.msra.mxu0 %v2879
      %2981 = vmatpush.bf16.msra.mxu0 %v2878
      %2982 = vmatpush.bf16.msra.mxu0 %v2877
      %2983 = vmatpush.bf16.msra.mxu0 %v2876
      %2984 = vmatmul.bf16.gmra.mxu0 %v2602
      %v2985 = vpop.f32.mrf.mxu0
      %v2986 = vadd.f32 %v2973, %v2985
      %v2987 = vpop.f32.mrf.mxu0
      %2988 = vdwg.mxu0
      %vm2989 = vcmp.gt.f32.partialorder %v216, 0.5
      %v2990 = vsel %vm2989, 1, 0
      %v2991 = vcvt.s32.f32 %v2990
      %v2992 = vmul.f32 %v216, 0.9048374
      %v2993 = vadd.f32 %v2992, %v2986
      %v2994 = vmul.f32 %v2991, 0.5
      %v2995 = vsub.f32 %v2993, %v2994
      %vm2996 = vcmp.gt.f32.partialorder %v2995, 0.5
      %v2997 = vsel %vm2996, 1, 0
      %v2998 = vcvt.s32.f32 %v2997
      %v2999 = vpack.c.bf16 %v2998, %v2998
      %v3000 = vld [vmem:[#allocation11] sm:$0xff]
      %v3001 = vld [vmem:[#allocation11 + $0x8] sm:$0xff]
      %v3002 = vld [vmem:[#allocation11 + $0x10] sm:$0xf]
      %v3003 = vld [vmem:[#allocation11 + $0x14] sm:$0xff]
      %v3004 = vld [vmem:[#allocation11 + $0x1c] sm:$0xff]
      %v3005 = vld [vmem:[#allocation11 + $0x24] sm:$0xf]
      %v3006 = vld [vmem:[#allocation11 + $0x28] sm:$0xff]
      %v3007 = vld [vmem:[#allocation11 + $0x30] sm:$0xff]
      %v3008 = vld [vmem:[#allocation11 + $0x38] sm:$0xf]
      %v3009 = vld [vmem:[#allocation11 + $0x3c] sm:$0xff]
      %v3010 = vld [vmem:[#allocation11 + $0x44] sm:$0xff]
      %v3011 = vld [vmem:[#allocation11 + $0x4c] sm:$0xf]
      %v3012 = vld [vmem:[#allocation11 + $0x50] sm:$0xff]
      %v3013 = vld [vmem:[#allocation11 + $0x58] sm:$0xff]
      %v3014 = vld [vmem:[#allocation11 + $0x60] sm:$0xf]
      %v3015 = vld [vmem:[#allocation11 + $0x64] sm:$0xff]
      %v3016 = vld [vmem:[#allocation11 + $0x6c] sm:$0xff]
      %v3017 = vld [vmem:[#allocation11 + $0x74] sm:$0xf]
      %v3018 = vld [vmem:[#allocation11 + $0x78] sm:$0xff]
      %v3019 = vld [vmem:[#allocation11 + $0x80] sm:$0xff]
      %v3020 = vld [vmem:[#allocation11 + $0x88] sm:$0xf]
      %v3021 = vld [vmem:[#allocation11 + $0x8c] sm:$0xff]
      %v3022 = vld [vmem:[#allocation11 + $0x94] sm:$0xff]
      %v3023 = vld [vmem:[#allocation11 + $0x9c] sm:$0xf]
      %v3024 = vld [vmem:[#allocation11 + $0xa0] sm:$0xff]
      %v3025 = vld [vmem:[#allocation11 + $0xa8] sm:$0xff]
      %v3026 = vld [vmem:[#allocation11 + $0xb0] sm:$0xf]
      %v3027 = vld [vmem:[#allocation11 + $0xb4] sm:$0xff]
      %v3028 = vld [vmem:[#allocation11 + $0xbc] sm:$0xff]
      %v3029 = vld [vmem:[#allocation11 + $0xc4] sm:$0xf]
      %v3030 = vld [vmem:[#allocation11 + $0xc8] sm:$0xff]
      %v3031 = vld [vmem:[#allocation11 + $0xd0] sm:$0xff]
      %v3032 = vld [vmem:[#allocation11 + $0xd8] sm:$0xf]
      %v3033 = vld [vmem:[#allocation11 + $0xdc] sm:$0xff]
      %v3034 = vld [vmem:[#allocation11 + $0xe4] sm:$0xff]
      %v3035 = vld [vmem:[#allocation11 + $0xec] sm:$0xf]
      %v3036 = vld [vmem:[#allocation11 + $0xf0] sm:$0xff]
      %v3037 = vld [vmem:[#allocation11 + $0xf8] sm:$0xff]
      %v3038 = vld [vmem:[#allocation11 + $0x100] sm:$0xf]
      %v3039 = vld [vmem:[#allocation11 + $0x104] sm:$0xff]
      %v3040 = vld [vmem:[#allocation11 + $0x10c] sm:$0xff]
      %v3041 = vld [vmem:[#allocation11 + $0x114] sm:$0xf]
      %v3042 = vld [vmem:[#allocation11 + $0x118] sm:$0xff]
      %v3043 = vld [vmem:[#allocation11 + $0x120] sm:$0xff]
      %v3044 = vld [vmem:[#allocation11 + $0x128] sm:$0xf]
      %v3045 = vld [vmem:[#allocation11 + $0x12c] sm:$0xff]
      %v3046 = vld [vmem:[#allocation11 + $0x134] sm:$0xff]
      %v3047 = vld [vmem:[#allocation11 + $0x13c] sm:$0xf]
      %v3048 = vld [vmem:[#allocation13] sm:$0xff]
      %v3049 = vld [vmem:[#allocation13 + $0x8] sm:$0x3]
      %v3098 = vunpack.c.l.b16 %v3000
      %v3099 = vunpack.c.h.b16 %v3000
      %v3100 = vunpack.c.l.b16 %v3001
      %v3101 = vunpack.c.h.b16 %v3001
      %v3102 = vunpack.c.l.b16 %v3002
      %v3103 = vunpack.c.l.b16 %v3003
      %v3104 = vunpack.c.h.b16 %v3003
      %v3105 = vunpack.c.l.b16 %v3004
      %v3106 = vunpack.c.h.b16 %v3004
      %v3107 = vunpack.c.l.b16 %v3005
      %v3108 = vunpack.c.l.b16 %v3006
      %v3109 = vunpack.c.h.b16 %v3006
      %v3110 = vunpack.c.l.b16 %v3007
      %v3111 = vunpack.c.h.b16 %v3007
      %v3112 = vunpack.c.l.b16 %v3008
      %v3113 = vunpack.c.l.b16 %v3009
      %v3114 = vunpack.c.h.b16 %v3009
      %v3115 = vunpack.c.l.b16 %v3010
      %v3116 = vunpack.c.h.b16 %v3010
      %v3117 = vunpack.c.l.b16 %v3011
      %v3118 = vunpack.c.l.b16 %v3012
      %v3119 = vunpack.c.h.b16 %v3012
      %v3120 = vunpack.c.l.b16 %v3013
      %v3121 = vunpack.c.h.b16 %v3013
      %v3122 = vunpack.c.l.b16 %v3014
      %v3123 = vunpack.c.l.b16 %v3015
      %v3124 = vunpack.c.h.b16 %v3015
      %v3125 = vunpack.c.l.b16 %v3016
      %v3126 = vunpack.c.h.b16 %v3016
      %v3127 = vunpack.c.l.b16 %v3017
      %v3128 = vunpack.c.l.b16 %v3018
      %v3129 = vunpack.c.h.b16 %v3018
      %v3130 = vunpack.c.l.b16 %v3019
      %v3131 = vunpack.c.h.b16 %v3019
      %v3132 = vunpack.c.l.b16 %v3020
      %v3133 = vunpack.c.l.b16 %v3021
      %v3134 = vunpack.c.h.b16 %v3021
      %v3135 = vunpack.c.l.b16 %v3022
      %v3136 = vunpack.c.h.b16 %v3022
      %v3137 = vunpack.c.l.b16 %v3023
      %v3138 = vunpack.c.l.b16 %v3024
      %v3139 = vunpack.c.h.b16 %v3024
      %v3140 = vunpack.c.l.b16 %v3025
      %v3141 = vunpack.c.h.b16 %v3025
      %v3142 = vunpack.c.l.b16 %v3026
      %v3143 = vunpack.c.l.b16 %v3027
      %v3144 = vunpack.c.h.b16 %v3027
      %v3145 = vunpack.c.l.b16 %v3028
      %v3146 = vunpack.c.h.b16 %v3028
      %v3147 = vunpack.c.l.b16 %v3029
      %v3148 = vunpack.c.l.b16 %v3030
      %v3149 = vunpack.c.h.b16 %v3030
      %v3150 = vunpack.c.l.b16 %v3031
      %v3151 = vunpack.c.h.b16 %v3031
      %v3152 = vunpack.c.l.b16 %v3032
      %v3153 = vunpack.c.l.b16 %v3033
      %v3154 = vunpack.c.h.b16 %v3033
      %v3155 = vunpack.c.l.b16 %v3034
      %v3156 = vunpack.c.h.b16 %v3034
      %v3157 = vunpack.c.l.b16 %v3035
      %v3158 = vunpack.c.l.b16 %v3036
      %v3159 = vunpack.c.h.b16 %v3036
      %v3160 = vunpack.c.l.b16 %v3037
      %v3161 = vunpack.c.h.b16 %v3037
      %v3162 = vunpack.c.l.b16 %v3038
      %v3163 = vunpack.c.l.b16 %v3039
      %v3164 = vunpack.c.h.b16 %v3039
      %v3165 = vunpack.c.l.b16 %v3040
      %v3166 = vunpack.c.h.b16 %v3040
      %v3167 = vunpack.c.l.b16 %v3041
      %v3168 = vunpack.c.l.b16 %v3042
      %v3169 = vunpack.c.h.b16 %v3042
      %v3170 = vunpack.c.l.b16 %v3043
      %v3171 = vunpack.c.h.b16 %v3043
      %v3172 = vunpack.c.l.b16 %v3044
      %v3173 = vunpack.c.l.b16 %v3045
      %v3174 = vunpack.c.h.b16 %v3045
      %v3175 = vunpack.c.l.b16 %v3046
      %v3176 = vunpack.c.h.b16 %v3046
      %v3177 = vunpack.c.l.b16 %v3047
      %v3178 = vpack.c.b16 %v3103, %v3098
      %v3179 = vpack.c.b16 %v3104, %v3099
      %v3180 = vpack.c.b16 %v3105, %v3100
      %v3181 = vpack.c.b16 %v3106, %v3101
      %v3182 = vpack.c.b16 %v3107, %v3102
      %v3183 = vpack.c.b16 %v3113, %v3108
      %v3184 = vpack.c.b16 %v3114, %v3109
      %v3185 = vpack.c.b16 %v3115, %v3110
      %v3186 = vpack.c.b16 %v3116, %v3111
      %v3187 = vpack.c.b16 %v3117, %v3112
      %v3188 = vpack.c.b16 %v3123, %v3118
      %v3189 = vpack.c.b16 %v3124, %v3119
      %v3190 = vpack.c.b16 %v3125, %v3120
      %v3191 = vpack.c.b16 %v3126, %v3121
      %v3192 = vpack.c.b16 %v3127, %v3122
      %v3193 = vpack.c.b16 %v3133, %v3128
      %v3194 = vpack.c.b16 %v3134, %v3129
      %v3195 = vpack.c.b16 %v3135, %v3130
      %v3196 = vpack.c.b16 %v3136, %v3131
      %v3197 = vpack.c.b16 %v3137, %v3132
      %v3198 = vpack.c.b16 %v3143, %v3138
      %v3199 = vpack.c.b16 %v3144, %v3139
      %v3200 = vpack.c.b16 %v3145, %v3140
      %v3201 = vpack.c.b16 %v3146, %v3141
      %v3202 = vpack.c.b16 %v3147, %v3142
      %v3203 = vpack.c.b16 %v3153, %v3148
      %v3204 = vpack.c.b16 %v3154, %v3149
      %v3205 = vpack.c.b16 %v3155, %v3150
      %v3206 = vpack.c.b16 %v3156, %v3151
      %v3207 = vpack.c.b16 %v3157, %v3152
      %v3208 = vpack.c.b16 %v3163, %v3158
      %v3209 = vpack.c.b16 %v3164, %v3159
      %v3210 = vpack.c.b16 %v3165, %v3160
      %v3211 = vpack.c.b16 %v3166, %v3161
      %v3212 = vpack.c.b16 %v3167, %v3162
      %v3213 = vpack.c.b16 %v3173, %v3168
      %v3214 = vpack.c.b16 %v3174, %v3169
      %v3215 = vpack.c.b16 %v3175, %v3170
      %v3216 = vpack.c.b16 %v3176, %v3171
      %v3217 = vpack.c.b16 %v3177, %v3172
      %3260 = vst [vmem:[#allocation1] ss:$4 sm:$0xff] %v3048
      %s3261 = scalar_lea.vmem [#allocation1], 32
      %3262 = vst [vmem:[%s3261] ss:$4 sm:$0xff] %v3049
      %v3263 = vld.sshfl [vmem:[#allocation1] sm:$0xff pattern:$0x73625140]
      %v3264 = vld.sshfl [vmem:[#allocation1 + $0x8] sm:$0xff pattern:$0x73625140]
      %v3265 = vld.sshfl [vmem:[#allocation1 + $0x10] sm:$0xff pattern:$0x73625140]
      %v3266 = vld.sshfl [vmem:[#allocation1 + $0x18] sm:$0xff pattern:$0x73625140]
      %v3267 = vld.sshfl [vmem:[#allocation1 + $0x20] sm:$0xff pattern:$0x73625140]
      %3273 = vmatpush.bf16.msra.mxu0 %v3213
      %3274 = vmatpush.bf16.msra.mxu0 %v3208
      %3275 = vmatpush.bf16.msra.mxu0 %v3203
      %3276 = vmatpush.bf16.msra.mxu0 %v3198
      %3277 = vmatpush.bf16.msra.mxu0 %v3193
      %3278 = vmatpush.bf16.msra.mxu0 %v3188
      %3279 = vmatpush.bf16.msra.mxu0 %v3183
      %3280 = vmatpush.bf16.msra.mxu0 %v3178
      %3281 = vmatmul.bf16.gmra.mxu0 %v2999
      %v3282 = vpop.f32.mrf.mxu0
      %v3283 = vadd.f32 %v3263, %v3282
      %v3284 = vpop.f32.mrf.mxu0
      %3285 = vdwg.mxu0
      %3286 = vmatpush.bf16.msra.mxu0 %v3214
      %3287 = vmatpush.bf16.msra.mxu0 %v3209
      %3288 = vmatpush.bf16.msra.mxu0 %v3204
      %3289 = vmatpush.bf16.msra.mxu0 %v3199
      %3290 = vmatpush.bf16.msra.mxu0 %v3194
      %3291 = vmatpush.bf16.msra.mxu0 %v3189
      %3292 = vmatpush.bf16.msra.mxu0 %v3184
      %3293 = vmatpush.bf16.msra.mxu0 %v3179
      %3294 = vmatmul.bf16.gmra.mxu0 %v2999
      %v3295 = vpop.f32.mrf.mxu0
      %v3296 = vadd.f32 %v3264, %v3295
      %v3297 = vpop.f32.mrf.mxu0
      %3298 = vdwg.mxu0
      %3299 = vmatpush.bf16.msra.mxu0 %v3215
      %3300 = vmatpush.bf16.msra.mxu0 %v3210
      %3301 = vmatpush.bf16.msra.mxu0 %v3205
      %3302 = vmatpush.bf16.msra.mxu0 %v3200
      %3303 = vmatpush.bf16.msra.mxu0 %v3195
      %3304 = vmatpush.bf16.msra.mxu0 %v3190
      %3305 = vmatpush.bf16.msra.mxu0 %v3185
      %3306 = vmatpush.bf16.msra.mxu0 %v3180
      %3307 = vmatmul.bf16.gmra.mxu0 %v2999
      %v3308 = vpop.f32.mrf.mxu0
      %v3309 = vadd.f32 %v3265, %v3308
      %v3310 = vpop.f32.mrf.mxu0
      %3311 = vdwg.mxu0
      %3312 = vmatpush.bf16.msra.mxu0 %v3216
      %3313 = vmatpush.bf16.msra.mxu0 %v3211
      %3314 = vmatpush.bf16.msra.mxu0 %v3206
      %3315 = vmatpush.bf16.msra.mxu0 %v3201
      %3316 = vmatpush.bf16.msra.mxu0 %v3196
      %3317 = vmatpush.bf16.msra.mxu0 %v3191
      %3318 = vmatpush.bf16.msra.mxu0 %v3186
      %3319 = vmatpush.bf16.msra.mxu0 %v3181
      %3320 = vmatmul.bf16.gmra.mxu0 %v2999
      %v3321 = vpop.f32.mrf.mxu0
      %v3322 = vadd.f32 %v3266, %v3321
      %v3323 = vpop.f32.mrf.mxu0
      %3324 = vdwg.mxu0
      %3325 = vmatpush.bf16.msra.mxu0 %v3217
      %3326 = vmatpush.bf16.msra.mxu0 %v3212
      %3327 = vmatpush.bf16.msra.mxu0 %v3207
      %3328 = vmatpush.bf16.msra.mxu0 %v3202
      %3329 = vmatpush.bf16.msra.mxu0 %v3197
      %3330 = vmatpush.bf16.msra.mxu0 %v3192
      %3331 = vmatpush.bf16.msra.mxu0 %v3187
      %3332 = vmatpush.bf16.msra.mxu0 %v3182
      %3333 = vmatmul.bf16.gmra.mxu0 %v2999
      %v3334 = vpop.f32.mrf.mxu0
      %v3335 = vadd.f32 %v3267, %v3334
      %v3336 = vpop.f32.mrf.mxu0
      %3337 = vdwg.mxu0
      %vm3338 = vcmp.gt.f32.partialorder %v217, 0.5
      %vm3339 = vcmp.gt.f32.partialorder %v218, 0.5
      %vm3340 = vcmp.gt.f32.partialorder %v219, 0.5
      %vm3341 = vcmp.gt.f32.partialorder %v220, 0.5
      %vm3342 = vcmp.gt.f32.partialorder %v221, 0.5
      %v3343 = vsel %vm3338, 1, 0
      %v3344 = vsel %vm3339, 1, 0
      %v3345 = vsel %vm3340, 1, 0
      %v3346 = vsel %vm3341, 1, 0
      %v3347 = vsel %vm3342, 1, 0
      %v3348 = vcvt.s32.f32 %v3343
      %v3349 = vcvt.s32.f32 %v3344
      %v3350 = vcvt.s32.f32 %v3345
      %v3351 = vcvt.s32.f32 %v3346
      %v3352 = vcvt.s32.f32 %v3347
      %v3353 = vmul.f32 %v217, 0.9048374
      %v3354 = vmul.f32 %v218, 0.9048374
      %v3355 = vmul.f32 %v219, 0.9048374
      %v3356 = vmul.f32 %v220, 0.9048374
      %v3357 = vmul.f32 %v221, 0.9048374
      %v3358 = vadd.f32 %v3353, %v3283
      %v3359 = vadd.f32 %v3354, %v3296
      %v3360 = vadd.f32 %v3355, %v3309
      %v3361 = vadd.f32 %v3356, %v3322
      %v3362 = vadd.f32 %v3357, %v3335
      %v3363 = vmul.f32 %v3348, 0.5
      %v3364 = vmul.f32 %v3349, 0.5
      %v3365 = vmul.f32 %v3350, 0.5
      %v3366 = vmul.f32 %v3351, 0.5
      %v3367 = vmul.f32 %v3352, 0.5
      %v3368 = vsub.f32 %v3358, %v3363
      %v3369 = vsub.f32 %v3359, %v3364
      %v3370 = vsub.f32 %v3360, %v3365
      %v3371 = vsub.f32 %v3361, %v3366
      %v3372 = vsub.f32 %v3362, %v3367
      %vm3373 = vcmp.gt.f32.partialorder %v3368, 0.5
      %vm3374 = vcmp.gt.f32.partialorder %v3369, 0.5
      %vm3375 = vcmp.gt.f32.partialorder %v3370, 0.5
      %vm3376 = vcmp.gt.f32.partialorder %v3371, 0.5
      %vm3377 = vcmp.gt.f32.partialorder %v3372, 0.5
      %v3378 = vsel %vm3373, 1, 0
      %v3379 = vsel %vm3374, 1, 0
      %v3380 = vsel %vm3375, 1, 0
      %v3381 = vsel %vm3376, 1, 0
      %v3382 = vsel %vm3377, 1, 0
      %v3383 = vcvt.s32.f32 %v3378
      %v3384 = vcvt.s32.f32 %v3379
      %v3385 = vcvt.s32.f32 %v3380
      %v3386 = vcvt.s32.f32 %v3381
      %v3387 = vcvt.s32.f32 %v3382
      %v3388 = vpack.c.bf16 %v3383, %v3383
      %v3389 = vpack.c.bf16 %v3384, %v3384
      %v3390 = vpack.c.bf16 %v3385, %v3385
      %v3391 = vpack.c.bf16 %v3386, %v3386
      %v3392 = vpack.c.bf16 %v3387, %v3387
      %v3393 = vld [vmem:[#allocation14] sm:$0xff]
      %v3394 = vld [vmem:[#allocation14 + $0x8] sm:$0xff]
      %v3395 = vld [vmem:[#allocation14 + $0x10] sm:$0xff]
      %v3396 = vld [vmem:[#allocation14 + $0x18] sm:$0xf]
      %v3397 = vld [vmem:[#allocation14 + $0x1c] sm:$0xff]
      %v3398 = vld [vmem:[#allocation14 + $0x24] sm:$0xff]
      %v3399 = vld [vmem:[#allocation14 + $0x2c] sm:$0xff]
      %v3400 = vld [vmem:[#allocation14 + $0x34] sm:$0xf]
      %v3401 = vld [vmem:[#allocation14 + $0x38] sm:$0xff]
      %v3402 = vld [vmem:[#allocation14 + $0x40] sm:$0xff]
      %v3403 = vld [vmem:[#allocation14 + $0x48] sm:$0xff]
      %v3404 = vld [vmem:[#allocation14 + $0x50] sm:$0xf]
      %v3405 = vld [vmem:[#allocation14 + $0x54] sm:$0xff]
      %v3406 = vld [vmem:[#allocation14 + $0x5c] sm:$0xff]
      %v3407 = vld [vmem:[#allocation14 + $0x64] sm:$0xff]
      %v3408 = vld [vmem:[#allocation14 + $0x6c] sm:$0xf]
      %v3409 = vld [vmem:[#allocation14 + $0x70] sm:$0xff]
      %v3410 = vld [vmem:[#allocation14 + $0x78] sm:$0xff]
      %v3411 = vld [vmem:[#allocation14 + $0x80] sm:$0xff]
      %v3412 = vld [vmem:[#allocation14 + $0x88] sm:$0xf]
      %v3413 = vld [vmem:[#allocation14 + $0x8c] sm:$0xff]
      %v3414 = vld [vmem:[#allocation14 + $0x94] sm:$0xff]
      %v3415 = vld [vmem:[#allocation14 + $0x9c] sm:$0xff]
      %v3416 = vld [vmem:[#allocation14 + $0xa4] sm:$0xf]
      %v3417 = vld [vmem:[#allocation14 + $0xa8] sm:$0xff]
      %v3418 = vld [vmem:[#allocation14 + $0xb0] sm:$0xff]
      %v3419 = vld [vmem:[#allocation14 + $0xb8] sm:$0xff]
      %v3420 = vld [vmem:[#allocation14 + $0xc0] sm:$0xf]
      %v3421 = vld [vmem:[#allocation14 + $0xc4] sm:$0xff]
      %v3422 = vld [vmem:[#allocation14 + $0xcc] sm:$0xff]
      %v3423 = vld [vmem:[#allocation14 + $0xd4] sm:$0xff]
      %v3424 = vld [vmem:[#allocation14 + $0xdc] sm:$0xf]
      %v3425 = vld [vmem:[#allocation14 + $0xe0] sm:$0xff]
      %v3426 = vld [vmem:[#allocation14 + $0xe8] sm:$0xff]
      %v3427 = vld [vmem:[#allocation14 + $0xf0] sm:$0xff]
      %v3428 = vld [vmem:[#allocation14 + $0xf8] sm:$0xf]
      %v3429 = vld [vmem:[#allocation14 + $0xfc] sm:$0xff]
      %v3430 = vld [vmem:[#allocation14 + $0x104] sm:$0xff]
      %v3431 = vld [vmem:[#allocation14 + $0x10c] sm:$0xff]
      %v3432 = vld [vmem:[#allocation14 + $0x114] sm:$0xf]
      %v3433 = vld [vmem:[#allocation14 + $0x118] sm:$0xff]
      %v3434 = vld [vmem:[#allocation14 + $0x120] sm:$0xff]
      %v3435 = vld [vmem:[#allocation14 + $0x128] sm:$0xff]
      %v3436 = vld [vmem:[#allocation14 + $0x130] sm:$0xf]
      %v3437 = vld [vmem:[#allocation14 + $0x134] sm:$0xff]
      %v3438 = vld [vmem:[#allocation14 + $0x13c] sm:$0xff]
      %v3439 = vld [vmem:[#allocation14 + $0x144] sm:$0xff]
      %v3440 = vld [vmem:[#allocation14 + $0x14c] sm:$0xf]
      %v3441 = vld [vmem:[#allocation14 + $0x150] sm:$0xff]
      %v3442 = vld [vmem:[#allocation14 + $0x158] sm:$0xff]
      %v3443 = vld [vmem:[#allocation14 + $0x160] sm:$0xff]
      %v3444 = vld [vmem:[#allocation14 + $0x168] sm:$0xf]
      %v3445 = vld [vmem:[#allocation14 + $0x16c] sm:$0xff]
      %v3446 = vld [vmem:[#allocation14 + $0x174] sm:$0xff]
      %v3447 = vld [vmem:[#allocation14 + $0x17c] sm:$0xff]
      %v3448 = vld [vmem:[#allocation14 + $0x184] sm:$0xf]
      %v3449 = vld [vmem:[#allocation14 + $0x188] sm:$0xff]
      %v3450 = vld [vmem:[#allocation14 + $0x190] sm:$0xff]
      %v3451 = vld [vmem:[#allocation14 + $0x198] sm:$0xff]
      %v3452 = vld [vmem:[#allocation14 + $0x1a0] sm:$0xf]
      %v3453 = vld [vmem:[#allocation14 + $0x1a4] sm:$0xff]
      %v3454 = vld [vmem:[#allocation14 + $0x1ac] sm:$0xff]
      %v3455 = vld [vmem:[#allocation14 + $0x1b4] sm:$0xff]
      %v3456 = vld [vmem:[#allocation14 + $0x1bc] sm:$0xf]
      %v3457 = vld [vmem:[#allocation14 + $0x1c0] sm:$0xff]
      %v3458 = vld [vmem:[#allocation14 + $0x1c8] sm:$0xff]
      %v3459 = vld [vmem:[#allocation14 + $0x1d0] sm:$0xff]
      %v3460 = vld [vmem:[#allocation14 + $0x1d8] sm:$0xf]
      %v3461 = vld [vmem:[#allocation14 + $0x1dc] sm:$0xff]
      %v3462 = vld [vmem:[#allocation14 + $0x1e4] sm:$0xff]
      %v3463 = vld [vmem:[#allocation14 + $0x1ec] sm:$0xff]
      %v3464 = vld [vmem:[#allocation14 + $0x1f4] sm:$0xf]
      %v3465 = vld [vmem:[#allocation14 + $0x1f8] sm:$0xff]
      %v3466 = vld [vmem:[#allocation14 + $0x200] sm:$0xff]
      %v3467 = vld [vmem:[#allocation14 + $0x208] sm:$0xff]
      %v3468 = vld [vmem:[#allocation14 + $0x210] sm:$0xf]
      %v3469 = vld [vmem:[#allocation14 + $0x214] sm:$0xff]
      %v3470 = vld [vmem:[#allocation14 + $0x21c] sm:$0xff]
      %v3471 = vld [vmem:[#allocation14 + $0x224] sm:$0xff]
      %v3472 = vld [vmem:[#allocation14 + $0x22c] sm:$0xf]
      %v3473 = vld [vmem:[#allocation14 + $0x230] sm:$0xff]
      %v3474 = vld [vmem:[#allocation14 + $0x238] sm:$0xff]
      %v3475 = vld [vmem:[#allocation14 + $0x240] sm:$0xff]
      %v3476 = vld [vmem:[#allocation14 + $0x248] sm:$0xf]
      %v3477 = vld [vmem:[#allocation14 + $0x24c] sm:$0xff]
      %v3478 = vld [vmem:[#allocation14 + $0x254] sm:$0xff]
      %v3479 = vld [vmem:[#allocation14 + $0x25c] sm:$0xff]
      %v3480 = vld [vmem:[#allocation14 + $0x264] sm:$0xf]
      %v3481 = vld [vmem:[#allocation14 + $0x268] sm:$0xff]
      %v3482 = vld [vmem:[#allocation14 + $0x270] sm:$0xff]
      %v3483 = vld [vmem:[#allocation14 + $0x278] sm:$0xff]
      %v3484 = vld [vmem:[#allocation14 + $0x280] sm:$0xf]
      %v3485 = vld [vmem:[#allocation14 + $0x284] sm:$0xff]
      %v3486 = vld [vmem:[#allocation14 + $0x28c] sm:$0xff]
      %v3487 = vld [vmem:[#allocation14 + $0x294] sm:$0xff]
      %v3488 = vld [vmem:[#allocation14 + $0x29c] sm:$0xf]
      %v3489 = vld [vmem:[#allocation14 + $0x2a0] sm:$0xff]
      %v3490 = vld [vmem:[#allocation14 + $0x2a8] sm:$0xff]
      %v3491 = vld [vmem:[#allocation14 + $0x2b0] sm:$0xff]
      %v3492 = vld [vmem:[#allocation14 + $0x2b8] sm:$0xf]
      %v3493 = vld [vmem:[#allocation14 + $0x2bc] sm:$0xff]
      %v3494 = vld [vmem:[#allocation14 + $0x2c4] sm:$0xff]
      %v3495 = vld [vmem:[#allocation14 + $0x2cc] sm:$0xff]
      %v3496 = vld [vmem:[#allocation14 + $0x2d4] sm:$0xf]
      %v3497 = vld [vmem:[#allocation14 + $0x2d8] sm:$0xff]
      %v3498 = vld [vmem:[#allocation14 + $0x2e0] sm:$0xff]
      %v3499 = vld [vmem:[#allocation14 + $0x2e8] sm:$0xff]
      %v3500 = vld [vmem:[#allocation14 + $0x2f0] sm:$0xf]
      %v3501 = vld [vmem:[#allocation14 + $0x2f4] sm:$0xff]
      %v3502 = vld [vmem:[#allocation14 + $0x2fc] sm:$0xff]
      %v3503 = vld [vmem:[#allocation14 + $0x304] sm:$0xff]
      %v3504 = vld [vmem:[#allocation14 + $0x30c] sm:$0xf]
      %v3505 = vld [vmem:[#allocation14 + $0x310] sm:$0xff]
      %v3506 = vld [vmem:[#allocation14 + $0x318] sm:$0xff]
      %v3507 = vld [vmem:[#allocation14 + $0x320] sm:$0xff]
      %v3508 = vld [vmem:[#allocation14 + $0x328] sm:$0xf]
      %v3509 = vld [vmem:[#allocation14 + $0x32c] sm:$0xff]
      %v3510 = vld [vmem:[#allocation14 + $0x334] sm:$0xff]
      %v3511 = vld [vmem:[#allocation14 + $0x33c] sm:$0xff]
      %v3512 = vld [vmem:[#allocation14 + $0x344] sm:$0xf]
      %v3513 = vld [vmem:[#allocation14 + $0x348] sm:$0xff]
      %v3514 = vld [vmem:[#allocation14 + $0x350] sm:$0xff]
      %v3515 = vld [vmem:[#allocation14 + $0x358] sm:$0xff]
      %v3516 = vld [vmem:[#allocation14 + $0x360] sm:$0xf]
      %v3517 = vld [vmem:[#allocation14 + $0x364] sm:$0xff]
      %v3518 = vld [vmem:[#allocation14 + $0x36c] sm:$0xff]
      %v3519 = vld [vmem:[#allocation14 + $0x374] sm:$0xff]
      %v3520 = vld [vmem:[#allocation14 + $0x37c] sm:$0xf]
      %v3521 = vld [vmem:[#allocation14 + $0x380] sm:$0xff]
      %v3522 = vld [vmem:[#allocation14 + $0x388] sm:$0xff]
      %v3523 = vld [vmem:[#allocation14 + $0x390] sm:$0xff]
      %v3524 = vld [vmem:[#allocation14 + $0x398] sm:$0xf]
      %v3525 = vld [vmem:[#allocation14 + $0x39c] sm:$0xff]
      %v3526 = vld [vmem:[#allocation14 + $0x3a4] sm:$0xff]
      %v3527 = vld [vmem:[#allocation14 + $0x3ac] sm:$0xff]
      %v3528 = vld [vmem:[#allocation14 + $0x3b4] sm:$0xf]
      %v3529 = vld [vmem:[#allocation14 + $0x3b8] sm:$0xff]
      %v3530 = vld [vmem:[#allocation14 + $0x3c0] sm:$0xff]
      %v3531 = vld [vmem:[#allocation14 + $0x3c8] sm:$0xff]
      %v3532 = vld [vmem:[#allocation14 + $0x3d0] sm:$0xf]
      %v3533 = vld [vmem:[#allocation14 + $0x3d4] sm:$0xff]
      %v3534 = vld [vmem:[#allocation14 + $0x3dc] sm:$0xff]
      %v3535 = vld [vmem:[#allocation14 + $0x3e4] sm:$0xff]
      %v3536 = vld [vmem:[#allocation14 + $0x3ec] sm:$0xf]
      %v3537 = vld [vmem:[#allocation14 + $0x3f0] sm:$0xff]
      %v3538 = vld [vmem:[#allocation14 + $0x3f8] sm:$0xff]
      %v3539 = vld [vmem:[#allocation14 + $0x400] sm:$0xff]
      %v3540 = vld [vmem:[#allocation14 + $0x408] sm:$0xf]
      %v3541 = vld [vmem:[#allocation14 + $0x40c] sm:$0xff]
      %v3542 = vld [vmem:[#allocation14 + $0x414] sm:$0xff]
      %v3543 = vld [vmem:[#allocation14 + $0x41c] sm:$0xff]
      %v3544 = vld [vmem:[#allocation14 + $0x424] sm:$0xf]
      %v3545 = vld [vmem:[#allocation14 + $0x428] sm:$0xff]
      %v3546 = vld [vmem:[#allocation14 + $0x430] sm:$0xff]
      %v3547 = vld [vmem:[#allocation14 + $0x438] sm:$0xff]
      %v3548 = vld [vmem:[#allocation14 + $0x440] sm:$0xf]
      %v3549 = vld [vmem:[#allocation14 + $0x444] sm:$0xff]
      %v3550 = vld [vmem:[#allocation14 + $0x44c] sm:$0xff]
      %v3551 = vld [vmem:[#allocation14 + $0x454] sm:$0xff]
      %v3552 = vld [vmem:[#allocation14 + $0x45c] sm:$0xf]
      %v3553 = vld [vmem:[#allocation14 + $0x460] sm:$0xff]
      %v3554 = vld [vmem:[#allocation14 + $0x468] sm:$0xff]
      %v3555 = vld [vmem:[#allocation14 + $0x470] sm:$0xff]
      %v3556 = vld [vmem:[#allocation14 + $0x478] sm:$0xf]
      %v3557 = vld [vmem:[#allocation14 + $0x47c] sm:$0xff]
      %v3558 = vld [vmem:[#allocation14 + $0x484] sm:$0xff]
      %v3559 = vld [vmem:[#allocation14 + $0x48c] sm:$0xff]
      %v3560 = vld [vmem:[#allocation14 + $0x494] sm:$0xf]
      %v3561 = vld [vmem:[#allocation14 + $0x498] sm:$0xff]
      %v3562 = vld [vmem:[#allocation14 + $0x4a0] sm:$0xff]
      %v3563 = vld [vmem:[#allocation14 + $0x4a8] sm:$0xff]
      %v3564 = vld [vmem:[#allocation14 + $0x4b0] sm:$0xf]
      %v3565 = vld [vmem:[#allocation14 + $0x4b4] sm:$0xff]
      %v3566 = vld [vmem:[#allocation14 + $0x4bc] sm:$0xff]
      %v3567 = vld [vmem:[#allocation14 + $0x4c4] sm:$0xff]
      %v3568 = vld [vmem:[#allocation14 + $0x4cc] sm:$0xf]
      %v3569 = vld [vmem:[#allocation14 + $0x4d0] sm:$0xff]
      %v3570 = vld [vmem:[#allocation14 + $0x4d8] sm:$0xff]
      %v3571 = vld [vmem:[#allocation14 + $0x4e0] sm:$0xff]
      %v3572 = vld [vmem:[#allocation14 + $0x4e8] sm:$0xf]
      %v3573 = vld [vmem:[#allocation14 + $0x4ec] sm:$0xff]
      %v3574 = vld [vmem:[#allocation14 + $0x4f4] sm:$0xff]
      %v3575 = vld [vmem:[#allocation14 + $0x4fc] sm:$0xff]
      %v3576 = vld [vmem:[#allocation14 + $0x504] sm:$0xf]
      %v3577 = vld [vmem:[#allocation14 + $0x508] sm:$0xff]
      %v3578 = vld [vmem:[#allocation14 + $0x510] sm:$0xff]
      %v3579 = vld [vmem:[#allocation14 + $0x518] sm:$0xff]
      %v3580 = vld [vmem:[#allocation14 + $0x520] sm:$0xf]
      %v3581 = vld [vmem:[#allocation14 + $0x524] sm:$0xff]
      %v3582 = vld [vmem:[#allocation14 + $0x52c] sm:$0xff]
      %v3583 = vld [vmem:[#allocation14 + $0x534] sm:$0xff]
      %v3584 = vld [vmem:[#allocation14 + $0x53c] sm:$0xf]
      %v3585 = vld [vmem:[#allocation14 + $0x540] sm:$0xff]
      %v3586 = vld [vmem:[#allocation14 + $0x548] sm:$0xff]
      %v3587 = vld [vmem:[#allocation14 + $0x550] sm:$0xff]
      %v3588 = vld [vmem:[#allocation14 + $0x558] sm:$0xf]
      %v3589 = vld [vmem:[#allocation14 + $0x55c] sm:$0xff]
      %v3590 = vld [vmem:[#allocation14 + $0x564] sm:$0xff]
      %v3591 = vld [vmem:[#allocation14 + $0x56c] sm:$0xff]
      %v3592 = vld [vmem:[#allocation14 + $0x574] sm:$0xf]
      %v3593 = vld [vmem:[#allocation14 + $0x578] sm:$0xff]
      %v3594 = vld [vmem:[#allocation14 + $0x580] sm:$0xff]
      %v3595 = vld [vmem:[#allocation14 + $0x588] sm:$0xff]
      %v3596 = vld [vmem:[#allocation14 + $0x590] sm:$0xf]
      %v3597 = vld [vmem:[#allocation14 + $0x594] sm:$0xff]
      %v3598 = vld [vmem:[#allocation14 + $0x59c] sm:$0xff]
      %v3599 = vld [vmem:[#allocation14 + $0x5a4] sm:$0xff]
      %v3600 = vld [vmem:[#allocation14 + $0x5ac] sm:$0xf]
      %v3601 = vld [vmem:[#allocation14 + $0x5b0] sm:$0xff]
      %v3602 = vld [vmem:[#allocation14 + $0x5b8] sm:$0xff]
      %v3603 = vld [vmem:[#allocation14 + $0x5c0] sm:$0xff]
      %v3604 = vld [vmem:[#allocation14 + $0x5c8] sm:$0xf]
      %v3605 = vld [vmem:[#allocation14 + $0x5cc] sm:$0xff]
      %v3606 = vld [vmem:[#allocation14 + $0x5d4] sm:$0xff]
      %v3607 = vld [vmem:[#allocation14 + $0x5dc] sm:$0xff]
      %v3608 = vld [vmem:[#allocation14 + $0x5e4] sm:$0xf]
      %v3609 = vld [vmem:[#allocation14 + $0x5e8] sm:$0xff]
      %v3610 = vld [vmem:[#allocation14 + $0x5f0] sm:$0xff]
      %v3611 = vld [vmem:[#allocation14 + $0x5f8] sm:$0xff]
      %v3612 = vld [vmem:[#allocation14 + $0x600] sm:$0xf]
      %v3613 = vld [vmem:[#allocation14 + $0x604] sm:$0xff]
      %v3614 = vld [vmem:[#allocation14 + $0x60c] sm:$0xff]
      %v3615 = vld [vmem:[#allocation14 + $0x614] sm:$0xff]
      %v3616 = vld [vmem:[#allocation14 + $0x61c] sm:$0xf]
      %v3617 = vld [vmem:[#allocation14 + $0x620] sm:$0xff]
      %v3618 = vld [vmem:[#allocation14 + $0x628] sm:$0xff]
      %v3619 = vld [vmem:[#allocation14 + $0x630] sm:$0xff]
      %v3620 = vld [vmem:[#allocation14 + $0x638] sm:$0xf]
      %v3621 = vld [vmem:[#allocation14 + $0x63c] sm:$0xff]
      %v3622 = vld [vmem:[#allocation14 + $0x644] sm:$0xff]
      %v3623 = vld [vmem:[#allocation14 + $0x64c] sm:$0xff]
      %v3624 = vld [vmem:[#allocation14 + $0x654] sm:$0xf]
      %v3625 = vld [vmem:[#allocation14 + $0x658] sm:$0xff]
      %v3626 = vld [vmem:[#allocation14 + $0x660] sm:$0xff]
      %v3627 = vld [vmem:[#allocation14 + $0x668] sm:$0xff]
      %v3628 = vld [vmem:[#allocation14 + $0x670] sm:$0xf]
      %v3629 = vld [vmem:[#allocation14 + $0x674] sm:$0xff]
      %v3630 = vld [vmem:[#allocation14 + $0x67c] sm:$0xff]
      %v3631 = vld [vmem:[#allocation14 + $0x684] sm:$0xff]
      %v3632 = vld [vmem:[#allocation14 + $0x68c] sm:$0xf]
      %v3633 = vld [vmem:[#allocation14 + $0x690] sm:$0xff]
      %v3634 = vld [vmem:[#allocation14 + $0x698] sm:$0xff]
      %v3635 = vld [vmem:[#allocation14 + $0x6a0] sm:$0xff]
      %v3636 = vld [vmem:[#allocation14 + $0x6a8] sm:$0xf]
      %v3637 = vld [vmem:[#allocation14 + $0x6ac] sm:$0xff]
      %v3638 = vld [vmem:[#allocation14 + $0x6b4] sm:$0xff]
      %v3639 = vld [vmem:[#allocation14 + $0x6bc] sm:$0xff]
      %v3640 = vld [vmem:[#allocation14 + $0x6c4] sm:$0xf]
      %v3641 = vld [vmem:[#allocation14 + $0x6c8] sm:$0xff]
      %v3642 = vld [vmem:[#allocation14 + $0x6d0] sm:$0xff]
      %v3643 = vld [vmem:[#allocation14 + $0x6d8] sm:$0xff]
      %v3644 = vld [vmem:[#allocation14 + $0x6e0] sm:$0xf]
      %v3645 = vld [vmem:[#allocation14 + $0x6e4] sm:$0xff]
      %v3646 = vld [vmem:[#allocation14 + $0x6ec] sm:$0xff]
      %v3647 = vld [vmem:[#allocation14 + $0x6f4] sm:$0xff]
      %v3648 = vld [vmem:[#allocation14 + $0x6fc] sm:$0xf]
      %v3649 = vld [vmem:[#allocation14 + $0x700] sm:$0xff]
      %v3650 = vld [vmem:[#allocation14 + $0x708] sm:$0xff]
      %v3651 = vld [vmem:[#allocation14 + $0x710] sm:$0xff]
      %v3652 = vld [vmem:[#allocation14 + $0x718] sm:$0xf]
      %v3653 = vld [vmem:[#allocation14 + $0x71c] sm:$0xff]
      %v3654 = vld [vmem:[#allocation14 + $0x724] sm:$0xff]
      %v3655 = vld [vmem:[#allocation14 + $0x72c] sm:$0xff]
      %v3656 = vld [vmem:[#allocation14 + $0x734] sm:$0xf]
      %v3657 = vld [vmem:[#allocation14 + $0x738] sm:$0xff]
      %v3658 = vld [vmem:[#allocation14 + $0x740] sm:$0xff]
      %v3659 = vld [vmem:[#allocation14 + $0x748] sm:$0xff]
      %v3660 = vld [vmem:[#allocation14 + $0x750] sm:$0xf]
      %v3661 = vld [vmem:[#allocation14 + $0x754] sm:$0xff]
      %v3662 = vld [vmem:[#allocation14 + $0x75c] sm:$0xff]
      %v3663 = vld [vmem:[#allocation14 + $0x764] sm:$0xff]
      %v3664 = vld [vmem:[#allocation14 + $0x76c] sm:$0xf]
      %v3665 = vld [vmem:[#allocation14 + $0x770] sm:$0xff]
      %v3666 = vld [vmem:[#allocation14 + $0x778] sm:$0xff]
      %v3667 = vld [vmem:[#allocation14 + $0x780] sm:$0xff]
      %v3668 = vld [vmem:[#allocation14 + $0x788] sm:$0xf]
      %v3669 = vld [vmem:[#allocation14 + $0x78c] sm:$0xff]
      %v3670 = vld [vmem:[#allocation14 + $0x794] sm:$0xff]
      %v3671 = vld [vmem:[#allocation14 + $0x79c] sm:$0xff]
      %v3672 = vld [vmem:[#allocation14 + $0x7a4] sm:$0xf]
      %v3673 = vld [vmem:[#allocation14 + $0x7a8] sm:$0xff]
      %v3674 = vld [vmem:[#allocation14 + $0x7b0] sm:$0xff]
      %v3675 = vld [vmem:[#allocation14 + $0x7b8] sm:$0xff]
      %v3676 = vld [vmem:[#allocation14 + $0x7c0] sm:$0xf]
      %v3677 = vld [vmem:[#allocation14 + $0x7c4] sm:$0xff]
      %v3678 = vld [vmem:[#allocation14 + $0x7cc] sm:$0xff]
      %v3679 = vld [vmem:[#allocation14 + $0x7d4] sm:$0xff]
      %v3680 = vld [vmem:[#allocation14 + $0x7dc] sm:$0xf]
      %v3681 = vld [vmem:[#allocation14 + $0x7e0] sm:$0xff]
      %v3682 = vld [vmem:[#allocation14 + $0x7e8] sm:$0xff]
      %v3683 = vld [vmem:[#allocation14 + $0x7f0] sm:$0xff]
      %v3684 = vld [vmem:[#allocation14 + $0x7f8] sm:$0xf]
      %v3685 = vld [vmem:[#allocation14 + $0x7fc] sm:$0xff]
      %v3686 = vld [vmem:[#allocation14 + $0x804] sm:$0xff]
      %v3687 = vld [vmem:[#allocation14 + $0x80c] sm:$0xff]
      %v3688 = vld [vmem:[#allocation14 + $0x814] sm:$0xf]
      %v3689 = vld [vmem:[#allocation14 + $0x818] sm:$0xff]
      %v3690 = vld [vmem:[#allocation14 + $0x820] sm:$0xff]
      %v3691 = vld [vmem:[#allocation14 + $0x828] sm:$0xff]
      %v3692 = vld [vmem:[#allocation14 + $0x830] sm:$0xf]
      %v3693 = vld [vmem:[#allocation14 + $0x834] sm:$0xff]
      %v3694 = vld [vmem:[#allocation14 + $0x83c] sm:$0xff]
      %v3695 = vld [vmem:[#allocation14 + $0x844] sm:$0xff]
      %v3696 = vld [vmem:[#allocation14 + $0x84c] sm:$0xf]
      %v3697 = vld [vmem:[#allocation14 + $0x850] sm:$0xff]
      %v3698 = vld [vmem:[#allocation14 + $0x858] sm:$0xff]
      %v3699 = vld [vmem:[#allocation14 + $0x860] sm:$0xff]
      %v3700 = vld [vmem:[#allocation14 + $0x868] sm:$0xf]
      %v3701 = vld [vmem:[#allocation14 + $0x86c] sm:$0xff]
      %v3702 = vld [vmem:[#allocation14 + $0x874] sm:$0xff]
      %v3703 = vld [vmem:[#allocation14 + $0x87c] sm:$0xff]
      %v3704 = vld [vmem:[#allocation14 + $0x884] sm:$0xf]
      %v3705 = vld [vmem:[#allocation14 + $0x888] sm:$0xff]
      %v3706 = vld [vmem:[#allocation14 + $0x890] sm:$0xff]
      %v3707 = vld [vmem:[#allocation14 + $0x898] sm:$0xff]
      %v3708 = vld [vmem:[#allocation14 + $0x8a0] sm:$0xf]
      %v3709 = vld [vmem:[#allocation14 + $0x8a4] sm:$0xff]
      %v3710 = vld [vmem:[#allocation14 + $0x8ac] sm:$0xff]
      %v3711 = vld [vmem:[#allocation14 + $0x8b4] sm:$0xff]
      %v3712 = vld [vmem:[#allocation14 + $0x8bc] sm:$0xf]
      %v3713 = vld [vmem:[#allocation16] sm:$0xff]
      %v3714 = vld [vmem:[#allocation16 + $0x8] sm:$0x3f]
      %v4035 = vunpack.c.l.b16 %v3393
      %v4036 = vunpack.c.h.b16 %v3393
      %v4037 = vunpack.c.l.b16 %v3394
      %v4038 = vunpack.c.h.b16 %v3394
      %v4039 = vunpack.c.l.b16 %v3395
      %v4040 = vunpack.c.h.b16 %v3395
      %v4041 = vunpack.c.l.b16 %v3396
      %v4042 = vunpack.c.l.b16 %v3397
      %v4043 = vunpack.c.h.b16 %v3397
      %v4044 = vunpack.c.l.b16 %v3398
      %v4045 = vunpack.c.h.b16 %v3398
      %v4046 = vunpack.c.l.b16 %v3399
      %v4047 = vunpack.c.h.b16 %v3399
      %v4048 = vunpack.c.l.b16 %v3400
      %v4049 = vunpack.c.l.b16 %v3401
      %v4050 = vunpack.c.h.b16 %v3401
      %v4051 = vunpack.c.l.b16 %v3402
      %v4052 = vunpack.c.h.b16 %v3402
      %v4053 = vunpack.c.l.b16 %v3403
      %v4054 = vunpack.c.h.b16 %v3403
      %v4055 = vunpack.c.l.b16 %v3404
      %v4056 = vunpack.c.l.b16 %v3405
      %v4057 = vunpack.c.h.b16 %v3405
      %v4058 = vunpack.c.l.b16 %v3406
      %v4059 = vunpack.c.h.b16 %v3406
      %v4060 = vunpack.c.l.b16 %v3407
      %v4061 = vunpack.c.h.b16 %v3407
      %v4062 = vunpack.c.l.b16 %v3408
      %v4063 = vunpack.c.l.b16 %v3409
      %v4064 = vunpack.c.h.b16 %v3409
      %v4065 = vunpack.c.l.b16 %v3410
      %v4066 = vunpack.c.h.b16 %v3410
      %v4067 = vunpack.c.l.b16 %v3411
      %v4068 = vunpack.c.h.b16 %v3411
      %v4069 = vunpack.c.l.b16 %v3412
      %v4070 = vunpack.c.l.b16 %v3413
      %v4071 = vunpack.c.h.b16 %v3413
      %v4072 = vunpack.c.l.b16 %v3414
      %v4073 = vunpack.c.h.b16 %v3414
      %v4074 = vunpack.c.l.b16 %v3415
      %v4075 = vunpack.c.h.b16 %v3415
      %v4076 = vunpack.c.l.b16 %v3416
      %v4077 = vunpack.c.l.b16 %v3417
      %v4078 = vunpack.c.h.b16 %v3417
      %v4079 = vunpack.c.l.b16 %v3418
      %v4080 = vunpack.c.h.b16 %v3418
      %v4081 = vunpack.c.l.b16 %v3419
      %v4082 = vunpack.c.h.b16 %v3419
      %v4083 = vunpack.c.l.b16 %v3420
      %v4084 = vunpack.c.l.b16 %v3421
      %v4085 = vunpack.c.h.b16 %v3421
      %v4086 = vunpack.c.l.b16 %v3422
      %v4087 = vunpack.c.h.b16 %v3422
      %v4088 = vunpack.c.l.b16 %v3423
      %v4089 = vunpack.c.h.b16 %v3423
      %v4090 = vunpack.c.l.b16 %v3424
      %v4091 = vunpack.c.l.b16 %v3425
      %v4092 = vunpack.c.h.b16 %v3425
      %v4093 = vunpack.c.l.b16 %v3426
      %v4094 = vunpack.c.h.b16 %v3426
      %v4095 = vunpack.c.l.b16 %v3427
      %v4096 = vunpack.c.h.b16 %v3427
      %v4097 = vunpack.c.l.b16 %v3428
      %v4098 = vunpack.c.l.b16 %v3429
      %v4099 = vunpack.c.h.b16 %v3429
      %v4100 = vunpack.c.l.b16 %v3430
      %v4101 = vunpack.c.h.b16 %v3430
      %v4102 = vunpack.c.l.b16 %v3431
      %v4103 = vunpack.c.h.b16 %v3431
      %v4104 = vunpack.c.l.b16 %v3432
      %v4105 = vunpack.c.l.b16 %v3433
      %v4106 = vunpack.c.h.b16 %v3433
      %v4107 = vunpack.c.l.b16 %v3434
      %v4108 = vunpack.c.h.b16 %v3434
      %v4109 = vunpack.c.l.b16 %v3435
      %v4110 = vunpack.c.h.b16 %v3435
      %v4111 = vunpack.c.l.b16 %v3436
      %v4112 = vunpack.c.l.b16 %v3437
      %v4113 = vunpack.c.h.b16 %v3437
      %v4114 = vunpack.c.l.b16 %v3438
      %v4115 = vunpack.c.h.b16 %v3438
      %v4116 = vunpack.c.l.b16 %v3439
      %v4117 = vunpack.c.h.b16 %v3439
      %v4118 = vunpack.c.l.b16 %v3440
      %v4119 = vunpack.c.l.b16 %v3441
      %v4120 = vunpack.c.h.b16 %v3441
      %v4121 = vunpack.c.l.b16 %v3442
      %v4122 = vunpack.c.h.b16 %v3442
      %v4123 = vunpack.c.l.b16 %v3443
      %v4124 = vunpack.c.h.b16 %v3443
      %v4125 = vunpack.c.l.b16 %v3444
      %v4126 = vunpack.c.l.b16 %v3445
      %v4127 = vunpack.c.h.b16 %v3445
      %v4128 = vunpack.c.l.b16 %v3446
      %v4129 = vunpack.c.h.b16 %v3446
      %v4130 = vunpack.c.l.b16 %v3447
      %v4131 = vunpack.c.h.b16 %v3447
      %v4132 = vunpack.c.l.b16 %v3448
      %v4133 = vunpack.c.l.b16 %v3449
      %v4134 = vunpack.c.h.b16 %v3449
      %v4135 = vunpack.c.l.b16 %v3450
      %v4136 = vunpack.c.h.b16 %v3450
      %v4137 = vunpack.c.l.b16 %v3451
      %v4138 = vunpack.c.h.b16 %v3451
      %v4139 = vunpack.c.l.b16 %v3452
      %v4140 = vunpack.c.l.b16 %v3453
      %v4141 = vunpack.c.h.b16 %v3453
      %v4142 = vunpack.c.l.b16 %v3454
      %v4143 = vunpack.c.h.b16 %v3454
      %v4144 = vunpack.c.l.b16 %v3455
      %v4145 = vunpack.c.h.b16 %v3455
      %v4146 = vunpack.c.l.b16 %v3456
      %v4147 = vunpack.c.l.b16 %v3457
      %v4148 = vunpack.c.h.b16 %v3457
      %v4149 = vunpack.c.l.b16 %v3458
      %v4150 = vunpack.c.h.b16 %v3458
      %v4151 = vunpack.c.l.b16 %v3459
      %v4152 = vunpack.c.h.b16 %v3459
      %v4153 = vunpack.c.l.b16 %v3460
      %v4154 = vunpack.c.l.b16 %v3461
      %v4155 = vunpack.c.h.b16 %v3461
      %v4156 = vunpack.c.l.b16 %v3462
      %v4157 = vunpack.c.h.b16 %v3462
      %v4158 = vunpack.c.l.b16 %v3463
      %v4159 = vunpack.c.h.b16 %v3463
      %v4160 = vunpack.c.l.b16 %v3464
      %v4161 = vunpack.c.l.b16 %v3465
      %v4162 = vunpack.c.h.b16 %v3465
      %v4163 = vunpack.c.l.b16 %v3466
      %v4164 = vunpack.c.h.b16 %v3466
      %v4165 = vunpack.c.l.b16 %v3467
      %v4166 = vunpack.c.h.b16 %v3467
      %v4167 = vunpack.c.l.b16 %v3468
      %v4168 = vunpack.c.l.b16 %v3469
      %v4169 = vunpack.c.h.b16 %v3469
      %v4170 = vunpack.c.l.b16 %v3470
      %v4171 = vunpack.c.h.b16 %v3470
      %v4172 = vunpack.c.l.b16 %v3471
      %v4173 = vunpack.c.h.b16 %v3471
      %v4174 = vunpack.c.l.b16 %v3472
      %v4175 = vunpack.c.l.b16 %v3473
      %v4176 = vunpack.c.h.b16 %v3473
      %v4177 = vunpack.c.l.b16 %v3474
      %v4178 = vunpack.c.h.b16 %v3474
      %v4179 = vunpack.c.l.b16 %v3475
      %v4180 = vunpack.c.h.b16 %v3475
      %v4181 = vunpack.c.l.b16 %v3476
      %v4182 = vunpack.c.l.b16 %v3477
      %v4183 = vunpack.c.h.b16 %v3477
      %v4184 = vunpack.c.l.b16 %v3478
      %v4185 = vunpack.c.h.b16 %v3478
      %v4186 = vunpack.c.l.b16 %v3479
      %v4187 = vunpack.c.h.b16 %v3479
      %v4188 = vunpack.c.l.b16 %v3480
      %v4189 = vunpack.c.l.b16 %v3481
      %v4190 = vunpack.c.h.b16 %v3481
      %v4191 = vunpack.c.l.b16 %v3482
      %v4192 = vunpack.c.h.b16 %v3482
      %v4193 = vunpack.c.l.b16 %v3483
      %v4194 = vunpack.c.h.b16 %v3483
      %v4195 = vunpack.c.l.b16 %v3484
      %v4196 = vunpack.c.l.b16 %v3485
      %v4197 = vunpack.c.h.b16 %v3485
      %v4198 = vunpack.c.l.b16 %v3486
      %v4199 = vunpack.c.h.b16 %v3486
      %v4200 = vunpack.c.l.b16 %v3487
      %v4201 = vunpack.c.h.b16 %v3487
      %v4202 = vunpack.c.l.b16 %v3488
      %v4203 = vunpack.c.l.b16 %v3489
      %v4204 = vunpack.c.h.b16 %v3489
      %v4205 = vunpack.c.l.b16 %v3490
      %v4206 = vunpack.c.h.b16 %v3490
      %v4207 = vunpack.c.l.b16 %v3491
      %v4208 = vunpack.c.h.b16 %v3491
      %v4209 = vunpack.c.l.b16 %v3492
      %v4210 = vunpack.c.l.b16 %v3493
      %v4211 = vunpack.c.h.b16 %v3493
      %v4212 = vunpack.c.l.b16 %v3494
      %v4213 = vunpack.c.h.b16 %v3494
      %v4214 = vunpack.c.l.b16 %v3495
      %v4215 = vunpack.c.h.b16 %v3495
      %v4216 = vunpack.c.l.b16 %v3496
      %v4217 = vunpack.c.l.b16 %v3497
      %v4218 = vunpack.c.h.b16 %v3497
      %v4219 = vunpack.c.l.b16 %v3498
      %v4220 = vunpack.c.h.b16 %v3498
      %v4221 = vunpack.c.l.b16 %v3499
      %v4222 = vunpack.c.h.b16 %v3499
      %v4223 = vunpack.c.l.b16 %v3500
      %v4224 = vunpack.c.l.b16 %v3501
      %v4225 = vunpack.c.h.b16 %v3501
      %v4226 = vunpack.c.l.b16 %v3502
      %v4227 = vunpack.c.h.b16 %v3502
      %v4228 = vunpack.c.l.b16 %v3503
      %v4229 = vunpack.c.h.b16 %v3503
      %v4230 = vunpack.c.l.b16 %v3504
      %v4231 = vunpack.c.l.b16 %v3505
      %v4232 = vunpack.c.h.b16 %v3505
      %v4233 = vunpack.c.l.b16 %v3506
      %v4234 = vunpack.c.h.b16 %v3506
      %v4235 = vunpack.c.l.b16 %v3507
      %v4236 = vunpack.c.h.b16 %v3507
      %v4237 = vunpack.c.l.b16 %v3508
      %v4238 = vunpack.c.l.b16 %v3509
      %v4239 = vunpack.c.h.b16 %v3509
      %v4240 = vunpack.c.l.b16 %v3510
      %v4241 = vunpack.c.h.b16 %v3510
      %v4242 = vunpack.c.l.b16 %v3511
      %v4243 = vunpack.c.h.b16 %v3511
      %v4244 = vunpack.c.l.b16 %v3512
      %v4245 = vunpack.c.l.b16 %v3513
      %v4246 = vunpack.c.h.b16 %v3513
      %v4247 = vunpack.c.l.b16 %v3514
      %v4248 = vunpack.c.h.b16 %v3514
      %v4249 = vunpack.c.l.b16 %v3515
      %v4250 = vunpack.c.h.b16 %v3515
      %v4251 = vunpack.c.l.b16 %v3516
      %v4252 = vunpack.c.l.b16 %v3517
      %v4253 = vunpack.c.h.b16 %v3517
      %v4254 = vunpack.c.l.b16 %v3518
      %v4255 = vunpack.c.h.b16 %v3518
      %v4256 = vunpack.c.l.b16 %v3519
      %v4257 = vunpack.c.h.b16 %v3519
      %v4258 = vunpack.c.l.b16 %v3520
      %v4259 = vunpack.c.l.b16 %v3521
      %v4260 = vunpack.c.h.b16 %v3521
      %v4261 = vunpack.c.l.b16 %v3522
      %v4262 = vunpack.c.h.b16 %v3522
      %v4263 = vunpack.c.l.b16 %v3523
      %v4264 = vunpack.c.h.b16 %v3523
      %v4265 = vunpack.c.l.b16 %v3524
      %v4266 = vunpack.c.l.b16 %v3525
      %v4267 = vunpack.c.h.b16 %v3525
      %v4268 = vunpack.c.l.b16 %v3526
      %v4269 = vunpack.c.h.b16 %v3526
      %v4270 = vunpack.c.l.b16 %v3527
      %v4271 = vunpack.c.h.b16 %v3527
      %v4272 = vunpack.c.l.b16 %v3528
      %v4273 = vunpack.c.l.b16 %v3529
      %v4274 = vunpack.c.h.b16 %v3529
      %v4275 = vunpack.c.l.b16 %v3530
      %v4276 = vunpack.c.h.b16 %v3530
      %v4277 = vunpack.c.l.b16 %v3531
      %v4278 = vunpack.c.h.b16 %v3531
      %v4279 = vunpack.c.l.b16 %v3532
      %v4280 = vunpack.c.l.b16 %v3533
      %v4281 = vunpack.c.h.b16 %v3533
      %v4282 = vunpack.c.l.b16 %v3534
      %v4283 = vunpack.c.h.b16 %v3534
      %v4284 = vunpack.c.l.b16 %v3535
      %v4285 = vunpack.c.h.b16 %v3535
      %v4286 = vunpack.c.l.b16 %v3536
      %v4287 = vunpack.c.l.b16 %v3537
      %v4288 = vunpack.c.h.b16 %v3537
      %v4289 = vunpack.c.l.b16 %v3538
      %v4290 = vunpack.c.h.b16 %v3538
      %v4291 = vunpack.c.l.b16 %v3539
      %v4292 = vunpack.c.h.b16 %v3539
      %v4293 = vunpack.c.l.b16 %v3540
      %v4294 = vunpack.c.l.b16 %v3541
      %v4295 = vunpack.c.h.b16 %v3541
      %v4296 = vunpack.c.l.b16 %v3542
      %v4297 = vunpack.c.h.b16 %v3542
      %v4298 = vunpack.c.l.b16 %v3543
      %v4299 = vunpack.c.h.b16 %v3543
      %v4300 = vunpack.c.l.b16 %v3544
      %v4301 = vunpack.c.l.b16 %v3545
      %v4302 = vunpack.c.h.b16 %v3545
      %v4303 = vunpack.c.l.b16 %v3546
      %v4304 = vunpack.c.h.b16 %v3546
      %v4305 = vunpack.c.l.b16 %v3547
      %v4306 = vunpack.c.h.b16 %v3547
      %v4307 = vunpack.c.l.b16 %v3548
      %v4308 = vunpack.c.l.b16 %v3549
      %v4309 = vunpack.c.h.b16 %v3549
      %v4310 = vunpack.c.l.b16 %v3550
      %v4311 = vunpack.c.h.b16 %v3550
      %v4312 = vunpack.c.l.b16 %v3551
      %v4313 = vunpack.c.h.b16 %v3551
      %v4314 = vunpack.c.l.b16 %v3552
      %v4315 = vunpack.c.l.b16 %v3553
      %v4316 = vunpack.c.h.b16 %v3553
      %v4317 = vunpack.c.l.b16 %v3554
      %v4318 = vunpack.c.h.b16 %v3554
      %v4319 = vunpack.c.l.b16 %v3555
      %v4320 = vunpack.c.h.b16 %v3555
      %v4321 = vunpack.c.l.b16 %v3556
      %v4322 = vunpack.c.l.b16 %v3557
      %v4323 = vunpack.c.h.b16 %v3557
      %v4324 = vunpack.c.l.b16 %v3558
      %v4325 = vunpack.c.h.b16 %v3558
      %v4326 = vunpack.c.l.b16 %v3559
      %v4327 = vunpack.c.h.b16 %v3559
      %v4328 = vunpack.c.l.b16 %v3560
      %v4329 = vunpack.c.l.b16 %v3561
      %v4330 = vunpack.c.h.b16 %v3561
      %v4331 = vunpack.c.l.b16 %v3562
      %v4332 = vunpack.c.h.b16 %v3562
      %v4333 = vunpack.c.l.b16 %v3563
      %v4334 = vunpack.c.h.b16 %v3563
      %v4335 = vunpack.c.l.b16 %v3564
      %v4336 = vunpack.c.l.b16 %v3565
      %v4337 = vunpack.c.h.b16 %v3565
      %v4338 = vunpack.c.l.b16 %v3566
      %v4339 = vunpack.c.h.b16 %v3566
      %v4340 = vunpack.c.l.b16 %v3567
      %v4341 = vunpack.c.h.b16 %v3567
      %v4342 = vunpack.c.l.b16 %v3568
      %v4343 = vunpack.c.l.b16 %v3569
      %v4344 = vunpack.c.h.b16 %v3569
      %v4345 = vunpack.c.l.b16 %v3570
      %v4346 = vunpack.c.h.b16 %v3570
      %v4347 = vunpack.c.l.b16 %v3571
      %v4348 = vunpack.c.h.b16 %v3571
      %v4349 = vunpack.c.l.b16 %v3572
      %v4350 = vunpack.c.l.b16 %v3573
      %v4351 = vunpack.c.h.b16 %v3573
      %v4352 = vunpack.c.l.b16 %v3574
      %v4353 = vunpack.c.h.b16 %v3574
      %v4354 = vunpack.c.l.b16 %v3575
      %v4355 = vunpack.c.h.b16 %v3575
      %v4356 = vunpack.c.l.b16 %v3576
      %v4357 = vunpack.c.l.b16 %v3577
      %v4358 = vunpack.c.h.b16 %v3577
      %v4359 = vunpack.c.l.b16 %v3578
      %v4360 = vunpack.c.h.b16 %v3578
      %v4361 = vunpack.c.l.b16 %v3579
      %v4362 = vunpack.c.h.b16 %v3579
      %v4363 = vunpack.c.l.b16 %v3580
      %v4364 = vunpack.c.l.b16 %v3581
      %v4365 = vunpack.c.h.b16 %v3581
      %v4366 = vunpack.c.l.b16 %v3582
      %v4367 = vunpack.c.h.b16 %v3582
      %v4368 = vunpack.c.l.b16 %v3583
      %v4369 = vunpack.c.h.b16 %v3583
      %v4370 = vunpack.c.l.b16 %v3584
      %v4371 = vunpack.c.l.b16 %v3585
      %v4372 = vunpack.c.h.b16 %v3585
      %v4373 = vunpack.c.l.b16 %v3586
      %v4374 = vunpack.c.h.b16 %v3586
      %v4375 = vunpack.c.l.b16 %v3587
      %v4376 = vunpack.c.h.b16 %v3587
      %v4377 = vunpack.c.l.b16 %v3588
      %v4378 = vunpack.c.l.b16 %v3589
      %v4379 = vunpack.c.h.b16 %v3589
      %v4380 = vunpack.c.l.b16 %v3590
      %v4381 = vunpack.c.h.b16 %v3590
      %v4382 = vunpack.c.l.b16 %v3591
      %v4383 = vunpack.c.h.b16 %v3591
      %v4384 = vunpack.c.l.b16 %v3592
      %v4385 = vunpack.c.l.b16 %v3593
      %v4386 = vunpack.c.h.b16 %v3593
      %v4387 = vunpack.c.l.b16 %v3594
      %v4388 = vunpack.c.h.b16 %v3594
      %v4389 = vunpack.c.l.b16 %v3595
      %v4390 = vunpack.c.h.b16 %v3595
      %v4391 = vunpack.c.l.b16 %v3596
      %v4392 = vunpack.c.l.b16 %v3597
      %v4393 = vunpack.c.h.b16 %v3597
      %v4394 = vunpack.c.l.b16 %v3598
      %v4395 = vunpack.c.h.b16 %v3598
      %v4396 = vunpack.c.l.b16 %v3599
      %v4397 = vunpack.c.h.b16 %v3599
      %v4398 = vunpack.c.l.b16 %v3600
      %v4399 = vunpack.c.l.b16 %v3601
      %v4400 = vunpack.c.h.b16 %v3601
      %v4401 = vunpack.c.l.b16 %v3602
      %v4402 = vunpack.c.h.b16 %v3602
      %v4403 = vunpack.c.l.b16 %v3603
      %v4404 = vunpack.c.h.b16 %v3603
      %v4405 = vunpack.c.l.b16 %v3604
      %v4406 = vunpack.c.l.b16 %v3605
      %v4407 = vunpack.c.h.b16 %v3605
      %v4408 = vunpack.c.l.b16 %v3606
      %v4409 = vunpack.c.h.b16 %v3606
      %v4410 = vunpack.c.l.b16 %v3607
      %v4411 = vunpack.c.h.b16 %v3607
      %v4412 = vunpack.c.l.b16 %v3608
      %v4413 = vunpack.c.l.b16 %v3609
      %v4414 = vunpack.c.h.b16 %v3609
      %v4415 = vunpack.c.l.b16 %v3610
      %v4416 = vunpack.c.h.b16 %v3610
      %v4417 = vunpack.c.l.b16 %v3611
      %v4418 = vunpack.c.h.b16 %v3611
      %v4419 = vunpack.c.l.b16 %v3612
      %v4420 = vunpack.c.l.b16 %v3613
      %v4421 = vunpack.c.h.b16 %v3613
      %v4422 = vunpack.c.l.b16 %v3614
      %v4423 = vunpack.c.h.b16 %v3614
      %v4424 = vunpack.c.l.b16 %v3615
      %v4425 = vunpack.c.h.b16 %v3615
      %v4426 = vunpack.c.l.b16 %v3616
      %v4427 = vunpack.c.l.b16 %v3617
      %v4428 = vunpack.c.h.b16 %v3617
      %v4429 = vunpack.c.l.b16 %v3618
      %v4430 = vunpack.c.h.b16 %v3618
      %v4431 = vunpack.c.l.b16 %v3619
      %v4432 = vunpack.c.h.b16 %v3619
      %v4433 = vunpack.c.l.b16 %v3620
      %v4434 = vunpack.c.l.b16 %v3621
      %v4435 = vunpack.c.h.b16 %v3621
      %v4436 = vunpack.c.l.b16 %v3622
      %v4437 = vunpack.c.h.b16 %v3622
      %v4438 = vunpack.c.l.b16 %v3623
      %v4439 = vunpack.c.h.b16 %v3623
      %v4440 = vunpack.c.l.b16 %v3624
      %v4441 = vunpack.c.l.b16 %v3625
      %v4442 = vunpack.c.h.b16 %v3625
      %v4443 = vunpack.c.l.b16 %v3626
      %v4444 = vunpack.c.h.b16 %v3626
      %v4445 = vunpack.c.l.b16 %v3627
      %v4446 = vunpack.c.h.b16 %v3627
      %v4447 = vunpack.c.l.b16 %v3628
      %v4448 = vunpack.c.l.b16 %v3629
      %v4449 = vunpack.c.h.b16 %v3629
      %v4450 = vunpack.c.l.b16 %v3630
      %v4451 = vunpack.c.h.b16 %v3630
      %v4452 = vunpack.c.l.b16 %v3631
      %v4453 = vunpack.c.h.b16 %v3631
      %v4454 = vunpack.c.l.b16 %v3632
      %v4455 = vunpack.c.l.b16 %v3633
      %v4456 = vunpack.c.h.b16 %v3633
      %v4457 = vunpack.c.l.b16 %v3634
      %v4458 = vunpack.c.h.b16 %v3634
      %v4459 = vunpack.c.l.b16 %v3635
      %v4460 = vunpack.c.h.b16 %v3635
      %v4461 = vunpack.c.l.b16 %v3636
      %v4462 = vunpack.c.l.b16 %v3637
      %v4463 = vunpack.c.h.b16 %v3637
      %v4464 = vunpack.c.l.b16 %v3638
      %v4465 = vunpack.c.h.b16 %v3638
      %v4466 = vunpack.c.l.b16 %v3639
      %v4467 = vunpack.c.h.b16 %v3639
      %v4468 = vunpack.c.l.b16 %v3640
      %v4469 = vunpack.c.l.b16 %v3641
      %v4470 = vunpack.c.h.b16 %v3641
      %v4471 = vunpack.c.l.b16 %v3642
      %v4472 = vunpack.c.h.b16 %v3642
      %v4473 = vunpack.c.l.b16 %v3643
      %v4474 = vunpack.c.h.b16 %v3643
      %v4475 = vunpack.c.l.b16 %v3644
      %v4476 = vunpack.c.l.b16 %v3645
      %v4477 = vunpack.c.h.b16 %v3645
      %v4478 = vunpack.c.l.b16 %v3646
      %v4479 = vunpack.c.h.b16 %v3646
      %v4480 = vunpack.c.l.b16 %v3647
      %v4481 = vunpack.c.h.b16 %v3647
      %v4482 = vunpack.c.l.b16 %v3648
      %v4483 = vunpack.c.l.b16 %v3649
      %v4484 = vunpack.c.h.b16 %v3649
      %v4485 = vunpack.c.l.b16 %v3650
      %v4486 = vunpack.c.h.b16 %v3650
      %v4487 = vunpack.c.l.b16 %v3651
      %v4488 = vunpack.c.h.b16 %v3651
      %v4489 = vunpack.c.l.b16 %v3652
      %v4490 = vunpack.c.l.b16 %v3653
      %v4491 = vunpack.c.h.b16 %v3653
      %v4492 = vunpack.c.l.b16 %v3654
      %v4493 = vunpack.c.h.b16 %v3654
      %v4494 = vunpack.c.l.b16 %v3655
      %v4495 = vunpack.c.h.b16 %v3655
      %v4496 = vunpack.c.l.b16 %v3656
      %v4497 = vunpack.c.l.b16 %v3657
      %v4498 = vunpack.c.h.b16 %v3657
      %v4499 = vunpack.c.l.b16 %v3658
      %v4500 = vunpack.c.h.b16 %v3658
      %v4501 = vunpack.c.l.b16 %v3659
      %v4502 = vunpack.c.h.b16 %v3659
      %v4503 = vunpack.c.l.b16 %v3660
      %v4504 = vunpack.c.l.b16 %v3661
      %v4505 = vunpack.c.h.b16 %v3661
      %v4506 = vunpack.c.l.b16 %v3662
      %v4507 = vunpack.c.h.b16 %v3662
      %v4508 = vunpack.c.l.b16 %v3663
      %v4509 = vunpack.c.h.b16 %v3663
      %v4510 = vunpack.c.l.b16 %v3664
      %v4511 = vunpack.c.l.b16 %v3665
      %v4512 = vunpack.c.h.b16 %v3665
      %v4513 = vunpack.c.l.b16 %v3666
      %v4514 = vunpack.c.h.b16 %v3666
      %v4515 = vunpack.c.l.b16 %v3667
      %v4516 = vunpack.c.h.b16 %v3667
      %v4517 = vunpack.c.l.b16 %v3668
      %v4518 = vunpack.c.l.b16 %v3669
      %v4519 = vunpack.c.h.b16 %v3669
      %v4520 = vunpack.c.l.b16 %v3670
      %v4521 = vunpack.c.h.b16 %v3670
      %v4522 = vunpack.c.l.b16 %v3671
      %v4523 = vunpack.c.h.b16 %v3671
      %v4524 = vunpack.c.l.b16 %v3672
      %v4525 = vunpack.c.l.b16 %v3673
      %v4526 = vunpack.c.h.b16 %v3673
      %v4527 = vunpack.c.l.b16 %v3674
      %v4528 = vunpack.c.h.b16 %v3674
      %v4529 = vunpack.c.l.b16 %v3675
      %v4530 = vunpack.c.h.b16 %v3675
      %v4531 = vunpack.c.l.b16 %v3676
      %v4532 = vunpack.c.l.b16 %v3677
      %v4533 = vunpack.c.h.b16 %v3677
      %v4534 = vunpack.c.l.b16 %v3678
      %v4535 = vunpack.c.h.b16 %v3678
      %v4536 = vunpack.c.l.b16 %v3679
      %v4537 = vunpack.c.h.b16 %v3679
      %v4538 = vunpack.c.l.b16 %v3680
      %v4539 = vunpack.c.l.b16 %v3681
      %v4540 = vunpack.c.h.b16 %v3681
      %v4541 = vunpack.c.l.b16 %v3682
      %v4542 = vunpack.c.h.b16 %v3682
      %v4543 = vunpack.c.l.b16 %v3683
      %v4544 = vunpack.c.h.b16 %v3683
      %v4545 = vunpack.c.l.b16 %v3684
      %v4546 = vunpack.c.l.b16 %v3685
      %v4547 = vunpack.c.h.b16 %v3685
      %v4548 = vunpack.c.l.b16 %v3686
      %v4549 = vunpack.c.h.b16 %v3686
      %v4550 = vunpack.c.l.b16 %v3687
      %v4551 = vunpack.c.h.b16 %v3687
      %v4552 = vunpack.c.l.b16 %v3688
      %v4553 = vunpack.c.l.b16 %v3689
      %v4554 = vunpack.c.h.b16 %v3689
      %v4555 = vunpack.c.l.b16 %v3690
      %v4556 = vunpack.c.h.b16 %v3690
      %v4557 = vunpack.c.l.b16 %v3691
      %v4558 = vunpack.c.h.b16 %v3691
      %v4559 = vunpack.c.l.b16 %v3692
      %v4560 = vunpack.c.l.b16 %v3693
      %v4561 = vunpack.c.h.b16 %v3693
      %v4562 = vunpack.c.l.b16 %v3694
      %v4563 = vunpack.c.h.b16 %v3694
      %v4564 = vunpack.c.l.b16 %v3695
      %v4565 = vunpack.c.h.b16 %v3695
      %v4566 = vunpack.c.l.b16 %v3696
      %v4567 = vunpack.c.l.b16 %v3697
      %v4568 = vunpack.c.h.b16 %v3697
      %v4569 = vunpack.c.l.b16 %v3698
      %v4570 = vunpack.c.h.b16 %v3698
      %v4571 = vunpack.c.l.b16 %v3699
      %v4572 = vunpack.c.h.b16 %v3699
      %v4573 = vunpack.c.l.b16 %v3700
      %v4574 = vunpack.c.l.b16 %v3701
      %v4575 = vunpack.c.h.b16 %v3701
      %v4576 = vunpack.c.l.b16 %v3702
      %v4577 = vunpack.c.h.b16 %v3702
      %v4578 = vunpack.c.l.b16 %v3703
      %v4579 = vunpack.c.h.b16 %v3703
      %v4580 = vunpack.c.l.b16 %v3704
      %v4581 = vunpack.c.l.b16 %v3705
      %v4582 = vunpack.c.h.b16 %v3705
      %v4583 = vunpack.c.l.b16 %v3706
      %v4584 = vunpack.c.h.b16 %v3706
      %v4585 = vunpack.c.l.b16 %v3707
      %v4586 = vunpack.c.h.b16 %v3707
      %v4587 = vunpack.c.l.b16 %v3708
      %v4588 = vunpack.c.l.b16 %v3709
      %v4589 = vunpack.c.h.b16 %v3709
      %v4590 = vunpack.c.l.b16 %v3710
      %v4591 = vunpack.c.h.b16 %v3710
      %v4592 = vunpack.c.l.b16 %v3711
      %v4593 = vunpack.c.h.b16 %v3711
      %v4594 = vunpack.c.l.b16 %v3712
      %v4595 = vpack.c.b16 %v4042, %v4035
      %v4596 = vpack.c.b16 %v4043, %v4036
      %v4597 = vpack.c.b16 %v4044, %v4037
      %v4598 = vpack.c.b16 %v4045, %v4038
      %v4599 = vpack.c.b16 %v4046, %v4039
      %v4600 = vpack.c.b16 %v4047, %v4040
      %v4601 = vpack.c.b16 %v4048, %v4041
      %v4602 = vpack.c.b16 %v4056, %v4049
      %v4603 = vpack.c.b16 %v4057, %v4050
      %v4604 = vpack.c.b16 %v4058, %v4051
      %v4605 = vpack.c.b16 %v4059, %v4052
      %v4606 = vpack.c.b16 %v4060, %v4053
      %v4607 = vpack.c.b16 %v4061, %v4054
      %v4608 = vpack.c.b16 %v4062, %v4055
      %v4609 = vpack.c.b16 %v4070, %v4063
      %v4610 = vpack.c.b16 %v4071, %v4064
      %v4611 = vpack.c.b16 %v4072, %v4065
      %v4612 = vpack.c.b16 %v4073, %v4066
      %v4613 = vpack.c.b16 %v4074, %v4067
      %v4614 = vpack.c.b16 %v4075, %v4068
      %v4615 = vpack.c.b16 %v4076, %v4069
      %v4616 = vpack.c.b16 %v4084, %v4077
      %v4617 = vpack.c.b16 %v4085, %v4078
      %v4618 = vpack.c.b16 %v4086, %v4079
      %v4619 = vpack.c.b16 %v4087, %v4080
      %v4620 = vpack.c.b16 %v4088, %v4081
      %v4621 = vpack.c.b16 %v4089, %v4082
      %v4622 = vpack.c.b16 %v4090, %v4083
      %v4623 = vpack.c.b16 %v4098, %v4091
      %v4624 = vpack.c.b16 %v4099, %v4092
      %v4625 = vpack.c.b16 %v4100, %v4093
      %v4626 = vpack.c.b16 %v4101, %v4094
      %v4627 = vpack.c.b16 %v4102, %v4095
      %v4628 = vpack.c.b16 %v4103, %v4096
      %v4629 = vpack.c.b16 %v4104, %v4097
      %v4630 = vpack.c.b16 %v4112, %v4105
      %v4631 = vpack.c.b16 %v4113, %v4106
      %v4632 = vpack.c.b16 %v4114, %v4107
      %v4633 = vpack.c.b16 %v4115, %v4108
      %v4634 = vpack.c.b16 %v4116, %v4109
      %v4635 = vpack.c.b16 %v4117, %v4110
      %v4636 = vpack.c.b16 %v4118, %v4111
      %v4637 = vpack.c.b16 %v4126, %v4119
      %v4638 = vpack.c.b16 %v4127, %v4120
      %v4639 = vpack.c.b16 %v4128, %v4121
      %v4640 = vpack.c.b16 %v4129, %v4122
      %v4641 = vpack.c.b16 %v4130, %v4123
      %v4642 = vpack.c.b16 %v4131, %v4124
      %v4643 = vpack.c.b16 %v4132, %v4125
      %v4644 = vpack.c.b16 %v4140, %v4133
      %v4645 = vpack.c.b16 %v4141, %v4134
      %v4646 = vpack.c.b16 %v4142, %v4135
      %v4647 = vpack.c.b16 %v4143, %v4136
      %v4648 = vpack.c.b16 %v4144, %v4137
      %v4649 = vpack.c.b16 %v4145, %v4138
      %v4650 = vpack.c.b16 %v4146, %v4139
      %v4651 = vpack.c.b16 %v4154, %v4147
      %v4652 = vpack.c.b16 %v4155, %v4148
      %v4653 = vpack.c.b16 %v4156, %v4149
      %v4654 = vpack.c.b16 %v4157, %v4150
      %v4655 = vpack.c.b16 %v4158, %v4151
      %v4656 = vpack.c.b16 %v4159, %v4152
      %v4657 = vpack.c.b16 %v4160, %v4153
      %v4658 = vpack.c.b16 %v4168, %v4161
      %v4659 = vpack.c.b16 %v4169, %v4162
      %v4660 = vpack.c.b16 %v4170, %v4163
      %v4661 = vpack.c.b16 %v4171, %v4164
      %v4662 = vpack.c.b16 %v4172, %v4165
      %v4663 = vpack.c.b16 %v4173, %v4166
      %v4664 = vpack.c.b16 %v4174, %v4167
      %v4665 = vpack.c.b16 %v4182, %v4175
      %v4666 = vpack.c.b16 %v4183, %v4176
      %v4667 = vpack.c.b16 %v4184, %v4177
      %v4668 = vpack.c.b16 %v4185, %v4178
      %v4669 = vpack.c.b16 %v4186, %v4179
      %v4670 = vpack.c.b16 %v4187, %v4180
      %v4671 = vpack.c.b16 %v4188, %v4181
      %v4672 = vpack.c.b16 %v4196, %v4189
      %v4673 = vpack.c.b16 %v4197, %v4190
      %v4674 = vpack.c.b16 %v4198, %v4191
      %v4675 = vpack.c.b16 %v4199, %v4192
      %v4676 = vpack.c.b16 %v4200, %v4193
      %v4677 = vpack.c.b16 %v4201, %v4194
      %v4678 = vpack.c.b16 %v4202, %v4195
      %v4679 = vpack.c.b16 %v4210, %v4203
      %v4680 = vpack.c.b16 %v4211, %v4204
      %v4681 = vpack.c.b16 %v4212, %v4205
      %v4682 = vpack.c.b16 %v4213, %v4206
      %v4683 = vpack.c.b16 %v4214, %v4207
      %v4684 = vpack.c.b16 %v4215, %v4208
      %v4685 = vpack.c.b16 %v4216, %v4209
      %v4686 = vpack.c.b16 %v4224, %v4217
      %v4687 = vpack.c.b16 %v4225, %v4218
      %v4688 = vpack.c.b16 %v4226, %v4219
      %v4689 = vpack.c.b16 %v4227, %v4220
      %v4690 = vpack.c.b16 %v4228, %v4221
      %v4691 = vpack.c.b16 %v4229, %v4222
      %v4692 = vpack.c.b16 %v4230, %v4223
      %v4693 = vpack.c.b16 %v4238, %v4231
      %v4694 = vpack.c.b16 %v4239, %v4232
      %v4695 = vpack.c.b16 %v4240, %v4233
      %v4696 = vpack.c.b16 %v4241, %v4234
      %v4697 = vpack.c.b16 %v4242, %v4235
      %v4698 = vpack.c.b16 %v4243, %v4236
      %v4699 = vpack.c.b16 %v4244, %v4237
      %v4700 = vpack.c.b16 %v4252, %v4245
      %v4701 = vpack.c.b16 %v4253, %v4246
      %v4702 = vpack.c.b16 %v4254, %v4247
      %v4703 = vpack.c.b16 %v4255, %v4248
      %v4704 = vpack.c.b16 %v4256, %v4249
      %v4705 = vpack.c.b16 %v4257, %v4250
      %v4706 = vpack.c.b16 %v4258, %v4251
      %v4707 = vpack.c.b16 %v4266, %v4259
      %v4708 = vpack.c.b16 %v4267, %v4260
      %v4709 = vpack.c.b16 %v4268, %v4261
      %v4710 = vpack.c.b16 %v4269, %v4262
      %v4711 = vpack.c.b16 %v4270, %v4263
      %v4712 = vpack.c.b16 %v4271, %v4264
      %v4713 = vpack.c.b16 %v4272, %v4265
      %v4714 = vpack.c.b16 %v4280, %v4273
      %v4715 = vpack.c.b16 %v4281, %v4274
      %v4716 = vpack.c.b16 %v4282, %v4275
      %v4717 = vpack.c.b16 %v4283, %v4276
      %v4718 = vpack.c.b16 %v4284, %v4277
      %v4719 = vpack.c.b16 %v4285, %v4278
      %v4720 = vpack.c.b16 %v4286, %v4279
      %v4721 = vpack.c.b16 %v4294, %v4287
      %v4722 = vpack.c.b16 %v4295, %v4288
      %v4723 = vpack.c.b16 %v4296, %v4289
      %v4724 = vpack.c.b16 %v4297, %v4290
      %v4725 = vpack.c.b16 %v4298, %v4291
      %v4726 = vpack.c.b16 %v4299, %v4292
      %v4727 = vpack.c.b16 %v4300, %v4293
      %v4728 = vpack.c.b16 %v4308, %v4301
      %v4729 = vpack.c.b16 %v4309, %v4302
      %v4730 = vpack.c.b16 %v4310, %v4303
      %v4731 = vpack.c.b16 %v4311, %v4304
      %v4732 = vpack.c.b16 %v4312, %v4305
      %v4733 = vpack.c.b16 %v4313, %v4306
      %v4734 = vpack.c.b16 %v4314, %v4307
      %v4735 = vpack.c.b16 %v4322, %v4315
      %v4736 = vpack.c.b16 %v4323, %v4316
      %v4737 = vpack.c.b16 %v4324, %v4317
      %v4738 = vpack.c.b16 %v4325, %v4318
      %v4739 = vpack.c.b16 %v4326, %v4319
      %v4740 = vpack.c.b16 %v4327, %v4320
      %v4741 = vpack.c.b16 %v4328, %v4321
      %v4742 = vpack.c.b16 %v4336, %v4329
      %v4743 = vpack.c.b16 %v4337, %v4330
      %v4744 = vpack.c.b16 %v4338, %v4331
      %v4745 = vpack.c.b16 %v4339, %v4332
      %v4746 = vpack.c.b16 %v4340, %v4333
      %v4747 = vpack.c.b16 %v4341, %v4334
      %v4748 = vpack.c.b16 %v4342, %v4335
      %v4749 = vpack.c.b16 %v4350, %v4343
      %v4750 = vpack.c.b16 %v4351, %v4344
      %v4751 = vpack.c.b16 %v4352, %v4345
      %v4752 = vpack.c.b16 %v4353, %v4346
      %v4753 = vpack.c.b16 %v4354, %v4347
      %v4754 = vpack.c.b16 %v4355, %v4348
      %v4755 = vpack.c.b16 %v4356, %v4349
      %v4756 = vpack.c.b16 %v4364, %v4357
      %v4757 = vpack.c.b16 %v4365, %v4358
      %v4758 = vpack.c.b16 %v4366, %v4359
      %v4759 = vpack.c.b16 %v4367, %v4360
      %v4760 = vpack.c.b16 %v4368, %v4361
      %v4761 = vpack.c.b16 %v4369, %v4362
      %v4762 = vpack.c.b16 %v4370, %v4363
      %v4763 = vpack.c.b16 %v4378, %v4371
      %v4764 = vpack.c.b16 %v4379, %v4372
      %v4765 = vpack.c.b16 %v4380, %v4373
      %v4766 = vpack.c.b16 %v4381, %v4374
      %v4767 = vpack.c.b16 %v4382, %v4375
      %v4768 = vpack.c.b16 %v4383, %v4376
      %v4769 = vpack.c.b16 %v4384, %v4377
      %v4770 = vpack.c.b16 %v4392, %v4385
      %v4771 = vpack.c.b16 %v4393, %v4386
      %v4772 = vpack.c.b16 %v4394, %v4387
      %v4773 = vpack.c.b16 %v4395, %v4388
      %v4774 = vpack.c.b16 %v4396, %v4389
      %v4775 = vpack.c.b16 %v4397, %v4390
      %v4776 = vpack.c.b16 %v4398, %v4391
      %v4777 = vpack.c.b16 %v4406, %v4399
      %v4778 = vpack.c.b16 %v4407, %v4400
      %v4779 = vpack.c.b16 %v4408, %v4401
      %v4780 = vpack.c.b16 %v4409, %v4402
      %v4781 = vpack.c.b16 %v4410, %v4403
      %v4782 = vpack.c.b16 %v4411, %v4404
      %v4783 = vpack.c.b16 %v4412, %v4405
      %v4784 = vpack.c.b16 %v4420, %v4413
      %v4785 = vpack.c.b16 %v4421, %v4414
      %v4786 = vpack.c.b16 %v4422, %v4415
      %v4787 = vpack.c.b16 %v4423, %v4416
      %v4788 = vpack.c.b16 %v4424, %v4417
      %v4789 = vpack.c.b16 %v4425, %v4418
      %v4790 = vpack.c.b16 %v4426, %v4419
      %v4791 = vpack.c.b16 %v4434, %v4427
      %v4792 = vpack.c.b16 %v4435, %v4428
      %v4793 = vpack.c.b16 %v4436, %v4429
      %v4794 = vpack.c.b16 %v4437, %v4430
      %v4795 = vpack.c.b16 %v4438, %v4431
      %v4796 = vpack.c.b16 %v4439, %v4432
      %v4797 = vpack.c.b16 %v4440, %v4433
      %v4798 = vpack.c.b16 %v4448, %v4441
      %v4799 = vpack.c.b16 %v4449, %v4442
      %v4800 = vpack.c.b16 %v4450, %v4443
      %v4801 = vpack.c.b16 %v4451, %v4444
      %v4802 = vpack.c.b16 %v4452, %v4445
      %v4803 = vpack.c.b16 %v4453, %v4446
      %v4804 = vpack.c.b16 %v4454, %v4447
      %v4805 = vpack.c.b16 %v4462, %v4455
      %v4806 = vpack.c.b16 %v4463, %v4456
      %v4807 = vpack.c.b16 %v4464, %v4457
      %v4808 = vpack.c.b16 %v4465, %v4458
      %v4809 = vpack.c.b16 %v4466, %v4459
      %v4810 = vpack.c.b16 %v4467, %v4460
      %v4811 = vpack.c.b16 %v4468, %v4461
      %v4812 = vpack.c.b16 %v4476, %v4469
      %v4813 = vpack.c.b16 %v4477, %v4470
      %v4814 = vpack.c.b16 %v4478, %v4471
      %v4815 = vpack.c.b16 %v4479, %v4472
      %v4816 = vpack.c.b16 %v4480, %v4473
      %v4817 = vpack.c.b16 %v4481, %v4474
      %v4818 = vpack.c.b16 %v4482, %v4475
      %v4819 = vpack.c.b16 %v4490, %v4483
      %v4820 = vpack.c.b16 %v4491, %v4484
      %v4821 = vpack.c.b16 %v4492, %v4485
      %v4822 = vpack.c.b16 %v4493, %v4486
      %v4823 = vpack.c.b16 %v4494, %v4487
      %v4824 = vpack.c.b16 %v4495, %v4488
      %v4825 = vpack.c.b16 %v4496, %v4489
      %v4826 = vpack.c.b16 %v4504, %v4497
      %v4827 = vpack.c.b16 %v4505, %v4498
      %v4828 = vpack.c.b16 %v4506, %v4499
      %v4829 = vpack.c.b16 %v4507, %v4500
      %v4830 = vpack.c.b16 %v4508, %v4501
      %v4831 = vpack.c.b16 %v4509, %v4502
      %v4832 = vpack.c.b16 %v4510, %v4503
      %v4833 = vpack.c.b16 %v4518, %v4511
      %v4834 = vpack.c.b16 %v4519, %v4512
      %v4835 = vpack.c.b16 %v4520, %v4513
      %v4836 = vpack.c.b16 %v4521, %v4514
      %v4837 = vpack.c.b16 %v4522, %v4515
      %v4838 = vpack.c.b16 %v4523, %v4516
      %v4839 = vpack.c.b16 %v4524, %v4517
      %v4840 = vpack.c.b16 %v4532, %v4525
      %v4841 = vpack.c.b16 %v4533, %v4526
      %v4842 = vpack.c.b16 %v4534, %v4527
      %v4843 = vpack.c.b16 %v4535, %v4528
      %v4844 = vpack.c.b16 %v4536, %v4529
      %v4845 = vpack.c.b16 %v4537, %v4530
      %v4846 = vpack.c.b16 %v4538, %v4531
      %v4847 = vpack.c.b16 %v4546, %v4539
      %v4848 = vpack.c.b16 %v4547, %v4540
      %v4849 = vpack.c.b16 %v4548, %v4541
      %v4850 = vpack.c.b16 %v4549, %v4542
      %v4851 = vpack.c.b16 %v4550, %v4543
      %v4852 = vpack.c.b16 %v4551, %v4544
      %v4853 = vpack.c.b16 %v4552, %v4545
      %v4854 = vpack.c.b16 %v4560, %v4553
      %v4855 = vpack.c.b16 %v4561, %v4554
      %v4856 = vpack.c.b16 %v4562, %v4555
      %v4857 = vpack.c.b16 %v4563, %v4556
      %v4858 = vpack.c.b16 %v4564, %v4557
      %v4859 = vpack.c.b16 %v4565, %v4558
      %v4860 = vpack.c.b16 %v4566, %v4559
      %v4861 = vpack.c.b16 %v4574, %v4567
      %v4862 = vpack.c.b16 %v4575, %v4568
      %v4863 = vpack.c.b16 %v4576, %v4569
      %v4864 = vpack.c.b16 %v4577, %v4570
      %v4865 = vpack.c.b16 %v4578, %v4571
      %v4866 = vpack.c.b16 %v4579, %v4572
      %v4867 = vpack.c.b16 %v4580, %v4573
      %v4868 = vpack.c.b16 %v4588, %v4581
      %v4869 = vpack.c.b16 %v4589, %v4582
      %v4870 = vpack.c.b16 %v4590, %v4583
      %v4871 = vpack.c.b16 %v4591, %v4584
      %v4872 = vpack.c.b16 %v4592, %v4585
      %v4873 = vpack.c.b16 %v4593, %v4586
      %v4874 = vpack.c.b16 %v4594, %v4587
      %5157 = vst [vmem:[#allocation1] ss:$4 sm:$0xff] %v3713
      %s5158 = scalar_lea.vmem [#allocation1], 32
      %5159 = vst [vmem:[%s5158] ss:$4 sm:$0xff] %v3714
      %v5160 = vld.sshfl [vmem:[#allocation1] sm:$0xff pattern:$0x73625140]
      %v5161 = vld.sshfl [vmem:[#allocation1 + $0x8] sm:$0xff pattern:$0x73625140]
      %v5162 = vld.sshfl [vmem:[#allocation1 + $0x10] sm:$0xff pattern:$0x73625140]
      %v5163 = vld.sshfl [vmem:[#allocation1 + $0x18] sm:$0xff pattern:$0x73625140]
      %v5164 = vld.sshfl [vmem:[#allocation1 + $0x20] sm:$0xff pattern:$0x73625140]
      %v5165 = vld.sshfl [vmem:[#allocation1 + $0x28] sm:$0xff pattern:$0x73625140]
      %v5166 = vld.sshfl [vmem:[#allocation1 + $0x30] sm:$0xff pattern:$0x73625140]
      %5174 = vmatpush.bf16.msra.mxu0 %v4644
      %5175 = vmatpush.bf16.msra.mxu0 %v4637
      %5176 = vmatpush.bf16.msra.mxu0 %v4630
      %5177 = vmatpush.bf16.msra.mxu0 %v4623
      %5178 = vmatpush.bf16.msra.mxu0 %v4616
      %5179 = vmatpush.bf16.msra.mxu0 %v4609
      %5180 = vmatpush.bf16.msra.mxu0 %v4602
      %5181 = vmatpush.bf16.msra.mxu0 %v4595
      %5182 = vmatmul.bf16.gmra.mxu0 %v3388
      %v5183 = vpop.f32.mrf.mxu0
      %v5184 = vadd.f32 %v5160, %v5183
      %v5185 = vpop.f32.mrf.mxu0
      %5186 = vdwg.mxu0
      %5187 = vmatpush.bf16.msra.mxu0 %v4700
      %5188 = vmatpush.bf16.msra.mxu0 %v4693
      %5189 = vmatpush.bf16.msra.mxu0 %v4686
      %5190 = vmatpush.bf16.msra.mxu0 %v4679
      %5191 = vmatpush.bf16.msra.mxu0 %v4672
      %5192 = vmatpush.bf16.msra.mxu0 %v4665
      %5193 = vmatpush.bf16.msra.mxu0 %v4658
      %5194 = vmatpush.bf16.msra.mxu0 %v4651
      %5195 = vmatmul.bf16.gmra.mxu0 %v3389
      %v5196 = vpop.f32.mrf.mxu0
      %v5197 = vadd.f32 %v5184, %v5196
      %v5198 = vpop.f32.mrf.mxu0
      %5199 = vdwg.mxu0
      %5200 = vmatpush.bf16.msra.mxu0 %v4756
      %5201 = vmatpush.bf16.msra.mxu0 %v4749
      %5202 = vmatpush.bf16.msra.mxu0 %v4742
      %5203 = vmatpush.bf16.msra.mxu0 %v4735
      %5204 = vmatpush.bf16.msra.mxu0 %v4728
      %5205 = vmatpush.bf16.msra.mxu0 %v4721
      %5206 = vmatpush.bf16.msra.mxu0 %v4714
      %5207 = vmatpush.bf16.msra.mxu0 %v4707
      %5208 = vmatmul.bf16.gmra.mxu0 %v3390
      %v5209 = vpop.f32.mrf.mxu0
      %v5210 = vadd.f32 %v5197, %v5209
      %v5211 = vpop.f32.mrf.mxu0
      %5212 = vdwg.mxu0
      %5213 = vmatpush.bf16.msra.mxu0 %v4812
      %5214 = vmatpush.bf16.msra.mxu0 %v4805
      %5215 = vmatpush.bf16.msra.mxu0 %v4798
      %5216 = vmatpush.bf16.msra.mxu0 %v4791
      %5217 = vmatpush.bf16.msra.mxu0 %v4784
      %5218 = vmatpush.bf16.msra.mxu0 %v4777
      %5219 = vmatpush.bf16.msra.mxu0 %v4770
      %5220 = vmatpush.bf16.msra.mxu0 %v4763
      %5221 = vmatmul.bf16.gmra.mxu0 %v3391
      %v5222 = vpop.f32.mrf.mxu0
      %v5223 = vadd.f32 %v5210, %v5222
      %v5224 = vpop.f32.mrf.mxu0
      %5225 = vdwg.mxu0
      %5226 = vmatpush.bf16.msra.mxu0 %v4868
      %5227 = vmatpush.bf16.msra.mxu0 %v4861
      %5228 = vmatpush.bf16.msra.mxu0 %v4854
      %5229 = vmatpush.bf16.msra.mxu0 %v4847
      %5230 = vmatpush.bf16.msra.mxu0 %v4840
      %5231 = vmatpush.bf16.msra.mxu0 %v4833
      %5232 = vmatpush.bf16.msra.mxu0 %v4826
      %5233 = vmatpush.bf16.msra.mxu0 %v4819
      %5234 = vmatmul.bf16.gmra.mxu0 %v3392
      %v5235 = vpop.f32.mrf.mxu0
      %v5236 = vadd.f32 %v5223, %v5235
      %v5237 = vpop.f32.mrf.mxu0
      %5238 = vdwg.mxu0
      %5239 = vmatpush.bf16.msra.mxu0 %v4645
      %5240 = vmatpush.bf16.msra.mxu0 %v4638
      %5241 = vmatpush.bf16.msra.mxu0 %v4631
      %5242 = vmatpush.bf16.msra.mxu0 %v4624
      %5243 = vmatpush.bf16.msra.mxu0 %v4617
      %5244 = vmatpush.bf16.msra.mxu0 %v4610
      %5245 = vmatpush.bf16.msra.mxu0 %v4603
      %5246 = vmatpush.bf16.msra.mxu0 %v4596
      %5247 = vmatmul.bf16.gmra.mxu0 %v3388
      %v5248 = vpop.f32.mrf.mxu0
      %v5249 = vadd.f32 %v5161, %v5248
      %v5250 = vpop.f32.mrf.mxu0
      %5251 = vdwg.mxu0
      %5252 = vmatpush.bf16.msra.mxu0 %v4701
      %5253 = vmatpush.bf16.msra.mxu0 %v4694
      %5254 = vmatpush.bf16.msra.mxu0 %v4687
      %5255 = vmatpush.bf16.msra.mxu0 %v4680
      %5256 = vmatpush.bf16.msra.mxu0 %v4673
      %5257 = vmatpush.bf16.msra.mxu0 %v4666
      %5258 = vmatpush.bf16.msra.mxu0 %v4659
      %5259 = vmatpush.bf16.msra.mxu0 %v4652
      %5260 = vmatmul.bf16.gmra.mxu0 %v3389
      %v5261 = vpop.f32.mrf.mxu0
      %v5262 = vadd.f32 %v5249, %v5261
      %v5263 = vpop.f32.mrf.mxu0
      %5264 = vdwg.mxu0
      %5265 = vmatpush.bf16.msra.mxu0 %v4757
      %5266 = vmatpush.bf16.msra.mxu0 %v4750
      %5267 = vmatpush.bf16.msra.mxu0 %v4743
      %5268 = vmatpush.bf16.msra.mxu0 %v4736
      %5269 = vmatpush.bf16.msra.mxu0 %v4729
      %5270 = vmatpush.bf16.msra.mxu0 %v4722
      %5271 = vmatpush.bf16.msra.mxu0 %v4715
      %5272 = vmatpush.bf16.msra.mxu0 %v4708
      %5273 = vmatmul.bf16.gmra.mxu0 %v3390
      %v5274 = vpop.f32.mrf.mxu0
      %v5275 = vadd.f32 %v5262, %v5274
      %v5276 = vpop.f32.mrf.mxu0
      %5277 = vdwg.mxu0
      %5278 = vmatpush.bf16.msra.mxu0 %v4813
      %5279 = vmatpush.bf16.msra.mxu0 %v4806
      %5280 = vmatpush.bf16.msra.mxu0 %v4799
      %5281 = vmatpush.bf16.msra.mxu0 %v4792
      %5282 = vmatpush.bf16.msra.mxu0 %v4785
      %5283 = vmatpush.bf16.msra.mxu0 %v4778
      %5284 = vmatpush.bf16.msra.mxu0 %v4771
      %5285 = vmatpush.bf16.msra.mxu0 %v4764
      %5286 = vmatmul.bf16.gmra.mxu0 %v3391
      %v5287 = vpop.f32.mrf.mxu0
      %v5288 = vadd.f32 %v5275, %v5287
      %v5289 = vpop.f32.mrf.mxu0
      %5290 = vdwg.mxu0
      %5291 = vmatpush.bf16.msra.mxu0 %v4869
      %5292 = vmatpush.bf16.msra.mxu0 %v4862
      %5293 = vmatpush.bf16.msra.mxu0 %v4855
      %5294 = vmatpush.bf16.msra.mxu0 %v4848
      %5295 = vmatpush.bf16.msra.mxu0 %v4841
      %5296 = vmatpush.bf16.msra.mxu0 %v4834
      %5297 = vmatpush.bf16.msra.mxu0 %v4827
      %5298 = vmatpush.bf16.msra.mxu0 %v4820
      %5299 = vmatmul.bf16.gmra.mxu0 %v3392
      %v5300 = vpop.f32.mrf.mxu0
      %v5301 = vadd.f32 %v5288, %v5300
      %v5302 = vpop.f32.mrf.mxu0
      %5303 = vdwg.mxu0
      %5304 = vmatpush.bf16.msra.mxu0 %v4646
      %5305 = vmatpush.bf16.msra.mxu0 %v4639
      %5306 = vmatpush.bf16.msra.mxu0 %v4632
      %5307 = vmatpush.bf16.msra.mxu0 %v4625
      %5308 = vmatpush.bf16.msra.mxu0 %v4618
      %5309 = vmatpush.bf16.msra.mxu0 %v4611
      %5310 = vmatpush.bf16.msra.mxu0 %v4604
      %5311 = vmatpush.bf16.msra.mxu0 %v4597
      %5312 = vmatmul.bf16.gmra.mxu0 %v3388
      %v5313 = vpop.f32.mrf.mxu0
      %v5314 = vadd.f32 %v5162, %v5313
      %v5315 = vpop.f32.mrf.mxu0
      %5316 = vdwg.mxu0
      %5317 = vmatpush.bf16.msra.mxu0 %v4702
      %5318 = vmatpush.bf16.msra.mxu0 %v4695
      %5319 = vmatpush.bf16.msra.mxu0 %v4688
      %5320 = vmatpush.bf16.msra.mxu0 %v4681
      %5321 = vmatpush.bf16.msra.mxu0 %v4674
      %5322 = vmatpush.bf16.msra.mxu0 %v4667
      %5323 = vmatpush.bf16.msra.mxu0 %v4660
      %5324 = vmatpush.bf16.msra.mxu0 %v4653
      %5325 = vmatmul.bf16.gmra.mxu0 %v3389
      %v5326 = vpop.f32.mrf.mxu0
      %v5327 = vadd.f32 %v5314, %v5326
      %v5328 = vpop.f32.mrf.mxu0
      %5329 = vdwg.mxu0
      %5330 = vmatpush.bf16.msra.mxu0 %v4758
      %5331 = vmatpush.bf16.msra.mxu0 %v4751
      %5332 = vmatpush.bf16.msra.mxu0 %v4744
      %5333 = vmatpush.bf16.msra.mxu0 %v4737
      %5334 = vmatpush.bf16.msra.mxu0 %v4730
      %5335 = vmatpush.bf16.msra.mxu0 %v4723
      %5336 = vmatpush.bf16.msra.mxu0 %v4716
      %5337 = vmatpush.bf16.msra.mxu0 %v4709
      %5338 = vmatmul.bf16.gmra.mxu0 %v3390
      %v5339 = vpop.f32.mrf.mxu0
      %v5340 = vadd.f32 %v5327, %v5339
      %v5341 = vpop.f32.mrf.mxu0
      %5342 = vdwg.mxu0
      %5343 = vmatpush.bf16.msra.mxu0 %v4814
      %5344 = vmatpush.bf16.msra.mxu0 %v4807
      %5345 = vmatpush.bf16.msra.mxu0 %v4800
      %5346 = vmatpush.bf16.msra.mxu0 %v4793
      %5347 = vmatpush.bf16.msra.mxu0 %v4786
      %5348 = vmatpush.bf16.msra.mxu0 %v4779
      %5349 = vmatpush.bf16.msra.mxu0 %v4772
      %5350 = vmatpush.bf16.msra.mxu0 %v4765
      %5351 = vmatmul.bf16.gmra.mxu0 %v3391
      %v5352 = vpop.f32.mrf.mxu0
      %v5353 = vadd.f32 %v5340, %v5352
      %v5354 = vpop.f32.mrf.mxu0
      %5355 = vdwg.mxu0
      %5356 = vmatpush.bf16.msra.mxu0 %v4870
      %5357 = vmatpush.bf16.msra.mxu0 %v4863
      %5358 = vmatpush.bf16.msra.mxu0 %v4856
      %5359 = vmatpush.bf16.msra.mxu0 %v4849
      %5360 = vmatpush.bf16.msra.mxu0 %v4842
      %5361 = vmatpush.bf16.msra.mxu0 %v4835
      %5362 = vmatpush.bf16.msra.mxu0 %v4828
      %5363 = vmatpush.bf16.msra.mxu0 %v4821
      %5364 = vmatmul.bf16.gmra.mxu0 %v3392
      %v5365 = vpop.f32.mrf.mxu0
      %v5366 = vadd.f32 %v5353, %v5365
      %v5367 = vpop.f32.mrf.mxu0
      %5368 = vdwg.mxu0
      %5369 = vmatpush.bf16.msra.mxu0 %v4647
      %5370 = vmatpush.bf16.msra.mxu0 %v4640
      %5371 = vmatpush.bf16.msra.mxu0 %v4633
      %5372 = vmatpush.bf16.msra.mxu0 %v4626
      %5373 = vmatpush.bf16.msra.mxu0 %v4619
      %5374 = vmatpush.bf16.msra.mxu0 %v4612
      %5375 = vmatpush.bf16.msra.mxu0 %v4605
      %5376 = vmatpush.bf16.msra.mxu0 %v4598
      %5377 = vmatmul.bf16.gmra.mxu0 %v3388
      %v5378 = vpop.f32.mrf.mxu0
      %v5379 = vadd.f32 %v5163, %v5378
      %v5380 = vpop.f32.mrf.mxu0
      %5381 = vdwg.mxu0
      %5382 = vmatpush.bf16.msra.mxu0 %v4703
      %5383 = vmatpush.bf16.msra.mxu0 %v4696
      %5384 = vmatpush.bf16.msra.mxu0 %v4689
      %5385 = vmatpush.bf16.msra.mxu0 %v4682
      %5386 = vmatpush.bf16.msra.mxu0 %v4675
      %5387 = vmatpush.bf16.msra.mxu0 %v4668
      %5388 = vmatpush.bf16.msra.mxu0 %v4661
      %5389 = vmatpush.bf16.msra.mxu0 %v4654
      %5390 = vmatmul.bf16.gmra.mxu0 %v3389
      %v5391 = vpop.f32.mrf.mxu0
      %v5392 = vadd.f32 %v5379, %v5391
      %v5393 = vpop.f32.mrf.mxu0
      %5394 = vdwg.mxu0
      %5395 = vmatpush.bf16.msra.mxu0 %v4759
      %5396 = vmatpush.bf16.msra.mxu0 %v4752
      %5397 = vmatpush.bf16.msra.mxu0 %v4745
      %5398 = vmatpush.bf16.msra.mxu0 %v4738
      %5399 = vmatpush.bf16.msra.mxu0 %v4731
      %5400 = vmatpush.bf16.msra.mxu0 %v4724
      %5401 = vmatpush.bf16.msra.mxu0 %v4717
      %5402 = vmatpush.bf16.msra.mxu0 %v4710
      %5403 = vmatmul.bf16.gmra.mxu0 %v3390
      %v5404 = vpop.f32.mrf.mxu0
      %v5405 = vadd.f32 %v5392, %v5404
      %v5406 = vpop.f32.mrf.mxu0
      %5407 = vdwg.mxu0
      %5408 = vmatpush.bf16.msra.mxu0 %v4815
      %5409 = vmatpush.bf16.msra.mxu0 %v4808
      %5410 = vmatpush.bf16.msra.mxu0 %v4801
      %5411 = vmatpush.bf16.msra.mxu0 %v4794
      %5412 = vmatpush.bf16.msra.mxu0 %v4787
      %5413 = vmatpush.bf16.msra.mxu0 %v4780
      %5414 = vmatpush.bf16.msra.mxu0 %v4773
      %5415 = vmatpush.bf16.msra.mxu0 %v4766
      %5416 = vmatmul.bf16.gmra.mxu0 %v3391
      %v5417 = vpop.f32.mrf.mxu0
      %v5418 = vadd.f32 %v5405, %v5417
      %v5419 = vpop.f32.mrf.mxu0
      %5420 = vdwg.mxu0
      %5421 = vmatpush.bf16.msra.mxu0 %v4871
      %5422 = vmatpush.bf16.msra.mxu0 %v4864
      %5423 = vmatpush.bf16.msra.mxu0 %v4857
      %5424 = vmatpush.bf16.msra.mxu0 %v4850
      %5425 = vmatpush.bf16.msra.mxu0 %v4843
      %5426 = vmatpush.bf16.msra.mxu0 %v4836
      %5427 = vmatpush.bf16.msra.mxu0 %v4829
      %5428 = vmatpush.bf16.msra.mxu0 %v4822
      %5429 = vmatmul.bf16.gmra.mxu0 %v3392
      %v5430 = vpop.f32.mrf.mxu0
      %v5431 = vadd.f32 %v5418, %v5430
      %v5432 = vpop.f32.mrf.mxu0
      %5433 = vdwg.mxu0
      %5434 = vmatpush.bf16.msra.mxu0 %v4648
      %5435 = vmatpush.bf16.msra.mxu0 %v4641
      %5436 = vmatpush.bf16.msra.mxu0 %v4634
      %5437 = vmatpush.bf16.msra.mxu0 %v4627
      %5438 = vmatpush.bf16.msra.mxu0 %v4620
      %5439 = vmatpush.bf16.msra.mxu0 %v4613
      %5440 = vmatpush.bf16.msra.mxu0 %v4606
      %5441 = vmatpush.bf16.msra.mxu0 %v4599
      %5442 = vmatmul.bf16.gmra.mxu0 %v3388
      %v5443 = vpop.f32.mrf.mxu0
      %v5444 = vadd.f32 %v5164, %v5443
      %v5445 = vpop.f32.mrf.mxu0
      %5446 = vdwg.mxu0
      %5447 = vmatpush.bf16.msra.mxu0 %v4704
      %5448 = vmatpush.bf16.msra.mxu0 %v4697
      %5449 = vmatpush.bf16.msra.mxu0 %v4690
      %5450 = vmatpush.bf16.msra.mxu0 %v4683
      %5451 = vmatpush.bf16.msra.mxu0 %v4676
      %5452 = vmatpush.bf16.msra.mxu0 %v4669
      %5453 = vmatpush.bf16.msra.mxu0 %v4662
      %5454 = vmatpush.bf16.msra.mxu0 %v4655
      %5455 = vmatmul.bf16.gmra.mxu0 %v3389
      %v5456 = vpop.f32.mrf.mxu0
      %v5457 = vadd.f32 %v5444, %v5456
      %v5458 = vpop.f32.mrf.mxu0
      %5459 = vdwg.mxu0
      %5460 = vmatpush.bf16.msra.mxu0 %v4760
      %5461 = vmatpush.bf16.msra.mxu0 %v4753
      %5462 = vmatpush.bf16.msra.mxu0 %v4746
      %5463 = vmatpush.bf16.msra.mxu0 %v4739
      %5464 = vmatpush.bf16.msra.mxu0 %v4732
      %5465 = vmatpush.bf16.msra.mxu0 %v4725
      %5466 = vmatpush.bf16.msra.mxu0 %v4718
      %5467 = vmatpush.bf16.msra.mxu0 %v4711
      %5468 = vmatmul.bf16.gmra.mxu0 %v3390
      %v5469 = vpop.f32.mrf.mxu0
      %v5470 = vadd.f32 %v5457, %v5469
      %v5471 = vpop.f32.mrf.mxu0
      %5472 = vdwg.mxu0
      %5473 = vmatpush.bf16.msra.mxu0 %v4816
      %5474 = vmatpush.bf16.msra.mxu0 %v4809
      %5475 = vmatpush.bf16.msra.mxu0 %v4802
      %5476 = vmatpush.bf16.msra.mxu0 %v4795
      %5477 = vmatpush.bf16.msra.mxu0 %v4788
      %5478 = vmatpush.bf16.msra.mxu0 %v4781
      %5479 = vmatpush.bf16.msra.mxu0 %v4774
      %5480 = vmatpush.bf16.msra.mxu0 %v4767
      %5481 = vmatmul.bf16.gmra.mxu0 %v3391
      %v5482 = vpop.f32.mrf.mxu0
      %v5483 = vadd.f32 %v5470, %v5482
      %v5484 = vpop.f32.mrf.mxu0
      %5485 = vdwg.mxu0
      %5486 = vmatpush.bf16.msra.mxu0 %v4872
      %5487 = vmatpush.bf16.msra.mxu0 %v4865
      %5488 = vmatpush.bf16.msra.mxu0 %v4858
      %5489 = vmatpush.bf16.msra.mxu0 %v4851
      %5490 = vmatpush.bf16.msra.mxu0 %v4844
      %5491 = vmatpush.bf16.msra.mxu0 %v4837
      %5492 = vmatpush.bf16.msra.mxu0 %v4830
      %5493 = vmatpush.bf16.msra.mxu0 %v4823
      %5494 = vmatmul.bf16.gmra.mxu0 %v3392
      %v5495 = vpop.f32.mrf.mxu0
      %v5496 = vadd.f32 %v5483, %v5495
      %v5497 = vpop.f32.mrf.mxu0
      %5498 = vdwg.mxu0
      %5499 = vmatpush.bf16.msra.mxu0 %v4649
      %5500 = vmatpush.bf16.msra.mxu0 %v4642
      %5501 = vmatpush.bf16.msra.mxu0 %v4635
      %5502 = vmatpush.bf16.msra.mxu0 %v4628
      %5503 = vmatpush.bf16.msra.mxu0 %v4621
      %5504 = vmatpush.bf16.msra.mxu0 %v4614
      %5505 = vmatpush.bf16.msra.mxu0 %v4607
      %5506 = vmatpush.bf16.msra.mxu0 %v4600
      %5507 = vmatmul.bf16.gmra.mxu0 %v3388
      %v5508 = vpop.f32.mrf.mxu0
      %v5509 = vadd.f32 %v5165, %v5508
      %v5510 = vpop.f32.mrf.mxu0
      %5511 = vdwg.mxu0
      %5512 = vmatpush.bf16.msra.mxu0 %v4705
      %5513 = vmatpush.bf16.msra.mxu0 %v4698
      %5514 = vmatpush.bf16.msra.mxu0 %v4691
      %5515 = vmatpush.bf16.msra.mxu0 %v4684
      %5516 = vmatpush.bf16.msra.mxu0 %v4677
      %5517 = vmatpush.bf16.msra.mxu0 %v4670
      %5518 = vmatpush.bf16.msra.mxu0 %v4663
      %5519 = vmatpush.bf16.msra.mxu0 %v4656
      %5520 = vmatmul.bf16.gmra.mxu0 %v3389
      %v5521 = vpop.f32.mrf.mxu0
      %v5522 = vadd.f32 %v5509, %v5521
      %v5523 = vpop.f32.mrf.mxu0
      %5524 = vdwg.mxu0
      %5525 = vmatpush.bf16.msra.mxu0 %v4761
      %5526 = vmatpush.bf16.msra.mxu0 %v4754
      %5527 = vmatpush.bf16.msra.mxu0 %v4747
      %5528 = vmatpush.bf16.msra.mxu0 %v4740
      %5529 = vmatpush.bf16.msra.mxu0 %v4733
      %5530 = vmatpush.bf16.msra.mxu0 %v4726
      %5531 = vmatpush.bf16.msra.mxu0 %v4719
      %5532 = vmatpush.bf16.msra.mxu0 %v4712
      %5533 = vmatmul.bf16.gmra.mxu0 %v3390
      %v5534 = vpop.f32.mrf.mxu0
      %v5535 = vadd.f32 %v5522, %v5534
      %v5536 = vpop.f32.mrf.mxu0
      %5537 = vdwg.mxu0
      %5538 = vmatpush.bf16.msra.mxu0 %v4817
      %5539 = vmatpush.bf16.msra.mxu0 %v4810
      %5540 = vmatpush.bf16.msra.mxu0 %v4803
      %5541 = vmatpush.bf16.msra.mxu0 %v4796
      %5542 = vmatpush.bf16.msra.mxu0 %v4789
      %5543 = vmatpush.bf16.msra.mxu0 %v4782
      %5544 = vmatpush.bf16.msra.mxu0 %v4775
      %5545 = vmatpush.bf16.msra.mxu0 %v4768
      %5546 = vmatmul.bf16.gmra.mxu0 %v3391
      %v5547 = vpop.f32.mrf.mxu0
      %v5548 = vadd.f32 %v5535, %v5547
      %v5549 = vpop.f32.mrf.mxu0
      %5550 = vdwg.mxu0
      %5551 = vmatpush.bf16.msra.mxu0 %v4873
      %5552 = vmatpush.bf16.msra.mxu0 %v4866
      %5553 = vmatpush.bf16.msra.mxu0 %v4859
      %5554 = vmatpush.bf16.msra.mxu0 %v4852
      %5555 = vmatpush.bf16.msra.mxu0 %v4845
      %5556 = vmatpush.bf16.msra.mxu0 %v4838
      %5557 = vmatpush.bf16.msra.mxu0 %v4831
      %5558 = vmatpush.bf16.msra.mxu0 %v4824
      %5559 = vmatmul.bf16.gmra.mxu0 %v3392
      %v5560 = vpop.f32.mrf.mxu0
      %v5561 = vadd.f32 %v5548, %v5560
      %v5562 = vpop.f32.mrf.mxu0
      %5563 = vdwg.mxu0
      %5564 = vmatpush.bf16.msra.mxu0 %v4650
      %5565 = vmatpush.bf16.msra.mxu0 %v4643
      %5566 = vmatpush.bf16.msra.mxu0 %v4636
      %5567 = vmatpush.bf16.msra.mxu0 %v4629
      %5568 = vmatpush.bf16.msra.mxu0 %v4622
      %5569 = vmatpush.bf16.msra.mxu0 %v4615
      %5570 = vmatpush.bf16.msra.mxu0 %v4608
      %5571 = vmatpush.bf16.msra.mxu0 %v4601
      %5572 = vmatmul.bf16.gmra.mxu0 %v3388
      %v5573 = vpop.f32.mrf.mxu0
      %v5574 = vadd.f32 %v5166, %v5573
      %v5575 = vpop.f32.mrf.mxu0
      %5576 = vdwg.mxu0
      %5577 = vmatpush.bf16.msra.mxu0 %v4706
      %5578 = vmatpush.bf16.msra.mxu0 %v4699
      %5579 = vmatpush.bf16.msra.mxu0 %v4692
      %5580 = vmatpush.bf16.msra.mxu0 %v4685
      %5581 = vmatpush.bf16.msra.mxu0 %v4678
      %5582 = vmatpush.bf16.msra.mxu0 %v4671
      %5583 = vmatpush.bf16.msra.mxu0 %v4664
      %5584 = vmatpush.bf16.msra.mxu0 %v4657
      %5585 = vmatmul.bf16.gmra.mxu0 %v3389
      %v5586 = vpop.f32.mrf.mxu0
      %v5587 = vadd.f32 %v5574, %v5586
      %v5588 = vpop.f32.mrf.mxu0
      %5589 = vdwg.mxu0
      %5590 = vmatpush.bf16.msra.mxu0 %v4762
      %5591 = vmatpush.bf16.msra.mxu0 %v4755
      %5592 = vmatpush.bf16.msra.mxu0 %v4748
      %5593 = vmatpush.bf16.msra.mxu0 %v4741
      %5594 = vmatpush.bf16.msra.mxu0 %v4734
      %5595 = vmatpush.bf16.msra.mxu0 %v4727
      %5596 = vmatpush.bf16.msra.mxu0 %v4720
      %5597 = vmatpush.bf16.msra.mxu0 %v4713
      %5598 = vmatmul.bf16.gmra.mxu0 %v3390
      %v5599 = vpop.f32.mrf.mxu0
      %v5600 = vadd.f32 %v5587, %v5599
      %v5601 = vpop.f32.mrf.mxu0
      %5602 = vdwg.mxu0
      %5603 = vmatpush.bf16.msra.mxu0 %v4818
      %5604 = vmatpush.bf16.msra.mxu0 %v4811
      %5605 = vmatpush.bf16.msra.mxu0 %v4804
      %5606 = vmatpush.bf16.msra.mxu0 %v4797
      %5607 = vmatpush.bf16.msra.mxu0 %v4790
      %5608 = vmatpush.bf16.msra.mxu0 %v4783
      %5609 = vmatpush.bf16.msra.mxu0 %v4776
      %5610 = vmatpush.bf16.msra.mxu0 %v4769
      %5611 = vmatmul.bf16.gmra.mxu0 %v3391
      %v5612 = vpop.f32.mrf.mxu0
      %v5613 = vadd.f32 %v5600, %v5612
      %v5614 = vpop.f32.mrf.mxu0
      %5615 = vdwg.mxu0
      %5616 = vmatpush.bf16.msra.mxu0 %v4874
      %5617 = vmatpush.bf16.msra.mxu0 %v4867
      %5618 = vmatpush.bf16.msra.mxu0 %v4860
      %5619 = vmatpush.bf16.msra.mxu0 %v4853
      %5620 = vmatpush.bf16.msra.mxu0 %v4846
      %5621 = vmatpush.bf16.msra.mxu0 %v4839
      %5622 = vmatpush.bf16.msra.mxu0 %v4832
      %5623 = vmatpush.bf16.msra.mxu0 %v4825
      %5624 = vmatmul.bf16.gmra.mxu0 %v3392
      %v5625 = vpop.f32.mrf.mxu0
      %v5626 = vadd.f32 %v5613, %v5625
      %v5627 = vpop.f32.mrf.mxu0
      %5628 = vdwg.mxu0
      %vm5629 = vcmp.gt.f32.partialorder %v222, 0.5
      %vm5630 = vcmp.gt.f32.partialorder %v223, 0.5
      %vm5631 = vcmp.gt.f32.partialorder %v224, 0.5
      %vm5632 = vcmp.gt.f32.partialorder %v225, 0.5
      %vm5633 = vcmp.gt.f32.partialorder %v226, 0.5
      %vm5634 = vcmp.gt.f32.partialorder %v227, 0.5
      %vm5635 = vcmp.gt.f32.partialorder %v228, 0.5
      %v5636 = vsel %vm5629, 1, 0
      %v5637 = vsel %vm5630, 1, 0
      %v5638 = vsel %vm5631, 1, 0
      %v5639 = vsel %vm5632, 1, 0
      %v5640 = vsel %vm5633, 1, 0
      %v5641 = vsel %vm5634, 1, 0
      %v5642 = vsel %vm5635, 1, 0
      %v5643 = vcvt.s32.f32 %v5636
      %v5644 = vcvt.s32.f32 %v5637
      %v5645 = vcvt.s32.f32 %v5638
      %v5646 = vcvt.s32.f32 %v5639
      %v5647 = vcvt.s32.f32 %v5640
      %v5648 = vcvt.s32.f32 %v5641
      %v5649 = vcvt.s32.f32 %v5642
      %v5650 = vmul.f32 %v222, 0.9048374
      %v5651 = vmul.f32 %v223, 0.9048374
      %v5652 = vmul.f32 %v224, 0.9048374
      %v5653 = vmul.f32 %v225, 0.9048374
      %v5654 = vmul.f32 %v226, 0.9048374
      %v5655 = vmul.f32 %v227, 0.9048374
      %v5656 = vmul.f32 %v228, 0.9048374
      %v5657 = vadd.f32 %v5650, %v5236
      %v5658 = vadd.f32 %v5651, %v5301
      %v5659 = vadd.f32 %v5652, %v5366
      %v5660 = vadd.f32 %v5653, %v5431
      %v5661 = vadd.f32 %v5654, %v5496
      %v5662 = vadd.f32 %v5655, %v5561
      %v5663 = vadd.f32 %v5656, %v5626
      %v5664 = vmul.f32 %v5643, 0.5
      %v5665 = vmul.f32 %v5644, 0.5
      %v5666 = vmul.f32 %v5645, 0.5
      %v5667 = vmul.f32 %v5646, 0.5
      %v5668 = vmul.f32 %v5647, 0.5
      %v5669 = vmul.f32 %v5648, 0.5
      %v5670 = vmul.f32 %v5649, 0.5
      %v5671 = vsub.f32 %v5657, %v5664
      %v5672 = vsub.f32 %v5658, %v5665
      %v5673 = vsub.f32 %v5659, %v5666
      %v5674 = vsub.f32 %v5660, %v5667
      %v5675 = vsub.f32 %v5661, %v5668
      %v5676 = vsub.f32 %v5662, %v5669
      %v5677 = vsub.f32 %v5663, %v5670
      %vm5678 = vcmp.gt.f32.partialorder %v5671, 0.5
      %vm5679 = vcmp.gt.f32.partialorder %v5672, 0.5
      %vm5680 = vcmp.gt.f32.partialorder %v5673, 0.5
      %vm5681 = vcmp.gt.f32.partialorder %v5674, 0.5
      %vm5682 = vcmp.gt.f32.partialorder %v5675, 0.5
      %vm5683 = vcmp.gt.f32.partialorder %v5676, 0.5
      %vm5684 = vcmp.gt.f32.partialorder %v5677, 0.5
      %v5685 = vsel %vm5678, 1, 0
      %v5686 = vsel %vm5679, 1, 0
      %v5687 = vsel %vm5680, 1, 0
      %v5688 = vsel %vm5681, 1, 0
      %v5689 = vsel %vm5682, 1, 0
      %v5690 = vsel %vm5683, 1, 0
      %v5691 = vsel %vm5684, 1, 0
      %v5692 = vcvt.s32.f32 %v5685
      %v5693 = vcvt.s32.f32 %v5686
      %v5694 = vcvt.s32.f32 %v5687
      %v5695 = vcvt.s32.f32 %v5688
      %v5696 = vcvt.s32.f32 %v5689
      %v5697 = vcvt.s32.f32 %v5690
      %v5698 = vcvt.s32.f32 %v5691
      %v5699 = vpack.c.bf16 %v5692, %v5692
      %v5700 = vpack.c.bf16 %v5693, %v5693
      %v5701 = vpack.c.bf16 %v5694, %v5694
      %v5702 = vpack.c.bf16 %v5695, %v5695
      %v5703 = vpack.c.bf16 %v5696, %v5696
      %v5704 = vpack.c.bf16 %v5697, %v5697
      %v5705 = vpack.c.bf16 %v5698, %v5698
      %v5706 = vld [vmem:[#allocation17] sm:$0xff]
      %v5707 = vld [vmem:[#allocation17 + $0x8] sm:$0xff]
      %v5708 = vld [vmem:[#allocation17 + $0x10] sm:$0xff]
      %v5709 = vld [vmem:[#allocation17 + $0x18] sm:$0xff]
      %v5710 = vld [vmem:[#allocation17 + $0x20] sm:$0xff]
      %v5711 = vld [vmem:[#allocation17 + $0x28] sm:$0xff]
      %v5712 = vld [vmem:[#allocation17 + $0x30] sm:$0xff]
      %v5713 = vld [vmem:[#allocation17 + $0x38] sm:$0xff]
      %v5714 = vld [vmem:[#allocation17 + $0x40] sm:$0xff]
      %v5715 = vld [vmem:[#allocation17 + $0x48] sm:$0xff]
      %v5716 = vld [vmem:[#allocation17 + $0x50] sm:$0xff]
      %v5717 = vld [vmem:[#allocation17 + $0x58] sm:$0xff]
      %v5718 = vld [vmem:[#allocation17 + $0x60] sm:$0xff]
      %v5719 = vld [vmem:[#allocation17 + $0x68] sm:$0xff]
      %v5720 = vld [vmem:[#allocation17 + $0x70] sm:$0xff]
      %v5721 = vld [vmem:[#allocation17 + $0x78] sm:$0xff]
      %v5722 = vld [vmem:[#allocation17 + $0x80] sm:$0xff]
      %v5723 = vld [vmem:[#allocation17 + $0x88] sm:$0xff]
      %v5724 = vld [vmem:[#allocation17 + $0x90] sm:$0xff]
      %v5725 = vld [vmem:[#allocation17 + $0x98] sm:$0xff]
      %v5726 = vld [vmem:[#allocation17 + $0xa0] sm:$0xff]
      %v5727 = vld [vmem:[#allocation17 + $0xa8] sm:$0xff]
      %v5728 = vld [vmem:[#allocation17 + $0xb0] sm:$0xff]
      %v5729 = vld [vmem:[#allocation17 + $0xb8] sm:$0xff]
      %v5730 = vld [vmem:[#allocation17 + $0xc0] sm:$0xff]
      %v5731 = vld [vmem:[#allocation17 + $0xc8] sm:$0xff]
      %v5732 = vld [vmem:[#allocation17 + $0xd0] sm:$0xff]
      %v5733 = vld [vmem:[#allocation17 + $0xd8] sm:$0xff]
      %v5734 = vld [vmem:[#allocation17 + $0xe0] sm:$0xff]
      %v5735 = vld [vmem:[#allocation17 + $0xe8] sm:$0xff]
      %v5736 = vld [vmem:[#allocation17 + $0xf0] sm:$0xff]
      %v5737 = vld [vmem:[#allocation17 + $0xf8] sm:$0xff]
      %v5738 = vld [vmem:[#allocation17 + $0x100] sm:$0xff]
      %v5739 = vld [vmem:[#allocation17 + $0x108] sm:$0xff]
      %v5740 = vld [vmem:[#allocation17 + $0x110] sm:$0xff]
      %v5741 = vld [vmem:[#allocation17 + $0x118] sm:$0xff]
      %v5742 = vld [vmem:[#allocation17 + $0x120] sm:$0xff]
      %v5743 = vld [vmem:[#allocation17 + $0x128] sm:$0xff]
      %v5744 = vld [vmem:[#allocation17 + $0x130] sm:$0xff]
      %v5745 = vld [vmem:[#allocation17 + $0x138] sm:$0xff]
      %v5746 = vld [vmem:[#allocation17 + $0x140] sm:$0xff]
      %v5747 = vld [vmem:[#allocation17 + $0x148] sm:$0xff]
      %v5748 = vld [vmem:[#allocation17 + $0x150] sm:$0xff]
      %v5749 = vld [vmem:[#allocation17 + $0x158] sm:$0xff]
      %v5750 = vld [vmem:[#allocation17 + $0x160] sm:$0xff]
      %v5751 = vld [vmem:[#allocation17 + $0x168] sm:$0xff]
      %v5752 = vld [vmem:[#allocation17 + $0x170] sm:$0xff]
      %v5753 = vld [vmem:[#allocation17 + $0x178] sm:$0xff]
      %v5754 = vld [vmem:[#allocation17 + $0x180] sm:$0xff]
      %v5755 = vld [vmem:[#allocation17 + $0x188] sm:$0xff]
      %v5756 = vld [vmem:[#allocation17 + $0x190] sm:$0xff]
      %v5757 = vld [vmem:[#allocation17 + $0x198] sm:$0xff]
      %v5758 = vld [vmem:[#allocation17 + $0x1a0] sm:$0xff]
      %v5759 = vld [vmem:[#allocation17 + $0x1a8] sm:$0xff]
      %v5760 = vld [vmem:[#allocation17 + $0x1b0] sm:$0xff]
      %v5761 = vld [vmem:[#allocation17 + $0x1b8] sm:$0xff]
      %v5762 = vld [vmem:[#allocation17 + $0x1c0] sm:$0xff]
      %v5763 = vld [vmem:[#allocation17 + $0x1c8] sm:$0xff]
      %v5764 = vld [vmem:[#allocation17 + $0x1d0] sm:$0xff]
      %v5765 = vld [vmem:[#allocation17 + $0x1d8] sm:$0xff]
      %v5766 = vld [vmem:[#allocation17 + $0x1e0] sm:$0xff]
      %v5767 = vld [vmem:[#allocation17 + $0x1e8] sm:$0xff]
      %v5768 = vld [vmem:[#allocation17 + $0x1f0] sm:$0xff]
      %v5769 = vld [vmem:[#allocation17 + $0x1f8] sm:$0xff]
      %v5770 = vld [vmem:[#allocation17 + $0x200] sm:$0xff]
      %v5771 = vld [vmem:[#allocation17 + $0x208] sm:$0xff]
      %v5772 = vld [vmem:[#allocation17 + $0x210] sm:$0xff]
      %v5773 = vld [vmem:[#allocation17 + $0x218] sm:$0xff]
      %v5774 = vld [vmem:[#allocation17 + $0x220] sm:$0xff]
      %v5775 = vld [vmem:[#allocation17 + $0x228] sm:$0xff]
      %v5776 = vld [vmem:[#allocation17 + $0x230] sm:$0xff]
      %v5777 = vld [vmem:[#allocation17 + $0x238] sm:$0xff]
      %v5778 = vld [vmem:[#allocation17 + $0x240] sm:$0xff]
      %v5779 = vld [vmem:[#allocation17 + $0x248] sm:$0xff]
      %v5780 = vld [vmem:[#allocation17 + $0x250] sm:$0xff]
      %v5781 = vld [vmem:[#allocation17 + $0x258] sm:$0xff]
      %v5782 = vld [vmem:[#allocation17 + $0x260] sm:$0xff]
      %v5783 = vld [vmem:[#allocation17 + $0x268] sm:$0xff]
      %v5784 = vld [vmem:[#allocation17 + $0x270] sm:$0xff]
      %v5785 = vld [vmem:[#allocation17 + $0x278] sm:$0xff]
      %v5786 = vld [vmem:[#allocation17 + $0x280] sm:$0xff]
      %v5787 = vld [vmem:[#allocation17 + $0x288] sm:$0xff]
      %v5788 = vld [vmem:[#allocation17 + $0x290] sm:$0xff]
      %v5789 = vld [vmem:[#allocation17 + $0x298] sm:$0xff]
      %v5790 = vld [vmem:[#allocation17 + $0x2a0] sm:$0xff]
      %v5791 = vld [vmem:[#allocation17 + $0x2a8] sm:$0xff]
      %v5792 = vld [vmem:[#allocation17 + $0x2b0] sm:$0xff]
      %v5793 = vld [vmem:[#allocation17 + $0x2b8] sm:$0xff]
      %v5794 = vld [vmem:[#allocation17 + $0x2c0] sm:$0xff]
      %v5795 = vld [vmem:[#allocation17 + $0x2c8] sm:$0xff]
      %v5796 = vld [vmem:[#allocation17 + $0x2d0] sm:$0xff]
      %v5797 = vld [vmem:[#allocation17 + $0x2d8] sm:$0xff]
      %v5798 = vld [vmem:[#allocation17 + $0x2e0] sm:$0xff]
      %v5799 = vld [vmem:[#allocation17 + $0x2e8] sm:$0xff]
      %v5800 = vld [vmem:[#allocation17 + $0x2f0] sm:$0xff]
      %v5801 = vld [vmem:[#allocation17 + $0x2f8] sm:$0xff]
      %v5802 = vld [vmem:[#allocation17 + $0x300] sm:$0xff]
      %v5803 = vld [vmem:[#allocation17 + $0x308] sm:$0xff]
      %v5804 = vld [vmem:[#allocation17 + $0x310] sm:$0xff]
      %v5805 = vld [vmem:[#allocation17 + $0x318] sm:$0xff]
      %v5806 = vld [vmem:[#allocation17 + $0x320] sm:$0xff]
      %v5807 = vld [vmem:[#allocation17 + $0x328] sm:$0xff]
      %v5808 = vld [vmem:[#allocation17 + $0x330] sm:$0xff]
      %v5809 = vld [vmem:[#allocation17 + $0x338] sm:$0xff]
      %v5810 = vld [vmem:[#allocation17 + $0x340] sm:$0xff]
      %v5811 = vld [vmem:[#allocation17 + $0x348] sm:$0xff]
      %v5812 = vld [vmem:[#allocation17 + $0x350] sm:$0xff]
      %v5813 = vld [vmem:[#allocation17 + $0x358] sm:$0xff]
      %v5814 = vld [vmem:[#allocation17 + $0x360] sm:$0xff]
      %v5815 = vld [vmem:[#allocation17 + $0x368] sm:$0xff]
      %v5816 = vld [vmem:[#allocation17 + $0x370] sm:$0xff]
      %v5817 = vld [vmem:[#allocation17 + $0x378] sm:$0xff]
      %v5818 = vld [vmem:[#allocation17 + $0x380] sm:$0xff]
      %v5819 = vld [vmem:[#allocation17 + $0x388] sm:$0xff]
      %v5820 = vld [vmem:[#allocation17 + $0x390] sm:$0xff]
      %v5821 = vld [vmem:[#allocation17 + $0x398] sm:$0xff]
      %v5822 = vld [vmem:[#allocation17 + $0x3a0] sm:$0xff]
      %v5823 = vld [vmem:[#allocation17 + $0x3a8] sm:$0xff]
      %v5824 = vld [vmem:[#allocation17 + $0x3b0] sm:$0xff]
      %v5825 = vld [vmem:[#allocation17 + $0x3b8] sm:$0xff]
      %v5826 = vld [vmem:[#allocation17 + $0x3c0] sm:$0xff]
      %v5827 = vld [vmem:[#allocation17 + $0x3c8] sm:$0xff]
      %v5828 = vld [vmem:[#allocation17 + $0x3d0] sm:$0xff]
      %v5829 = vld [vmem:[#allocation17 + $0x3d8] sm:$0xff]
      %v5830 = vld [vmem:[#allocation17 + $0x3e0] sm:$0xff]
      %v5831 = vld [vmem:[#allocation17 + $0x3e8] sm:$0xff]
      %v5832 = vld [vmem:[#allocation17 + $0x3f0] sm:$0xff]
      %v5833 = vld [vmem:[#allocation17 + $0x3f8] sm:$0xff]
      %v5834 = vld [vmem:[#allocation17 + $0x400] sm:$0xff]
      %v5835 = vld [vmem:[#allocation17 + $0x408] sm:$0xff]
      %v5836 = vld [vmem:[#allocation17 + $0x410] sm:$0xff]
      %v5837 = vld [vmem:[#allocation17 + $0x418] sm:$0xff]
      %v5838 = vld [vmem:[#allocation17 + $0x420] sm:$0xff]
      %v5839 = vld [vmem:[#allocation17 + $0x428] sm:$0xff]
      %v5840 = vld [vmem:[#allocation17 + $0x430] sm:$0xff]
      %v5841 = vld [vmem:[#allocation17 + $0x438] sm:$0xff]
      %v5842 = vld [vmem:[#allocation17 + $0x440] sm:$0xff]
      %v5843 = vld [vmem:[#allocation17 + $0x448] sm:$0xff]
      %v5844 = vld [vmem:[#allocation17 + $0x450] sm:$0xff]
      %v5845 = vld [vmem:[#allocation17 + $0x458] sm:$0xff]
      %v5846 = vld [vmem:[#allocation17 + $0x460] sm:$0xff]
      %v5847 = vld [vmem:[#allocation17 + $0x468] sm:$0xff]
      %v5848 = vld [vmem:[#allocation17 + $0x470] sm:$0xff]
      %v5849 = vld [vmem:[#allocation17 + $0x478] sm:$0xff]
      %v5850 = vld [vmem:[#allocation17 + $0x480] sm:$0xff]
      %v5851 = vld [vmem:[#allocation17 + $0x488] sm:$0xff]
      %v5852 = vld [vmem:[#allocation17 + $0x490] sm:$0xff]
      %v5853 = vld [vmem:[#allocation17 + $0x498] sm:$0xff]
      %v5854 = vld [vmem:[#allocation17 + $0x4a0] sm:$0xff]
      %v5855 = vld [vmem:[#allocation17 + $0x4a8] sm:$0xff]
      %v5856 = vld [vmem:[#allocation17 + $0x4b0] sm:$0xff]
      %v5857 = vld [vmem:[#allocation17 + $0x4b8] sm:$0xff]
      %v5858 = vld [vmem:[#allocation17 + $0x4c0] sm:$0xff]
      %v5859 = vld [vmem:[#allocation17 + $0x4c8] sm:$0xff]
      %v5860 = vld [vmem:[#allocation17 + $0x4d0] sm:$0xff]
      %v5861 = vld [vmem:[#allocation17 + $0x4d8] sm:$0xff]
      %v5862 = vld [vmem:[#allocation17 + $0x4e0] sm:$0xff]
      %v5863 = vld [vmem:[#allocation17 + $0x4e8] sm:$0xff]
      %v5864 = vld [vmem:[#allocation17 + $0x4f0] sm:$0xff]
      %v5865 = vld [vmem:[#allocation17 + $0x4f8] sm:$0xff]
      %v5866 = vld [vmem:[#allocation17 + $0x500] sm:$0xff]
      %v5867 = vld [vmem:[#allocation17 + $0x508] sm:$0xff]
      %v5868 = vld [vmem:[#allocation17 + $0x510] sm:$0xff]
      %v5869 = vld [vmem:[#allocation17 + $0x518] sm:$0xff]
      %v5870 = vld [vmem:[#allocation17 + $0x520] sm:$0xff]
      %v5871 = vld [vmem:[#allocation17 + $0x528] sm:$0xff]
      %v5872 = vld [vmem:[#allocation17 + $0x530] sm:$0xff]
      %v5873 = vld [vmem:[#allocation17 + $0x538] sm:$0xff]
      %v5874 = vld [vmem:[#allocation17 + $0x540] sm:$0xff]
      %v5875 = vld [vmem:[#allocation17 + $0x548] sm:$0xff]
      %v5876 = vld [vmem:[#allocation17 + $0x550] sm:$0xff]
      %v5877 = vld [vmem:[#allocation17 + $0x558] sm:$0xff]
      %v5878 = vld [vmem:[#allocation17 + $0x560] sm:$0xff]
      %v5879 = vld [vmem:[#allocation17 + $0x568] sm:$0xff]
      %v5880 = vld [vmem:[#allocation17 + $0x570] sm:$0xff]
      %v5881 = vld [vmem:[#allocation17 + $0x578] sm:$0xff]
      %v5882 = vld [vmem:[#allocation17 + $0x580] sm:$0xff]
      %v5883 = vld [vmem:[#allocation17 + $0x588] sm:$0xff]
      %v5884 = vld [vmem:[#allocation17 + $0x590] sm:$0xff]
      %v5885 = vld [vmem:[#allocation17 + $0x598] sm:$0xff]
      %v5886 = vld [vmem:[#allocation17 + $0x5a0] sm:$0xff]
      %v5887 = vld [vmem:[#allocation17 + $0x5a8] sm:$0xff]
      %v5888 = vld [vmem:[#allocation17 + $0x5b0] sm:$0xff]
      %v5889 = vld [vmem:[#allocation17 + $0x5b8] sm:$0xff]
      %v5890 = vld [vmem:[#allocation17 + $0x5c0] sm:$0xff]
      %v5891 = vld [vmem:[#allocation17 + $0x5c8] sm:$0xff]
      %v5892 = vld [vmem:[#allocation17 + $0x5d0] sm:$0xff]
      %v5893 = vld [vmem:[#allocation17 + $0x5d8] sm:$0xff]
      %v5894 = vld [vmem:[#allocation17 + $0x5e0] sm:$0xff]
      %v5895 = vld [vmem:[#allocation17 + $0x5e8] sm:$0xff]
      %v5896 = vld [vmem:[#allocation17 + $0x5f0] sm:$0xff]
      %v5897 = vld [vmem:[#allocation17 + $0x5f8] sm:$0xff]
      %v5898 = vld [vmem:[#allocation17 + $0x600] sm:$0xff]
      %v5899 = vld [vmem:[#allocation17 + $0x608] sm:$0xff]
      %v5900 = vld [vmem:[#allocation17 + $0x610] sm:$0xff]
      %v5901 = vld [vmem:[#allocation17 + $0x618] sm:$0xff]
      %v5902 = vld [vmem:[#allocation17 + $0x620] sm:$0xff]
      %v5903 = vld [vmem:[#allocation17 + $0x628] sm:$0xff]
      %v5904 = vld [vmem:[#allocation17 + $0x630] sm:$0xff]
      %v5905 = vld [vmem:[#allocation17 + $0x638] sm:$0xff]
      %v5906 = vld [vmem:[#allocation17 + $0x640] sm:$0xff]
      %v5907 = vld [vmem:[#allocation17 + $0x648] sm:$0xff]
      %v5908 = vld [vmem:[#allocation17 + $0x650] sm:$0xff]
      %v5909 = vld [vmem:[#allocation17 + $0x658] sm:$0xff]
      %v5910 = vld [vmem:[#allocation17 + $0x660] sm:$0xff]
      %v5911 = vld [vmem:[#allocation17 + $0x668] sm:$0xff]
      %v5912 = vld [vmem:[#allocation17 + $0x670] sm:$0xff]
      %v5913 = vld [vmem:[#allocation17 + $0x678] sm:$0xff]
      %v5914 = vld [vmem:[#allocation17 + $0x680] sm:$0xff]
      %v5915 = vld [vmem:[#allocation17 + $0x688] sm:$0xff]
      %v5916 = vld [vmem:[#allocation17 + $0x690] sm:$0xff]
      %v5917 = vld [vmem:[#allocation17 + $0x698] sm:$0xff]
      %v5918 = vld [vmem:[#allocation17 + $0x6a0] sm:$0xff]
      %v5919 = vld [vmem:[#allocation17 + $0x6a8] sm:$0xff]
      %v5920 = vld [vmem:[#allocation17 + $0x6b0] sm:$0xff]
      %v5921 = vld [vmem:[#allocation17 + $0x6b8] sm:$0xff]
      %v5922 = vld [vmem:[#allocation17 + $0x6c0] sm:$0xff]
      %v5923 = vld [vmem:[#allocation17 + $0x6c8] sm:$0xff]
      %v5924 = vld [vmem:[#allocation17 + $0x6d0] sm:$0xff]
      %v5925 = vld [vmem:[#allocation17 + $0x6d8] sm:$0xff]
      %v5926 = vld [vmem:[#allocation17 + $0x6e0] sm:$0xff]
      %v5927 = vld [vmem:[#allocation17 + $0x6e8] sm:$0xff]
      %v5928 = vld [vmem:[#allocation17 + $0x6f0] sm:$0xff]
      %v5929 = vld [vmem:[#allocation17 + $0x6f8] sm:$0xff]
      %v5930 = vld [vmem:[#allocation19] sm:$0xff]
      %v6155 = vunpack.c.l.b16 %v5706
      %v6156 = vunpack.c.h.b16 %v5706
      %v6157 = vunpack.c.l.b16 %v5707
      %v6158 = vunpack.c.h.b16 %v5707
      %v6159 = vunpack.c.l.b16 %v5708
      %v6160 = vunpack.c.h.b16 %v5708
      %v6161 = vunpack.c.l.b16 %v5709
      %v6162 = vunpack.c.h.b16 %v5709
      %v6163 = vunpack.c.l.b16 %v5710
      %v6164 = vunpack.c.h.b16 %v5710
      %v6165 = vunpack.c.l.b16 %v5711
      %v6166 = vunpack.c.h.b16 %v5711
      %v6167 = vunpack.c.l.b16 %v5712
      %v6168 = vunpack.c.h.b16 %v5712
      %v6169 = vunpack.c.l.b16 %v5713
      %v6170 = vunpack.c.h.b16 %v5713
      %v6171 = vunpack.c.l.b16 %v5714
      %v6172 = vunpack.c.h.b16 %v5714
      %v6173 = vunpack.c.l.b16 %v5715
      %v6174 = vunpack.c.h.b16 %v5715
      %v6175 = vunpack.c.l.b16 %v5716
      %v6176 = vunpack.c.h.b16 %v5716
      %v6177 = vunpack.c.l.b16 %v5717
      %v6178 = vunpack.c.h.b16 %v5717
      %v6179 = vunpack.c.l.b16 %v5718
      %v6180 = vunpack.c.h.b16 %v5718
      %v6181 = vunpack.c.l.b16 %v5719
      %v6182 = vunpack.c.h.b16 %v5719
      %v6183 = vunpack.c.l.b16 %v5720
      %v6184 = vunpack.c.h.b16 %v5720
      %v6185 = vunpack.c.l.b16 %v5721
      %v6186 = vunpack.c.h.b16 %v5721
      %v6187 = vunpack.c.l.b16 %v5722
      %v6188 = vunpack.c.h.b16 %v5722
      %v6189 = vunpack.c.l.b16 %v5723
      %v6190 = vunpack.c.h.b16 %v5723
      %v6191 = vunpack.c.l.b16 %v5724
      %v6192 = vunpack.c.h.b16 %v5724
      %v6193 = vunpack.c.l.b16 %v5725
      %v6194 = vunpack.c.h.b16 %v5725
      %v6195 = vunpack.c.l.b16 %v5726
      %v6196 = vunpack.c.h.b16 %v5726
      %v6197 = vunpack.c.l.b16 %v5727
      %v6198 = vunpack.c.h.b16 %v5727
      %v6199 = vunpack.c.l.b16 %v5728
      %v6200 = vunpack.c.h.b16 %v5728
      %v6201 = vunpack.c.l.b16 %v5729
      %v6202 = vunpack.c.h.b16 %v5729
      %v6203 = vunpack.c.l.b16 %v5730
      %v6204 = vunpack.c.h.b16 %v5730
      %v6205 = vunpack.c.l.b16 %v5731
      %v6206 = vunpack.c.h.b16 %v5731
      %v6207 = vunpack.c.l.b16 %v5732
      %v6208 = vunpack.c.h.b16 %v5732
      %v6209 = vunpack.c.l.b16 %v5733
      %v6210 = vunpack.c.h.b16 %v5733
      %v6211 = vunpack.c.l.b16 %v5734
      %v6212 = vunpack.c.h.b16 %v5734
      %v6213 = vunpack.c.l.b16 %v5735
      %v6214 = vunpack.c.h.b16 %v5735
      %v6215 = vunpack.c.l.b16 %v5736
      %v6216 = vunpack.c.h.b16 %v5736
      %v6217 = vunpack.c.l.b16 %v5737
      %v6218 = vunpack.c.h.b16 %v5737
      %v6219 = vunpack.c.l.b16 %v5738
      %v6220 = vunpack.c.h.b16 %v5738
      %v6221 = vunpack.c.l.b16 %v5739
      %v6222 = vunpack.c.h.b16 %v5739
      %v6223 = vunpack.c.l.b16 %v5740
      %v6224 = vunpack.c.h.b16 %v5740
      %v6225 = vunpack.c.l.b16 %v5741
      %v6226 = vunpack.c.h.b16 %v5741
      %v6227 = vunpack.c.l.b16 %v5742
      %v6228 = vunpack.c.h.b16 %v5742
      %v6229 = vunpack.c.l.b16 %v5743
      %v6230 = vunpack.c.h.b16 %v5743
      %v6231 = vunpack.c.l.b16 %v5744
      %v6232 = vunpack.c.h.b16 %v5744
      %v6233 = vunpack.c.l.b16 %v5745
      %v6234 = vunpack.c.h.b16 %v5745
      %v6235 = vunpack.c.l.b16 %v5746
      %v6236 = vunpack.c.h.b16 %v5746
      %v6237 = vunpack.c.l.b16 %v5747
      %v6238 = vunpack.c.h.b16 %v5747
      %v6239 = vunpack.c.l.b16 %v5748
      %v6240 = vunpack.c.h.b16 %v5748
      %v6241 = vunpack.c.l.b16 %v5749
      %v6242 = vunpack.c.h.b16 %v5749
      %v6243 = vunpack.c.l.b16 %v5750
      %v6244 = vunpack.c.h.b16 %v5750
      %v6245 = vunpack.c.l.b16 %v5751
      %v6246 = vunpack.c.h.b16 %v5751
      %v6247 = vunpack.c.l.b16 %v5752
      %v6248 = vunpack.c.h.b16 %v5752
      %v6249 = vunpack.c.l.b16 %v5753
      %v6250 = vunpack.c.h.b16 %v5753
      %v6251 = vunpack.c.l.b16 %v5754
      %v6252 = vunpack.c.h.b16 %v5754
      %v6253 = vunpack.c.l.b16 %v5755
      %v6254 = vunpack.c.h.b16 %v5755
      %v6255 = vunpack.c.l.b16 %v5756
      %v6256 = vunpack.c.h.b16 %v5756
      %v6257 = vunpack.c.l.b16 %v5757
      %v6258 = vunpack.c.h.b16 %v5757
      %v6259 = vunpack.c.l.b16 %v5758
      %v6260 = vunpack.c.h.b16 %v5758
      %v6261 = vunpack.c.l.b16 %v5759
      %v6262 = vunpack.c.h.b16 %v5759
      %v6263 = vunpack.c.l.b16 %v5760
      %v6264 = vunpack.c.h.b16 %v5760
      %v6265 = vunpack.c.l.b16 %v5761
      %v6266 = vunpack.c.h.b16 %v5761
      %v6267 = vunpack.c.l.b16 %v5762
      %v6268 = vunpack.c.h.b16 %v5762
      %v6269 = vunpack.c.l.b16 %v5763
      %v6270 = vunpack.c.h.b16 %v5763
      %v6271 = vunpack.c.l.b16 %v5764
      %v6272 = vunpack.c.h.b16 %v5764
      %v6273 = vunpack.c.l.b16 %v5765
      %v6274 = vunpack.c.h.b16 %v5765
      %v6275 = vunpack.c.l.b16 %v5766
      %v6276 = vunpack.c.h.b16 %v5766
      %v6277 = vunpack.c.l.b16 %v5767
      %v6278 = vunpack.c.h.b16 %v5767
      %v6279 = vunpack.c.l.b16 %v5768
      %v6280 = vunpack.c.h.b16 %v5768
      %v6281 = vunpack.c.l.b16 %v5769
      %v6282 = vunpack.c.h.b16 %v5769
      %v6283 = vunpack.c.l.b16 %v5770
      %v6284 = vunpack.c.h.b16 %v5770
      %v6285 = vunpack.c.l.b16 %v5771
      %v6286 = vunpack.c.h.b16 %v5771
      %v6287 = vunpack.c.l.b16 %v5772
      %v6288 = vunpack.c.h.b16 %v5772
      %v6289 = vunpack.c.l.b16 %v5773
      %v6290 = vunpack.c.h.b16 %v5773
      %v6291 = vunpack.c.l.b16 %v5774
      %v6292 = vunpack.c.h.b16 %v5774
      %v6293 = vunpack.c.l.b16 %v5775
      %v6294 = vunpack.c.h.b16 %v5775
      %v6295 = vunpack.c.l.b16 %v5776
      %v6296 = vunpack.c.h.b16 %v5776
      %v6297 = vunpack.c.l.b16 %v5777
      %v6298 = vunpack.c.h.b16 %v5777
      %v6299 = vunpack.c.l.b16 %v5778
      %v6300 = vunpack.c.h.b16 %v5778
      %v6301 = vunpack.c.l.b16 %v5779
      %v6302 = vunpack.c.h.b16 %v5779
      %v6303 = vunpack.c.l.b16 %v5780
      %v6304 = vunpack.c.h.b16 %v5780
      %v6305 = vunpack.c.l.b16 %v5781
      %v6306 = vunpack.c.h.b16 %v5781
      %v6307 = vunpack.c.l.b16 %v5782
      %v6308 = vunpack.c.h.b16 %v5782
      %v6309 = vunpack.c.l.b16 %v5783
      %v6310 = vunpack.c.h.b16 %v5783
      %v6311 = vunpack.c.l.b16 %v5784
      %v6312 = vunpack.c.h.b16 %v5784
      %v6313 = vunpack.c.l.b16 %v5785
      %v6314 = vunpack.c.h.b16 %v5785
      %v6315 = vunpack.c.l.b16 %v5786
      %v6316 = vunpack.c.h.b16 %v5786
      %v6317 = vunpack.c.l.b16 %v5787
      %v6318 = vunpack.c.h.b16 %v5787
      %v6319 = vunpack.c.l.b16 %v5788
      %v6320 = vunpack.c.h.b16 %v5788
      %v6321 = vunpack.c.l.b16 %v5789
      %v6322 = vunpack.c.h.b16 %v5789
      %v6323 = vunpack.c.l.b16 %v5790
      %v6324 = vunpack.c.h.b16 %v5790
      %v6325 = vunpack.c.l.b16 %v5791
      %v6326 = vunpack.c.h.b16 %v5791
      %v6327 = vunpack.c.l.b16 %v5792
      %v6328 = vunpack.c.h.b16 %v5792
      %v6329 = vunpack.c.l.b16 %v5793
      %v6330 = vunpack.c.h.b16 %v5793
      %v6331 = vunpack.c.l.b16 %v5794
      %v6332 = vunpack.c.h.b16 %v5794
      %v6333 = vunpack.c.l.b16 %v5795
      %v6334 = vunpack.c.h.b16 %v5795
      %v6335 = vunpack.c.l.b16 %v5796
      %v6336 = vunpack.c.h.b16 %v5796
      %v6337 = vunpack.c.l.b16 %v5797
      %v6338 = vunpack.c.h.b16 %v5797
      %v6339 = vunpack.c.l.b16 %v5798
      %v6340 = vunpack.c.h.b16 %v5798
      %v6341 = vunpack.c.l.b16 %v5799
      %v6342 = vunpack.c.h.b16 %v5799
      %v6343 = vunpack.c.l.b16 %v5800
      %v6344 = vunpack.c.h.b16 %v5800
      %v6345 = vunpack.c.l.b16 %v5801
      %v6346 = vunpack.c.h.b16 %v5801
      %v6347 = vunpack.c.l.b16 %v5802
      %v6348 = vunpack.c.h.b16 %v5802
      %v6349 = vunpack.c.l.b16 %v5803
      %v6350 = vunpack.c.h.b16 %v5803
      %v6351 = vunpack.c.l.b16 %v5804
      %v6352 = vunpack.c.h.b16 %v5804
      %v6353 = vunpack.c.l.b16 %v5805
      %v6354 = vunpack.c.h.b16 %v5805
      %v6355 = vunpack.c.l.b16 %v5806
      %v6356 = vunpack.c.h.b16 %v5806
      %v6357 = vunpack.c.l.b16 %v5807
      %v6358 = vunpack.c.h.b16 %v5807
      %v6359 = vunpack.c.l.b16 %v5808
      %v6360 = vunpack.c.h.b16 %v5808
      %v6361 = vunpack.c.l.b16 %v5809
      %v6362 = vunpack.c.h.b16 %v5809
      %v6363 = vunpack.c.l.b16 %v5810
      %v6364 = vunpack.c.h.b16 %v5810
      %v6365 = vunpack.c.l.b16 %v5811
      %v6366 = vunpack.c.h.b16 %v5811
      %v6367 = vunpack.c.l.b16 %v5812
      %v6368 = vunpack.c.h.b16 %v5812
      %v6369 = vunpack.c.l.b16 %v5813
      %v6370 = vunpack.c.h.b16 %v5813
      %v6371 = vunpack.c.l.b16 %v5814
      %v6372 = vunpack.c.h.b16 %v5814
      %v6373 = vunpack.c.l.b16 %v5815
      %v6374 = vunpack.c.h.b16 %v5815
      %v6375 = vunpack.c.l.b16 %v5816
      %v6376 = vunpack.c.h.b16 %v5816
      %v6377 = vunpack.c.l.b16 %v5817
      %v6378 = vunpack.c.h.b16 %v5817
      %v6379 = vunpack.c.l.b16 %v5818
      %v6380 = vunpack.c.h.b16 %v5818
      %v6381 = vunpack.c.l.b16 %v5819
      %v6382 = vunpack.c.h.b16 %v5819
      %v6383 = vunpack.c.l.b16 %v5820
      %v6384 = vunpack.c.h.b16 %v5820
      %v6385 = vunpack.c.l.b16 %v5821
      %v6386 = vunpack.c.h.b16 %v5821
      %v6387 = vunpack.c.l.b16 %v5822
      %v6388 = vunpack.c.h.b16 %v5822
      %v6389 = vunpack.c.l.b16 %v5823
      %v6390 = vunpack.c.h.b16 %v5823
      %v6391 = vunpack.c.l.b16 %v5824
      %v6392 = vunpack.c.h.b16 %v5824
      %v6393 = vunpack.c.l.b16 %v5825
      %v6394 = vunpack.c.h.b16 %v5825
      %v6395 = vunpack.c.l.b16 %v5826
      %v6396 = vunpack.c.h.b16 %v5826
      %v6397 = vunpack.c.l.b16 %v5827
      %v6398 = vunpack.c.h.b16 %v5827
      %v6399 = vunpack.c.l.b16 %v5828
      %v6400 = vunpack.c.h.b16 %v5828
      %v6401 = vunpack.c.l.b16 %v5829
      %v6402 = vunpack.c.h.b16 %v5829
      %v6403 = vunpack.c.l.b16 %v5830
      %v6404 = vunpack.c.h.b16 %v5830
      %v6405 = vunpack.c.l.b16 %v5831
      %v6406 = vunpack.c.h.b16 %v5831
      %v6407 = vunpack.c.l.b16 %v5832
      %v6408 = vunpack.c.h.b16 %v5832
      %v6409 = vunpack.c.l.b16 %v5833
      %v6410 = vunpack.c.h.b16 %v5833
      %v6411 = vunpack.c.l.b16 %v5834
      %v6412 = vunpack.c.h.b16 %v5834
      %v6413 = vunpack.c.l.b16 %v5835
      %v6414 = vunpack.c.h.b16 %v5835
      %v6415 = vunpack.c.l.b16 %v5836
      %v6416 = vunpack.c.h.b16 %v5836
      %v6417 = vunpack.c.l.b16 %v5837
      %v6418 = vunpack.c.h.b16 %v5837
      %v6419 = vunpack.c.l.b16 %v5838
      %v6420 = vunpack.c.h.b16 %v5838
      %v6421 = vunpack.c.l.b16 %v5839
      %v6422 = vunpack.c.h.b16 %v5839
      %v6423 = vunpack.c.l.b16 %v5840
      %v6424 = vunpack.c.h.b16 %v5840
      %v6425 = vunpack.c.l.b16 %v5841
      %v6426 = vunpack.c.h.b16 %v5841
      %v6427 = vunpack.c.l.b16 %v5842
      %v6428 = vunpack.c.h.b16 %v5842
      %v6429 = vunpack.c.l.b16 %v5843
      %v6430 = vunpack.c.h.b16 %v5843
      %v6431 = vunpack.c.l.b16 %v5844
      %v6432 = vunpack.c.h.b16 %v5844
      %v6433 = vunpack.c.l.b16 %v5845
      %v6434 = vunpack.c.h.b16 %v5845
      %v6435 = vunpack.c.l.b16 %v5846
      %v6436 = vunpack.c.h.b16 %v5846
      %v6437 = vunpack.c.l.b16 %v5847
      %v6438 = vunpack.c.h.b16 %v5847
      %v6439 = vunpack.c.l.b16 %v5848
      %v6440 = vunpack.c.h.b16 %v5848
      %v6441 = vunpack.c.l.b16 %v5849
      %v6442 = vunpack.c.h.b16 %v5849
      %v6443 = vunpack.c.l.b16 %v5850
      %v6444 = vunpack.c.h.b16 %v5850
      %v6445 = vunpack.c.l.b16 %v5851
      %v6446 = vunpack.c.h.b16 %v5851
      %v6447 = vunpack.c.l.b16 %v5852
      %v6448 = vunpack.c.h.b16 %v5852
      %v6449 = vunpack.c.l.b16 %v5853
      %v6450 = vunpack.c.h.b16 %v5853
      %v6451 = vunpack.c.l.b16 %v5854
      %v6452 = vunpack.c.h.b16 %v5854
      %v6453 = vunpack.c.l.b16 %v5855
      %v6454 = vunpack.c.h.b16 %v5855
      %v6455 = vunpack.c.l.b16 %v5856
      %v6456 = vunpack.c.h.b16 %v5856
      %v6457 = vunpack.c.l.b16 %v5857
      %v6458 = vunpack.c.h.b16 %v5857
      %v6459 = vunpack.c.l.b16 %v5858
      %v6460 = vunpack.c.h.b16 %v5858
      %v6461 = vunpack.c.l.b16 %v5859
      %v6462 = vunpack.c.h.b16 %v5859
      %v6463 = vunpack.c.l.b16 %v5860
      %v6464 = vunpack.c.h.b16 %v5860
      %v6465 = vunpack.c.l.b16 %v5861
      %v6466 = vunpack.c.h.b16 %v5861
      %v6467 = vunpack.c.l.b16 %v5862
      %v6468 = vunpack.c.h.b16 %v5862
      %v6469 = vunpack.c.l.b16 %v5863
      %v6470 = vunpack.c.h.b16 %v5863
      %v6471 = vunpack.c.l.b16 %v5864
      %v6472 = vunpack.c.h.b16 %v5864
      %v6473 = vunpack.c.l.b16 %v5865
      %v6474 = vunpack.c.h.b16 %v5865
      %v6475 = vunpack.c.l.b16 %v5866
      %v6476 = vunpack.c.h.b16 %v5866
      %v6477 = vunpack.c.l.b16 %v5867
      %v6478 = vunpack.c.h.b16 %v5867
      %v6479 = vunpack.c.l.b16 %v5868
      %v6480 = vunpack.c.h.b16 %v5868
      %v6481 = vunpack.c.l.b16 %v5869
      %v6482 = vunpack.c.h.b16 %v5869
      %v6483 = vunpack.c.l.b16 %v5870
      %v6484 = vunpack.c.h.b16 %v5870
      %v6485 = vunpack.c.l.b16 %v5871
      %v6486 = vunpack.c.h.b16 %v5871
      %v6487 = vunpack.c.l.b16 %v5872
      %v6488 = vunpack.c.h.b16 %v5872
      %v6489 = vunpack.c.l.b16 %v5873
      %v6490 = vunpack.c.h.b16 %v5873
      %v6491 = vunpack.c.l.b16 %v5874
      %v6492 = vunpack.c.h.b16 %v5874
      %v6493 = vunpack.c.l.b16 %v5875
      %v6494 = vunpack.c.h.b16 %v5875
      %v6495 = vunpack.c.l.b16 %v5876
      %v6496 = vunpack.c.h.b16 %v5876
      %v6497 = vunpack.c.l.b16 %v5877
      %v6498 = vunpack.c.h.b16 %v5877
      %v6499 = vunpack.c.l.b16 %v5878
      %v6500 = vunpack.c.h.b16 %v5878
      %v6501 = vunpack.c.l.b16 %v5879
      %v6502 = vunpack.c.h.b16 %v5879
      %v6503 = vunpack.c.l.b16 %v5880
      %v6504 = vunpack.c.h.b16 %v5880
      %v6505 = vunpack.c.l.b16 %v5881
      %v6506 = vunpack.c.h.b16 %v5881
      %v6507 = vunpack.c.l.b16 %v5882
      %v6508 = vunpack.c.h.b16 %v5882
      %v6509 = vunpack.c.l.b16 %v5883
      %v6510 = vunpack.c.h.b16 %v5883
      %v6511 = vunpack.c.l.b16 %v5884
      %v6512 = vunpack.c.h.b16 %v5884
      %v6513 = vunpack.c.l.b16 %v5885
      %v6514 = vunpack.c.h.b16 %v5885
      %v6515 = vunpack.c.l.b16 %v5886
      %v6516 = vunpack.c.h.b16 %v5886
      %v6517 = vunpack.c.l.b16 %v5887
      %v6518 = vunpack.c.h.b16 %v5887
      %v6519 = vunpack.c.l.b16 %v5888
      %v6520 = vunpack.c.h.b16 %v5888
      %v6521 = vunpack.c.l.b16 %v5889
      %v6522 = vunpack.c.h.b16 %v5889
      %v6523 = vunpack.c.l.b16 %v5890
      %v6524 = vunpack.c.h.b16 %v5890
      %v6525 = vunpack.c.l.b16 %v5891
      %v6526 = vunpack.c.h.b16 %v5891
      %v6527 = vunpack.c.l.b16 %v5892
      %v6528 = vunpack.c.h.b16 %v5892
      %v6529 = vunpack.c.l.b16 %v5893
      %v6530 = vunpack.c.h.b16 %v5893
      %v6531 = vunpack.c.l.b16 %v5894
      %v6532 = vunpack.c.h.b16 %v5894
      %v6533 = vunpack.c.l.b16 %v5895
      %v6534 = vunpack.c.h.b16 %v5895
      %v6535 = vunpack.c.l.b16 %v5896
      %v6536 = vunpack.c.h.b16 %v5896
      %v6537 = vunpack.c.l.b16 %v5897
      %v6538 = vunpack.c.h.b16 %v5897
      %v6539 = vunpack.c.l.b16 %v5898
      %v6540 = vunpack.c.h.b16 %v5898
      %v6541 = vunpack.c.l.b16 %v5899
      %v6542 = vunpack.c.h.b16 %v5899
      %v6543 = vunpack.c.l.b16 %v5900
      %v6544 = vunpack.c.h.b16 %v5900
      %v6545 = vunpack.c.l.b16 %v5901
      %v6546 = vunpack.c.h.b16 %v5901
      %v6547 = vunpack.c.l.b16 %v5902
      %v6548 = vunpack.c.h.b16 %v5902
      %v6549 = vunpack.c.l.b16 %v5903
      %v6550 = vunpack.c.h.b16 %v5903
      %v6551 = vunpack.c.l.b16 %v5904
      %v6552 = vunpack.c.h.b16 %v5904
      %v6553 = vunpack.c.l.b16 %v5905
      %v6554 = vunpack.c.h.b16 %v5905
      %v6555 = vunpack.c.l.b16 %v5906
      %v6556 = vunpack.c.h.b16 %v5906
      %v6557 = vunpack.c.l.b16 %v5907
      %v6558 = vunpack.c.h.b16 %v5907
      %v6559 = vunpack.c.l.b16 %v5908
      %v6560 = vunpack.c.h.b16 %v5908
      %v6561 = vunpack.c.l.b16 %v5909
      %v6562 = vunpack.c.h.b16 %v5909
      %v6563 = vunpack.c.l.b16 %v5910
      %v6564 = vunpack.c.h.b16 %v5910
      %v6565 = vunpack.c.l.b16 %v5911
      %v6566 = vunpack.c.h.b16 %v5911
      %v6567 = vunpack.c.l.b16 %v5912
      %v6568 = vunpack.c.h.b16 %v5912
      %v6569 = vunpack.c.l.b16 %v5913
      %v6570 = vunpack.c.h.b16 %v5913
      %v6571 = vunpack.c.l.b16 %v5914
      %v6572 = vunpack.c.h.b16 %v5914
      %v6573 = vunpack.c.l.b16 %v5915
      %v6574 = vunpack.c.h.b16 %v5915
      %v6575 = vunpack.c.l.b16 %v5916
      %v6576 = vunpack.c.h.b16 %v5916
      %v6577 = vunpack.c.l.b16 %v5917
      %v6578 = vunpack.c.h.b16 %v5917
      %v6579 = vunpack.c.l.b16 %v5918
      %v6580 = vunpack.c.h.b16 %v5918
      %v6581 = vunpack.c.l.b16 %v5919
      %v6582 = vunpack.c.h.b16 %v5919
      %v6583 = vunpack.c.l.b16 %v5920
      %v6584 = vunpack.c.h.b16 %v5920
      %v6585 = vunpack.c.l.b16 %v5921
      %v6586 = vunpack.c.h.b16 %v5921
      %v6587 = vunpack.c.l.b16 %v5922
      %v6588 = vunpack.c.h.b16 %v5922
      %v6589 = vunpack.c.l.b16 %v5923
      %v6590 = vunpack.c.h.b16 %v5923
      %v6591 = vunpack.c.l.b16 %v5924
      %v6592 = vunpack.c.h.b16 %v5924
      %v6593 = vunpack.c.l.b16 %v5925
      %v6594 = vunpack.c.h.b16 %v5925
      %v6595 = vunpack.c.l.b16 %v5926
      %v6596 = vunpack.c.h.b16 %v5926
      %v6597 = vunpack.c.l.b16 %v5927
      %v6598 = vunpack.c.h.b16 %v5927
      %v6599 = vunpack.c.l.b16 %v5928
      %v6600 = vunpack.c.h.b16 %v5928
      %v6601 = vunpack.c.l.b16 %v5929
      %v6602 = vunpack.c.h.b16 %v5929
      %v6603 = vpack.c.b16 %v6159, %v6155
      %v6604 = vpack.c.b16 %v6160, %v6156
      %v6605 = vpack.c.b16 %v6161, %v6157
      %v6606 = vpack.c.b16 %v6162, %v6158
      %v6607 = vpack.c.b16 %v6167, %v6163
      %v6608 = vpack.c.b16 %v6168, %v6164
      %v6609 = vpack.c.b16 %v6169, %v6165
      %v6610 = vpack.c.b16 %v6170, %v6166
      %v6611 = vpack.c.b16 %v6175, %v6171
      %v6612 = vpack.c.b16 %v6176, %v6172
      %v6613 = vpack.c.b16 %v6177, %v6173
      %v6614 = vpack.c.b16 %v6178, %v6174
      %v6615 = vpack.c.b16 %v6183, %v6179
      %v6616 = vpack.c.b16 %v6184, %v6180
      %v6617 = vpack.c.b16 %v6185, %v6181
      %v6618 = vpack.c.b16 %v6186, %v6182
      %v6619 = vpack.c.b16 %v6191, %v6187
      %v6620 = vpack.c.b16 %v6192, %v6188
      %v6621 = vpack.c.b16 %v6193, %v6189
      %v6622 = vpack.c.b16 %v6194, %v6190
      %v6623 = vpack.c.b16 %v6199, %v6195
      %v6624 = vpack.c.b16 %v6200, %v6196
      %v6625 = vpack.c.b16 %v6201, %v6197
      %v6626 = vpack.c.b16 %v6202, %v6198
      %v6627 = vpack.c.b16 %v6207, %v6203
      %v6628 = vpack.c.b16 %v6208, %v6204
      %v6629 = vpack.c.b16 %v6209, %v6205
      %v6630 = vpack.c.b16 %v6210, %v6206
      %v6631 = vpack.c.b16 %v6215, %v6211
      %v6632 = vpack.c.b16 %v6216, %v6212
      %v6633 = vpack.c.b16 %v6217, %v6213
      %v6634 = vpack.c.b16 %v6218, %v6214
      %v6635 = vpack.c.b16 %v6223, %v6219
      %v6636 = vpack.c.b16 %v6224, %v6220
      %v6637 = vpack.c.b16 %v6225, %v6221
      %v6638 = vpack.c.b16 %v6226, %v6222
      %v6639 = vpack.c.b16 %v6231, %v6227
      %v6640 = vpack.c.b16 %v6232, %v6228
      %v6641 = vpack.c.b16 %v6233, %v6229
      %v6642 = vpack.c.b16 %v6234, %v6230
      %v6643 = vpack.c.b16 %v6239, %v6235
      %v6644 = vpack.c.b16 %v6240, %v6236
      %v6645 = vpack.c.b16 %v6241, %v6237
      %v6646 = vpack.c.b16 %v6242, %v6238
      %v6647 = vpack.c.b16 %v6247, %v6243
      %v6648 = vpack.c.b16 %v6248, %v6244
      %v6649 = vpack.c.b16 %v6249, %v6245
      %v6650 = vpack.c.b16 %v6250, %v6246
      %v6651 = vpack.c.b16 %v6255, %v6251
      %v6652 = vpack.c.b16 %v6256, %v6252
      %v6653 = vpack.c.b16 %v6257, %v6253
      %v6654 = vpack.c.b16 %v6258, %v6254
      %v6655 = vpack.c.b16 %v6263, %v6259
      %v6656 = vpack.c.b16 %v6264, %v6260
      %v6657 = vpack.c.b16 %v6265, %v6261
      %v6658 = vpack.c.b16 %v6266, %v6262
      %v6659 = vpack.c.b16 %v6271, %v6267
      %v6660 = vpack.c.b16 %v6272, %v6268
      %v6661 = vpack.c.b16 %v6273, %v6269
      %v6662 = vpack.c.b16 %v6274, %v6270
      %v6663 = vpack.c.b16 %v6279, %v6275
      %v6664 = vpack.c.b16 %v6280, %v6276
      %v6665 = vpack.c.b16 %v6281, %v6277
      %v6666 = vpack.c.b16 %v6282, %v6278
      %v6667 = vpack.c.b16 %v6287, %v6283
      %v6668 = vpack.c.b16 %v6288, %v6284
      %v6669 = vpack.c.b16 %v6289, %v6285
      %v6670 = vpack.c.b16 %v6290, %v6286
      %v6671 = vpack.c.b16 %v6295, %v6291
      %v6672 = vpack.c.b16 %v6296, %v6292
      %v6673 = vpack.c.b16 %v6297, %v6293
      %v6674 = vpack.c.b16 %v6298, %v6294
      %v6675 = vpack.c.b16 %v6303, %v6299
      %v6676 = vpack.c.b16 %v6304, %v6300
      %v6677 = vpack.c.b16 %v6305, %v6301
      %v6678 = vpack.c.b16 %v6306, %v6302
      %v6679 = vpack.c.b16 %v6311, %v6307
      %v6680 = vpack.c.b16 %v6312, %v6308
      %v6681 = vpack.c.b16 %v6313, %v6309
      %v6682 = vpack.c.b16 %v6314, %v6310
      %v6683 = vpack.c.b16 %v6319, %v6315
      %v6684 = vpack.c.b16 %v6320, %v6316
      %v6685 = vpack.c.b16 %v6321, %v6317
      %v6686 = vpack.c.b16 %v6322, %v6318
      %v6687 = vpack.c.b16 %v6327, %v6323
      %v6688 = vpack.c.b16 %v6328, %v6324
      %v6689 = vpack.c.b16 %v6329, %v6325
      %v6690 = vpack.c.b16 %v6330, %v6326
      %v6691 = vpack.c.b16 %v6335, %v6331
      %v6692 = vpack.c.b16 %v6336, %v6332
      %v6693 = vpack.c.b16 %v6337, %v6333
      %v6694 = vpack.c.b16 %v6338, %v6334
      %v6695 = vpack.c.b16 %v6343, %v6339
      %v6696 = vpack.c.b16 %v6344, %v6340
      %v6697 = vpack.c.b16 %v6345, %v6341
      %v6698 = vpack.c.b16 %v6346, %v6342
      %v6699 = vpack.c.b16 %v6351, %v6347
      %v6700 = vpack.c.b16 %v6352, %v6348
      %v6701 = vpack.c.b16 %v6353, %v6349
      %v6702 = vpack.c.b16 %v6354, %v6350
      %v6703 = vpack.c.b16 %v6359, %v6355
      %v6704 = vpack.c.b16 %v6360, %v6356
      %v6705 = vpack.c.b16 %v6361, %v6357
      %v6706 = vpack.c.b16 %v6362, %v6358
      %v6707 = vpack.c.b16 %v6367, %v6363
      %v6708 = vpack.c.b16 %v6368, %v6364
      %v6709 = vpack.c.b16 %v6369, %v6365
      %v6710 = vpack.c.b16 %v6370, %v6366
      %v6711 = vpack.c.b16 %v6375, %v6371
      %v6712 = vpack.c.b16 %v6376, %v6372
      %v6713 = vpack.c.b16 %v6377, %v6373
      %v6714 = vpack.c.b16 %v6378, %v6374
      %v6715 = vpack.c.b16 %v6383, %v6379
      %v6716 = vpack.c.b16 %v6384, %v6380
      %v6717 = vpack.c.b16 %v6385, %v6381
      %v6718 = vpack.c.b16 %v6386, %v6382
      %v6719 = vpack.c.b16 %v6391, %v6387
      %v6720 = vpack.c.b16 %v6392, %v6388
      %v6721 = vpack.c.b16 %v6393, %v6389
      %v6722 = vpack.c.b16 %v6394, %v6390
      %v6723 = vpack.c.b16 %v6399, %v6395
      %v6724 = vpack.c.b16 %v6400, %v6396
      %v6725 = vpack.c.b16 %v6401, %v6397
      %v6726 = vpack.c.b16 %v6402, %v6398
      %v6727 = vpack.c.b16 %v6407, %v6403
      %v6728 = vpack.c.b16 %v6408, %v6404
      %v6729 = vpack.c.b16 %v6409, %v6405
      %v6730 = vpack.c.b16 %v6410, %v6406
      %v6731 = vpack.c.b16 %v6415, %v6411
      %v6732 = vpack.c.b16 %v6416, %v6412
      %v6733 = vpack.c.b16 %v6417, %v6413
      %v6734 = vpack.c.b16 %v6418, %v6414
      %v6735 = vpack.c.b16 %v6423, %v6419
      %v6736 = vpack.c.b16 %v6424, %v6420
      %v6737 = vpack.c.b16 %v6425, %v6421
      %v6738 = vpack.c.b16 %v6426, %v6422
      %v6739 = vpack.c.b16 %v6431, %v6427
      %v6740 = vpack.c.b16 %v6432, %v6428
      %v6741 = vpack.c.b16 %v6433, %v6429
      %v6742 = vpack.c.b16 %v6434, %v6430
      %v6743 = vpack.c.b16 %v6439, %v6435
      %v6744 = vpack.c.b16 %v6440, %v6436
      %v6745 = vpack.c.b16 %v6441, %v6437
      %v6746 = vpack.c.b16 %v6442, %v6438
      %v6747 = vpack.c.b16 %v6447, %v6443
      %v6748 = vpack.c.b16 %v6448, %v6444
      %v6749 = vpack.c.b16 %v6449, %v6445
      %v6750 = vpack.c.b16 %v6450, %v6446
      %v6751 = vpack.c.b16 %v6455, %v6451
      %v6752 = vpack.c.b16 %v6456, %v6452
      %v6753 = vpack.c.b16 %v6457, %v6453
      %v6754 = vpack.c.b16 %v6458, %v6454
      %v6755 = vpack.c.b16 %v6463, %v6459
      %v6756 = vpack.c.b16 %v6464, %v6460
      %v6757 = vpack.c.b16 %v6465, %v6461
      %v6758 = vpack.c.b16 %v6466, %v6462
      %v6759 = vpack.c.b16 %v6471, %v6467
      %v6760 = vpack.c.b16 %v6472, %v6468
      %v6761 = vpack.c.b16 %v6473, %v6469
      %v6762 = vpack.c.b16 %v6474, %v6470
      %v6763 = vpack.c.b16 %v6479, %v6475
      %v6764 = vpack.c.b16 %v6480, %v6476
      %v6765 = vpack.c.b16 %v6481, %v6477
      %v6766 = vpack.c.b16 %v6482, %v6478
      %v6767 = vpack.c.b16 %v6487, %v6483
      %v6768 = vpack.c.b16 %v6488, %v6484
      %v6769 = vpack.c.b16 %v6489, %v6485
      %v6770 = vpack.c.b16 %v6490, %v6486
      %v6771 = vpack.c.b16 %v6495, %v6491
      %v6772 = vpack.c.b16 %v6496, %v6492
      %v6773 = vpack.c.b16 %v6497, %v6493
      %v6774 = vpack.c.b16 %v6498, %v6494
      %v6775 = vpack.c.b16 %v6503, %v6499
      %v6776 = vpack.c.b16 %v6504, %v6500
      %v6777 = vpack.c.b16 %v6505, %v6501
      %v6778 = vpack.c.b16 %v6506, %v6502
      %v6779 = vpack.c.b16 %v6511, %v6507
      %v6780 = vpack.c.b16 %v6512, %v6508
      %v6781 = vpack.c.b16 %v6513, %v6509
      %v6782 = vpack.c.b16 %v6514, %v6510
      %v6783 = vpack.c.b16 %v6519, %v6515
      %v6784 = vpack.c.b16 %v6520, %v6516
      %v6785 = vpack.c.b16 %v6521, %v6517
      %v6786 = vpack.c.b16 %v6522, %v6518
      %v6787 = vpack.c.b16 %v6527, %v6523
      %v6788 = vpack.c.b16 %v6528, %v6524
      %v6789 = vpack.c.b16 %v6529, %v6525
      %v6790 = vpack.c.b16 %v6530, %v6526
      %v6791 = vpack.c.b16 %v6535, %v6531
      %v6792 = vpack.c.b16 %v6536, %v6532
      %v6793 = vpack.c.b16 %v6537, %v6533
      %v6794 = vpack.c.b16 %v6538, %v6534
      %v6795 = vpack.c.b16 %v6543, %v6539
      %v6796 = vpack.c.b16 %v6544, %v6540
      %v6797 = vpack.c.b16 %v6545, %v6541
      %v6798 = vpack.c.b16 %v6546, %v6542
      %v6799 = vpack.c.b16 %v6551, %v6547
      %v6800 = vpack.c.b16 %v6552, %v6548
      %v6801 = vpack.c.b16 %v6553, %v6549
      %v6802 = vpack.c.b16 %v6554, %v6550
      %v6803 = vpack.c.b16 %v6559, %v6555
      %v6804 = vpack.c.b16 %v6560, %v6556
      %v6805 = vpack.c.b16 %v6561, %v6557
      %v6806 = vpack.c.b16 %v6562, %v6558
      %v6807 = vpack.c.b16 %v6567, %v6563
      %v6808 = vpack.c.b16 %v6568, %v6564
      %v6809 = vpack.c.b16 %v6569, %v6565
      %v6810 = vpack.c.b16 %v6570, %v6566
      %v6811 = vpack.c.b16 %v6575, %v6571
      %v6812 = vpack.c.b16 %v6576, %v6572
      %v6813 = vpack.c.b16 %v6577, %v6573
      %v6814 = vpack.c.b16 %v6578, %v6574
      %v6815 = vpack.c.b16 %v6583, %v6579
      %v6816 = vpack.c.b16 %v6584, %v6580
      %v6817 = vpack.c.b16 %v6585, %v6581
      %v6818 = vpack.c.b16 %v6586, %v6582
      %v6819 = vpack.c.b16 %v6591, %v6587
      %v6820 = vpack.c.b16 %v6592, %v6588
      %v6821 = vpack.c.b16 %v6593, %v6589
      %v6822 = vpack.c.b16 %v6594, %v6590
      %v6823 = vpack.c.b16 %v6599, %v6595
      %v6824 = vpack.c.b16 %v6600, %v6596
      %v6825 = vpack.c.b16 %v6601, %v6597
      %v6826 = vpack.c.b16 %v6602, %v6598
      %7052 = vst [vmem:[#allocation1] ss:$4 sm:$0xff] %v5930
      %v7053 = vld.sshfl [vmem:[#allocation1] sm:$0xff pattern:$0x73625140]
      %v7054 = vld.sshfl [vmem:[#allocation1 + $0x8] sm:$0xff pattern:$0x73625140]
      %v7055 = vld.sshfl [vmem:[#allocation1 + $0x10] sm:$0xff pattern:$0x73625140]
      %v7056 = vld.sshfl [vmem:[#allocation1 + $0x18] sm:$0xff pattern:$0x73625140]
      %7061 = vmatpush.bf16.msra.mxu0 %v6631
      %7062 = vmatpush.bf16.msra.mxu0 %v6627
      %7063 = vmatpush.bf16.msra.mxu0 %v6623
      %7064 = vmatpush.bf16.msra.mxu0 %v6619
      %7065 = vmatpush.bf16.msra.mxu0 %v6615
      %7066 = vmatpush.bf16.msra.mxu0 %v6611
      %7067 = vmatpush.bf16.msra.mxu0 %v6607
      %7068 = vmatpush.bf16.msra.mxu0 %v6603
      %7069 = vmatmul.bf16.gmra.mxu0 %v5699
      %v7070 = vpop.f32.mrf.mxu0
      %v7071 = vadd.f32 %v7053, %v7070
      %v7072 = vpop.f32.mrf.mxu0
      %7073 = vdwg.mxu0
      %7074 = vmatpush.bf16.msra.mxu0 %v6663
      %7075 = vmatpush.bf16.msra.mxu0 %v6659
      %7076 = vmatpush.bf16.msra.mxu0 %v6655
      %7077 = vmatpush.bf16.msra.mxu0 %v6651
      %7078 = vmatpush.bf16.msra.mxu0 %v6647
      %7079 = vmatpush.bf16.msra.mxu0 %v6643
      %7080 = vmatpush.bf16.msra.mxu0 %v6639
      %7081 = vmatpush.bf16.msra.mxu0 %v6635
      %7082 = vmatmul.bf16.gmra.mxu0 %v5700
      %v7083 = vpop.f32.mrf.mxu0
      %v7084 = vadd.f32 %v7071, %v7083
      %v7085 = vpop.f32.mrf.mxu0
      %7086 = vdwg.mxu0
      %7087 = vmatpush.bf16.msra.mxu0 %v6695
      %7088 = vmatpush.bf16.msra.mxu0 %v6691
      %7089 = vmatpush.bf16.msra.mxu0 %v6687
      %7090 = vmatpush.bf16.msra.mxu0 %v6683
      %7091 = vmatpush.bf16.msra.mxu0 %v6679
      %7092 = vmatpush.bf16.msra.mxu0 %v6675
      %7093 = vmatpush.bf16.msra.mxu0 %v6671
      %7094 = vmatpush.bf16.msra.mxu0 %v6667
      %7095 = vmatmul.bf16.gmra.mxu0 %v5701
      %v7096 = vpop.f32.mrf.mxu0
      %v7097 = vadd.f32 %v7084, %v7096
      %v7098 = vpop.f32.mrf.mxu0
      %7099 = vdwg.mxu0
      %7100 = vmatpush.bf16.msra.mxu0 %v6727
      %7101 = vmatpush.bf16.msra.mxu0 %v6723
      %7102 = vmatpush.bf16.msra.mxu0 %v6719
      %7103 = vmatpush.bf16.msra.mxu0 %v6715
      %7104 = vmatpush.bf16.msra.mxu0 %v6711
      %7105 = vmatpush.bf16.msra.mxu0 %v6707
      %7106 = vmatpush.bf16.msra.mxu0 %v6703
      %7107 = vmatpush.bf16.msra.mxu0 %v6699
      %7108 = vmatmul.bf16.gmra.mxu0 %v5702
      %v7109 = vpop.f32.mrf.mxu0
      %v7110 = vadd.f32 %v7097, %v7109
      %v7111 = vpop.f32.mrf.mxu0
      %7112 = vdwg.mxu0
      %7113 = vmatpush.bf16.msra.mxu0 %v6759
      %7114 = vmatpush.bf16.msra.mxu0 %v6755
      %7115 = vmatpush.bf16.msra.mxu0 %v6751
      %7116 = vmatpush.bf16.msra.mxu0 %v6747
      %7117 = vmatpush.bf16.msra.mxu0 %v6743
      %7118 = vmatpush.bf16.msra.mxu0 %v6739
      %7119 = vmatpush.bf16.msra.mxu0 %v6735
      %7120 = vmatpush.bf16.msra.mxu0 %v6731
      %7121 = vmatmul.bf16.gmra.mxu0 %v5703
      %v7122 = vpop.f32.mrf.mxu0
      %v7123 = vadd.f32 %v7110, %v7122
      %v7124 = vpop.f32.mrf.mxu0
      %7125 = vdwg.mxu0
      %7126 = vmatpush.bf16.msra.mxu0 %v6791
      %7127 = vmatpush.bf16.msra.mxu0 %v6787
      %7128 = vmatpush.bf16.msra.mxu0 %v6783
      %7129 = vmatpush.bf16.msra.mxu0 %v6779
      %7130 = vmatpush.bf16.msra.mxu0 %v6775
      %7131 = vmatpush.bf16.msra.mxu0 %v6771
      %7132 = vmatpush.bf16.msra.mxu0 %v6767
      %7133 = vmatpush.bf16.msra.mxu0 %v6763
      %7134 = vmatmul.bf16.gmra.mxu0 %v5704
      %v7135 = vpop.f32.mrf.mxu0
      %v7136 = vadd.f32 %v7123, %v7135
      %v7137 = vpop.f32.mrf.mxu0
      %7138 = vdwg.mxu0
      %7139 = vmatpush.bf16.msra.mxu0 %v6823
      %7140 = vmatpush.bf16.msra.mxu0 %v6819
      %7141 = vmatpush.bf16.msra.mxu0 %v6815
      %7142 = vmatpush.bf16.msra.mxu0 %v6811
      %7143 = vmatpush.bf16.msra.mxu0 %v6807
      %7144 = vmatpush.bf16.msra.mxu0 %v6803
      %7145 = vmatpush.bf16.msra.mxu0 %v6799
      %7146 = vmatpush.bf16.msra.mxu0 %v6795
      %7147 = vmatmul.bf16.gmra.mxu0 %v5705
      %v7148 = vpop.f32.mrf.mxu0
      %v7149 = vadd.f32 %v7136, %v7148
      %v7150 = vpop.f32.mrf.mxu0
      %7151 = vdwg.mxu0
      %7152 = vmatpush.bf16.msra.mxu0 %v6632
      %7153 = vmatpush.bf16.msra.mxu0 %v6628
      %7154 = vmatpush.bf16.msra.mxu0 %v6624
      %7155 = vmatpush.bf16.msra.mxu0 %v6620
      %7156 = vmatpush.bf16.msra.mxu0 %v6616
      %7157 = vmatpush.bf16.msra.mxu0 %v6612
      %7158 = vmatpush.bf16.msra.mxu0 %v6608
      %7159 = vmatpush.bf16.msra.mxu0 %v6604
      %7160 = vmatmul.bf16.gmra.mxu0 %v5699
      %v7161 = vpop.f32.mrf.mxu0
      %v7162 = vadd.f32 %v7054, %v7161
      %v7163 = vpop.f32.mrf.mxu0
      %7164 = vdwg.mxu0
      %7165 = vmatpush.bf16.msra.mxu0 %v6664
      %7166 = vmatpush.bf16.msra.mxu0 %v6660
      %7167 = vmatpush.bf16.msra.mxu0 %v6656
      %7168 = vmatpush.bf16.msra.mxu0 %v6652
      %7169 = vmatpush.bf16.msra.mxu0 %v6648
      %7170 = vmatpush.bf16.msra.mxu0 %v6644
      %7171 = vmatpush.bf16.msra.mxu0 %v6640
      %7172 = vmatpush.bf16.msra.mxu0 %v6636
      %7173 = vmatmul.bf16.gmra.mxu0 %v5700
      %v7174 = vpop.f32.mrf.mxu0
      %v7175 = vadd.f32 %v7162, %v7174
      %v7176 = vpop.f32.mrf.mxu0
      %7177 = vdwg.mxu0
      %7178 = vmatpush.bf16.msra.mxu0 %v6696
      %7179 = vmatpush.bf16.msra.mxu0 %v6692
      %7180 = vmatpush.bf16.msra.mxu0 %v6688
      %7181 = vmatpush.bf16.msra.mxu0 %v6684
      %7182 = vmatpush.bf16.msra.mxu0 %v6680
      %7183 = vmatpush.bf16.msra.mxu0 %v6676
      %7184 = vmatpush.bf16.msra.mxu0 %v6672
      %7185 = vmatpush.bf16.msra.mxu0 %v6668
      %7186 = vmatmul.bf16.gmra.mxu0 %v5701
      %v7187 = vpop.f32.mrf.mxu0
      %v7188 = vadd.f32 %v7175, %v7187
      %v7189 = vpop.f32.mrf.mxu0
      %7190 = vdwg.mxu0
      %7191 = vmatpush.bf16.msra.mxu0 %v6728
      %7192 = vmatpush.bf16.msra.mxu0 %v6724
      %7193 = vmatpush.bf16.msra.mxu0 %v6720
      %7194 = vmatpush.bf16.msra.mxu0 %v6716
      %7195 = vmatpush.bf16.msra.mxu0 %v6712
      %7196 = vmatpush.bf16.msra.mxu0 %v6708
      %7197 = vmatpush.bf16.msra.mxu0 %v6704
      %7198 = vmatpush.bf16.msra.mxu0 %v6700
      %7199 = vmatmul.bf16.gmra.mxu0 %v5702
      %v7200 = vpop.f32.mrf.mxu0
      %v7201 = vadd.f32 %v7188, %v7200
      %v7202 = vpop.f32.mrf.mxu0
      %7203 = vdwg.mxu0
      %7204 = vmatpush.bf16.msra.mxu0 %v6760
      %7205 = vmatpush.bf16.msra.mxu0 %v6756
      %7206 = vmatpush.bf16.msra.mxu0 %v6752
      %7207 = vmatpush.bf16.msra.mxu0 %v6748
      %7208 = vmatpush.bf16.msra.mxu0 %v6744
      %7209 = vmatpush.bf16.msra.mxu0 %v6740
      %7210 = vmatpush.bf16.msra.mxu0 %v6736
      %7211 = vmatpush.bf16.msra.mxu0 %v6732
      %7212 = vmatmul.bf16.gmra.mxu0 %v5703
      %v7213 = vpop.f32.mrf.mxu0
      %v7214 = vadd.f32 %v7201, %v7213
      %v7215 = vpop.f32.mrf.mxu0
      %7216 = vdwg.mxu0
      %7217 = vmatpush.bf16.msra.mxu0 %v6792
      %7218 = vmatpush.bf16.msra.mxu0 %v6788
      %7219 = vmatpush.bf16.msra.mxu0 %v6784
      %7220 = vmatpush.bf16.msra.mxu0 %v6780
      %7221 = vmatpush.bf16.msra.mxu0 %v6776
      %7222 = vmatpush.bf16.msra.mxu0 %v6772
      %7223 = vmatpush.bf16.msra.mxu0 %v6768
      %7224 = vmatpush.bf16.msra.mxu0 %v6764
      %7225 = vmatmul.bf16.gmra.mxu0 %v5704
      %v7226 = vpop.f32.mrf.mxu0
      %v7227 = vadd.f32 %v7214, %v7226
      %v7228 = vpop.f32.mrf.mxu0
      %7229 = vdwg.mxu0
      %7230 = vmatpush.bf16.msra.mxu0 %v6824
      %7231 = vmatpush.bf16.msra.mxu0 %v6820
      %7232 = vmatpush.bf16.msra.mxu0 %v6816
      %7233 = vmatpush.bf16.msra.mxu0 %v6812
      %7234 = vmatpush.bf16.msra.mxu0 %v6808
      %7235 = vmatpush.bf16.msra.mxu0 %v6804
      %7236 = vmatpush.bf16.msra.mxu0 %v6800
      %7237 = vmatpush.bf16.msra.mxu0 %v6796
      %7238 = vmatmul.bf16.gmra.mxu0 %v5705
      %v7239 = vpop.f32.mrf.mxu0
      %v7240 = vadd.f32 %v7227, %v7239
      %v7241 = vpop.f32.mrf.mxu0
      %7242 = vdwg.mxu0
      %7243 = vmatpush.bf16.msra.mxu0 %v6633
      %7244 = vmatpush.bf16.msra.mxu0 %v6629
      %7245 = vmatpush.bf16.msra.mxu0 %v6625
      %7246 = vmatpush.bf16.msra.mxu0 %v6621
      %7247 = vmatpush.bf16.msra.mxu0 %v6617
      %7248 = vmatpush.bf16.msra.mxu0 %v6613
      %7249 = vmatpush.bf16.msra.mxu0 %v6609
      %7250 = vmatpush.bf16.msra.mxu0 %v6605
      %7251 = vmatmul.bf16.gmra.mxu0 %v5699
      %v7252 = vpop.f32.mrf.mxu0
      %v7253 = vadd.f32 %v7055, %v7252
      %v7254 = vpop.f32.mrf.mxu0
      %7255 = vdwg.mxu0
      %7256 = vmatpush.bf16.msra.mxu0 %v6665
      %7257 = vmatpush.bf16.msra.mxu0 %v6661
      %7258 = vmatpush.bf16.msra.mxu0 %v6657
      %7259 = vmatpush.bf16.msra.mxu0 %v6653
      %7260 = vmatpush.bf16.msra.mxu0 %v6649
      %7261 = vmatpush.bf16.msra.mxu0 %v6645
      %7262 = vmatpush.bf16.msra.mxu0 %v6641
      %7263 = vmatpush.bf16.msra.mxu0 %v6637
      %7264 = vmatmul.bf16.gmra.mxu0 %v5700
      %v7265 = vpop.f32.mrf.mxu0
      %v7266 = vadd.f32 %v7253, %v7265
      %v7267 = vpop.f32.mrf.mxu0
      %7268 = vdwg.mxu0
      %7269 = vmatpush.bf16.msra.mxu0 %v6697
      %7270 = vmatpush.bf16.msra.mxu0 %v6693
      %7271 = vmatpush.bf16.msra.mxu0 %v6689
      %7272 = vmatpush.bf16.msra.mxu0 %v6685
      %7273 = vmatpush.bf16.msra.mxu0 %v6681
      %7274 = vmatpush.bf16.msra.mxu0 %v6677
      %7275 = vmatpush.bf16.msra.mxu0 %v6673
      %7276 = vmatpush.bf16.msra.mxu0 %v6669
      %7277 = vmatmul.bf16.gmra.mxu0 %v5701
      %v7278 = vpop.f32.mrf.mxu0
      %v7279 = vadd.f32 %v7266, %v7278
      %v7280 = vpop.f32.mrf.mxu0
      %7281 = vdwg.mxu0
      %7282 = vmatpush.bf16.msra.mxu0 %v6729
      %7283 = vmatpush.bf16.msra.mxu0 %v6725
      %7284 = vmatpush.bf16.msra.mxu0 %v6721
      %7285 = vmatpush.bf16.msra.mxu0 %v6717
      %7286 = vmatpush.bf16.msra.mxu0 %v6713
      %7287 = vmatpush.bf16.msra.mxu0 %v6709
      %7288 = vmatpush.bf16.msra.mxu0 %v6705
      %7289 = vmatpush.bf16.msra.mxu0 %v6701
      %7290 = vmatmul.bf16.gmra.mxu0 %v5702
      %v7291 = vpop.f32.mrf.mxu0
      %v7292 = vadd.f32 %v7279, %v7291
      %v7293 = vpop.f32.mrf.mxu0
      %7294 = vdwg.mxu0
      %7295 = vmatpush.bf16.msra.mxu0 %v6761
      %7296 = vmatpush.bf16.msra.mxu0 %v6757
      %7297 = vmatpush.bf16.msra.mxu0 %v6753
      %7298 = vmatpush.bf16.msra.mxu0 %v6749
      %7299 = vmatpush.bf16.msra.mxu0 %v6745
      %7300 = vmatpush.bf16.msra.mxu0 %v6741
      %7301 = vmatpush.bf16.msra.mxu0 %v6737
      %7302 = vmatpush.bf16.msra.mxu0 %v6733
      %7303 = vmatmul.bf16.gmra.mxu0 %v5703
      %v7304 = vpop.f32.mrf.mxu0
      %v7305 = vadd.f32 %v7292, %v7304
      %v7306 = vpop.f32.mrf.mxu0
      %7307 = vdwg.mxu0
      %7308 = vmatpush.bf16.msra.mxu0 %v6793
      %7309 = vmatpush.bf16.msra.mxu0 %v6789
      %7310 = vmatpush.bf16.msra.mxu0 %v6785
      %7311 = vmatpush.bf16.msra.mxu0 %v6781
      %7312 = vmatpush.bf16.msra.mxu0 %v6777
      %7313 = vmatpush.bf16.msra.mxu0 %v6773
      %7314 = vmatpush.bf16.msra.mxu0 %v6769
      %7315 = vmatpush.bf16.msra.mxu0 %v6765
      %7316 = vmatmul.bf16.gmra.mxu0 %v5704
      %v7317 = vpop.f32.mrf.mxu0
      %v7318 = vadd.f32 %v7305, %v7317
      %v7319 = vpop.f32.mrf.mxu0
      %7320 = vdwg.mxu0
      %7321 = vmatpush.bf16.msra.mxu0 %v6825
      %7322 = vmatpush.bf16.msra.mxu0 %v6821
      %7323 = vmatpush.bf16.msra.mxu0 %v6817
      %7324 = vmatpush.bf16.msra.mxu0 %v6813
      %7325 = vmatpush.bf16.msra.mxu0 %v6809
      %7326 = vmatpush.bf16.msra.mxu0 %v6805
      %7327 = vmatpush.bf16.msra.mxu0 %v6801
      %7328 = vmatpush.bf16.msra.mxu0 %v6797
      %7329 = vmatmul.bf16.gmra.mxu0 %v5705
      %v7330 = vpop.f32.mrf.mxu0
      %v7331 = vadd.f32 %v7318, %v7330
      %v7332 = vpop.f32.mrf.mxu0
      %7333 = vdwg.mxu0
      %7334 = vmatpush.bf16.msra.mxu0 %v6634
      %7335 = vmatpush.bf16.msra.mxu0 %v6630
      %7336 = vmatpush.bf16.msra.mxu0 %v6626
      %7337 = vmatpush.bf16.msra.mxu0 %v6622
      %7338 = vmatpush.bf16.msra.mxu0 %v6618
      %7339 = vmatpush.bf16.msra.mxu0 %v6614
      %7340 = vmatpush.bf16.msra.mxu0 %v6610
      %7341 = vmatpush.bf16.msra.mxu0 %v6606
      %7342 = vmatmul.bf16.gmra.mxu0 %v5699
      %v7343 = vpop.f32.mrf.mxu0
      %v7344 = vadd.f32 %v7056, %v7343
      %v7345 = vpop.f32.mrf.mxu0
      %7346 = vdwg.mxu0
      %7347 = vmatpush.bf16.msra.mxu0 %v6666
      %7348 = vmatpush.bf16.msra.mxu0 %v6662
      %7349 = vmatpush.bf16.msra.mxu0 %v6658
      %7350 = vmatpush.bf16.msra.mxu0 %v6654
      %7351 = vmatpush.bf16.msra.mxu0 %v6650
      %7352 = vmatpush.bf16.msra.mxu0 %v6646
      %7353 = vmatpush.bf16.msra.mxu0 %v6642
      %7354 = vmatpush.bf16.msra.mxu0 %v6638
      %7355 = vmatmul.bf16.gmra.mxu0 %v5700
      %v7356 = vpop.f32.mrf.mxu0
      %v7357 = vadd.f32 %v7344, %v7356
      %v7358 = vpop.f32.mrf.mxu0
      %7359 = vdwg.mxu0
      %7360 = vmatpush.bf16.msra.mxu0 %v6698
      %7361 = vmatpush.bf16.msra.mxu0 %v6694
      %7362 = vmatpush.bf16.msra.mxu0 %v6690
      %7363 = vmatpush.bf16.msra.mxu0 %v6686
      %7364 = vmatpush.bf16.msra.mxu0 %v6682
      %7365 = vmatpush.bf16.msra.mxu0 %v6678
      %7366 = vmatpush.bf16.msra.mxu0 %v6674
      %7367 = vmatpush.bf16.msra.mxu0 %v6670
      %7368 = vmatmul.bf16.gmra.mxu0 %v5701
      %v7369 = vpop.f32.mrf.mxu0
      %v7370 = vadd.f32 %v7357, %v7369
      %v7371 = vpop.f32.mrf.mxu0
      %7372 = vdwg.mxu0
      %7373 = vmatpush.bf16.msra.mxu0 %v6730
      %7374 = vmatpush.bf16.msra.mxu0 %v6726
      %7375 = vmatpush.bf16.msra.mxu0 %v6722
      %7376 = vmatpush.bf16.msra.mxu0 %v6718
      %7377 = vmatpush.bf16.msra.mxu0 %v6714
      %7378 = vmatpush.bf16.msra.mxu0 %v6710
      %7379 = vmatpush.bf16.msra.mxu0 %v6706
      %7380 = vmatpush.bf16.msra.mxu0 %v6702
      %7381 = vmatmul.bf16.gmra.mxu0 %v5702
      %v7382 = vpop.f32.mrf.mxu0
      %v7383 = vadd.f32 %v7370, %v7382
      %v7384 = vpop.f32.mrf.mxu0
      %7385 = vdwg.mxu0
      %7386 = vmatpush.bf16.msra.mxu0 %v6762
      %7387 = vmatpush.bf16.msra.mxu0 %v6758
      %7388 = vmatpush.bf16.msra.mxu0 %v6754
      %7389 = vmatpush.bf16.msra.mxu0 %v6750
      %7390 = vmatpush.bf16.msra.mxu0 %v6746
      %7391 = vmatpush.bf16.msra.mxu0 %v6742
      %7392 = vmatpush.bf16.msra.mxu0 %v6738
      %7393 = vmatpush.bf16.msra.mxu0 %v6734
      %7394 = vmatmul.bf16.gmra.mxu0 %v5703
      %v7395 = vpop.f32.mrf.mxu0
      %v7396 = vadd.f32 %v7383, %v7395
      %v7397 = vpop.f32.mrf.mxu0
      %7398 = vdwg.mxu0
      %7399 = vmatpush.bf16.msra.mxu0 %v6794
      %7400 = vmatpush.bf16.msra.mxu0 %v6790
      %7401 = vmatpush.bf16.msra.mxu0 %v6786
      %7402 = vmatpush.bf16.msra.mxu0 %v6782
      %7403 = vmatpush.bf16.msra.mxu0 %v6778
      %7404 = vmatpush.bf16.msra.mxu0 %v6774
      %7405 = vmatpush.bf16.msra.mxu0 %v6770
      %7406 = vmatpush.bf16.msra.mxu0 %v6766
      %7407 = vmatmul.bf16.gmra.mxu0 %v5704
      %v7408 = vpop.f32.mrf.mxu0
      %v7409 = vadd.f32 %v7396, %v7408
      %v7410 = vpop.f32.mrf.mxu0
      %7411 = vdwg.mxu0
      %7412 = vmatpush.bf16.msra.mxu0 %v6826
      %7413 = vmatpush.bf16.msra.mxu0 %v6822
      %7414 = vmatpush.bf16.msra.mxu0 %v6818
      %7415 = vmatpush.bf16.msra.mxu0 %v6814
      %7416 = vmatpush.bf16.msra.mxu0 %v6810
      %7417 = vmatpush.bf16.msra.mxu0 %v6806
      %7418 = vmatpush.bf16.msra.mxu0 %v6802
      %7419 = vmatpush.bf16.msra.mxu0 %v6798
      %7420 = vmatmul.bf16.gmra.mxu0 %v5705
      %v7421 = vpop.f32.mrf.mxu0
      %v7422 = vadd.f32 %v7409, %v7421
      %v7423 = vpop.f32.mrf.mxu0
      %7424 = vdwg.mxu0
      %vm7425 = vcmp.gt.f32.partialorder %v229, 0.5
      %vm7426 = vcmp.gt.f32.partialorder %v230, 0.5
      %vm7427 = vcmp.gt.f32.partialorder %v231, 0.5
      %vm7428 = vcmp.gt.f32.partialorder %v232, 0.5
      %v7429 = vsel %vm7425, 1, 0
      %v7430 = vsel %vm7426, 1, 0
      %v7431 = vsel %vm7427, 1, 0
      %v7432 = vsel %vm7428, 1, 0
      %v7433 = vcvt.s32.f32 %v7429
      %v7434 = vcvt.s32.f32 %v7430
      %v7435 = vcvt.s32.f32 %v7431
      %v7436 = vcvt.s32.f32 %v7432
      %v7437 = vmul.f32 %v229, 0.9048374
      %v7438 = vmul.f32 %v230, 0.9048374
      %v7439 = vmul.f32 %v231, 0.9048374
      %v7440 = vmul.f32 %v232, 0.9048374
      %v7441 = vadd.f32 %v7437, %v7149
      %v7442 = vadd.f32 %v7438, %v7240
      %v7443 = vadd.f32 %v7439, %v7331
      %v7444 = vadd.f32 %v7440, %v7422
      %v7445 = vmul.f32 %v7433, 0.5
      %v7446 = vmul.f32 %v7434, 0.5
      %v7447 = vmul.f32 %v7435, 0.5
      %v7448 = vmul.f32 %v7436, 0.5
      %v7449 = vsub.f32 %v7441, %v7445
      %v7450 = vsub.f32 %v7442, %v7446
      %v7451 = vsub.f32 %v7443, %v7447
      %v7452 = vsub.f32 %v7444, %v7448
      %vm7453 = vcmp.gt.f32.partialorder %v7449, 0.5
      %vm7454 = vcmp.gt.f32.partialorder %v7450, 0.5
      %vm7455 = vcmp.gt.f32.partialorder %v7451, 0.5
      %vm7456 = vcmp.gt.f32.partialorder %v7452, 0.5
      %s7457 = smul.u32 %s204, 2
      %s7458 = scalar_lea.vmem [#allocation20], %s7457
      %7459 = vst [vmem:[%s7458] sm:$0x3] %v2998
      %v7460 = vsel %vm7453, 1, 0
      %v7461 = vsel %vm7454, 1, 0
      %v7462 = vsel %vm7455, 1, 0
      %v7463 = vsel %vm7456, 1, 0
      %v7464 = vcvt.s32.f32 %v7460
      %v7465 = vcvt.s32.f32 %v7461
      %v7466 = vcvt.s32.f32 %v7462
      %v7467 = vcvt.s32.f32 %v7463
      %v7472 = vrot.slane %v7465, 6
      %v7473 = vrot.slane %v7466, 4
      %v7474 = vrot.slane %v7467, 2
      %vm7475 = vcmask 1041408
      %v7476 = vsel %vm7475, %v7464, %v7472
      %vm7477 = vcmask 1045508
      %v7478 = vsel %vm7477, %v7473, %v7474
      %vm7479 = vcmask 1043456
      %v7480 = vsel %vm7479, %v7476, %v7478
      %s7482 = smul.u32 %s204, 4
      %s7483 = smul.addr %s7482, 2
      %s7484 = scalar_lea.vmem [#allocation21], %s7483
      %7485 = vst [vmem:[%s7484] sm:$0xff] %v7480
    $region94: #{tpu_custom_call.1} parent=1 // loop_footer
      %s208 = sadd.s32 1, %s204
    $region95: #{tpu_custom_call.1} parent=1 // loop_footer_branch
      %203 = sbr.rel target = $region91
    $region96: #{tpu_custom_call.1} parent=1 // loop_exit
      _
    // Predicated region
    $region97: #{tpu_custom_call.1} parent=1 // pred_check
      _
    $region98: #{tpu_custom_call.1} parent=1 // pred_check_branch
      %7487 = sbr.rel (0) target = $region100
    $region99: #{tpu_custom_call.1} parent=1 // pred_region
      %7489 = vsyncadd [#allocation4], 0
      %s7490 = sshll.u32 [#allocation20], 4
      %s7491 = int_to_ptr.vmem [resolvable:$true] %s7490
      %s7492 = sshll.u32 %s11, 4
      %s7493 = int_to_ptr.hbm [resolvable:$true] %s7492
      %7498 = dma.vmem_to_hbm [thread:$0]  %s7491, 256, %s7493, [#allocation4], 32, 32, 2
    $region100: #{tpu_custom_call.1} parent=1 // pred_fallthru
      _
    // Predicated region
    $region101: #{tpu_custom_call.1} parent=1 // pred_check
      _
    $region102: #{tpu_custom_call.1} parent=1 // pred_check_branch
      %7500 = sbr.rel (0) target = $region104
    $region103: #{tpu_custom_call.1} parent=1 // pred_region
      %7502 = vsyncadd [#allocation22], 0
      %s7503 = sshll.u32 [#allocation21], 4
      %s7504 = int_to_ptr.vmem [resolvable:$true] %s7503
      %s7505 = sshll.u32 %s12, 4
      %s7506 = int_to_ptr.hbm [resolvable:$true] %s7505
      %7511 = dma.vmem_to_hbm [thread:$0]  %s7504, 1024, %s7506, [#allocation22], 128, 128, 8
    $region104: #{tpu_custom_call.1} parent=1 // pred_fallthru
      _
    // Predicated region
    $region105: #{tpu_custom_call.1} parent=1 // pred_check
      _
    $region106: #{tpu_custom_call.1} parent=1 // pred_check_branch
      %7513 = sbr.rel (0) target = $region108
    $region107: #{tpu_custom_call.1} parent=1 // pred_region
      %7515 = dma.done [#allocation4], 256
    $region108: #{tpu_custom_call.1} parent=1 // pred_fallthru
      _
    // Predicated region
    $region109: #{tpu_custom_call.1} parent=1 // pred_check
      _
    $region110: #{tpu_custom_call.1} parent=1 // pred_check_branch
      %7517 = sbr.rel (0) target = $region112
    $region111: #{tpu_custom_call.1} parent=1 // pred_region
      %7519 = dma.done [#allocation22], 1024
    $region112: #{tpu_custom_call.1} parent=1 // pred_fallthru
      _
    %7520 = vsyncpa [#allocation3], 1
    %7521 = vsyncpa [#allocation6], 1
    %7522 = vsyncpa [#allocation9], 1
    %7523 = vsyncpa [#allocation12], 1
    %7524 = vsyncpa [#allocation15], 1
    %7525 = vsyncpa [#allocation18], 1
    %7526 = vsyncpa [#allocation4], 1
    %7527 = vsyncpa [#allocation22], 1

</llo_original>
